<compile_context>
chip_gen: v7x
topology: tpu7x:2x2x1
jax: 0.10.0
libtpu: 0.0.40
codegen_flags: <defaults>
</compile_context>

<pallas_src>
import functools

import jax
import jax.numpy as jnp
from jax import lax
from jax.experimental import pallas as pl
from jax.experimental.pallas import tpu as pltpu


LANE = 128      # TPU lane width (last-dim tiling quantum)
SUBLANE = 8     # TPU sublane quantum (second-to-last dim)


def _round_up(x, m):
    return (x + m - 1) // m * m


def _pick_tile(total, quantum, max_tile):
    """Largest divisor of `total` that is a multiple of `quantum` and <= max_tile."""
    best = quantum
    for t in range(quantum, min(total, max_tile) + 1, quantum):
        if total % t == 0:
            best = t
    return best


# ----------------------------- Pallas kernels ------------------------------

def _matmul_kernel(a_ref, w_ref, b_ref, o_ref, acc_ref, *, relu):
    """K-tiled GEMM with f32 VMEM accumulator; bias (+ReLU) fused at finalize."""
    k = pl.program_id(2)

    @pl.when(k == 0)
    def _():
        acc_ref[...] = jnp.zeros_like(acc_ref)

    acc_ref[...] += jnp.dot(a_ref[...], w_ref[...],
                            preferred_element_type=jnp.float32)

    @pl.when(k == pl.num_programs(2) - 1)
    def _():
        out = acc_ref[...] + b_ref[...]          # (1, tn) broadcasts over rows
        if relu:
            out = jnp.maximum(out, 0.0)
        o_ref[...] = out.astype(o_ref.dtype)


def matmul_bias_act(a, w, b, *, relu):
    """a: (M, K) float, w: (Kpad, Npad) bf16 (zero-padded), b: (1, Npad) f32.

    Returns (M, Npad) f32.  Pads M to a sublane-friendly tile and K to the
    weight's padded K; output lane dim (Npad) is already a multiple of 128.
    """
    M, K = a.shape
    Kpad, Npad = w.shape

    tm = min(256, _round_up(M, SUBLANE))
    Mpad = _round_up(M, tm)
    tk = _pick_tile(Kpad, LANE, 512)
    tn = _pick_tile(Npad, LANE, 256)

    a = a.astype(jnp.bfloat16)
    if Mpad != M or Kpad != K:
        a = jnp.pad(a, ((0, Mpad - M), (0, Kpad - K)))

    grid = (Mpad // tm, Npad // tn, Kpad // tk)
    out = pl.pallas_call(
        functools.partial(_matmul_kernel, relu=relu),
        grid=grid,
        in_specs=[
            pl.BlockSpec((tm, tk), lambda i, j, k: (i, k)),
            pl.BlockSpec((tk, tn), lambda i, j, k: (k, j)),
            pl.BlockSpec((1, tn), lambda i, j, k: (0, j)),
        ],
        out_specs=pl.BlockSpec((tm, tn), lambda i, j, k: (i, j)),
        out_shape=jax.ShapeDtypeStruct((Mpad, Npad), jnp.float32),
        scratch_shapes=[pltpu.VMEM((tm, tn), jnp.float32)],
        compiler_params=pltpu.CompilerParams(
            dimension_semantics=("parallel", "parallel", "arbitrary")),
    )(a, w, b)
    return out[:M]


def _pool3x3_dense_kernel(x_ref, o_ref):
    """Dense (stride-1) 3x3 max over the NHWC tile; only unit-stride slices."""
    hd = x_ref.shape[1] - 2
    wd = x_ref.shape[2] - 2
    m = x_ref[:, 0:hd, 0:wd, :]
    for dh in range(3):
        for dw in range(3):
            if dh == 0 and dw == 0:
                continue
            m = jnp.maximum(m, x_ref[:, dh:dh + hd, dw:dw + wd, :])
    o_ref[...] = m


def maxpool2d(x_nhwc):
    """PyTorch MaxPool2d(kernel_size=3, stride=2), floor mode.

    One Pallas kernel computes the dense 3x3 max (lane-dense C); the stride-2
    subsample is a single XLA strided slice of the dense map.
    """
    N, H, W, C = x_nhwc.shape
    Ho = (H - 3) // 2 + 1
    Wo = (W - 3) // 2 + 1
    dense = pl.pallas_call(
        _pool3x3_dense_kernel,
        grid=(N,),
        in_specs=[pl.BlockSpec((1, H, W, C), lambda n: (n, 0, 0, 0))],
        out_specs=pl.BlockSpec((1, H - 2, W - 2, C), lambda n: (n, 0, 0, 0)),
        out_shape=jax.ShapeDtypeStruct((N, H - 2, W - 2, C), x_nhwc.dtype),
        compiler_params=pltpu.CompilerParams(dimension_semantics=("parallel",)),
    )(x_nhwc)
    return dense[:, : 2 * Ho : 2, : 2 * Wo : 2, :]


def _classifier_kernel(x_ref, w1_ref, b1_ref, w2_ref, b2_ref, o_ref, h_ref):
    """Fused fc1 + bias + ReLU -> fc2 + bias; intermediate stays in VMEM."""
    h = jnp.dot(x_ref[...], w1_ref[...], preferred_element_type=jnp.float32)
    h = jnp.maximum(h + b1_ref[...], 0.0)
    h_ref[...] = h.astype(h_ref.dtype)                      # (M, 256) in VMEM
    o = jnp.dot(h_ref[...], w2_ref[...], preferred_element_type=jnp.float32)
    o_ref[...] = (o + b2_ref[...]).astype(o_ref.dtype)


def classifier_pallas(x, w1, b1, w2, b2):
    """x: (M, K); w1: (Kpad, 256) bf16; w2: (256, 256) bf16; biases (1, 256) f32."""
    M, K = x.shape
    Kp, Hd = w1.shape
    Nout = w2.shape[1]
    Mp = _round_up(M, SUBLANE)

    xb = x.astype(jnp.bfloat16)
    if Mp != M or Kp != K:
        xb = jnp.pad(xb, ((0, Mp - M), (0, Kp - K)))

    out = pl.pallas_call(
        _classifier_kernel,
        grid=(1,),
        in_specs=[
            pl.BlockSpec((Mp, Kp), lambda i: (0, 0)),
            pl.BlockSpec((Kp, Hd), lambda i: (0, 0)),
            pl.BlockSpec((1, Hd), lambda i: (0, 0)),
            pl.BlockSpec((Hd, Nout), lambda i: (0, 0)),
            pl.BlockSpec((1, Nout), lambda i: (0, 0)),
        ],
        out_specs=pl.BlockSpec((Mp, Nout), lambda i: (0, 0)),
        out_shape=jax.ShapeDtypeStruct((Mp, Nout), jnp.float32),
        scratch_shapes=[pltpu.VMEM((Mp, Hd), jnp.bfloat16)],
        compiler_params=pltpu.CompilerParams(dimension_semantics=("arbitrary",)),
    )(xb, w1, b1, w2, b2)
    return out[:M]


# ------------------------------ layer wrappers ------------------------------

def conv2d_relu(x_nhwc, w_mat, b_pad, *, ksize, stride, padding):
    """PyTorch Conv2d + ReLU via single-op patch extraction + Pallas GEMM.

    w_mat rows are ordered (cin, kh, kw) — the same channel-major ordering that
    lax.conv_general_dilated_patches produces — and are zero-padded to a
    128-multiple K; columns are Cout zero-padded to 128 (lane-dense output).
    """
    N = x_nhwc.shape[0]
    patches = lax.conv_general_dilated_patches(
        x_nhwc.astype(jnp.bfloat16),
        (ksize, ksize),
        (stride, stride),
        ((padding, padding), (padding, padding)),
        dimension_numbers=("NHWC", "HWIO", "NHWC"),
    )                                                   # (N, Ho, Wo, Cin*K*K)
    _, Ho, Wo, K = patches.shape
    a = patches.reshape(N * Ho * Wo, K)
    out = matmul_bias_act(a, w_mat, b_pad, relu=True)   # (M, 128)
    return out.reshape(N, Ho, Wo, w_mat.shape[1])


# --------------------------- model config / params --------------------------

# (name, Cin, Cout, K, stride, pad) — AlexNet structure, scaled-down widths.
CONV_SPECS = [
    ("1", 3, 16, 11, 4, 2),
    ("2", 16, 32, 5, 1, 2),
    ("3", 32, 48, 3, 1, 1),
    ("4", 48, 32, 3, 1, 1),
    ("5", 32, 32, 3, 1, 1),
]
FC_HIDDEN = 256  # stands in for AlexNet's 4096


def _conv_out(h, k, s, p):
    return (h + 2 * p - k) // s + 1


def _pool_out(h):
    return (h - 3) // 2 + 1


def feature_spatial(h):
    h = _conv_out(h, 11, 4, 2); h = _pool_out(h)   # conv1 + pool1
    h = _conv_out(h, 5, 1, 2);  h = _pool_out(h)   # conv2 + pool2
    h = _conv_out(h, 3, 1, 1)                      # conv3
    h = _conv_out(h, 3, 1, 1)                      # conv4
    h = _conv_out(h, 3, 1, 1)                      # conv5
    h = _pool_out(h)                               # pool3
    return h


def init_params(key, input_hw):
    params = {}
    for name, cin, cout, k, _, _ in CONV_SPECS:
        key, kw_, kb_ = jax.random.split(key, 3)
        fan_in = cin * k * k
        w = (jax.random.normal(kw_, (cout, cin, k, k), jnp.float32)
             * (2.0 / fan_in) ** 0.5)
        b = jax.random.normal(kb_, (cout,), jnp.float32) * 0.01
        # Kernel-ready GEMM operand: rows ordered (cin, kh, kw), K padded to a
        # 128 multiple, Cout padded to 128, bf16 operand (f32 accumulation).
        w_mat = jnp.transpose(w, (1, 2, 3, 0)).reshape(fan_in, cout)
        kpad = _round_up(fan_in, LANE)
        npad = _round_up(cout, LANE)
        params[f"w{name}"] = jnp.pad(
            w_mat, ((0, kpad - fan_in), (0, npad - cout))).astype(jnp.bfloat16)
        params[f"b{name}"] = jnp.pad(b, (0, npad - cout)).reshape(1, npad)

    hf = feature_spatial(input_hw)
    num_ftrs = CONV_SPECS[-1][2] * hf * hf          # = model.classifier[1].in_features
    kfp = _round_up(num_ftrs, LANE)
    key, k1w, k1b, k2w, k2b = jax.random.split(key, 5)
    # PyTorch Linear stores (out, in); pre-transpose + pre-pad + bf16 at init.
    fc1_w = (jax.random.normal(k1w, (FC_HIDDEN, num_ftrs), jnp.float32)
             * (2.0 / num_ftrs) ** 0.5)
    fc2_w = (jax.random.normal(k2w, (FC_HIDDEN, FC_HIDDEN), jnp.float32)
             * (2.0 / FC_HIDDEN) ** 0.5)
    params["fc1_w"] = jnp.pad(fc1_w.T, ((0, kfp - num_ftrs), (0, 0))).astype(jnp.bfloat16)
    params["fc1_b"] = (jax.random.normal(k1b, (FC_HIDDEN,), jnp.float32) * 0.01
                       ).reshape(1, FC_HIDDEN)
    params["fc2_w"] = fc2_w.T.astype(jnp.bfloat16)
    params["fc2_b"] = (jax.random.normal(k2b, (FC_HIDDEN,), jnp.float32) * 0.01
                       ).reshape(1, FC_HIDDEN)
    return params, num_ftrs


# -------------------------------- forward -----------------------------------

def extract_forward(params, x_nchw):
    x = jnp.transpose(x_nchw, (0, 2, 3, 1))        # NCHW -> NHWC for the convs

    # features: conv+ReLU (+pool).  Conv outputs stay 128-wide (lane-dense)
    # through ReLU and pooling; sliced back to the real Cout before the next
    # patch extraction so the GEMM K doesn't blow up with zero channels.
    x = conv2d_relu(x, params["w1"], params["b1"], ksize=11, stride=4, padding=2)
    x = maxpool2d(x)[..., :16]
    x = conv2d_relu(x, params["w2"], params["b2"], ksize=5, stride=1, padding=2)
    x = maxpool2d(x)[..., :32]
    x = conv2d_relu(x, params["w3"], params["b3"], ksize=3, stride=1, padding=1)[..., :48]
    x = conv2d_relu(x, params["w4"], params["b4"], ksize=3, stride=1, padding=1)[..., :32]
    x = conv2d_relu(x, params["w5"], params["b5"], ksize=3, stride=1, padding=1)
    x = maxpool2d(x)[..., :32]

    # x.view(x.size(0), -1) flattens in (C, H, W) order — transpose back first.
    n = x.shape[0]
    x = jnp.transpose(x, (0, 3, 1, 2)).reshape(n, -1)

    # classifier: Dropout -> fc1 -> ReLU -> Dropout -> fc2 (single fused kernel)
    # TODO(synk): Dropout layers act as identity (eval-mode inference); a
    # training-mode dropout would need pltpu.prng_seed/prng_random_bits.
    return classifier_pallas(x, params["fc1_w"], params["fc1_b"],
                             params["fc2_w"], params["fc2_b"])


# ---------------------------------- main -------------------------------------

if __name__ == "__main__":
    key = jax.random.PRNGKey(0)
    k_param, k_data = jax.random.split(key)

    H = W = 95                                     # final feature map is 2x2
    params, num_ftrs = init_params(k_param, H)

    x = jax.random.normal(k_data, (2, 3, H, W), jnp.float32)   # NCHW, like PyTorch

    fwd = jax.jit(extract_forward)
    out = jax.block_until_ready(fwd(params, x))

    assert out.shape == (2, FC_HIDDEN), out.shape
    assert out.dtype == jnp.float32
    assert bool(jnp.all(jnp.isfinite(out)))
    print("KERNEL_OK")
</pallas_src>

<mosaic_0001>
module attributes {stable_mosaic.version = 11 : i64} {
  func.func @_matmul_kernel(%arg0: i32, %arg1: i32, %arg2: i32, %arg3: memref<256x384xbf16, #tpu.memory_space<vmem>>, %arg4: memref<384x128xbf16, #tpu.memory_space<vmem>>, %arg5: memref<1x128xf32, #tpu.memory_space<vmem>>, %arg6: memref<256x128xf32, #tpu.memory_space<vmem>>, %arg7: memref<256x128xf32, #tpu.memory_space<vmem>>) attributes {dimension_semantics = [#tpu.dimension_semantics<parallel>, #tpu.dimension_semantics<parallel>, #tpu.dimension_semantics<arbitrary>], iteration_bounds = array<i64: 5, 1, 1>, scalar_prefetch = 0 : i64, scratch_operands = 1 : i64, tpu.core_type = #tpu.core_type<tc>, window_params = [{transform_indices = @transform_0, window_bounds = array<i64: 256, 384>}, {transform_indices = @transform_1, window_bounds = array<i64: 384, 128>}, {transform_indices = @transform_2, window_bounds = array<i64: 1, 128>}, {transform_indices = @transform_3, window_bounds = array<i64: 256, 128>}]} {
    %c0_i32 = arith.constant 0 : i32
    %0 = arith.cmpi eq, %arg2, %c0_i32 : i32
    %1 = arith.extui %0 : i1 to i32
    %c0_i32_0 = arith.constant 0 : i32
    %2 = arith.cmpi ne, %1, %c0_i32_0 : i32
    scf.if %2 {
      %cst_10 = arith.constant 0.000000e+00 : f32
      %12 = vector.broadcast %cst_10 : f32 to vector<256x128xf32>
      %c0_11 = arith.constant 0 : index
      %c0_12 = arith.constant 0 : index
      %13 = vector.load %arg7[%c0_11, %c0_12] : memref<256x128xf32, #tpu.memory_space<vmem>>, vector<256x128xf32>
      tpu.vector_store %arg7[%c0_11, %c0_12], %12 {strides = array<i32>} : memref<256x128xf32, #tpu.memory_space<vmem>>, vector<256x128xf32>,
    } else {
    }
    %c0 = arith.constant 0 : index
    %c0_1 = arith.constant 0 : index
    %3 = vector.load %arg7[%c0, %c0_1] : memref<256x128xf32, #tpu.memory_space<vmem>>, vector<256x128xf32>
    %c0_2 = arith.constant 0 : index
    %c0_3 = arith.constant 0 : index
    %4 = vector.load %arg3[%c0_2, %c0_3] : memref<256x384xbf16, #tpu.memory_space<vmem>>, vector<256x384xbf16>
    %c0_4 = arith.constant 0 : index
    %c0_5 = arith.constant 0 : index
    %5 = vector.load %arg4[%c0_4, %c0_5] : memref<384x128xbf16, #tpu.memory_space<vmem>>, vector<384x128xbf16>
    %cst = arith.constant dense<0.000000e+00> : vector<256x128xf32>
    %6 = tpu.matmul %4, %5, %cst {dimension_numbers = #tpu.dot_dimension_numbers<[1], [0], [0], [1], [0, 0, 1, 1], [], []>} : vector<256x384xbf16>, vector<384x128xbf16>, vector<256x128xf32> -> vector<256x128xf32>
    %7 = arith.addf %3, %6 : vector<256x128xf32>
    %c0_6 = arith.constant 0 : index
    %c0_7 = arith.constant 0 : index
    %8 = vector.load %arg7[%c0_6, %c0_7] : memref<256x128xf32, #tpu.memory_space<vmem>>, vector<256x128xf32>
    tpu.vector_store %arg7[%c0_6, %c0_7], %7 {strides = array<i32>} : memref<256x128xf32, #tpu.memory_space<vmem>>, vector<256x128xf32>,
    %c0_i32_8 = arith.constant 0 : i32
    %9 = arith.cmpi eq, %arg2, %c0_i32_8 : i32
    %10 = arith.extui %9 : i1 to i32
    %c0_i32_9 = arith.constant 0 : i32
    %11 = arith.cmpi ne, %10, %c0_i32_9 : i32
    scf.if %11 {
      %c0_10 = arith.constant 0 : index
      %c0_11 = arith.constant 0 : index
      %12 = vector.load %arg7[%c0_10, %c0_11] : memref<256x128xf32, #tpu.memory_space<vmem>>, vector<256x128xf32>
      %c0_12 = arith.constant 0 : index
      %c0_13 = arith.constant 0 : index
      %13 = vector.load %arg5[%c0_12, %c0_13] : memref<1x128xf32, #tpu.memory_space<vmem>>, vector<1x128xf32>
      %14 = vector.broadcast %13 : vector<1x128xf32> to vector<256x128xf32>
      %15 = arith.addf %12, %14 : vector<256x128xf32>
      %cst_14 = arith.constant 0.000000e+00 : f32
      %16 = vector.broadcast %cst_14 : f32 to vector<256x128xf32>
      %17 = arith.maximumf %15, %16 : vector<256x128xf32>
      %c0_15 = arith.constant 0 : index
      %c0_16 = arith.constant 0 : index
      %18 = vector.load %arg6[%c0_15, %c0_16] : memref<256x128xf32, #tpu.memory_space<vmem>>, vector<256x128xf32>
      tpu.vector_store %arg6[%c0_15, %c0_16], %17 {strides = array<i32>} : memref<256x128xf32, #tpu.memory_space<vmem>>, vector<256x128xf32>,
    } else {
    }
    return
  }
  func.func @transform_0(%arg0: i32, %arg1: i32, %arg2: i32) -> (i32, i32) {
    %c0_i32 = arith.constant 0 : i32
    return %arg0, %arg2 : i32, i32
  }
  func.func @transform_1(%arg0: i32, %arg1: i32, %arg2: i32) -> (i32, i32) {
    %c0_i32 = arith.constant 0 : i32
    return %arg2, %arg1 : i32, i32
  }
  func.func @transform_2(%arg0: i32, %arg1: i32, %arg2: i32) -> (i32, i32) {
    %c0_i32 = arith.constant 0 : i32
    %c0_i32_0 = arith.constant 0 : i32
    return %c0_i32, %arg1 : i32, i32
  }
  func.func @transform_3(%arg0: i32, %arg1: i32, %arg2: i32) -> (i32, i32) {
    %c0_i32 = arith.constant 0 : i32
    return %arg0, %arg1 : i32, i32
  }
}

module attributes {stable_mosaic.version = 11 : i64} {
  func.func @_pool3x3_dense_kernel(%arg0: i32, %arg1: memref<1x23x23x128xf32, #tpu.memory_space<vmem>>, %arg2: memref<1x21x21x128xf32, #tpu.memory_space<vmem>>) attributes {dimension_semantics = [#tpu.dimension_semantics<parallel>], iteration_bounds = array<i64: 2>, scalar_prefetch = 0 : i64, scratch_operands = 0 : i64, tpu.core_type = #tpu.core_type<tc>, window_params = [{transform_indices = @transform_0, window_bounds = array<i64: 1, 23, 23, 128>}, {transform_indices = @transform_1, window_bounds = array<i64: 1, 21, 21, 128>}]} {
    %c0 = arith.constant 0 : index
    %c0_0 = arith.constant 0 : index
    %c0_1 = arith.constant 0 : index
    %c0_2 = arith.constant 0 : index
    %0 = vector.load %arg1[%c0, %c0_0, %c0_1, %c0_2] : memref<1x23x23x128xf32, #tpu.memory_space<vmem>>, vector<1x21x21x128xf32>
    %c0_3 = arith.constant 0 : index
    %c0_4 = arith.constant 0 : index
    %c1 = arith.constant 1 : index
    %c0_5 = arith.constant 0 : index
    %1 = vector.load %arg1[%c0_3, %c0_4, %c1, %c0_5] : memref<1x23x23x128xf32, #tpu.memory_space<vmem>>, vector<1x21x21x128xf32>
    %2 = arith.maximumf %0, %1 : vector<1x21x21x128xf32>
    %c0_6 = arith.constant 0 : index
    %c0_7 = arith.constant 0 : index
    %c2 = arith.constant 2 : index
    %c0_8 = arith.constant 0 : index
    %3 = vector.load %arg1[%c0_6, %c0_7, %c2, %c0_8] : memref<1x23x23x128xf32, #tpu.memory_space<vmem>>, vector<1x21x21x128xf32>
    %4 = arith.maximumf %2, %3 : vector<1x21x21x128xf32>
    %c0_9 = arith.constant 0 : index
    %c1_10 = arith.constant 1 : index
    %c0_11 = arith.constant 0 : index
    %c0_12 = arith.constant 0 : index
    %5 = vector.load %arg1[%c0_9, %c1_10, %c0_11, %c0_12] : memref<1x23x23x128xf32, #tpu.memory_space<vmem>>, vector<1x21x21x128xf32>
    %6 = arith.maximumf %4, %5 : vector<1x21x21x128xf32>
    %c0_13 = arith.constant 0 : index
    %c1_14 = arith.constant 1 : index
    %c1_15 = arith.constant 1 : index
    %c0_16 = arith.constant 0 : index
    %7 = vector.load %arg1[%c0_13, %c1_14, %c1_15, %c0_16] : memref<1x23x23x128xf32, #tpu.memory_space<vmem>>, vector<1x21x21x128xf32>
    %8 = arith.maximumf %6, %7 : vector<1x21x21x128xf32>
    %c0_17 = arith.constant 0 : index
    %c1_18 = arith.constant 1 : index
    %c2_19 = arith.constant 2 : index
    %c0_20 = arith.constant 0 : index
    %9 = vector.load %arg1[%c0_17, %c1_18, %c2_19, %c0_20] : memref<1x23x23x128xf32, #tpu.memory_space<vmem>>, vector<1x21x21x128xf32>
    %10 = arith.maximumf %8, %9 : vector<1x21x21x128xf32>
    %c0_21 = arith.constant 0 : index
    %c2_22 = arith.constant 2 : index
    %c0_23 = arith.constant 0 : index
    %c0_24 = arith.constant 0 : index
    %11 = vector.load %arg1[%c0_21, %c2_22, %c0_23, %c0_24] : memref<1x23x23x128xf32, #tpu.memory_space<vmem>>, vector<1x21x21x128xf32>
    %12 = arith.maximumf %10, %11 : vector<1x21x21x128xf32>
    %c0_25 = arith.constant 0 : index
    %c2_26 = arith.constant 2 : index
    %c1_27 = arith.constant 1 : index
    %c0_28 = arith.constant 0 : index
    %13 = vector.load %arg1[%c0_25, %c2_26, %c1_27, %c0_28] : memref<1x23x23x128xf32, #tpu.memory_space<vmem>>, vector<1x21x21x128xf32>
    %14 = arith.maximumf %12, %13 : vector<1x21x21x128xf32>
    %c0_29 = arith.constant 0 : index
    %c2_30 = arith.constant 2 : index
    %c2_31 = arith.constant 2 : index
    %c0_32 = arith.constant 0 : index
    %15 = vector.load %arg1[%c0_29, %c2_30, %c2_31, %c0_32] : memref<1x23x23x128xf32, #tpu.memory_space<vmem>>, vector<1x21x21x128xf32>
    %16 = arith.maximumf %14, %15 : vector<1x21x21x128xf32>
    %c0_33 = arith.constant 0 : index
    %c0_34 = arith.constant 0 : index
    %c0_35 = arith.constant 0 : index
    %c0_36 = arith.constant 0 : index
    %17 = vector.load %arg2[%c0_33, %c0_34, %c0_35, %c0_36] : memref<1x21x21x128xf32, #tpu.memory_space<vmem>>, vector<1x21x21x128xf32>
    tpu.vector_store %arg2[%c0_33, %c0_34, %c0_35, %c0_36], %16 {strides = array<i32>} : memref<1x21x21x128xf32, #tpu.memory_space<vmem>>, vector<1x21x21x128xf32>,
    return
  }
  func.func @transform_0(%arg0: i32) -> (i32, i32, i32, i32) {
    %c0_i32 = arith.constant 0 : i32
    %c0_i32_0 = arith.constant 0 : i32
    %c0_i32_1 = arith.constant 0 : i32
    %c0_i32_2 = arith.constant 0 : i32
    return %arg0, %c0_i32, %c0_i32_0, %c0_i32_1 : i32, i32, i32, i32
  }
  func.func @transform_1(%arg0: i32) -> (i32, i32, i32, i32) {
    %c0_i32 = arith.constant 0 : i32
    %c0_i32_0 = arith.constant 0 : i32
    %c0_i32_1 = arith.constant 0 : i32
    %c0_i32_2 = arith.constant 0 : i32
    return %arg0, %c0_i32, %c0_i32_0, %c0_i32_1 : i32, i32, i32, i32
  }
}

module attributes {stable_mosaic.version = 11 : i64} {
  func.func @_matmul_kernel(%arg0: i32, %arg1: i32, %arg2: i32, %arg3: memref<248x512xbf16, #tpu.memory_space<vmem>>, %arg4: memref<512x128xbf16, #tpu.memory_space<vmem>>, %arg5: memref<1x128xf32, #tpu.memory_space<vmem>>, %arg6: memref<248x128xf32, #tpu.memory_space<vmem>>, %arg7: memref<248x128xf32, #tpu.memory_space<vmem>>) attributes {dimension_semantics = [#tpu.dimension_semantics<parallel>, #tpu.dimension_semantics<parallel>, #tpu.dimension_semantics<arbitrary>], iteration_bounds = array<i64: 1, 1, 1>, scalar_prefetch = 0 : i64, scratch_operands = 1 : i64, tpu.core_type = #tpu.core_type<tc>, window_params = [{transform_indices = @transform_0, window_bounds = array<i64: 248, 512>}, {transform_indices = @transform_1, window_bounds = array<i64: 512, 128>}, {transform_indices = @transform_2, window_bounds = array<i64: 1, 128>}, {transform_indices = @transform_3, window_bounds = array<i64: 248, 128>}]} {
    %c0_i32 = arith.constant 0 : i32
    %0 = arith.cmpi eq, %arg2, %c0_i32 : i32
    %1 = arith.extui %0 : i1 to i32
    %c0_i32_0 = arith.constant 0 : i32
    %2 = arith.cmpi ne, %1, %c0_i32_0 : i32
    scf.if %2 {
      %cst_10 = arith.constant 0.000000e+00 : f32
      %12 = vector.broadcast %cst_10 : f32 to vector<248x128xf32>
      %c0_11 = arith.constant 0 : index
      %c0_12 = arith.constant 0 : index
      %13 = vector.load %arg7[%c0_11, %c0_12] : memref<248x128xf32, #tpu.memory_space<vmem>>, vector<248x128xf32>
      tpu.vector_store %arg7[%c0_11, %c0_12], %12 {strides = array<i32>} : memref<248x128xf32, #tpu.memory_space<vmem>>, vector<248x128xf32>,
    } else {
    }
    %c0 = arith.constant 0 : index
    %c0_1 = arith.constant 0 : index
    %3 = vector.load %arg7[%c0, %c0_1] : memref<248x128xf32, #tpu.memory_space<vmem>>, vector<248x128xf32>
    %c0_2 = arith.constant 0 : index
    %c0_3 = arith.constant 0 : index
    %4 = vector.load %arg3[%c0_2, %c0_3] : memref<248x512xbf16, #tpu.memory_space<vmem>>, vector<248x512xbf16>
    %c0_4 = arith.constant 0 : index
    %c0_5 = arith.constant 0 : index
    %5 = vector.load %arg4[%c0_4, %c0_5] : memref<512x128xbf16, #tpu.memory_space<vmem>>, vector<512x128xbf16>
    %cst = arith.constant dense<0.000000e+00> : vector<248x128xf32>
    %6 = tpu.matmul %4, %5, %cst {dimension_numbers = #tpu.dot_dimension_numbers<[1], [0], [0], [1], [0, 0, 1, 1], [], []>} : vector<248x512xbf16>, vector<512x128xbf16>, vector<248x128xf32> -> vector<248x128xf32>
    %7 = arith.addf %3, %6 : vector<248x128xf32>
    %c0_6 = arith.constant 0 : index
    %c0_7 = arith.constant 0 : index
    %8 = vector.load %arg7[%c0_6, %c0_7] : memref<248x128xf32, #tpu.memory_space<vmem>>, vector<248x128xf32>
    tpu.vector_store %arg7[%c0_6, %c0_7], %7 {strides = array<i32>} : memref<248x128xf32, #tpu.memory_space<vmem>>, vector<248x128xf32>,
    %c0_i32_8 = arith.constant 0 : i32
    %9 = arith.cmpi eq, %arg2, %c0_i32_8 : i32
    %10 = arith.extui %9 : i1 to i32
    %c0_i32_9 = arith.constant 0 : i32
    %11 = arith.cmpi ne, %10, %c0_i32_9 : i32
    scf.if %11 {
      %c0_10 = arith.constant 0 : index
      %c0_11 = arith.constant 0 : index
      %12 = vector.load %arg7[%c0_10, %c0_11] : memref<248x128xf32, #tpu.memory_space<vmem>>, vector<248x128xf32>
      %c0_12 = arith.constant 0 : index
      %c0_13 = arith.constant 0 : index
      %13 = vector.load %arg5[%c0_12, %c0_13] : memref<1x128xf32, #tpu.memory_space<vmem>>, vector<1x128xf32>
      %14 = vector.broadcast %13 : vector<1x128xf32> to vector<248x128xf32>
      %15 = arith.addf %12, %14 : vector<248x128xf32>
      %cst_14 = arith.constant 0.000000e+00 : f32
      %16 = vector.broadcast %cst_14 : f32 to vector<248x128xf32>
      %17 = arith.maximumf %15, %16 : vector<248x128xf32>
      %c0_15 = arith.constant 0 : index
      %c0_16 = arith.constant 0 : index
      %18 = vector.load %arg6[%c0_15, %c0_16] : memref<248x128xf32, #tpu.memory_space<vmem>>, vector<248x128xf32>
      tpu.vector_store %arg6[%c0_15, %c0_16], %17 {strides = array<i32>} : memref<248x128xf32, #tpu.memory_space<vmem>>, vector<248x128xf32>,
    } else {
    }
    return
  }
  func.func @transform_0(%arg0: i32, %arg1: i32, %arg2: i32) -> (i32, i32) {
    %c0_i32 = arith.constant 0 : i32
    return %arg0, %arg2 : i32, i32
  }
  func.func @transform_1(%arg0: i32, %arg1: i32, %arg2: i32) -> (i32, i32) {
    %c0_i32 = arith.constant 0 : i32
    return %arg2, %arg1 : i32, i32
  }
  func.func @transform_2(%arg0: i32, %arg1: i32, %arg2: i32) -> (i32, i32) {
    %c0_i32 = arith.constant 0 : i32
    %c0_i32_0 = arith.constant 0 : i32
    return %c0_i32, %arg1 : i32, i32
  }
  func.func @transform_3(%arg0: i32, %arg1: i32, %arg2: i32) -> (i32, i32) {
    %c0_i32 = arith.constant 0 : i32
    return %arg0, %arg1 : i32, i32
  }
}

module attributes {stable_mosaic.version = 11 : i64} {
  func.func @_pool3x3_dense_kernel(%arg0: i32, %arg1: memref<1x11x11x128xf32, #tpu.memory_space<vmem>>, %arg2: memref<1x9x9x128xf32, #tpu.memory_space<vmem>>) attributes {dimension_semantics = [#tpu.dimension_semantics<parallel>], iteration_bounds = array<i64: 2>, scalar_prefetch = 0 : i64, scratch_operands = 0 : i64, tpu.core_type = #tpu.core_type<tc>, window_params = [{transform_indices = @transform_0, window_bounds = array<i64: 1, 11, 11, 128>}, {transform_indices = @transform_1, window_bounds = array<i64: 1, 9, 9, 128>}]} {
    %c0 = arith.constant 0 : index
    %c0_0 = arith.constant 0 : index
    %c0_1 = arith.constant 0 : index
    %c0_2 = arith.constant 0 : index
    %0 = vector.load %arg1[%c0, %c0_0, %c0_1, %c0_2] : memref<1x11x11x128xf32, #tpu.memory_space<vmem>>, vector<1x9x9x128xf32>
    %c0_3 = arith.constant 0 : index
    %c0_4 = arith.constant 0 : index
    %c1 = arith.constant 1 : index
    %c0_5 = arith.constant 0 : index
    %1 = vector.load %arg1[%c0_3, %c0_4, %c1, %c0_5] : memref<1x11x11x128xf32, #tpu.memory_space<vmem>>, vector<1x9x9x128xf32>
    %2 = arith.maximumf %0, %1 : vector<1x9x9x128xf32>
    %c0_6 = arith.constant 0 : index
    %c0_7 = arith.constant 0 : index
    %c2 = arith.constant 2 : index
    %c0_8 = arith.constant 0 : index
    %3 = vector.load %arg1[%c0_6, %c0_7, %c2, %c0_8] : memref<1x11x11x128xf32, #tpu.memory_space<vmem>>, vector<1x9x9x128xf32>
    %4 = arith.maximumf %2, %3 : vector<1x9x9x128xf32>
    %c0_9 = arith.constant 0 : index
    %c1_10 = arith.constant 1 : index
    %c0_11 = arith.constant 0 : index
    %c0_12 = arith.constant 0 : index
    %5 = vector.load %arg1[%c0_9, %c1_10, %c0_11, %c0_12] : memref<1x11x11x128xf32, #tpu.memory_space<vmem>>, vector<1x9x9x128xf32>
    %6 = arith.maximumf %4, %5 : vector<1x9x9x128xf32>
    %c0_13 = arith.constant 0 : index
    %c1_14 = arith.constant 1 : index
    %c1_15 = arith.constant 1 : index
    %c0_16 = arith.constant 0 : index
    %7 = vector.load %arg1[%c0_13, %c1_14, %c1_15, %c0_16] : memref<1x11x11x128xf32, #tpu.memory_space<vmem>>, vector<1x9x9x128xf32>
    %8 = arith.maximumf %6, %7 : vector<1x9x9x128xf32>
    %c0_17 = arith.constant 0 : index
    %c1_18 = arith.constant 1 : index
    %c2_19 = arith.constant 2 : index
    %c0_20 = arith.constant 0 : index
    %9 = vector.load %arg1[%c0_17, %c1_18, %c2_19, %c0_20] : memref<1x11x11x128xf32, #tpu.memory_space<vmem>>, vector<1x9x9x128xf32>
    %10 = arith.maximumf %8, %9 : vector<1x9x9x128xf32>
    %c0_21 = arith.constant 0 : index
    %c2_22 = arith.constant 2 : index
    %c0_23 = arith.constant 0 : index
    %c0_24 = arith.constant 0 : index
    %11 = vector.load %arg1[%c0_21, %c2_22, %c0_23, %c0_24] : memref<1x11x11x128xf32, #tpu.memory_space<vmem>>, vector<1x9x9x128xf32>
    %12 = arith.maximumf %10, %11 : vector<1x9x9x128xf32>
    %c0_25 = arith.constant 0 : index
    %c2_26 = arith.constant 2 : index
    %c1_27 = arith.constant 1 : index
    %c0_28 = arith.constant 0 : index
    %13 = vector.load %arg1[%c0_25, %c2_26, %c1_27, %c0_28] : memref<1x11x11x128xf32, #tpu.memory_space<vmem>>, vector<1x9x9x128xf32>
    %14 = arith.maximumf %12, %13 : vector<1x9x9x128xf32>
    %c0_29 = arith.constant 0 : index
    %c2_30 = arith.constant 2 : index
    %c2_31 = arith.constant 2 : index
    %c0_32 = arith.constant 0 : index
    %15 = vector.load %arg1[%c0_29, %c2_30, %c2_31, %c0_32] : memref<1x11x11x128xf32, #tpu.memory_space<vmem>>, vector<1x9x9x128xf32>
    %16 = arith.maximumf %14, %15 : vector<1x9x9x128xf32>
    %c0_33 = arith.constant 0 : index
    %c0_34 = arith.constant 0 : index
    %c0_35 = arith.constant 0 : index
    %c0_36 = arith.constant 0 : index
    %17 = vector.load %arg2[%c0_33, %c0_34, %c0_35, %c0_36] : memref<1x9x9x128xf32, #tpu.memory_space<vmem>>, vector<1x9x9x128xf32>
    tpu.vector_store %arg2[%c0_33, %c0_34, %c0_35, %c0_36], %16 {strides = array<i32>} : memref<1x9x9x128xf32, #tpu.memory_space<vmem>>, vector<1x9x9x128xf32>,
    return
  }
  func.func @transform_0(%arg0: i32) -> (i32, i32, i32, i32) {
    %c0_i32 = arith.constant 0 : i32
    %c0_i32_0 = arith.constant 0 : i32
    %c0_i32_1 = arith.constant 0 : i32
    %c0_i32_2 = arith.constant 0 : i32
    return %arg0, %c0_i32, %c0_i32_0, %c0_i32_1 : i32, i32, i32, i32
  }
  func.func @transform_1(%arg0: i32) -> (i32, i32, i32, i32) {
    %c0_i32 = arith.constant 0 : i32
    %c0_i32_0 = arith.constant 0 : i32
    %c0_i32_1 = arith.constant 0 : i32
    %c0_i32_2 = arith.constant 0 : i32
    return %arg0, %c0_i32, %c0_i32_0, %c0_i32_1 : i32, i32, i32, i32
  }
}

module attributes {stable_mosaic.version = 11 : i64} {
  func.func @_matmul_kernel(%arg0: i32, %arg1: i32, %arg2: i32, %arg3: memref<56x384xbf16, #tpu.memory_space<vmem>>, %arg4: memref<384x128xbf16, #tpu.memory_space<vmem>>, %arg5: memref<1x128xf32, #tpu.memory_space<vmem>>, %arg6: memref<56x128xf32, #tpu.memory_space<vmem>>, %arg7: memref<56x128xf32, #tpu.memory_space<vmem>>) attributes {dimension_semantics = [#tpu.dimension_semantics<parallel>, #tpu.dimension_semantics<parallel>, #tpu.dimension_semantics<arbitrary>], iteration_bounds = array<i64: 1, 1, 1>, scalar_prefetch = 0 : i64, scratch_operands = 1 : i64, tpu.core_type = #tpu.core_type<tc>, window_params = [{transform_indices = @transform_0, window_bounds = array<i64: 56, 384>}, {transform_indices = @transform_1, window_bounds = array<i64: 384, 128>}, {transform_indices = @transform_2, window_bounds = array<i64: 1, 128>}, {transform_indices = @transform_3, window_bounds = array<i64: 56, 128>}]} {
    %c0_i32 = arith.constant 0 : i32
    %0 = arith.cmpi eq, %arg2, %c0_i32 : i32
    %1 = arith.extui %0 : i1 to i32
    %c0_i32_0 = arith.constant 0 : i32
    %2 = arith.cmpi ne, %1, %c0_i32_0 : i32
    scf.if %2 {
      %cst_10 = arith.constant 0.000000e+00 : f32
      %12 = vector.broadcast %cst_10 : f32 to vector<56x128xf32>
      %c0_11 = arith.constant 0 : index
      %c0_12 = arith.constant 0 : index
      %13 = vector.load %arg7[%c0_11, %c0_12] : memref<56x128xf32, #tpu.memory_space<vmem>>, vector<56x128xf32>
      tpu.vector_store %arg7[%c0_11, %c0_12], %12 {strides = array<i32>} : memref<56x128xf32, #tpu.memory_space<vmem>>, vector<56x128xf32>,
    } else {
    }
    %c0 = arith.constant 0 : index
    %c0_1 = arith.constant 0 : index
    %3 = vector.load %arg7[%c0, %c0_1] : memref<56x128xf32, #tpu.memory_space<vmem>>, vector<56x128xf32>
    %c0_2 = arith.constant 0 : index
    %c0_3 = arith.constant 0 : index
    %4 = vector.load %arg3[%c0_2, %c0_3] : memref<56x384xbf16, #tpu.memory_space<vmem>>, vector<56x384xbf16>
    %c0_4 = arith.constant 0 : index
    %c0_5 = arith.constant 0 : index
    %5 = vector.load %arg4[%c0_4, %c0_5] : memref<384x128xbf16, #tpu.memory_space<vmem>>, vector<384x128xbf16>
    %cst = arith.constant dense<0.000000e+00> : vector<56x128xf32>
    %6 = tpu.matmul %4, %5, %cst {dimension_numbers = #tpu.dot_dimension_numbers<[1], [0], [0], [1], [0, 0, 1, 1], [], []>} : vector<56x384xbf16>, vector<384x128xbf16>, vector<56x128xf32> -> vector<56x128xf32>
    %7 = arith.addf %3, %6 : vector<56x128xf32>
    %c0_6 = arith.constant 0 : index
    %c0_7 = arith.constant 0 : index
    %8 = vector.load %arg7[%c0_6, %c0_7] : memref<56x128xf32, #tpu.memory_space<vmem>>, vector<56x128xf32>
    tpu.vector_store %arg7[%c0_6, %c0_7], %7 {strides = array<i32>} : memref<56x128xf32, #tpu.memory_space<vmem>>, vector<56x128xf32>,
    %c0_i32_8 = arith.constant 0 : i32
    %9 = arith.cmpi eq, %arg2, %c0_i32_8 : i32
    %10 = arith.extui %9 : i1 to i32
    %c0_i32_9 = arith.constant 0 : i32
    %11 = arith.cmpi ne, %10, %c0_i32_9 : i32
    scf.if %11 {
      %c0_10 = arith.constant 0 : index
      %c0_11 = arith.constant 0 : index
      %12 = vector.load %arg7[%c0_10, %c0_11] : memref<56x128xf32, #tpu.memory_space<vmem>>, vector<56x128xf32>
      %c0_12 = arith.constant 0 : index
      %c0_13 = arith.constant 0 : index
      %13 = vector.load %arg5[%c0_12, %c0_13] : memref<1x128xf32, #tpu.memory_space<vmem>>, vector<1x128xf32>
      %14 = vector.broadcast %13 : vector<1x128xf32> to vector<56x128xf32>
      %15 = arith.addf %12, %14 : vector<56x128xf32>
      %cst_14 = arith.constant 0.000000e+00 : f32
      %16 = vector.broadcast %cst_14 : f32 to vector<56x128xf32>
      %17 = arith.maximumf %15, %16 : vector<56x128xf32>
      %c0_15 = arith.constant 0 : index
      %c0_16 = arith.constant 0 : index
      %18 = vector.load %arg6[%c0_15, %c0_16] : memref<56x128xf32, #tpu.memory_space<vmem>>, vector<56x128xf32>
      tpu.vector_store %arg6[%c0_15, %c0_16], %17 {strides = array<i32>} : memref<56x128xf32, #tpu.memory_space<vmem>>, vector<56x128xf32>,
    } else {
    }
    return
  }
  func.func @transform_0(%arg0: i32, %arg1: i32, %arg2: i32) -> (i32, i32) {
    %c0_i32 = arith.constant 0 : i32
    return %arg0, %arg2 : i32, i32
  }
  func.func @transform_1(%arg0: i32, %arg1: i32, %arg2: i32) -> (i32, i32) {
    %c0_i32 = arith.constant 0 : i32
    return %arg2, %arg1 : i32, i32
  }
  func.func @transform_2(%arg0: i32, %arg1: i32, %arg2: i32) -> (i32, i32) {
    %c0_i32 = arith.constant 0 : i32
    %c0_i32_0 = arith.constant 0 : i32
    return %c0_i32, %arg1 : i32, i32
  }
  func.func @transform_3(%arg0: i32, %arg1: i32, %arg2: i32) -> (i32, i32) {
    %c0_i32 = arith.constant 0 : i32
    return %arg0, %arg1 : i32, i32
  }
}

module attributes {stable_mosaic.version = 11 : i64} {
  func.func @_matmul_kernel(%arg0: i32, %arg1: i32, %arg2: i32, %arg3: memref<56x512xbf16, #tpu.memory_space<vmem>>, %arg4: memref<512x128xbf16, #tpu.memory_space<vmem>>, %arg5: memref<1x128xf32, #tpu.memory_space<vmem>>, %arg6: memref<56x128xf32, #tpu.memory_space<vmem>>, %arg7: memref<56x128xf32, #tpu.memory_space<vmem>>) attributes {dimension_semantics = [#tpu.dimension_semantics<parallel>, #tpu.dimension_semantics<parallel>, #tpu.dimension_semantics<arbitrary>], iteration_bounds = array<i64: 1, 1, 1>, scalar_prefetch = 0 : i64, scratch_operands = 1 : i64, tpu.core_type = #tpu.core_type<tc>, window_params = [{transform_indices = @transform_0, window_bounds = array<i64: 56, 512>}, {transform_indices = @transform_1, window_bounds = array<i64: 512, 128>}, {transform_indices = @transform_2, window_bounds = array<i64: 1, 128>}, {transform_indices = @transform_3, window_bounds = array<i64: 56, 128>}]} {
    %c0_i32 = arith.constant 0 : i32
    %0 = arith.cmpi eq, %arg2, %c0_i32 : i32
    %1 = arith.extui %0 : i1 to i32
    %c0_i32_0 = arith.constant 0 : i32
    %2 = arith.cmpi ne, %1, %c0_i32_0 : i32
    scf.if %2 {
      %cst_10 = arith.constant 0.000000e+00 : f32
      %12 = vector.broadcast %cst_10 : f32 to vector<56x128xf32>
      %c0_11 = arith.constant 0 : index
      %c0_12 = arith.constant 0 : index
      %13 = vector.load %arg7[%c0_11, %c0_12] : memref<56x128xf32, #tpu.memory_space<vmem>>, vector<56x128xf32>
      tpu.vector_store %arg7[%c0_11, %c0_12], %12 {strides = array<i32>} : memref<56x128xf32, #tpu.memory_space<vmem>>, vector<56x128xf32>,
    } else {
    }
    %c0 = arith.constant 0 : index
    %c0_1 = arith.constant 0 : index
    %3 = vector.load %arg7[%c0, %c0_1] : memref<56x128xf32, #tpu.memory_space<vmem>>, vector<56x128xf32>
    %c0_2 = arith.constant 0 : index
    %c0_3 = arith.constant 0 : index
    %4 = vector.load %arg3[%c0_2, %c0_3] : memref<56x512xbf16, #tpu.memory_space<vmem>>, vector<56x512xbf16>
    %c0_4 = arith.constant 0 : index
    %c0_5 = arith.constant 0 : index
    %5 = vector.load %arg4[%c0_4, %c0_5] : memref<512x128xbf16, #tpu.memory_space<vmem>>, vector<512x128xbf16>
    %cst = arith.constant dense<0.000000e+00> : vector<56x128xf32>
    %6 = tpu.matmul %4, %5, %cst {dimension_numbers = #tpu.dot_dimension_numbers<[1], [0], [0], [1], [0, 0, 1, 1], [], []>} : vector<56x512xbf16>, vector<512x128xbf16>, vector<56x128xf32> -> vector<56x128xf32>
    %7 = arith.addf %3, %6 : vector<56x128xf32>
    %c0_6 = arith.constant 0 : index
    %c0_7 = arith.constant 0 : index
    %8 = vector.load %arg7[%c0_6, %c0_7] : memref<56x128xf32, #tpu.memory_space<vmem>>, vector<56x128xf32>
    tpu.vector_store %arg7[%c0_6, %c0_7], %7 {strides = array<i32>} : memref<56x128xf32, #tpu.memory_space<vmem>>, vector<56x128xf32>,
    %c0_i32_8 = arith.constant 0 : i32
    %9 = arith.cmpi eq, %arg2, %c0_i32_8 : i32
    %10 = arith.extui %9 : i1 to i32
    %c0_i32_9 = arith.constant 0 : i32
    %11 = arith.cmpi ne, %10, %c0_i32_9 : i32
    scf.if %11 {
      %c0_10 = arith.constant 0 : index
      %c0_11 = arith.constant 0 : index
      %12 = vector.load %arg7[%c0_10, %c0_11] : memref<56x128xf32, #tpu.memory_space<vmem>>, vector<56x128xf32>
      %c0_12 = arith.constant 0 : index
      %c0_13 = arith.constant 0 : index
      %13 = vector.load %arg5[%c0_12, %c0_13] : memref<1x128xf32, #tpu.memory_space<vmem>>, vector<1x128xf32>
      %14 = vector.broadcast %13 : vector<1x128xf32> to vector<56x128xf32>
      %15 = arith.addf %12, %14 : vector<56x128xf32>
      %cst_14 = arith.constant 0.000000e+00 : f32
      %16 = vector.broadcast %cst_14 : f32 to vector<56x128xf32>
      %17 = arith.maximumf %15, %16 : vector<56x128xf32>
      %c0_15 = arith.constant 0 : index
      %c0_16 = arith.constant 0 : index
      %18 = vector.load %arg6[%c0_15, %c0_16] : memref<56x128xf32, #tpu.memory_space<vmem>>, vector<56x128xf32>
      tpu.vector_store %arg6[%c0_15, %c0_16], %17 {strides = array<i32>} : memref<56x128xf32, #tpu.memory_space<vmem>>, vector<56x128xf32>,
    } else {
    }
    return
  }
  func.func @transform_0(%arg0: i32, %arg1: i32, %arg2: i32) -> (i32, i32) {
    %c0_i32 = arith.constant 0 : i32
    return %arg0, %arg2 : i32, i32
  }
  func.func @transform_1(%arg0: i32, %arg1: i32, %arg2: i32) -> (i32, i32) {
    %c0_i32 = arith.constant 0 : i32
    return %arg2, %arg1 : i32, i32
  }
  func.func @transform_2(%arg0: i32, %arg1: i32, %arg2: i32) -> (i32, i32) {
    %c0_i32 = arith.constant 0 : i32
    %c0_i32_0 = arith.constant 0 : i32
    return %c0_i32, %arg1 : i32, i32
  }
  func.func @transform_3(%arg0: i32, %arg1: i32, %arg2: i32) -> (i32, i32) {
    %c0_i32 = arith.constant 0 : i32
    return %arg0, %arg1 : i32, i32
  }
}

module attributes {stable_mosaic.version = 11 : i64} {
  func.func @_pool3x3_dense_kernel(%arg0: i32, %arg1: memref<1x5x5x128xf32, #tpu.memory_space<vmem>>, %arg2: memref<1x3x3x128xf32, #tpu.memory_space<vmem>>) attributes {dimension_semantics = [#tpu.dimension_semantics<parallel>], iteration_bounds = array<i64: 2>, scalar_prefetch = 0 : i64, scratch_operands = 0 : i64, tpu.core_type = #tpu.core_type<tc>, window_params = [{transform_indices = @transform_0, window_bounds = array<i64: 1, 5, 5, 128>}, {transform_indices = @transform_1, window_bounds = array<i64: 1, 3, 3, 128>}]} {
    %c0 = arith.constant 0 : index
    %c0_0 = arith.constant 0 : index
    %c0_1 = arith.constant 0 : index
    %c0_2 = arith.constant 0 : index
    %0 = vector.load %arg1[%c0, %c0_0, %c0_1, %c0_2] : memref<1x5x5x128xf32, #tpu.memory_space<vmem>>, vector<1x3x3x128xf32>
    %c0_3 = arith.constant 0 : index
    %c0_4 = arith.constant 0 : index
    %c1 = arith.constant 1 : index
    %c0_5 = arith.constant 0 : index
    %1 = vector.load %arg1[%c0_3, %c0_4, %c1, %c0_5] : memref<1x5x5x128xf32, #tpu.memory_space<vmem>>, vector<1x3x3x128xf32>
    %2 = arith.maximumf %0, %1 : vector<1x3x3x128xf32>
    %c0_6 = arith.constant 0 : index
    %c0_7 = arith.constant 0 : index
    %c2 = arith.constant 2 : index
    %c0_8 = arith.constant 0 : index
    %3 = vector.load %arg1[%c0_6, %c0_7, %c2, %c0_8] : memref<1x5x5x128xf32, #tpu.memory_space<vmem>>, vector<1x3x3x128xf32>
    %4 = arith.maximumf %2, %3 : vector<1x3x3x128xf32>
    %c0_9 = arith.constant 0 : index
    %c1_10 = arith.constant 1 : index
    %c0_11 = arith.constant 0 : index
    %c0_12 = arith.constant 0 : index
    %5 = vector.load %arg1[%c0_9, %c1_10, %c0_11, %c0_12] : memref<1x5x5x128xf32, #tpu.memory_space<vmem>>, vector<1x3x3x128xf32>
    %6 = arith.maximumf %4, %5 : vector<1x3x3x128xf32>
    %c0_13 = arith.constant 0 : index
    %c1_14 = arith.constant 1 : index
    %c1_15 = arith.constant 1 : index
    %c0_16 = arith.constant 0 : index
    %7 = vector.load %arg1[%c0_13, %c1_14, %c1_15, %c0_16] : memref<1x5x5x128xf32, #tpu.memory_space<vmem>>, vector<1x3x3x128xf32>
    %8 = arith.maximumf %6, %7 : vector<1x3x3x128xf32>
    %c0_17 = arith.constant 0 : index
    %c1_18 = arith.constant 1 : index
    %c2_19 = arith.constant 2 : index
    %c0_20 = arith.constant 0 : index
    %9 = vector.load %arg1[%c0_17, %c1_18, %c2_19, %c0_20] : memref<1x5x5x128xf32, #tpu.memory_space<vmem>>, vector<1x3x3x128xf32>
    %10 = arith.maximumf %8, %9 : vector<1x3x3x128xf32>
    %c0_21 = arith.constant 0 : index
    %c2_22 = arith.constant 2 : index
    %c0_23 = arith.constant 0 : index
    %c0_24 = arith.constant 0 : index
    %11 = vector.load %arg1[%c0_21, %c2_22, %c0_23, %c0_24] : memref<1x5x5x128xf32, #tpu.memory_space<vmem>>, vector<1x3x3x128xf32>
    %12 = arith.maximumf %10, %11 : vector<1x3x3x128xf32>
    %c0_25 = arith.constant 0 : index
    %c2_26 = arith.constant 2 : index
    %c1_27 = arith.constant 1 : index
    %c0_28 = arith.constant 0 : index
    %13 = vector.load %arg1[%c0_25, %c2_26, %c1_27, %c0_28] : memref<1x5x5x128xf32, #tpu.memory_space<vmem>>, vector<1x3x3x128xf32>
    %14 = arith.maximumf %12, %13 : vector<1x3x3x128xf32>
    %c0_29 = arith.constant 0 : index
    %c2_30 = arith.constant 2 : index
    %c2_31 = arith.constant 2 : index
    %c0_32 = arith.constant 0 : index
    %15 = vector.load %arg1[%c0_29, %c2_30, %c2_31, %c0_32] : memref<1x5x5x128xf32, #tpu.memory_space<vmem>>, vector<1x3x3x128xf32>
    %16 = arith.maximumf %14, %15 : vector<1x3x3x128xf32>
    %c0_33 = arith.constant 0 : index
    %c0_34 = arith.constant 0 : index
    %c0_35 = arith.constant 0 : index
    %c0_36 = arith.constant 0 : index
    %17 = vector.load %arg2[%c0_33, %c0_34, %c0_35, %c0_36] : memref<1x3x3x128xf32, #tpu.memory_space<vmem>>, vector<1x3x3x128xf32>
    tpu.vector_store %arg2[%c0_33, %c0_34, %c0_35, %c0_36], %16 {strides = array<i32>} : memref<1x3x3x128xf32, #tpu.memory_space<vmem>>, vector<1x3x3x128xf32>,
    return
  }
  func.func @transform_0(%arg0: i32) -> (i32, i32, i32, i32) {
    %c0_i32 = arith.constant 0 : i32
    %c0_i32_0 = arith.constant 0 : i32
    %c0_i32_1 = arith.constant 0 : i32
    %c0_i32_2 = arith.constant 0 : i32
    return %arg0, %c0_i32, %c0_i32_0, %c0_i32_1 : i32, i32, i32, i32
  }
  func.func @transform_1(%arg0: i32) -> (i32, i32, i32, i32) {
    %c0_i32 = arith.constant 0 : i32
    %c0_i32_0 = arith.constant 0 : i32
    %c0_i32_1 = arith.constant 0 : i32
    %c0_i32_2 = arith.constant 0 : i32
    return %arg0, %c0_i32, %c0_i32_0, %c0_i32_1 : i32, i32, i32, i32
  }
}

module attributes {stable_mosaic.version = 11 : i64} {
  func.func @_classifier_kernel(%arg0: i32, %arg1: memref<8x128xbf16, #tpu.memory_space<vmem>>, %arg2: memref<128x256xbf16, #tpu.memory_space<vmem>>, %arg3: memref<1x256xf32, #tpu.memory_space<vmem>>, %arg4: memref<256x256xbf16, #tpu.memory_space<vmem>>, %arg5: memref<1x256xf32, #tpu.memory_space<vmem>>, %arg6: memref<8x256xf32, #tpu.memory_space<vmem>>, %arg7: memref<8x256xbf16, #tpu.memory_space<vmem>>) attributes {dimension_semantics = [#tpu.dimension_semantics<arbitrary>], iteration_bounds = array<i64: 1>, scalar_prefetch = 0 : i64, scratch_operands = 1 : i64, tpu.core_type = #tpu.core_type<tc>, window_params = [{pipeline_mode = #tpu.pipeline_mode<synchronous>, transform_indices = @transform_0, window_bounds = array<i64: 8, 128>}, {pipeline_mode = #tpu.pipeline_mode<synchronous>, transform_indices = @transform_1, window_bounds = array<i64: 128, 256>}, {pipeline_mode = #tpu.pipeline_mode<synchronous>, transform_indices = @transform_2, window_bounds = array<i64: 1, 256>}, {pipeline_mode = #tpu.pipeline_mode<synchronous>, transform_indices = @transform_3, window_bounds = array<i64: 256, 256>}, {pipeline_mode = #tpu.pipeline_mode<synchronous>, transform_indices = @transform_4, window_bounds = array<i64: 1, 256>}, {pipeline_mode = #tpu.pipeline_mode<synchronous>, transform_indices = @transform_5, window_bounds = array<i64: 8, 256>}]} {
    %c0 = arith.constant 0 : index
    %c0_0 = arith.constant 0 : index
    %0 = vector.load %arg1[%c0, %c0_0] : memref<8x128xbf16, #tpu.memory_space<vmem>>, vector<8x128xbf16>
    %c0_1 = arith.constant 0 : index
    %c0_2 = arith.constant 0 : index
    %1 = vector.load %arg2[%c0_1, %c0_2] : memref<128x256xbf16, #tpu.memory_space<vmem>>, vector<128x256xbf16>
    %cst = arith.constant dense<0.000000e+00> : vector<8x256xf32>
    %2 = tpu.matmul %0, %1, %cst {dimension_numbers = #tpu.dot_dimension_numbers<[1], [0], [0], [1], [0, 0, 1, 1], [], []>} : vector<8x128xbf16>, vector<128x256xbf16>, vector<8x256xf32> -> vector<8x256xf32>
    %c0_3 = arith.constant 0 : index
    %c0_4 = arith.constant 0 : index
    %3 = vector.load %arg3[%c0_3, %c0_4] : memref<1x256xf32, #tpu.memory_space<vmem>>, vector<1x256xf32>
    %4 = vector.broadcast %3 : vector<1x256xf32> to vector<8x256xf32>
    %5 = arith.addf %2, %4 : vector<8x256xf32>
    %cst_5 = arith.constant 0.000000e+00 : f32
    %6 = vector.broadcast %cst_5 : f32 to vector<8x256xf32>
    %7 = arith.maximumf %5, %6 : vector<8x256xf32>
    %8 = arith.truncf %7 : vector<8x256xf32> to vector<8x256xbf16>
    %c0_6 = arith.constant 0 : index
    %c0_7 = arith.constant 0 : index
    %9 = vector.load %arg7[%c0_6, %c0_7] : memref<8x256xbf16, #tpu.memory_space<vmem>>, vector<8x256xbf16>
    tpu.vector_store %arg7[%c0_6, %c0_7], %8 {strides = array<i32>} : memref<8x256xbf16, #tpu.memory_space<vmem>>, vector<8x256xbf16>,
    %c0_8 = arith.constant 0 : index
    %c0_9 = arith.constant 0 : index
    %10 = vector.load %arg7[%c0_8, %c0_9] : memref<8x256xbf16, #tpu.memory_space<vmem>>, vector<8x256xbf16>
    %c0_10 = arith.constant 0 : index
    %c0_11 = arith.constant 0 : index
    %11 = vector.load %arg4[%c0_10, %c0_11] : memref<256x256xbf16, #tpu.memory_space<vmem>>, vector<256x256xbf16>
    %cst_12 = arith.constant dense<0.000000e+00> : vector<8x256xf32>
    %12 = tpu.matmul %10, %11, %cst_12 {dimension_numbers = #tpu.dot_dimension_numbers<[1], [0], [0], [1], [0, 0, 1, 1], [], []>} : vector<8x256xbf16>, vector<256x256xbf16>, vector<8x256xf32> -> vector<8x256xf32>
    %c0_13 = arith.constant 0 : index
    %c0_14 = arith.constant 0 : index
    %13 = vector.load %arg5[%c0_13, %c0_14] : memref<1x256xf32, #tpu.memory_space<vmem>>, vector<1x256xf32>
    %14 = vector.broadcast %13 : vector<1x256xf32> to vector<8x256xf32>
    %15 = arith.addf %12, %14 : vector<8x256xf32>
    %c0_15 = arith.constant 0 : index
    %c0_16 = arith.constant 0 : index
    %16 = vector.load %arg6[%c0_15, %c0_16] : memref<8x256xf32, #tpu.memory_space<vmem>>, vector<8x256xf32>
    tpu.vector_store %arg6[%c0_15, %c0_16], %15 {strides = array<i32>} : memref<8x256xf32, #tpu.memory_space<vmem>>, vector<8x256xf32>,
    return
  }
  func.func @transform_0(%arg0: i32) -> (i32, i32) {
    %c0_i32 = arith.constant 0 : i32
    %c0_i32_0 = arith.constant 0 : i32
    %c0_i32_1 = arith.constant 0 : i32
    return %c0_i32, %c0_i32_0 : i32, i32
  }
  func.func @transform_1(%arg0: i32) -> (i32, i32) {
    %c0_i32 = arith.constant 0 : i32
    %c0_i32_0 = arith.constant 0 : i32
    %c0_i32_1 = arith.constant 0 : i32
    return %c0_i32, %c0_i32_0 : i32, i32
  }
  func.func @transform_2(%arg0: i32) -> (i32, i32) {
    %c0_i32 = arith.constant 0 : i32
    %c0_i32_0 = arith.constant 0 : i32
    %c0_i32_1 = arith.constant 0 : i32
    return %c0_i32, %c0_i32_0 : i32, i32
  }
  func.func @transform_3(%arg0: i32) -> (i32, i32) {
    %c0_i32 = arith.constant 0 : i32
    %c0_i32_0 = arith.constant 0 : i32
    %c0_i32_1 = arith.constant 0 : i32
    return %c0_i32, %c0_i32_0 : i32, i32
  }
  func.func @transform_4(%arg0: i32) -> (i32, i32) {
    %c0_i32 = arith.constant 0 : i32
    %c0_i32_0 = arith.constant 0 : i32
    %c0_i32_1 = arith.constant 0 : i32
    return %c0_i32, %c0_i32_0 : i32, i32
  }
  func.func @transform_5(%arg0: i32) -> (i32, i32) {
    %c0_i32 = arith.constant 0 : i32
    %c0_i32_0 = arith.constant 0 : i32
    %c0_i32_1 = arith.constant 0 : i32
    return %c0_i32, %c0_i32_0 : i32, i32
  }
}

</mosaic_0001>

<llo_original>
// kernel: extract_forward.9
$region0: #{extract_forward.9}
  #allocation0 [shape = 'u32[]', space=smem, size = 0x4, offset = 0x4, fixed_abs, tag = 'smem constant byte address 0x4 - core index']
  #allocation1 [shape = 'u32[144,128]{1,0:T(1,128)}', space=vmem, size = 0x12000, scoped, tag = 'internal scratch']
  #allocation2 [shape = 'f32[256,128]{1,0:T(8,128)}', space=vmem, size = 0x20000, scoped, tag = 'scratch operand']
  %s0 = inlined_call_operand.vmem [shape: bf16[1280,384], index: 0, kind: input, shape index: {}]
  %s1 = inlined_call_operand.vmem [shape: bf16[384,128], index: 1, kind: input, shape index: {}]
  %s2 = inlined_call_operand.vmem [shape: f32[1,128], index: 2, kind: input, shape index: {}]
  %s3 = inlined_call_operand.vmem [shape: f32[1280,128], index: 3, kind: output, shape index: {}]
  %s4 = sld [smem:[#allocation0]]
  $region53: #{extract_forward.9} parent=0
    _
  %s6 = ssub.s32 1, %s4
  %s7 = scalar_select 0, %s6, %s4
  loop: start=0, step=1, limit=7
  $region2: #{extract_forward.9} parent=0 // loop_pre_header
    _
  $region3: #{extract_forward.9} parent=0 // loop_header
    %s9 = sphi 0, %s13
    %p10 = scmp.ge.s32.totalorder %s9, 7
    %s16 = sphi 0, %s35
    %s17 = sphi 0, %s31
    %s18 = sphi 0, %s27
    %s19 = sphi 0, %s16
    %s20 = sphi 0, %s17
    %s21 = sphi 0, %s18
    %s22 = sphi 0, %s19
    %s23 = sphi 0, %s20
    %s24 = sphi 0, %s21
    %s40 = sphi 0, %s42
    %s43 = sphi 0, %s40
    %s44 = sphi 0, %s43
    %s60 = sphi 0, %s44
    %s68 = sphi 0, %s70
    %s71 = sphi 0, %s68
    %s72 = sphi 0, %s71
    %s88 = sphi 0, %s72
    %s94 = sphi 0, %s96
    %s97 = sphi 0, %s94
    %s98 = sphi 0, %s97
    %s114 = sphi 0, %s98
    %s122 = sphi 0, %s124
    %s125 = sphi 0, %s122
    %s126 = sphi 0, %s125
    %s142 = sphi 0, %s126
  $region4: #{extract_forward.9} parent=0 // loop_header_branch
    %12 = sbr.rel (%p10) target = $region8
  $region5: #{extract_forward.9} parent=0 // loop_body
    %s14 = ssub.s32 %s9, 1
    %s15 = ssub.s32 %s9, 2
    %s25 = sadd.s32 1, %s18
    %p26 = scmp.ge.s32.totalorder %s25, 1
    %s27 = scalar_select %p26, 0, %s25
    %s28 = sadd.s32 1, %s17
    %s29 = scalar_select %p26, %s28, %s17
    %p30 = scmp.ge.s32.totalorder %s29, 1
    %s31 = scalar_select %p30, 0, %s29
    %s32 = sadd.s32 1, %s16
    %s33 = scalar_select %p30, %s32, %s16
    %p34 = scmp.ge.s32.totalorder %s33, 5
    %s35 = scalar_select %p34, 0, %s33
    %s36 = ssub.s32 %s16, %s35
    %s37 = ssub.s32 %s18, %s27
    %s38 = sor.u32 %s36, %s37
    %p39 = scmp.eq.s32.totalorder %s38, 0
    %s41 = sadd.s32 %s40, 1
    %s42 = scalar_select %p39, %s40, %s41
    %p45 = pneg %p39
    %p46 = scmp.eq.s32.totalorder %s9, 4
    %p47 = por %p45, %p46
    %p48 = scmp.ne.s32.totalorder %s40, %s43
    %p49 = scmp.eq.s32.totalorder %s9, 0
    %p50 = por %p48, %p49
    %p51 = scmp.ne.s32.totalorder %s40, %s43
    %p52 = scmp.eq.s32.totalorder %s14, 4
    %p53 = por %p51, %p52
    %p54 = scmp.ne.s32.totalorder %s43, %s44
    %p55 = scmp.eq.s32.totalorder %s14, 0
    %p56 = por %p54, %p55
    %p57 = scmp.ne.s32.totalorder %s43, %s44
    %p58 = scmp.eq.s32.totalorder %s15, 4
    %p59 = por %p57, %p58
    %p61 = scmp.ne.s32.totalorder %s44, %s60
    %p62 = scmp.eq.s32.totalorder %s15, 0
    %p63 = por %p61, %p62
    %s64 = ssub.s32 %s18, %s27
    %s65 = ssub.s32 %s17, %s31
    %s66 = sor.u32 %s64, %s65
    %p67 = scmp.eq.s32.totalorder %s66, 0
    %s69 = sadd.s32 %s68, 1
    %s70 = scalar_select %p67, %s68, %s69
    %p73 = pneg %p67
    %p74 = scmp.eq.s32.totalorder %s9, 4
    %p75 = por %p73, %p74
    %p76 = scmp.ne.s32.totalorder %s68, %s71
    %p77 = scmp.eq.s32.totalorder %s9, 0
    %p78 = por %p76, %p77
    %p79 = scmp.ne.s32.totalorder %s68, %s71
    %p80 = scmp.eq.s32.totalorder %s14, 4
    %p81 = por %p79, %p80
    %p82 = scmp.ne.s32.totalorder %s71, %s72
    %p83 = scmp.eq.s32.totalorder %s14, 0
    %p84 = por %p82, %p83
    %p85 = scmp.ne.s32.totalorder %s71, %s72
    %p86 = scmp.eq.s32.totalorder %s15, 4
    %p87 = por %p85, %p86
    %p89 = scmp.ne.s32.totalorder %s72, %s88
    %p90 = scmp.eq.s32.totalorder %s15, 0
    %p91 = por %p89, %p90
    %s92 = ssub.s32 %s17, %s31
    %p93 = scmp.eq.s32.totalorder %s92, 0
    %s95 = sadd.s32 %s94, 1
    %s96 = scalar_select %p93, %s94, %s95
    %p99 = pneg %p93
    %p100 = scmp.eq.s32.totalorder %s9, 4
    %p101 = por %p99, %p100
    %p102 = scmp.ne.s32.totalorder %s94, %s97
    %p103 = scmp.eq.s32.totalorder %s9, 0
    %p104 = por %p102, %p103
    %p105 = scmp.ne.s32.totalorder %s94, %s97
    %p106 = scmp.eq.s32.totalorder %s14, 4
    %p107 = por %p105, %p106
    %p108 = scmp.ne.s32.totalorder %s97, %s98
    %p109 = scmp.eq.s32.totalorder %s14, 0
    %p110 = por %p108, %p109
    %p111 = scmp.ne.s32.totalorder %s97, %s98
    %p112 = scmp.eq.s32.totalorder %s15, 4
    %p113 = por %p111, %p112
    %p115 = scmp.ne.s32.totalorder %s98, %s114
    %p116 = scmp.eq.s32.totalorder %s15, 0
    %p117 = por %p115, %p116
    %s118 = ssub.s32 %s16, %s35
    %s119 = ssub.s32 %s17, %s31
    %s120 = sor.u32 %s118, %s119
    %p121 = scmp.eq.s32.totalorder %s120, 0
    %s123 = sadd.s32 %s122, 1
    %s124 = scalar_select %p121, %s122, %s123
    %p127 = pneg %p121
    %p128 = scmp.eq.s32.totalorder %s9, 4
    %p129 = por %p127, %p128
    %p130 = scmp.ne.s32.totalorder %s122, %s125
    %p131 = scmp.eq.s32.totalorder %s9, 0
    %p132 = por %p130, %p131
    %p133 = scmp.ne.s32.totalorder %s122, %s125
    %p134 = scmp.eq.s32.totalorder %s14, 4
    %p135 = por %p133, %p134
    %p136 = scmp.ne.s32.totalorder %s125, %s126
    %p137 = scmp.eq.s32.totalorder %s14, 0
    %p138 = por %p136, %p137
    %p139 = scmp.ne.s32.totalorder %s125, %s126
    %p140 = scmp.eq.s32.totalorder %s15, 4
    %p141 = por %p139, %p140
    %p143 = scmp.ne.s32.totalorder %s126, %s142
    %p144 = scmp.eq.s32.totalorder %s15, 0
    %p145 = por %p143, %p144
    %p146 = scmp.le.s32.totalorder 1, %s9
    %p147 = scmp.lt.s32.totalorder %s9, 6
    %p148 = pnand %p146, %p147
    %p149 = pneg %p148
    // Predicated region
    $region9: #{extract_forward.9} parent=5 // pred_check
      _
    $region10: #{extract_forward.9} parent=5 // pred_check_branch
      %151 = sbr.rel (%p148) target = $region12
    $region11: #{extract_forward.9} parent=5 // pred_region
      %s152 = ssub.s32 %s9, 1
      // Predicated region
      $region13: #{extract_forward.9} parent=11 // pred_check
        %p153 = pneg %p84
      $region14: #{extract_forward.9} parent=11 // pred_check_branch
        %155 = sbr.rel (%p153) target = $region16
      $region15: #{extract_forward.9} parent=11 // pred_region
        %s156 = smul.u32 48, %s21
        %p157 = scmp.lt.s32.totalorder %s156, 47
        %s158 = scalar_select %p157, %s156, 47
        %p159 = scmp.lt.s32.totalorder %s20, 0
        %s160 = scalar_select %p159, %s20, 0
        %s161 = sadd.s32 %s160, %s158
        %s162 = smul.addr %s161, 4
        %s163 = scalar_lea.vmem %s1, %s162
        %s164 = smul.u32 48, %s21
      $region16: #{extract_forward.9} parent=11 // pred_fallthru
        _
      // Predicated region
      $region17: #{extract_forward.9} parent=11 // pred_check
        %p165 = pneg %p110
      $region18: #{extract_forward.9} parent=11 // pred_check_branch
        %167 = sbr.rel (%p165) target = $region20
      $region19: #{extract_forward.9} parent=11 // pred_region
        %p168 = scmp.lt.s32.totalorder %s20, 0
        %s169 = scalar_select %p168, %s20, 0
        %s170 = scalar_lea.vmem %s2, %s169
      $region20: #{extract_forward.9} parent=11 // pred_fallthru
        _
    $region12: #{extract_forward.9} parent=5 // pred_fallthru
      _
    %p171 = scmp.lt.s32.totalorder %s9, 5
    // Predicated region
    $region21: #{extract_forward.9} parent=5 // pred_check
      %p172 = pneg %p171
    $region22: #{extract_forward.9} parent=5 // pred_check_branch
      %174 = sbr.rel (%p172) target = $region24
    $region23: #{extract_forward.9} parent=5 // pred_region
      // Predicated region
      $region25: #{extract_forward.9} parent=23 // pred_check
        %p175 = pneg %p50
      $region26: #{extract_forward.9} parent=23 // pred_check_branch
        %177 = sbr.rel (%p175) target = $region28
      $region27: #{extract_forward.9} parent=23 // pred_region
        %s178 = smul.u32 32, %s16
        %s179 = smul.u32 3, %s18
        %p180 = scmp.lt.s32.totalorder %s178, 159
        %s181 = scalar_select %p180, %s178, 159
        %p182 = scmp.lt.s32.totalorder %s179, 2
        %s183 = scalar_select %p182, %s179, 2
        %s184 = smul.addr %s181, 3
        %s185 = sadd.s32 %s183, %s184
        %s186 = smul.addr %s185, 4
        %s187 = scalar_lea.vmem %s0, %s186
        %s188 = smul.u32 32, %s16
        %s189 = smul.u32 3, %s18
      $region28: #{extract_forward.9} parent=23 // pred_fallthru
        _
    $region24: #{extract_forward.9} parent=5 // pred_fallthru
      _
    %p190 = scmp.le.s32.totalorder 1, %s9
    %p191 = scmp.lt.s32.totalorder %s9, 6
    %p192 = pnand %p190, %p191
    %p193 = pneg %p192
    // Predicated region
    $region29: #{extract_forward.9} parent=5 // pred_check
      _
    $region30: #{extract_forward.9} parent=5 // pred_check_branch
      %195 = sbr.rel (%p192) target = $region32
    $region31: #{extract_forward.9} parent=5 // pred_region
      %s196 = ssub.s32 %s9, 1
      %s197 = smul.u32 32, %s19
      %s198 = smul.u32 3, %s21
      %p199 = scmp.lt.s32.totalorder %s197, 159
      %s200 = scalar_select %p199, %s197, 159
      %p201 = scmp.lt.s32.totalorder %s198, 2
      %s202 = scalar_select %p201, %s198, 2
      %s203 = smul.addr %s200, 3
      %s204 = sadd.s32 %s202, %s203
      %s205 = smul.addr %s204, 4
      %s206 = scalar_lea.vmem %s0, %s205
      %p207 = pneg %p56
      %p208 = pneg %p53
      %s209 = smul.u32 48, %s21
      %p210 = scmp.lt.s32.totalorder %s209, 47
      %s211 = scalar_select %p210, %s209, 47
      %p212 = scmp.lt.s32.totalorder %s20, 0
      %s213 = scalar_select %p212, %s20, 0
      %s214 = sadd.s32 %s213, %s211
      %s215 = smul.addr %s214, 4
      %s216 = scalar_lea.vmem %s1, %s215
      %p217 = pneg %p84
      %p218 = pneg %p81
      %p219 = scmp.lt.s32.totalorder %s20, 0
      %s220 = scalar_select %p219, %s20, 0
      %s221 = scalar_lea.vmem %s2, %s220
      %p222 = pneg %p110
      %p223 = pneg %p107
      %p224 = pneg %p138
      %p225 = pneg %p135
      %s226 = smul.u32 32, %s19
      %p227 = scmp.lt.s32.totalorder %s226, 159
      %s228 = scalar_select %p227, %s226, 159
      %p229 = scmp.lt.s32.totalorder %s20, 0
      %s230 = scalar_select %p229, %s20, 0
      %s231 = sadd.s32 %s230, %s228
      %s232 = smul.addr %s231, 8
      %s233 = scalar_lea.vmem %s3, %s232
      %s234 = smul.u32 32, %s19
      %s235 = smul.u32 3, %s21
      %p236 = scmp.lt.s32.totalorder %s234, 159
      %s237 = scalar_select %p236, %s234, 159
      %p238 = scmp.lt.s32.totalorder %s235, 2
      %s239 = scalar_select %p238, %s235, 2
      %s240 = smul.addr %s237, 3
      %s241 = sadd.s32 %s239, %s240
      %s242 = smul.addr %s241, 4
      %s243 = scalar_lea.vmem %s0, %s242
      %s244 = smul.u32 32, %s19
      %s245 = smul.u32 3, %s21
      %s246 = smul.u32 48, %s21
      %p247 = scmp.lt.s32.totalorder %s246, 47
      %s248 = scalar_select %p247, %s246, 47
      %p249 = scmp.lt.s32.totalorder %s20, 0
      %s250 = scalar_select %p249, %s20, 0
      %s251 = sadd.s32 %s250, %s248
      %s252 = smul.addr %s251, 4
      %s253 = scalar_lea.vmem %s1, %s252
      %s254 = smul.u32 48, %s21
      %p255 = scmp.lt.s32.totalorder %s20, 0
      %s256 = scalar_select %p255, %s20, 0
      %s257 = scalar_lea.vmem %s2, %s256
      %s258 = smul.u32 32, %s19
      %p259 = scmp.lt.s32.totalorder %s258, 159
      %s260 = scalar_select %p259, %s258, 159
      %p261 = scmp.lt.s32.totalorder %s20, 0
      %s262 = scalar_select %p261, %s20, 0
      %s263 = sadd.s32 %s262, %s260
      %s264 = smul.addr %s263, 8
      %s265 = scalar_lea.vmem %s3, %s264
      %s266 = smul.u32 32, %s19
      %p268 = scmp.eq.s32.totalorder %s21, 0
      // Predicated region
      $region33: #{extract_forward.9} parent=31 // pred_check
        %p269 = pneg %p268
      $region34: #{extract_forward.9} parent=31 // pred_check_branch
        %271 = sbr.rel (%p269) target = $region36
      $region35: #{extract_forward.9} parent=31 // pred_region
        %272 = vst [vmem:[#allocation2] sm:$0xff] 0.0
        %273 = vst [vmem:[#allocation2 + $0x8] sm:$0xff] 0.0
        %274 = vst [vmem:[#allocation2 + $0x10] sm:$0xff] 0.0
        %275 = vst [vmem:[#allocation2 + $0x18] sm:$0xff] 0.0
        %276 = vst [vmem:[#allocation2 + $0x20] sm:$0xff] 0.0
        %277 = vst [vmem:[#allocation2 + $0x28] sm:$0xff] 0.0
        %278 = vst [vmem:[#allocation2 + $0x30] sm:$0xff] 0.0
        %279 = vst [vmem:[#allocation2 + $0x38] sm:$0xff] 0.0
        %280 = vst [vmem:[#allocation2 + $0x40] sm:$0xff] 0.0
        %281 = vst [vmem:[#allocation2 + $0x48] sm:$0xff] 0.0
        %282 = vst [vmem:[#allocation2 + $0x50] sm:$0xff] 0.0
        %283 = vst [vmem:[#allocation2 + $0x58] sm:$0xff] 0.0
        %284 = vst [vmem:[#allocation2 + $0x60] sm:$0xff] 0.0
        %285 = vst [vmem:[#allocation2 + $0x68] sm:$0xff] 0.0
        %286 = vst [vmem:[#allocation2 + $0x70] sm:$0xff] 0.0
        %287 = vst [vmem:[#allocation2 + $0x78] sm:$0xff] 0.0
        %288 = vst [vmem:[#allocation2 + $0x80] sm:$0xff] 0.0
        %289 = vst [vmem:[#allocation2 + $0x88] sm:$0xff] 0.0
        %290 = vst [vmem:[#allocation2 + $0x90] sm:$0xff] 0.0
        %291 = vst [vmem:[#allocation2 + $0x98] sm:$0xff] 0.0
        %292 = vst [vmem:[#allocation2 + $0xa0] sm:$0xff] 0.0
        %293 = vst [vmem:[#allocation2 + $0xa8] sm:$0xff] 0.0
        %294 = vst [vmem:[#allocation2 + $0xb0] sm:$0xff] 0.0
        %295 = vst [vmem:[#allocation2 + $0xb8] sm:$0xff] 0.0
        %296 = vst [vmem:[#allocation2 + $0xc0] sm:$0xff] 0.0
        %297 = vst [vmem:[#allocation2 + $0xc8] sm:$0xff] 0.0
        %298 = vst [vmem:[#allocation2 + $0xd0] sm:$0xff] 0.0
        %299 = vst [vmem:[#allocation2 + $0xd8] sm:$0xff] 0.0
        %300 = vst [vmem:[#allocation2 + $0xe0] sm:$0xff] 0.0
        %301 = vst [vmem:[#allocation2 + $0xe8] sm:$0xff] 0.0
        %302 = vst [vmem:[#allocation2 + $0xf0] sm:$0xff] 0.0
        %303 = vst [vmem:[#allocation2 + $0xf8] sm:$0xff] 0.0
      $region36: #{extract_forward.9} parent=31 // pred_fallthru
        _
      %v304 = vld [vmem:[#allocation2] sm:$0xff]
      %v305 = vld [vmem:[#allocation2 + $0x8] sm:$0xff]
      %v306 = vld [vmem:[#allocation2 + $0x10] sm:$0xff]
      %v307 = vld [vmem:[#allocation2 + $0x18] sm:$0xff]
      %v308 = vld [vmem:[#allocation2 + $0x20] sm:$0xff]
      %v309 = vld [vmem:[#allocation2 + $0x28] sm:$0xff]
      %v310 = vld [vmem:[#allocation2 + $0x30] sm:$0xff]
      %v311 = vld [vmem:[#allocation2 + $0x38] sm:$0xff]
      %v312 = vld [vmem:[#allocation2 + $0x40] sm:$0xff]
      %v313 = vld [vmem:[#allocation2 + $0x48] sm:$0xff]
      %v314 = vld [vmem:[#allocation2 + $0x50] sm:$0xff]
      %v315 = vld [vmem:[#allocation2 + $0x58] sm:$0xff]
      %v316 = vld [vmem:[#allocation2 + $0x60] sm:$0xff]
      %v317 = vld [vmem:[#allocation2 + $0x68] sm:$0xff]
      %v318 = vld [vmem:[#allocation2 + $0x70] sm:$0xff]
      %v319 = vld [vmem:[#allocation2 + $0x78] sm:$0xff]
      %v320 = vld [vmem:[#allocation2 + $0x80] sm:$0xff]
      %v321 = vld [vmem:[#allocation2 + $0x88] sm:$0xff]
      %v322 = vld [vmem:[#allocation2 + $0x90] sm:$0xff]
      %v323 = vld [vmem:[#allocation2 + $0x98] sm:$0xff]
      %v324 = vld [vmem:[#allocation2 + $0xa0] sm:$0xff]
      %v325 = vld [vmem:[#allocation2 + $0xa8] sm:$0xff]
      %v326 = vld [vmem:[#allocation2 + $0xb0] sm:$0xff]
      %v327 = vld [vmem:[#allocation2 + $0xb8] sm:$0xff]
      %v328 = vld [vmem:[#allocation2 + $0xc0] sm:$0xff]
      %v329 = vld [vmem:[#allocation2 + $0xc8] sm:$0xff]
      %v330 = vld [vmem:[#allocation2 + $0xd0] sm:$0xff]
      %v331 = vld [vmem:[#allocation2 + $0xd8] sm:$0xff]
      %v332 = vld [vmem:[#allocation2 + $0xe0] sm:$0xff]
      %v333 = vld [vmem:[#allocation2 + $0xe8] sm:$0xff]
      %v334 = vld [vmem:[#allocation2 + $0xf0] sm:$0xff]
      %v335 = vld [vmem:[#allocation2 + $0xf8] sm:$0xff]
      %v336 = vld [vmem:[%s243] sm:$0xff]
      %v337 = vld [vmem:[%s243 + $0x8] sm:$0xf]
      %v338 = vld [vmem:[%s243 + $0xc] sm:$0xff]
      %v339 = vld [vmem:[%s243 + $0x14] sm:$0xf]
      %v340 = vld [vmem:[%s243 + $0x18] sm:$0xff]
      %v341 = vld [vmem:[%s243 + $0x20] sm:$0xf]
      %v342 = vld [vmem:[%s243 + $0x24] sm:$0xff]
      %v343 = vld [vmem:[%s243 + $0x2c] sm:$0xf]
      %v344 = vld [vmem:[%s243 + $0x30] sm:$0xff]
      %v345 = vld [vmem:[%s243 + $0x38] sm:$0xf]
      %v346 = vld [vmem:[%s243 + $0x3c] sm:$0xff]
      %v347 = vld [vmem:[%s243 + $0x44] sm:$0xf]
      %v348 = vld [vmem:[%s243 + $0x48] sm:$0xff]
      %v349 = vld [vmem:[%s243 + $0x50] sm:$0xf]
      %v350 = vld [vmem:[%s243 + $0x54] sm:$0xff]
      %v351 = vld [vmem:[%s243 + $0x5c] sm:$0xf]
      %v352 = vld [vmem:[%s243 + $0x60] sm:$0xff]
      %v353 = vld [vmem:[%s243 + $0x68] sm:$0xf]
      %v354 = vld [vmem:[%s243 + $0x6c] sm:$0xff]
      %v355 = vld [vmem:[%s243 + $0x74] sm:$0xf]
      %v356 = vld [vmem:[%s243 + $0x78] sm:$0xff]
      %v357 = vld [vmem:[%s243 + $0x80] sm:$0xf]
      %v358 = vld [vmem:[%s243 + $0x84] sm:$0xff]
      %v359 = vld [vmem:[%s243 + $0x8c] sm:$0xf]
      %v360 = vld [vmem:[%s243 + $0x90] sm:$0xff]
      %v361 = vld [vmem:[%s243 + $0x98] sm:$0xf]
      %v362 = vld [vmem:[%s243 + $0x9c] sm:$0xff]
      %v363 = vld [vmem:[%s243 + $0xa4] sm:$0xf]
      %v364 = vld [vmem:[%s243 + $0xa8] sm:$0xff]
      %v365 = vld [vmem:[%s243 + $0xb0] sm:$0xf]
      %v366 = vld [vmem:[%s243 + $0xb4] sm:$0xff]
      %v367 = vld [vmem:[%s243 + $0xbc] sm:$0xf]
      %v368 = vld [vmem:[%s243 + $0xc0] sm:$0xff]
      %v369 = vld [vmem:[%s243 + $0xc8] sm:$0xf]
      %v370 = vld [vmem:[%s243 + $0xcc] sm:$0xff]
      %v371 = vld [vmem:[%s243 + $0xd4] sm:$0xf]
      %v372 = vld [vmem:[%s243 + $0xd8] sm:$0xff]
      %v373 = vld [vmem:[%s243 + $0xe0] sm:$0xf]
      %v374 = vld [vmem:[%s243 + $0xe4] sm:$0xff]
      %v375 = vld [vmem:[%s243 + $0xec] sm:$0xf]
      %v376 = vld [vmem:[%s243 + $0xf0] sm:$0xff]
      %v377 = vld [vmem:[%s243 + $0xf8] sm:$0xf]
      %v378 = vld [vmem:[%s243 + $0xfc] sm:$0xff]
      %v379 = vld [vmem:[%s243 + $0x104] sm:$0xf]
      %v380 = vld [vmem:[%s243 + $0x108] sm:$0xff]
      %v381 = vld [vmem:[%s243 + $0x110] sm:$0xf]
      %v382 = vld [vmem:[%s243 + $0x114] sm:$0xff]
      %v383 = vld [vmem:[%s243 + $0x11c] sm:$0xf]
      %v384 = vld [vmem:[%s243 + $0x120] sm:$0xff]
      %v385 = vld [vmem:[%s243 + $0x128] sm:$0xf]
      %v386 = vld [vmem:[%s243 + $0x12c] sm:$0xff]
      %v387 = vld [vmem:[%s243 + $0x134] sm:$0xf]
      %v388 = vld [vmem:[%s243 + $0x138] sm:$0xff]
      %v389 = vld [vmem:[%s243 + $0x140] sm:$0xf]
      %v390 = vld [vmem:[%s243 + $0x144] sm:$0xff]
      %v391 = vld [vmem:[%s243 + $0x14c] sm:$0xf]
      %v392 = vld [vmem:[%s243 + $0x150] sm:$0xff]
      %v393 = vld [vmem:[%s243 + $0x158] sm:$0xf]
      %v394 = vld [vmem:[%s243 + $0x15c] sm:$0xff]
      %v395 = vld [vmem:[%s243 + $0x164] sm:$0xf]
      %v396 = vld [vmem:[%s243 + $0x168] sm:$0xff]
      %v397 = vld [vmem:[%s243 + $0x170] sm:$0xf]
      %v398 = vld [vmem:[%s243 + $0x174] sm:$0xff]
      %v399 = vld [vmem:[%s243 + $0x17c] sm:$0xf]
      %v400 = vld [vmem:[%s253] sm:$0xf]
      %v401 = vld [vmem:[%s253 + $0x4] sm:$0xf]
      %v402 = vld [vmem:[%s253 + $0x8] sm:$0xf]
      %v403 = vld [vmem:[%s253 + $0xc] sm:$0xf]
      %v404 = vld [vmem:[%s253 + $0x10] sm:$0xf]
      %v405 = vld [vmem:[%s253 + $0x14] sm:$0xf]
      %v406 = vld [vmem:[%s253 + $0x18] sm:$0xf]
      %v407 = vld [vmem:[%s253 + $0x1c] sm:$0xf]
      %v408 = vld [vmem:[%s253 + $0x20] sm:$0xf]
      %v409 = vld [vmem:[%s253 + $0x24] sm:$0xf]
      %v410 = vld [vmem:[%s253 + $0x28] sm:$0xf]
      %v411 = vld [vmem:[%s253 + $0x2c] sm:$0xf]
      %v412 = vld [vmem:[%s253 + $0x30] sm:$0xf]
      %v413 = vld [vmem:[%s253 + $0x34] sm:$0xf]
      %v414 = vld [vmem:[%s253 + $0x38] sm:$0xf]
      %v415 = vld [vmem:[%s253 + $0x3c] sm:$0xf]
      %v416 = vld [vmem:[%s253 + $0x40] sm:$0xf]
      %v417 = vld [vmem:[%s253 + $0x44] sm:$0xf]
      %v418 = vld [vmem:[%s253 + $0x48] sm:$0xf]
      %v419 = vld [vmem:[%s253 + $0x4c] sm:$0xf]
      %v420 = vld [vmem:[%s253 + $0x50] sm:$0xf]
      %v421 = vld [vmem:[%s253 + $0x54] sm:$0xf]
      %v422 = vld [vmem:[%s253 + $0x58] sm:$0xf]
      %v423 = vld [vmem:[%s253 + $0x5c] sm:$0xf]
      %v424 = vld [vmem:[%s253 + $0x60] sm:$0xf]
      %v425 = vld [vmem:[%s253 + $0x64] sm:$0xf]
      %v426 = vld [vmem:[%s253 + $0x68] sm:$0xf]
      %v427 = vld [vmem:[%s253 + $0x6c] sm:$0xf]
      %v428 = vld [vmem:[%s253 + $0x70] sm:$0xf]
      %v429 = vld [vmem:[%s253 + $0x74] sm:$0xf]
      %v430 = vld [vmem:[%s253 + $0x78] sm:$0xf]
      %v431 = vld [vmem:[%s253 + $0x7c] sm:$0xf]
      %v432 = vld [vmem:[%s253 + $0x80] sm:$0xf]
      %v433 = vld [vmem:[%s253 + $0x84] sm:$0xf]
      %v434 = vld [vmem:[%s253 + $0x88] sm:$0xf]
      %v435 = vld [vmem:[%s253 + $0x8c] sm:$0xf]
      %v436 = vld [vmem:[%s253 + $0x90] sm:$0xf]
      %v437 = vld [vmem:[%s253 + $0x94] sm:$0xf]
      %v438 = vld [vmem:[%s253 + $0x98] sm:$0xf]
      %v439 = vld [vmem:[%s253 + $0x9c] sm:$0xf]
      %v440 = vld [vmem:[%s253 + $0xa0] sm:$0xf]
      %v441 = vld [vmem:[%s253 + $0xa4] sm:$0xf]
      %v442 = vld [vmem:[%s253 + $0xa8] sm:$0xf]
      %v443 = vld [vmem:[%s253 + $0xac] sm:$0xf]
      %v444 = vld [vmem:[%s253 + $0xb0] sm:$0xf]
      %v445 = vld [vmem:[%s253 + $0xb4] sm:$0xf]
      %v446 = vld [vmem:[%s253 + $0xb8] sm:$0xf]
      %v447 = vld [vmem:[%s253 + $0xbc] sm:$0xf]
      %v512 = vunpack.c.l.b16 %v336
      %v513 = vunpack.c.h.b16 %v336
      %v514 = vunpack.c.l.b16 %v337
      %v515 = vunpack.c.l.b16 %v338
      %v516 = vunpack.c.h.b16 %v338
      %v517 = vunpack.c.l.b16 %v339
      %v518 = vunpack.c.l.b16 %v340
      %v519 = vunpack.c.h.b16 %v340
      %v520 = vunpack.c.l.b16 %v341
      %v521 = vunpack.c.l.b16 %v342
      %v522 = vunpack.c.h.b16 %v342
      %v523 = vunpack.c.l.b16 %v343
      %v524 = vunpack.c.l.b16 %v344
      %v525 = vunpack.c.h.b16 %v344
      %v526 = vunpack.c.l.b16 %v345
      %v527 = vunpack.c.l.b16 %v346
      %v528 = vunpack.c.h.b16 %v346
      %v529 = vunpack.c.l.b16 %v347
      %v530 = vunpack.c.l.b16 %v348
      %v531 = vunpack.c.h.b16 %v348
      %v532 = vunpack.c.l.b16 %v349
      %v533 = vunpack.c.l.b16 %v350
      %v534 = vunpack.c.h.b16 %v350
      %v535 = vunpack.c.l.b16 %v351
      %v536 = vunpack.c.l.b16 %v352
      %v537 = vunpack.c.h.b16 %v352
      %v538 = vunpack.c.l.b16 %v353
      %v539 = vunpack.c.l.b16 %v354
      %v540 = vunpack.c.h.b16 %v354
      %v541 = vunpack.c.l.b16 %v355
      %v542 = vunpack.c.l.b16 %v356
      %v543 = vunpack.c.h.b16 %v356
      %v544 = vunpack.c.l.b16 %v357
      %v545 = vunpack.c.l.b16 %v358
      %v546 = vunpack.c.h.b16 %v358
      %v547 = vunpack.c.l.b16 %v359
      %v548 = vunpack.c.l.b16 %v360
      %v549 = vunpack.c.h.b16 %v360
      %v550 = vunpack.c.l.b16 %v361
      %v551 = vunpack.c.l.b16 %v362
      %v552 = vunpack.c.h.b16 %v362
      %v553 = vunpack.c.l.b16 %v363
      %v554 = vunpack.c.l.b16 %v364
      %v555 = vunpack.c.h.b16 %v364
      %v556 = vunpack.c.l.b16 %v365
      %v557 = vunpack.c.l.b16 %v366
      %v558 = vunpack.c.h.b16 %v366
      %v559 = vunpack.c.l.b16 %v367
      %v560 = vunpack.c.l.b16 %v368
      %v561 = vunpack.c.h.b16 %v368
      %v562 = vunpack.c.l.b16 %v369
      %v563 = vunpack.c.l.b16 %v370
      %v564 = vunpack.c.h.b16 %v370
      %v565 = vunpack.c.l.b16 %v371
      %v566 = vunpack.c.l.b16 %v372
      %v567 = vunpack.c.h.b16 %v372
      %v568 = vunpack.c.l.b16 %v373
      %v569 = vunpack.c.l.b16 %v374
      %v570 = vunpack.c.h.b16 %v374
      %v571 = vunpack.c.l.b16 %v375
      %v572 = vunpack.c.l.b16 %v376
      %v573 = vunpack.c.h.b16 %v376
      %v574 = vunpack.c.l.b16 %v377
      %v575 = vunpack.c.l.b16 %v378
      %v576 = vunpack.c.h.b16 %v378
      %v577 = vunpack.c.l.b16 %v379
      %v578 = vunpack.c.l.b16 %v380
      %v579 = vunpack.c.h.b16 %v380
      %v580 = vunpack.c.l.b16 %v381
      %v581 = vunpack.c.l.b16 %v382
      %v582 = vunpack.c.h.b16 %v382
      %v583 = vunpack.c.l.b16 %v383
      %v584 = vunpack.c.l.b16 %v384
      %v585 = vunpack.c.h.b16 %v384
      %v586 = vunpack.c.l.b16 %v385
      %v587 = vunpack.c.l.b16 %v386
      %v588 = vunpack.c.h.b16 %v386
      %v589 = vunpack.c.l.b16 %v387
      %v590 = vunpack.c.l.b16 %v388
      %v591 = vunpack.c.h.b16 %v388
      %v592 = vunpack.c.l.b16 %v389
      %v593 = vunpack.c.l.b16 %v390
      %v594 = vunpack.c.h.b16 %v390
      %v595 = vunpack.c.l.b16 %v391
      %v596 = vunpack.c.l.b16 %v392
      %v597 = vunpack.c.h.b16 %v392
      %v598 = vunpack.c.l.b16 %v393
      %v599 = vunpack.c.l.b16 %v394
      %v600 = vunpack.c.h.b16 %v394
      %v601 = vunpack.c.l.b16 %v395
      %v602 = vunpack.c.l.b16 %v396
      %v603 = vunpack.c.h.b16 %v396
      %v604 = vunpack.c.l.b16 %v397
      %v605 = vunpack.c.l.b16 %v398
      %v606 = vunpack.c.h.b16 %v398
      %v607 = vunpack.c.l.b16 %v399
      %v608 = vpack.c.b16 %v515, %v512
      %v609 = vpack.c.b16 %v516, %v513
      %v610 = vpack.c.b16 %v517, %v514
      %v611 = vpack.c.b16 %v521, %v518
      %v612 = vpack.c.b16 %v522, %v519
      %v613 = vpack.c.b16 %v523, %v520
      %v614 = vpack.c.b16 %v527, %v524
      %v615 = vpack.c.b16 %v528, %v525
      %v616 = vpack.c.b16 %v529, %v526
      %v617 = vpack.c.b16 %v533, %v530
      %v618 = vpack.c.b16 %v534, %v531
      %v619 = vpack.c.b16 %v535, %v532
      %v620 = vpack.c.b16 %v539, %v536
      %v621 = vpack.c.b16 %v540, %v537
      %v622 = vpack.c.b16 %v541, %v538
      %v623 = vpack.c.b16 %v545, %v542
      %v624 = vpack.c.b16 %v546, %v543
      %v625 = vpack.c.b16 %v547, %v544
      %v626 = vpack.c.b16 %v551, %v548
      %v627 = vpack.c.b16 %v552, %v549
      %v628 = vpack.c.b16 %v553, %v550
      %v629 = vpack.c.b16 %v557, %v554
      %v630 = vpack.c.b16 %v558, %v555
      %v631 = vpack.c.b16 %v559, %v556
      %v632 = vpack.c.b16 %v563, %v560
      %v633 = vpack.c.b16 %v564, %v561
      %v634 = vpack.c.b16 %v565, %v562
      %v635 = vpack.c.b16 %v569, %v566
      %v636 = vpack.c.b16 %v570, %v567
      %v637 = vpack.c.b16 %v571, %v568
      %v638 = vpack.c.b16 %v575, %v572
      %v639 = vpack.c.b16 %v576, %v573
      %v640 = vpack.c.b16 %v577, %v574
      %v641 = vpack.c.b16 %v581, %v578
      %v642 = vpack.c.b16 %v582, %v579
      %v643 = vpack.c.b16 %v583, %v580
      %v644 = vpack.c.b16 %v587, %v584
      %v645 = vpack.c.b16 %v588, %v585
      %v646 = vpack.c.b16 %v589, %v586
      %v647 = vpack.c.b16 %v593, %v590
      %v648 = vpack.c.b16 %v594, %v591
      %v649 = vpack.c.b16 %v595, %v592
      %v650 = vpack.c.b16 %v599, %v596
      %v651 = vpack.c.b16 %v600, %v597
      %v652 = vpack.c.b16 %v601, %v598
      %v653 = vpack.c.b16 %v605, %v602
      %v654 = vpack.c.b16 %v606, %v603
      %v655 = vpack.c.b16 %v607, %v604
      %v752 = vunpack.c.l.b16 %v400
      %v753 = vunpack.c.l.b16 %v401
      %v754 = vunpack.c.l.b16 %v402
      %v755 = vunpack.c.l.b16 %v403
      %v756 = vunpack.c.l.b16 %v404
      %v757 = vunpack.c.l.b16 %v405
      %v758 = vunpack.c.l.b16 %v406
      %v759 = vunpack.c.l.b16 %v407
      %v760 = vunpack.c.l.b16 %v408
      %v761 = vunpack.c.l.b16 %v409
      %v762 = vunpack.c.l.b16 %v410
      %v763 = vunpack.c.l.b16 %v411
      %v764 = vunpack.c.l.b16 %v412
      %v765 = vunpack.c.l.b16 %v413
      %v766 = vunpack.c.l.b16 %v414
      %v767 = vunpack.c.l.b16 %v415
      %v768 = vunpack.c.l.b16 %v416
      %v769 = vunpack.c.l.b16 %v417
      %v770 = vunpack.c.l.b16 %v418
      %v771 = vunpack.c.l.b16 %v419
      %v772 = vunpack.c.l.b16 %v420
      %v773 = vunpack.c.l.b16 %v421
      %v774 = vunpack.c.l.b16 %v422
      %v775 = vunpack.c.l.b16 %v423
      %v776 = vunpack.c.l.b16 %v424
      %v777 = vunpack.c.l.b16 %v425
      %v778 = vunpack.c.l.b16 %v426
      %v779 = vunpack.c.l.b16 %v427
      %v780 = vunpack.c.l.b16 %v428
      %v781 = vunpack.c.l.b16 %v429
      %v782 = vunpack.c.l.b16 %v430
      %v783 = vunpack.c.l.b16 %v431
      %v784 = vunpack.c.l.b16 %v432
      %v785 = vunpack.c.l.b16 %v433
      %v786 = vunpack.c.l.b16 %v434
      %v787 = vunpack.c.l.b16 %v435
      %v788 = vunpack.c.l.b16 %v436
      %v789 = vunpack.c.l.b16 %v437
      %v790 = vunpack.c.l.b16 %v438
      %v791 = vunpack.c.l.b16 %v439
      %v792 = vunpack.c.l.b16 %v440
      %v793 = vunpack.c.l.b16 %v441
      %v794 = vunpack.c.l.b16 %v442
      %v795 = vunpack.c.l.b16 %v443
      %v796 = vunpack.c.l.b16 %v444
      %v797 = vunpack.c.l.b16 %v445
      %v798 = vunpack.c.l.b16 %v446
      %v799 = vunpack.c.l.b16 %v447
      %v800 = vpack.c.b16 %v753, %v752
      %v801 = vpack.c.b16 %v755, %v754
      %v802 = vpack.c.b16 %v757, %v756
      %v803 = vpack.c.b16 %v759, %v758
      %v804 = vpack.c.b16 %v761, %v760
      %v805 = vpack.c.b16 %v763, %v762
      %v806 = vpack.c.b16 %v765, %v764
      %v807 = vpack.c.b16 %v767, %v766
      %v808 = vpack.c.b16 %v769, %v768
      %v809 = vpack.c.b16 %v771, %v770
      %v810 = vpack.c.b16 %v773, %v772
      %v811 = vpack.c.b16 %v775, %v774
      %v812 = vpack.c.b16 %v777, %v776
      %v813 = vpack.c.b16 %v779, %v778
      %v814 = vpack.c.b16 %v781, %v780
      %v815 = vpack.c.b16 %v783, %v782
      %v816 = vpack.c.b16 %v785, %v784
      %v817 = vpack.c.b16 %v787, %v786
      %v818 = vpack.c.b16 %v789, %v788
      %v819 = vpack.c.b16 %v791, %v790
      %v820 = vpack.c.b16 %v793, %v792
      %v821 = vpack.c.b16 %v795, %v794
      %v822 = vpack.c.b16 %v797, %v796
      %v823 = vpack.c.b16 %v799, %v798
      %848 = vmatprep.subr.bf16.mxu0 0
      %849 = vmatpush1.bf16.msra.mxu0 %v800
      %850 = vmatprep.subr.bf16.mxu0 0
      %851 = vmatpush1.bf16.msra.mxu0 %v801
      %852 = vmatprep.subr.bf16.mxu0 0
      %853 = vmatpush1.bf16.msra.mxu0 %v802
      %854 = vmatprep.subr.bf16.mxu0 0
      %855 = vmatpush1.bf16.msra.mxu0 %v803
      %856 = vmatprep.subr.bf16.mxu0 0
      %857 = vmatpush1.bf16.msra.mxu0 %v804
      %858 = vmatprep.subr.bf16.mxu0 0
      %859 = vmatpush1.bf16.msra.mxu0 %v805
      %860 = vmatprep.subr.bf16.mxu0 0
      %861 = vmatpush1.bf16.msra.mxu0 %v806
      %862 = vmatprep.subr.bf16.mxu0 0
      %863 = vmatpush1.bf16.msra.mxu0 %v807
      %864 = vmatprep.subr.bf16.mxu0 0
      %865 = vmatpush1.bf16.msra.mxu0 %v808
      %866 = vmatprep.subr.bf16.mxu0 0
      %867 = vmatpush1.bf16.msra.mxu0 %v809
      %868 = vmatprep.subr.bf16.mxu0 0
      %869 = vmatpush1.bf16.msra.mxu0 %v810
      %870 = vmatprep.subr.bf16.mxu0 0
      %871 = vmatpush1.bf16.msra.mxu0 %v811
      %872 = vmatprep.subr.bf16.mxu0 0
      %873 = vmatpush1.bf16.msra.mxu0 %v812
      %874 = vmatprep.subr.bf16.mxu0 0
      %875 = vmatpush1.bf16.msra.mxu0 %v813
      %876 = vmatprep.subr.bf16.mxu0 0
      %877 = vmatpush1.bf16.msra.mxu0 %v814
      %878 = vmatprep.subr.bf16.mxu0 0
      %879 = vmatpush1.bf16.msra.mxu0 %v815
      %880 = vmatprep.mubr.bf16.mxu0 %v609
      %881 = vmatmul.mubr.bf16.gmra.mrb[0].mxu0 %v608
      %v882 = vpop.f32.mrb[0].mxu0
      %v883 = vadd.f32 0.0, %v882
      %v884 = vpop.f32.mrb[0].mxu0
      %v885 = vpop.f32.mrb[0].mxu0
      %v886 = vadd.f32 0.0, %v885
      %v887 = vpop.f32.mrb[0].mxu0
      %888 = vmatprep.mubr.bf16.mxu0 %v612
      %889 = vmatmul.mubr.bf16.gmra.mrb[0].mxu0 %v611
      %v890 = vpop.f32.mrb[0].mxu0
      %v891 = vadd.f32 0.0, %v890
      %v892 = vpop.f32.mrb[0].mxu0
      %v893 = vpop.f32.mrb[0].mxu0
      %v894 = vadd.f32 0.0, %v893
      %v895 = vpop.f32.mrb[0].mxu0
      %896 = vmatprep.mubr.bf16.mxu0 %v615
      %897 = vmatmul.mubr.bf16.gmra.mrb[0].mxu0 %v614
      %v898 = vpop.f32.mrb[0].mxu0
      %v899 = vadd.f32 0.0, %v898
      %v900 = vpop.f32.mrb[0].mxu0
      %v901 = vpop.f32.mrb[0].mxu0
      %v902 = vadd.f32 0.0, %v901
      %v903 = vpop.f32.mrb[0].mxu0
      %904 = vmatprep.mubr.bf16.mxu0 %v618
      %905 = vmatmul.mubr.bf16.gmra.mrb[0].mxu0 %v617
      %v906 = vpop.f32.mrb[0].mxu0
      %v907 = vadd.f32 0.0, %v906
      %v908 = vpop.f32.mrb[0].mxu0
      %v909 = vpop.f32.mrb[0].mxu0
      %v910 = vadd.f32 0.0, %v909
      %v911 = vpop.f32.mrb[0].mxu0
      %912 = vmatprep.mubr.bf16.mxu0 %v621
      %913 = vmatmul.mubr.bf16.gmra.mrb[0].mxu0 %v620
      %v914 = vpop.f32.mrb[0].mxu0
      %v915 = vadd.f32 0.0, %v914
      %v916 = vpop.f32.mrb[0].mxu0
      %v917 = vpop.f32.mrb[0].mxu0
      %v918 = vadd.f32 0.0, %v917
      %v919 = vpop.f32.mrb[0].mxu0
      %920 = vmatprep.mubr.bf16.mxu0 %v624
      %921 = vmatmul.mubr.bf16.gmra.mrb[0].mxu0 %v623
      %v922 = vpop.f32.mrb[0].mxu0
      %v923 = vadd.f32 0.0, %v922
      %v924 = vpop.f32.mrb[0].mxu0
      %v925 = vpop.f32.mrb[0].mxu0
      %v926 = vadd.f32 0.0, %v925
      %v927 = vpop.f32.mrb[0].mxu0
      %928 = vmatprep.mubr.bf16.mxu0 %v627
      %929 = vmatmul.mubr.bf16.gmra.mrb[0].mxu0 %v626
      %v930 = vpop.f32.mrb[0].mxu0
      %v931 = vadd.f32 0.0, %v930
      %v932 = vpop.f32.mrb[0].mxu0
      %v933 = vpop.f32.mrb[0].mxu0
      %v934 = vadd.f32 0.0, %v933
      %v935 = vpop.f32.mrb[0].mxu0
      %936 = vmatprep.mubr.bf16.mxu0 %v630
      %937 = vmatmul.mubr.bf16.gmra.mrb[0].mxu0 %v629
      %v938 = vpop.f32.mrb[0].mxu0
      %v939 = vadd.f32 0.0, %v938
      %v940 = vpop.f32.mrb[0].mxu0
      %v941 = vpop.f32.mrb[0].mxu0
      %v942 = vadd.f32 0.0, %v941
      %v943 = vpop.f32.mrb[0].mxu0
      %944 = vmatprep.mubr.bf16.mxu0 %v633
      %945 = vmatmul.mubr.bf16.gmra.mrb[0].mxu0 %v632
      %v946 = vpop.f32.mrb[0].mxu0
      %v947 = vadd.f32 0.0, %v946
      %v948 = vpop.f32.mrb[0].mxu0
      %v949 = vpop.f32.mrb[0].mxu0
      %v950 = vadd.f32 0.0, %v949
      %v951 = vpop.f32.mrb[0].mxu0
      %952 = vmatprep.mubr.bf16.mxu0 %v636
      %953 = vmatmul.mubr.bf16.gmra.mrb[0].mxu0 %v635
      %v954 = vpop.f32.mrb[0].mxu0
      %v955 = vadd.f32 0.0, %v954
      %v956 = vpop.f32.mrb[0].mxu0
      %v957 = vpop.f32.mrb[0].mxu0
      %v958 = vadd.f32 0.0, %v957
      %v959 = vpop.f32.mrb[0].mxu0
      %960 = vmatprep.mubr.bf16.mxu0 %v639
      %961 = vmatmul.mubr.bf16.gmra.mrb[0].mxu0 %v638
      %v962 = vpop.f32.mrb[0].mxu0
      %v963 = vadd.f32 0.0, %v962
      %v964 = vpop.f32.mrb[0].mxu0
      %v965 = vpop.f32.mrb[0].mxu0
      %v966 = vadd.f32 0.0, %v965
      %v967 = vpop.f32.mrb[0].mxu0
      %968 = vmatprep.mubr.bf16.mxu0 %v642
      %969 = vmatmul.mubr.bf16.gmra.mrb[0].mxu0 %v641
      %v970 = vpop.f32.mrb[0].mxu0
      %v971 = vadd.f32 0.0, %v970
      %v972 = vpop.f32.mrb[0].mxu0
      %v973 = vpop.f32.mrb[0].mxu0
      %v974 = vadd.f32 0.0, %v973
      %v975 = vpop.f32.mrb[0].mxu0
      %976 = vmatprep.mubr.bf16.mxu0 %v645
      %977 = vmatmul.mubr.bf16.gmra.mrb[0].mxu0 %v644
      %v978 = vpop.f32.mrb[0].mxu0
      %v979 = vadd.f32 0.0, %v978
      %v980 = vpop.f32.mrb[0].mxu0
      %v981 = vpop.f32.mrb[0].mxu0
      %v982 = vadd.f32 0.0, %v981
      %v983 = vpop.f32.mrb[0].mxu0
      %984 = vmatprep.mubr.bf16.mxu0 %v648
      %985 = vmatmul.mubr.bf16.gmra.mrb[0].mxu0 %v647
      %v986 = vpop.f32.mrb[0].mxu0
      %v987 = vadd.f32 0.0, %v986
      %v988 = vpop.f32.mrb[0].mxu0
      %v989 = vpop.f32.mrb[0].mxu0
      %v990 = vadd.f32 0.0, %v989
      %v991 = vpop.f32.mrb[0].mxu0
      %992 = vmatprep.mubr.bf16.mxu0 %v651
      %993 = vmatmul.mubr.bf16.gmra.mrb[0].mxu0 %v650
      %v994 = vpop.f32.mrb[0].mxu0
      %v995 = vadd.f32 0.0, %v994
      %v996 = vpop.f32.mrb[0].mxu0
      %v997 = vpop.f32.mrb[0].mxu0
      %v998 = vadd.f32 0.0, %v997
      %v999 = vpop.f32.mrb[0].mxu0
      %1000 = vmatprep.mubr.bf16.mxu0 %v654
      %1001 = vmatmul.mubr.bf16.gmra.mrb[0].mxu0 %v653
      %v1002 = vpop.f32.mrb[0].mxu0
      %v1003 = vadd.f32 0.0, %v1002
      %v1004 = vpop.f32.mrb[0].mxu0
      %v1005 = vpop.f32.mrb[0].mxu0
      %v1006 = vadd.f32 0.0, %v1005
      %v1007 = vpop.f32.mrb[0].mxu0
      %1008 = vdwg.mxu0
      %1009 = vmatprep.subr.bf16.mxu0 0
      %1010 = vmatpush1.bf16.msra.mxu0 %v816
      %1011 = vmatprep.subr.bf16.mxu0 0
      %1012 = vmatpush1.bf16.msra.mxu0 %v817
      %1013 = vmatprep.subr.bf16.mxu0 0
      %1014 = vmatpush1.bf16.msra.mxu0 %v818
      %1015 = vmatprep.subr.bf16.mxu0 0
      %1016 = vmatpush1.bf16.msra.mxu0 %v819
      %1017 = vmatprep.subr.bf16.mxu0 0
      %1018 = vmatpush1.bf16.msra.mxu0 %v820
      %1019 = vmatprep.subr.bf16.mxu0 0
      %1020 = vmatpush1.bf16.msra.mxu0 %v821
      %1021 = vmatprep.subr.bf16.mxu0 0
      %1022 = vmatpush1.bf16.msra.mxu0 %v822
      %1023 = vmatprep.subr.bf16.mxu0 0
      %1024 = vmatpush1.bf16.msra.mxu0 %v823
      %1025 = vmatprep.subr.bf16.mxu0 0
      %1026 = vmatpush1.bf16.msra.mxu0 0
      %1027 = vmatprep.subr.bf16.mxu0 0
      %1028 = vmatpush1.bf16.msra.mxu0 0
      %1029 = vmatprep.subr.bf16.mxu0 0
      %1030 = vmatpush1.bf16.msra.mxu0 0
      %1031 = vmatprep.subr.bf16.mxu0 0
      %1032 = vmatpush1.bf16.msra.mxu0 0
      %1033 = vmatprep.subr.bf16.mxu0 0
      %1034 = vmatpush1.bf16.msra.mxu0 0
      %1035 = vmatprep.subr.bf16.mxu0 0
      %1036 = vmatpush1.bf16.msra.mxu0 0
      %1037 = vmatprep.subr.bf16.mxu0 0
      %1038 = vmatpush1.bf16.msra.mxu0 0
      %1039 = vmatprep.subr.bf16.mxu0 0
      %1040 = vmatpush1.bf16.msra.mxu0 0
      %1041 = vmatprep.mubr.bf16.mxu0 0
      %1042 = vmatmul.mubr.bf16.gmra.mrb[0].mxu0 %v610
      %v1043 = vpop.f32.mrb[0].mxu0
      %v1044 = vadd.f32 %v883, %v1043
      %v1045 = vpop.f32.mrb[0].mxu0
      %v1046 = vpop.f32.mrb[0].mxu0
      %v1047 = vadd.f32 %v886, %v1046
      %v1048 = vpop.f32.mrb[0].mxu0
      %1049 = vmatprep.mubr.bf16.mxu0 0
      %1050 = vmatmul.mubr.bf16.gmra.mrb[0].mxu0 %v613
      %v1051 = vpop.f32.mrb[0].mxu0
      %v1052 = vadd.f32 %v891, %v1051
      %v1053 = vpop.f32.mrb[0].mxu0
      %v1054 = vpop.f32.mrb[0].mxu0
      %v1055 = vadd.f32 %v894, %v1054
      %v1056 = vpop.f32.mrb[0].mxu0
      %1057 = vmatprep.mubr.bf16.mxu0 0
      %1058 = vmatmul.mubr.bf16.gmra.mrb[0].mxu0 %v616
      %v1059 = vpop.f32.mrb[0].mxu0
      %v1060 = vadd.f32 %v899, %v1059
      %v1061 = vpop.f32.mrb[0].mxu0
      %v1062 = vpop.f32.mrb[0].mxu0
      %v1063 = vadd.f32 %v902, %v1062
      %v1064 = vpop.f32.mrb[0].mxu0
      %1065 = vmatprep.mubr.bf16.mxu0 0
      %1066 = vmatmul.mubr.bf16.gmra.mrb[0].mxu0 %v619
      %v1067 = vpop.f32.mrb[0].mxu0
      %v1068 = vadd.f32 %v907, %v1067
      %v1069 = vpop.f32.mrb[0].mxu0
      %v1070 = vpop.f32.mrb[0].mxu0
      %v1071 = vadd.f32 %v910, %v1070
      %v1072 = vpop.f32.mrb[0].mxu0
      %1073 = vmatprep.mubr.bf16.mxu0 0
      %1074 = vmatmul.mubr.bf16.gmra.mrb[0].mxu0 %v622
      %v1075 = vpop.f32.mrb[0].mxu0
      %v1076 = vadd.f32 %v915, %v1075
      %v1077 = vpop.f32.mrb[0].mxu0
      %v1078 = vpop.f32.mrb[0].mxu0
      %v1079 = vadd.f32 %v918, %v1078
      %v1080 = vpop.f32.mrb[0].mxu0
      %1081 = vmatprep.mubr.bf16.mxu0 0
      %1082 = vmatmul.mubr.bf16.gmra.mrb[0].mxu0 %v625
      %v1083 = vpop.f32.mrb[0].mxu0
      %v1084 = vadd.f32 %v923, %v1083
      %v1085 = vpop.f32.mrb[0].mxu0
      %v1086 = vpop.f32.mrb[0].mxu0
      %v1087 = vadd.f32 %v926, %v1086
      %v1088 = vpop.f32.mrb[0].mxu0
      %1089 = vmatprep.mubr.bf16.mxu0 0
      %1090 = vmatmul.mubr.bf16.gmra.mrb[0].mxu0 %v628
      %v1091 = vpop.f32.mrb[0].mxu0
      %v1092 = vadd.f32 %v931, %v1091
      %v1093 = vpop.f32.mrb[0].mxu0
      %v1094 = vpop.f32.mrb[0].mxu0
      %v1095 = vadd.f32 %v934, %v1094
      %v1096 = vpop.f32.mrb[0].mxu0
      %1097 = vmatprep.mubr.bf16.mxu0 0
      %1098 = vmatmul.mubr.bf16.gmra.mrb[0].mxu0 %v631
      %v1099 = vpop.f32.mrb[0].mxu0
      %v1100 = vadd.f32 %v939, %v1099
      %v1101 = vpop.f32.mrb[0].mxu0
      %v1102 = vpop.f32.mrb[0].mxu0
      %v1103 = vadd.f32 %v942, %v1102
      %v1104 = vpop.f32.mrb[0].mxu0
      %1105 = vmatprep.mubr.bf16.mxu0 0
      %1106 = vmatmul.mubr.bf16.gmra.mrb[0].mxu0 %v634
      %v1107 = vpop.f32.mrb[0].mxu0
      %v1108 = vadd.f32 %v947, %v1107
      %v1109 = vpop.f32.mrb[0].mxu0
      %v1110 = vpop.f32.mrb[0].mxu0
      %v1111 = vadd.f32 %v950, %v1110
      %v1112 = vpop.f32.mrb[0].mxu0
      %1113 = vmatprep.mubr.bf16.mxu0 0
      %1114 = vmatmul.mubr.bf16.gmra.mrb[0].mxu0 %v637
      %v1115 = vpop.f32.mrb[0].mxu0
      %v1116 = vadd.f32 %v955, %v1115
      %v1117 = vpop.f32.mrb[0].mxu0
      %v1118 = vpop.f32.mrb[0].mxu0
      %v1119 = vadd.f32 %v958, %v1118
      %v1120 = vpop.f32.mrb[0].mxu0
      %1121 = vmatprep.mubr.bf16.mxu0 0
      %1122 = vmatmul.mubr.bf16.gmra.mrb[0].mxu0 %v640
      %v1123 = vpop.f32.mrb[0].mxu0
      %v1124 = vadd.f32 %v963, %v1123
      %v1125 = vpop.f32.mrb[0].mxu0
      %v1126 = vpop.f32.mrb[0].mxu0
      %v1127 = vadd.f32 %v966, %v1126
      %v1128 = vpop.f32.mrb[0].mxu0
      %1129 = vmatprep.mubr.bf16.mxu0 0
      %1130 = vmatmul.mubr.bf16.gmra.mrb[0].mxu0 %v643
      %v1131 = vpop.f32.mrb[0].mxu0
      %v1132 = vadd.f32 %v971, %v1131
      %v1133 = vpop.f32.mrb[0].mxu0
      %v1134 = vpop.f32.mrb[0].mxu0
      %v1135 = vadd.f32 %v974, %v1134
      %v1136 = vpop.f32.mrb[0].mxu0
      %1137 = vmatprep.mubr.bf16.mxu0 0
      %1138 = vmatmul.mubr.bf16.gmra.mrb[0].mxu0 %v646
      %v1139 = vpop.f32.mrb[0].mxu0
      %v1140 = vadd.f32 %v979, %v1139
      %v1141 = vpop.f32.mrb[0].mxu0
      %v1142 = vpop.f32.mrb[0].mxu0
      %v1143 = vadd.f32 %v982, %v1142
      %v1144 = vpop.f32.mrb[0].mxu0
      %1145 = vmatprep.mubr.bf16.mxu0 0
      %1146 = vmatmul.mubr.bf16.gmra.mrb[0].mxu0 %v649
      %v1147 = vpop.f32.mrb[0].mxu0
      %v1148 = vadd.f32 %v987, %v1147
      %v1149 = vpop.f32.mrb[0].mxu0
      %v1150 = vpop.f32.mrb[0].mxu0
      %v1151 = vadd.f32 %v990, %v1150
      %v1152 = vpop.f32.mrb[0].mxu0
      %1153 = vmatprep.mubr.bf16.mxu0 0
      %1154 = vmatmul.mubr.bf16.gmra.mrb[0].mxu0 %v652
      %v1155 = vpop.f32.mrb[0].mxu0
      %v1156 = vadd.f32 %v995, %v1155
      %v1157 = vpop.f32.mrb[0].mxu0
      %v1158 = vpop.f32.mrb[0].mxu0
      %v1159 = vadd.f32 %v998, %v1158
      %v1160 = vpop.f32.mrb[0].mxu0
      %1161 = vmatprep.mubr.bf16.mxu0 0
      %1162 = vmatmul.mubr.bf16.gmra.mrb[0].mxu0 %v655
      %v1163 = vpop.f32.mrb[0].mxu0
      %v1164 = vadd.f32 %v1003, %v1163
      %v1165 = vpop.f32.mrb[0].mxu0
      %v1166 = vpop.f32.mrb[0].mxu0
      %v1167 = vadd.f32 %v1006, %v1166
      %v1168 = vpop.f32.mrb[0].mxu0
      %1169 = vdwg.mxu0
      %v1170 = vadd.f32 %v304, %v1044
      %v1171 = vadd.f32 %v305, %v1047
      %v1172 = vadd.f32 %v306, %v1052
      %v1173 = vadd.f32 %v307, %v1055
      %v1174 = vadd.f32 %v308, %v1060
      %v1175 = vadd.f32 %v309, %v1063
      %v1176 = vadd.f32 %v310, %v1068
      %v1177 = vadd.f32 %v311, %v1071
      %v1178 = vadd.f32 %v312, %v1076
      %v1179 = vadd.f32 %v313, %v1079
      %v1180 = vadd.f32 %v314, %v1084
      %v1181 = vadd.f32 %v315, %v1087
      %v1182 = vadd.f32 %v316, %v1092
      %v1183 = vadd.f32 %v317, %v1095
      %v1184 = vadd.f32 %v318, %v1100
      %v1185 = vadd.f32 %v319, %v1103
      %v1186 = vadd.f32 %v320, %v1108
      %v1187 = vadd.f32 %v321, %v1111
      %v1188 = vadd.f32 %v322, %v1116
      %v1189 = vadd.f32 %v323, %v1119
      %v1190 = vadd.f32 %v324, %v1124
      %v1191 = vadd.f32 %v325, %v1127
      %v1192 = vadd.f32 %v326, %v1132
      %v1193 = vadd.f32 %v327, %v1135
      %v1194 = vadd.f32 %v328, %v1140
      %v1195 = vadd.f32 %v329, %v1143
      %v1196 = vadd.f32 %v330, %v1148
      %v1197 = vadd.f32 %v331, %v1151
      %v1198 = vadd.f32 %v332, %v1156
      %v1199 = vadd.f32 %v333, %v1159
      %v1200 = vadd.f32 %v334, %v1164
      %v1201 = vadd.f32 %v335, %v1167
      %1202 = vst [vmem:[#allocation2] sm:$0xff] %v1170
      %1203 = vst [vmem:[#allocation2 + $0x8] sm:$0xff] %v1171
      %1204 = vst [vmem:[#allocation2 + $0x10] sm:$0xff] %v1172
      %1205 = vst [vmem:[#allocation2 + $0x18] sm:$0xff] %v1173
      %1206 = vst [vmem:[#allocation2 + $0x20] sm:$0xff] %v1174
      %1207 = vst [vmem:[#allocation2 + $0x28] sm:$0xff] %v1175
      %1208 = vst [vmem:[#allocation2 + $0x30] sm:$0xff] %v1176
      %1209 = vst [vmem:[#allocation2 + $0x38] sm:$0xff] %v1177
      %1210 = vst [vmem:[#allocation2 + $0x40] sm:$0xff] %v1178
      %1211 = vst [vmem:[#allocation2 + $0x48] sm:$0xff] %v1179
      %1212 = vst [vmem:[#allocation2 + $0x50] sm:$0xff] %v1180
      %1213 = vst [vmem:[#allocation2 + $0x58] sm:$0xff] %v1181
      %1214 = vst [vmem:[#allocation2 + $0x60] sm:$0xff] %v1182
      %1215 = vst [vmem:[#allocation2 + $0x68] sm:$0xff] %v1183
      %1216 = vst [vmem:[#allocation2 + $0x70] sm:$0xff] %v1184
      %1217 = vst [vmem:[#allocation2 + $0x78] sm:$0xff] %v1185
      %1218 = vst [vmem:[#allocation2 + $0x80] sm:$0xff] %v1186
      %1219 = vst [vmem:[#allocation2 + $0x88] sm:$0xff] %v1187
      %1220 = vst [vmem:[#allocation2 + $0x90] sm:$0xff] %v1188
      %1221 = vst [vmem:[#allocation2 + $0x98] sm:$0xff] %v1189
      %1222 = vst [vmem:[#allocation2 + $0xa0] sm:$0xff] %v1190
      %1223 = vst [vmem:[#allocation2 + $0xa8] sm:$0xff] %v1191
      %1224 = vst [vmem:[#allocation2 + $0xb0] sm:$0xff] %v1192
      %1225 = vst [vmem:[#allocation2 + $0xb8] sm:$0xff] %v1193
      %1226 = vst [vmem:[#allocation2 + $0xc0] sm:$0xff] %v1194
      %1227 = vst [vmem:[#allocation2 + $0xc8] sm:$0xff] %v1195
      %1228 = vst [vmem:[#allocation2 + $0xd0] sm:$0xff] %v1196
      %1229 = vst [vmem:[#allocation2 + $0xd8] sm:$0xff] %v1197
      %1230 = vst [vmem:[#allocation2 + $0xe0] sm:$0xff] %v1198
      %1231 = vst [vmem:[#allocation2 + $0xe8] sm:$0xff] %v1199
      %1232 = vst [vmem:[#allocation2 + $0xf0] sm:$0xff] %v1200
      %1233 = vst [vmem:[#allocation2 + $0xf8] sm:$0xff] %v1201
      // Predicated region
      $region37: #{extract_forward.9} parent=31 // pred_check
        %p1234 = pneg %p268
      $region38: #{extract_forward.9} parent=31 // pred_check_branch
        %1236 = sbr.rel (%p1234) target = $region40
      $region39: #{extract_forward.9} parent=31 // pred_region
        %v1237 = vld [vmem:[#allocation2] sm:$0xff]
        %v1238 = vld [vmem:[#allocation2 + $0x8] sm:$0xff]
        %v1239 = vld [vmem:[#allocation2 + $0x10] sm:$0xff]
        %v1240 = vld [vmem:[#allocation2 + $0x18] sm:$0xff]
        %v1241 = vld [vmem:[#allocation2 + $0x20] sm:$0xff]
        %v1242 = vld [vmem:[#allocation2 + $0x28] sm:$0xff]
        %v1243 = vld [vmem:[#allocation2 + $0x30] sm:$0xff]
        %v1244 = vld [vmem:[#allocation2 + $0x38] sm:$0xff]
        %v1245 = vld [vmem:[#allocation2 + $0x40] sm:$0xff]
        %v1246 = vld [vmem:[#allocation2 + $0x48] sm:$0xff]
        %v1247 = vld [vmem:[#allocation2 + $0x50] sm:$0xff]
        %v1248 = vld [vmem:[#allocation2 + $0x58] sm:$0xff]
        %v1249 = vld [vmem:[#allocation2 + $0x60] sm:$0xff]
        %v1250 = vld [vmem:[#allocation2 + $0x68] sm:$0xff]
        %v1251 = vld [vmem:[#allocation2 + $0x70] sm:$0xff]
        %v1252 = vld [vmem:[#allocation2 + $0x78] sm:$0xff]
        %v1253 = vld [vmem:[#allocation2 + $0x80] sm:$0xff]
        %v1254 = vld [vmem:[#allocation2 + $0x88] sm:$0xff]
        %v1255 = vld [vmem:[#allocation2 + $0x90] sm:$0xff]
        %v1256 = vld [vmem:[#allocation2 + $0x98] sm:$0xff]
        %v1257 = vld [vmem:[#allocation2 + $0xa0] sm:$0xff]
        %v1258 = vld [vmem:[#allocation2 + $0xa8] sm:$0xff]
        %v1259 = vld [vmem:[#allocation2 + $0xb0] sm:$0xff]
        %v1260 = vld [vmem:[#allocation2 + $0xb8] sm:$0xff]
        %v1261 = vld [vmem:[#allocation2 + $0xc0] sm:$0xff]
        %v1262 = vld [vmem:[#allocation2 + $0xc8] sm:$0xff]
        %v1263 = vld [vmem:[#allocation2 + $0xd0] sm:$0xff]
        %v1264 = vld [vmem:[#allocation2 + $0xd8] sm:$0xff]
        %v1265 = vld [vmem:[#allocation2 + $0xe0] sm:$0xff]
        %v1266 = vld [vmem:[#allocation2 + $0xe8] sm:$0xff]
        %v1267 = vld [vmem:[#allocation2 + $0xf0] sm:$0xff]
        %v1268 = vld [vmem:[#allocation2 + $0xf8] sm:$0xff]
        %v1269 = vld [vmem:[%s257] sm:$0x1]
        %v1271 = vlaneseq
        %v1272 = vshrl.u32 %v1271, 7
        %v1273 = vsub.s32 0, %v1272
        %v1274 = vrot.slane %v1269, %v1273
        %v1276 = vadd.f32 %v1237, %v1274
        %v1277 = vadd.f32 %v1238, %v1274
        %v1278 = vadd.f32 %v1239, %v1274
        %v1279 = vadd.f32 %v1240, %v1274
        %v1280 = vadd.f32 %v1241, %v1274
        %v1281 = vadd.f32 %v1242, %v1274
        %v1282 = vadd.f32 %v1243, %v1274
        %v1283 = vadd.f32 %v1244, %v1274
        %v1284 = vadd.f32 %v1245, %v1274
        %v1285 = vadd.f32 %v1246, %v1274
        %v1286 = vadd.f32 %v1247, %v1274
        %v1287 = vadd.f32 %v1248, %v1274
        %v1288 = vadd.f32 %v1249, %v1274
        %v1289 = vadd.f32 %v1250, %v1274
        %v1290 = vadd.f32 %v1251, %v1274
        %v1291 = vadd.f32 %v1252, %v1274
        %v1292 = vadd.f32 %v1253, %v1274
        %v1293 = vadd.f32 %v1254, %v1274
        %v1294 = vadd.f32 %v1255, %v1274
        %v1295 = vadd.f32 %v1256, %v1274
        %v1296 = vadd.f32 %v1257, %v1274
        %v1297 = vadd.f32 %v1258, %v1274
        %v1298 = vadd.f32 %v1259, %v1274
        %v1299 = vadd.f32 %v1260, %v1274
        %v1300 = vadd.f32 %v1261, %v1274
        %v1301 = vadd.f32 %v1262, %v1274
        %v1302 = vadd.f32 %v1263, %v1274
        %v1303 = vadd.f32 %v1264, %v1274
        %v1304 = vadd.f32 %v1265, %v1274
        %v1305 = vadd.f32 %v1266, %v1274
        %v1306 = vadd.f32 %v1267, %v1274
        %v1307 = vadd.f32 %v1268, %v1274
        %v1308 = vmax.f32 %v1276, 0.0
        %v1309 = vmax.f32 %v1277, 0.0
        %v1310 = vmax.f32 %v1278, 0.0
        %v1311 = vmax.f32 %v1279, 0.0
        %v1312 = vmax.f32 %v1280, 0.0
        %v1313 = vmax.f32 %v1281, 0.0
        %v1314 = vmax.f32 %v1282, 0.0
        %v1315 = vmax.f32 %v1283, 0.0
        %v1316 = vmax.f32 %v1284, 0.0
        %v1317 = vmax.f32 %v1285, 0.0
        %v1318 = vmax.f32 %v1286, 0.0
        %v1319 = vmax.f32 %v1287, 0.0
        %v1320 = vmax.f32 %v1288, 0.0
        %v1321 = vmax.f32 %v1289, 0.0
        %v1322 = vmax.f32 %v1290, 0.0
        %v1323 = vmax.f32 %v1291, 0.0
        %v1324 = vmax.f32 %v1292, 0.0
        %v1325 = vmax.f32 %v1293, 0.0
        %v1326 = vmax.f32 %v1294, 0.0
        %v1327 = vmax.f32 %v1295, 0.0
        %v1328 = vmax.f32 %v1296, 0.0
        %v1329 = vmax.f32 %v1297, 0.0
        %v1330 = vmax.f32 %v1298, 0.0
        %v1331 = vmax.f32 %v1299, 0.0
        %v1332 = vmax.f32 %v1300, 0.0
        %v1333 = vmax.f32 %v1301, 0.0
        %v1334 = vmax.f32 %v1302, 0.0
        %v1335 = vmax.f32 %v1303, 0.0
        %v1336 = vmax.f32 %v1304, 0.0
        %v1337 = vmax.f32 %v1305, 0.0
        %v1338 = vmax.f32 %v1306, 0.0
        %v1339 = vmax.f32 %v1307, 0.0
        %1340 = vst [vmem:[%s265] sm:$0xff] %v1308
        %1341 = vst [vmem:[%s265 + $0x8] sm:$0xff] %v1309
        %1342 = vst [vmem:[%s265 + $0x10] sm:$0xff] %v1310
        %1343 = vst [vmem:[%s265 + $0x18] sm:$0xff] %v1311
        %1344 = vst [vmem:[%s265 + $0x20] sm:$0xff] %v1312
        %1345 = vst [vmem:[%s265 + $0x28] sm:$0xff] %v1313
        %1346 = vst [vmem:[%s265 + $0x30] sm:$0xff] %v1314
        %1347 = vst [vmem:[%s265 + $0x38] sm:$0xff] %v1315
        %1348 = vst [vmem:[%s265 + $0x40] sm:$0xff] %v1316
        %1349 = vst [vmem:[%s265 + $0x48] sm:$0xff] %v1317
        %1350 = vst [vmem:[%s265 + $0x50] sm:$0xff] %v1318
        %1351 = vst [vmem:[%s265 + $0x58] sm:$0xff] %v1319
        %1352 = vst [vmem:[%s265 + $0x60] sm:$0xff] %v1320
        %1353 = vst [vmem:[%s265 + $0x68] sm:$0xff] %v1321
        %1354 = vst [vmem:[%s265 + $0x70] sm:$0xff] %v1322
        %1355 = vst [vmem:[%s265 + $0x78] sm:$0xff] %v1323
        %1356 = vst [vmem:[%s265 + $0x80] sm:$0xff] %v1324
        %1357 = vst [vmem:[%s265 + $0x88] sm:$0xff] %v1325
        %1358 = vst [vmem:[%s265 + $0x90] sm:$0xff] %v1326
        %1359 = vst [vmem:[%s265 + $0x98] sm:$0xff] %v1327
        %1360 = vst [vmem:[%s265 + $0xa0] sm:$0xff] %v1328
        %1361 = vst [vmem:[%s265 + $0xa8] sm:$0xff] %v1329
        %1362 = vst [vmem:[%s265 + $0xb0] sm:$0xff] %v1330
        %1363 = vst [vmem:[%s265 + $0xb8] sm:$0xff] %v1331
        %1364 = vst [vmem:[%s265 + $0xc0] sm:$0xff] %v1332
        %1365 = vst [vmem:[%s265 + $0xc8] sm:$0xff] %v1333
        %1366 = vst [vmem:[%s265 + $0xd0] sm:$0xff] %v1334
        %1367 = vst [vmem:[%s265 + $0xd8] sm:$0xff] %v1335
        %1368 = vst [vmem:[%s265 + $0xe0] sm:$0xff] %v1336
        %1369 = vst [vmem:[%s265 + $0xe8] sm:$0xff] %v1337
        %1370 = vst [vmem:[%s265 + $0xf0] sm:$0xff] %v1338
        %1371 = vst [vmem:[%s265 + $0xf8] sm:$0xff] %v1339
      $region40: #{extract_forward.9} parent=31 // pred_fallthru
        _
      %s1372 = smul.u32 32, %s19
      %p1373 = scmp.lt.s32.totalorder %s1372, 159
      %s1374 = scalar_select %p1373, %s1372, 159
      %p1375 = scmp.lt.s32.totalorder %s20, 0
      %s1376 = scalar_select %p1375, %s20, 0
      %s1377 = sadd.s32 %s1376, %s1374
      %s1378 = smul.addr %s1377, 8
      %s1379 = scalar_lea.vmem %s3, %s1378
      // Predicated region
      $region41: #{extract_forward.9} parent=31 // pred_check
        %p1380 = pneg %p135
      $region42: #{extract_forward.9} parent=31 // pred_check_branch
        %1382 = sbr.rel (%p1380) target = $region44
      $region43: #{extract_forward.9} parent=31 // pred_region
        %s1383 = smul.u32 32, %s19
      $region44: #{extract_forward.9} parent=31 // pred_fallthru
        _
    $region32: #{extract_forward.9} parent=5 // pred_fallthru
      _
    %p1384 = scmp.le.s32.totalorder 2, %s9
    // Predicated region
    $region45: #{extract_forward.9} parent=5 // pred_check
      %p1385 = pneg %p1384
    $region46: #{extract_forward.9} parent=5 // pred_check_branch
      %1387 = sbr.rel (%p1385) target = $region48
    $region47: #{extract_forward.9} parent=5 // pred_region
      %s1388 = ssub.s32 %s9, 2
      // Predicated region
      $region49: #{extract_forward.9} parent=47 // pred_check
        %p1389 = pneg %p141
      $region50: #{extract_forward.9} parent=47 // pred_check_branch
        %1391 = sbr.rel (%p1389) target = $region52
      $region51: #{extract_forward.9} parent=47 // pred_region
        %s1392 = smul.u32 32, %s22
        %p1393 = scmp.lt.s32.totalorder %s1392, 159
        %s1394 = scalar_select %p1393, %s1392, 159
        %p1395 = scmp.lt.s32.totalorder %s23, 0
        %s1396 = scalar_select %p1395, %s23, 0
        %s1397 = sadd.s32 %s1396, %s1394
        %s1398 = smul.addr %s1397, 8
        %s1399 = scalar_lea.vmem %s3, %s1398
      $region52: #{extract_forward.9} parent=47 // pred_fallthru
        _
    $region48: #{extract_forward.9} parent=5 // pred_fallthru
      _
  $region6: #{extract_forward.9} parent=0 // loop_footer
    %s13 = sadd.s32 1, %s9
  $region7: #{extract_forward.9} parent=0 // loop_footer_branch
    %8 = sbr.rel target = $region3
  $region8: #{extract_forward.9} parent=0 // loop_exit
    _

// kernel: extract_forward.10
$region0: #{extract_forward.10}
  #allocation0 [shape = 'u32[]', space=smem, size = 0x4, offset = 0x4, fixed_abs, tag = 'smem constant byte address 0x4 - core index']
  #allocation1 [shape = 'u32[144,128]{1,0:T(1,128)}', space=vmem, size = 0x12000, scoped, tag = 'internal scratch']
  %s0 = inlined_call_operand.vmem [shape: f32[2,23,23,128], index: 0, kind: input, shape index: {}]
  %s1 = inlined_call_operand.vmem [shape: f32[2,21,21,128], index: 1, kind: output, shape index: {}]
  %s2 = sld [smem:[#allocation0]]
  $region37: #{extract_forward.10} parent=0
    _
  %s4 = ssub.s32 1, %s2
  %s5 = scalar_select 0, %s4, %s2
  loop: start=0, step=1, limit=4
  $region2: #{extract_forward.10} parent=0 // loop_pre_header
    _
  $region3: #{extract_forward.10} parent=0 // loop_header
    %s7 = sphi 0, %s11
    %p8 = scmp.ge.s32.totalorder %s7, 4
    %s17 = sphi 0, %s19
    %s20 = sphi 0, %s17
    %s21 = sphi 0, %s20
    %s37 = sphi 0, %s21
    %s43 = sphi 0, %s45
    %s46 = sphi 0, %s43
    %s47 = sphi 0, %s46
    %s63 = sphi 0, %s47
  $region4: #{extract_forward.10} parent=0 // loop_header_branch
    %10 = sbr.rel (%p8) target = $region8
  $region5: #{extract_forward.10} parent=0 // loop_body
    %s12 = ssub.s32 %s7, 1
    %s13 = ssub.s32 %s7, 2
    %s14 = sadd.s32 %s7, 1
    %s15 = ssub.s32 %s7, %s14
    %p16 = scmp.eq.s32.totalorder %s15, 0
    %s18 = sadd.s32 %s17, 1
    %s19 = scalar_select %p16, %s17, %s18
    %p22 = pneg %p16
    %p23 = scmp.eq.s32.totalorder %s7, 1
    %p24 = por %p22, %p23
    %p25 = scmp.ne.s32.totalorder %s17, %s20
    %p26 = scmp.eq.s32.totalorder %s7, 0
    %p27 = por %p25, %p26
    %p28 = scmp.ne.s32.totalorder %s17, %s20
    %p29 = scmp.eq.s32.totalorder %s12, 1
    %p30 = por %p28, %p29
    %p31 = scmp.ne.s32.totalorder %s20, %s21
    %p32 = scmp.eq.s32.totalorder %s12, 0
    %p33 = por %p31, %p32
    %p34 = scmp.ne.s32.totalorder %s20, %s21
    %p35 = scmp.eq.s32.totalorder %s13, 1
    %p36 = por %p34, %p35
    %p38 = scmp.ne.s32.totalorder %s21, %s37
    %p39 = scmp.eq.s32.totalorder %s13, 0
    %p40 = por %p38, %p39
    %s41 = ssub.s32 %s7, %s14
    %p42 = scmp.eq.s32.totalorder %s41, 0
    %s44 = sadd.s32 %s43, 1
    %s45 = scalar_select %p42, %s43, %s44
    %p48 = pneg %p42
    %p49 = scmp.eq.s32.totalorder %s7, 1
    %p50 = por %p48, %p49
    %p51 = scmp.ne.s32.totalorder %s43, %s46
    %p52 = scmp.eq.s32.totalorder %s7, 0
    %p53 = por %p51, %p52
    %p54 = scmp.ne.s32.totalorder %s43, %s46
    %p55 = scmp.eq.s32.totalorder %s12, 1
    %p56 = por %p54, %p55
    %p57 = scmp.ne.s32.totalorder %s46, %s47
    %p58 = scmp.eq.s32.totalorder %s12, 0
    %p59 = por %p57, %p58
    %p60 = scmp.ne.s32.totalorder %s46, %s47
    %p61 = scmp.eq.s32.totalorder %s13, 1
    %p62 = por %p60, %p61
    %p64 = scmp.ne.s32.totalorder %s47, %s63
    %p65 = scmp.eq.s32.totalorder %s13, 0
    %p66 = por %p64, %p65
    %p67 = scmp.le.s32.totalorder 1, %s7
    %p68 = scmp.lt.s32.totalorder %s7, 3
    %p69 = pnand %p67, %p68
    %p70 = pneg %p69
    // Predicated region
    $region9: #{extract_forward.10} parent=5 // pred_check
      _
    $region10: #{extract_forward.10} parent=5 // pred_check_branch
      %72 = sbr.rel (%p69) target = $region12
    $region11: #{extract_forward.10} parent=5 // pred_region
      %s73 = ssub.s32 %s7, 1
    $region12: #{extract_forward.10} parent=5 // pred_fallthru
      _
    %p74 = scmp.lt.s32.totalorder %s7, 2
    // Predicated region
    $region13: #{extract_forward.10} parent=5 // pred_check
      %p75 = pneg %p74
    $region14: #{extract_forward.10} parent=5 // pred_check_branch
      %77 = sbr.rel (%p75) target = $region16
    $region15: #{extract_forward.10} parent=5 // pred_region
      // Predicated region
      $region17: #{extract_forward.10} parent=15 // pred_check
        %p78 = pneg %p27
      $region18: #{extract_forward.10} parent=15 // pred_check_branch
        %80 = sbr.rel (%p78) target = $region20
      $region19: #{extract_forward.10} parent=15 // pred_region
        %p81 = scmp.lt.s32.totalorder %s7, 1
        %s82 = scalar_select %p81, %s7, 1
        %s83 = smul.addr %s82, 69
        %s84 = smul.addr %s83, 8
        %s85 = scalar_lea.vmem %s0, %s84
      $region20: #{extract_forward.10} parent=15 // pred_fallthru
        _
    $region16: #{extract_forward.10} parent=5 // pred_fallthru
      _
    %p86 = scmp.le.s32.totalorder 1, %s7
    %p87 = scmp.lt.s32.totalorder %s7, 3
    %p88 = pnand %p86, %p87
    %p89 = pneg %p88
    // Predicated region
    $region21: #{extract_forward.10} parent=5 // pred_check
      _
    $region22: #{extract_forward.10} parent=5 // pred_check_branch
      %91 = sbr.rel (%p88) target = $region24
    $region23: #{extract_forward.10} parent=5 // pred_region
      %s92 = ssub.s32 %s7, 1
      %p93 = scmp.lt.s32.totalorder %s12, 1
      %s94 = scalar_select %p93, %s12, 1
      %s95 = smul.addr %s94, 69
      %s96 = smul.addr %s95, 8
      %s97 = scalar_lea.vmem %s0, %s96
      %p98 = pneg %p33
      %p99 = pneg %p30
      %p100 = pneg %p59
      %p101 = pneg %p56
      %p102 = scmp.lt.s32.totalorder %s12, 1
      %s103 = scalar_select %p102, %s12, 1
      %s104 = smul.addr %s103, 63
      %s105 = smul.addr %s104, 8
      %s106 = scalar_lea.vmem %s1, %s105
      %p107 = scmp.lt.s32.totalorder %s12, 1
      %s108 = scalar_select %p107, %s12, 1
      %s109 = smul.addr %s108, 69
      %s110 = smul.addr %s109, 8
      %s111 = scalar_lea.vmem %s0, %s110
      %p112 = scmp.lt.s32.totalorder %s12, 1
      %s113 = scalar_select %p112, %s12, 1
      %s114 = smul.addr %s113, 63
      %s115 = smul.addr %s114, 8
      %s116 = scalar_lea.vmem %s1, %s115
      %v117 = vld [vmem:[%s111] sm:$0xff]
      %v118 = vld [vmem:[%s111 + $0x8] sm:$0xff]
      %v119 = vld [vmem:[%s111 + $0x10] sm:$0x1f]
      %v120 = vld [vmem:[%s111 + $0x18] sm:$0xff]
      %v121 = vld [vmem:[%s111 + $0x20] sm:$0xff]
      %v122 = vld [vmem:[%s111 + $0x28] sm:$0x1f]
      %v123 = vld [vmem:[%s111 + $0x30] sm:$0xff]
      %v124 = vld [vmem:[%s111 + $0x38] sm:$0xff]
      %v125 = vld [vmem:[%s111 + $0x40] sm:$0x1f]
      %v126 = vld [vmem:[%s111 + $0x48] sm:$0xff]
      %v127 = vld [vmem:[%s111 + $0x50] sm:$0xff]
      %v128 = vld [vmem:[%s111 + $0x58] sm:$0x1f]
      %v129 = vld [vmem:[%s111 + $0x60] sm:$0xff]
      %v130 = vld [vmem:[%s111 + $0x68] sm:$0xff]
      %v131 = vld [vmem:[%s111 + $0x70] sm:$0x1f]
      %v132 = vld [vmem:[%s111 + $0x78] sm:$0xff]
      %v133 = vld [vmem:[%s111 + $0x80] sm:$0xff]
      %v134 = vld [vmem:[%s111 + $0x88] sm:$0x1f]
      %v135 = vld [vmem:[%s111 + $0x90] sm:$0xff]
      %v136 = vld [vmem:[%s111 + $0x98] sm:$0xff]
      %v137 = vld [vmem:[%s111 + $0xa0] sm:$0x1f]
      %v138 = vld [vmem:[%s111 + $0xa8] sm:$0xff]
      %v139 = vld [vmem:[%s111 + $0xb0] sm:$0xff]
      %v140 = vld [vmem:[%s111 + $0xb8] sm:$0x1f]
      %v141 = vld [vmem:[%s111 + $0xc0] sm:$0xff]
      %v142 = vld [vmem:[%s111 + $0xc8] sm:$0xff]
      %v143 = vld [vmem:[%s111 + $0xd0] sm:$0x1f]
      %v144 = vld [vmem:[%s111 + $0xd8] sm:$0xff]
      %v145 = vld [vmem:[%s111 + $0xe0] sm:$0xff]
      %v146 = vld [vmem:[%s111 + $0xe8] sm:$0x1f]
      %v147 = vld [vmem:[%s111 + $0xf0] sm:$0xff]
      %v148 = vld [vmem:[%s111 + $0xf8] sm:$0xff]
      %v149 = vld [vmem:[%s111 + $0x100] sm:$0x1f]
      %v150 = vld [vmem:[%s111 + $0x108] sm:$0xff]
      %v151 = vld [vmem:[%s111 + $0x110] sm:$0xff]
      %v152 = vld [vmem:[%s111 + $0x118] sm:$0x1f]
      %v153 = vld [vmem:[%s111 + $0x120] sm:$0xff]
      %v154 = vld [vmem:[%s111 + $0x128] sm:$0xff]
      %v155 = vld [vmem:[%s111 + $0x130] sm:$0x1f]
      %v156 = vld [vmem:[%s111 + $0x138] sm:$0xff]
      %v157 = vld [vmem:[%s111 + $0x140] sm:$0xff]
      %v158 = vld [vmem:[%s111 + $0x148] sm:$0x1f]
      %v159 = vld [vmem:[%s111 + $0x150] sm:$0xff]
      %v160 = vld [vmem:[%s111 + $0x158] sm:$0xff]
      %v161 = vld [vmem:[%s111 + $0x160] sm:$0x1f]
      %v162 = vld [vmem:[%s111 + $0x168] sm:$0xff]
      %v163 = vld [vmem:[%s111 + $0x170] sm:$0xff]
      %v164 = vld [vmem:[%s111 + $0x178] sm:$0x1f]
      %v165 = vld [vmem:[%s111 + $0x180] sm:$0xff]
      %v166 = vld [vmem:[%s111 + $0x188] sm:$0xff]
      %v167 = vld [vmem:[%s111 + $0x190] sm:$0x1f]
      %v168 = vld [vmem:[%s111 + $0x198] sm:$0xff]
      %v169 = vld [vmem:[%s111 + $0x1a0] sm:$0xff]
      %v170 = vld [vmem:[%s111 + $0x1a8] sm:$0x1f]
      %v171 = vld [vmem:[%s111 + $0x1b0] sm:$0xff]
      %v172 = vld [vmem:[%s111 + $0x1b8] sm:$0xff]
      %v173 = vld [vmem:[%s111 + $0x1c0] sm:$0x1f]
      %v174 = vld [vmem:[%s111 + $0x1c8] sm:$0xff]
      %v175 = vld [vmem:[%s111 + $0x1d0] sm:$0xff]
      %v176 = vld [vmem:[%s111 + $0x1d8] sm:$0x1f]
      %v177 = vld [vmem:[%s111 + $0x1e0] sm:$0xff]
      %v178 = vld [vmem:[%s111 + $0x1e8] sm:$0xff]
      %v179 = vld [vmem:[%s111 + $0x1f0] sm:$0x1f]
      %v180 = vld [vmem:[%s111 + $0x1] sm:$0xff]
      %v181 = vld [vmem:[%s111 + $0x9] sm:$0xff]
      %v182 = vld [vmem:[%s111 + $0x11] sm:$0x1f]
      %v183 = vld [vmem:[%s111 + $0x19] sm:$0xff]
      %v184 = vld [vmem:[%s111 + $0x21] sm:$0xff]
      %v185 = vld [vmem:[%s111 + $0x29] sm:$0x1f]
      %v186 = vld [vmem:[%s111 + $0x31] sm:$0xff]
      %v187 = vld [vmem:[%s111 + $0x39] sm:$0xff]
      %v188 = vld [vmem:[%s111 + $0x41] sm:$0x1f]
      %v189 = vld [vmem:[%s111 + $0x49] sm:$0xff]
      %v190 = vld [vmem:[%s111 + $0x51] sm:$0xff]
      %v191 = vld [vmem:[%s111 + $0x59] sm:$0x1f]
      %v192 = vld [vmem:[%s111 + $0x61] sm:$0xff]
      %v193 = vld [vmem:[%s111 + $0x69] sm:$0xff]
      %v194 = vld [vmem:[%s111 + $0x71] sm:$0x1f]
      %v195 = vld [vmem:[%s111 + $0x79] sm:$0xff]
      %v196 = vld [vmem:[%s111 + $0x81] sm:$0xff]
      %v197 = vld [vmem:[%s111 + $0x89] sm:$0x1f]
      %v198 = vld [vmem:[%s111 + $0x91] sm:$0xff]
      %v199 = vld [vmem:[%s111 + $0x99] sm:$0xff]
      %v200 = vld [vmem:[%s111 + $0xa1] sm:$0x1f]
      %v201 = vld [vmem:[%s111 + $0xa9] sm:$0xff]
      %v202 = vld [vmem:[%s111 + $0xb1] sm:$0xff]
      %v203 = vld [vmem:[%s111 + $0xb9] sm:$0x1f]
      %v204 = vld [vmem:[%s111 + $0xc1] sm:$0xff]
      %v205 = vld [vmem:[%s111 + $0xc9] sm:$0xff]
      %v206 = vld [vmem:[%s111 + $0xd1] sm:$0x1f]
      %v207 = vld [vmem:[%s111 + $0xd9] sm:$0xff]
      %v208 = vld [vmem:[%s111 + $0xe1] sm:$0xff]
      %v209 = vld [vmem:[%s111 + $0xe9] sm:$0x1f]
      %v210 = vld [vmem:[%s111 + $0xf1] sm:$0xff]
      %v211 = vld [vmem:[%s111 + $0xf9] sm:$0xff]
      %v212 = vld [vmem:[%s111 + $0x101] sm:$0x1f]
      %v213 = vld [vmem:[%s111 + $0x109] sm:$0xff]
      %v214 = vld [vmem:[%s111 + $0x111] sm:$0xff]
      %v215 = vld [vmem:[%s111 + $0x119] sm:$0x1f]
      %v216 = vld [vmem:[%s111 + $0x121] sm:$0xff]
      %v217 = vld [vmem:[%s111 + $0x129] sm:$0xff]
      %v218 = vld [vmem:[%s111 + $0x131] sm:$0x1f]
      %v219 = vld [vmem:[%s111 + $0x139] sm:$0xff]
      %v220 = vld [vmem:[%s111 + $0x141] sm:$0xff]
      %v221 = vld [vmem:[%s111 + $0x149] sm:$0x1f]
      %v222 = vld [vmem:[%s111 + $0x151] sm:$0xff]
      %v223 = vld [vmem:[%s111 + $0x159] sm:$0xff]
      %v224 = vld [vmem:[%s111 + $0x161] sm:$0x1f]
      %v225 = vld [vmem:[%s111 + $0x169] sm:$0xff]
      %v226 = vld [vmem:[%s111 + $0x171] sm:$0xff]
      %v227 = vld [vmem:[%s111 + $0x179] sm:$0x1f]
      %v228 = vld [vmem:[%s111 + $0x181] sm:$0xff]
      %v229 = vld [vmem:[%s111 + $0x189] sm:$0xff]
      %v230 = vld [vmem:[%s111 + $0x191] sm:$0x1f]
      %v231 = vld [vmem:[%s111 + $0x199] sm:$0xff]
      %v232 = vld [vmem:[%s111 + $0x1a1] sm:$0xff]
      %v233 = vld [vmem:[%s111 + $0x1a9] sm:$0x1f]
      %v234 = vld [vmem:[%s111 + $0x1b1] sm:$0xff]
      %v235 = vld [vmem:[%s111 + $0x1b9] sm:$0xff]
      %v236 = vld [vmem:[%s111 + $0x1c1] sm:$0x1f]
      %v237 = vld [vmem:[%s111 + $0x1c9] sm:$0xff]
      %v238 = vld [vmem:[%s111 + $0x1d1] sm:$0xff]
      %v239 = vld [vmem:[%s111 + $0x1d9] sm:$0x1f]
      %v240 = vld [vmem:[%s111 + $0x1e1] sm:$0xff]
      %v241 = vld [vmem:[%s111 + $0x1e9] sm:$0xff]
      %v242 = vld [vmem:[%s111 + $0x1f1] sm:$0x1f]
      %v243 = vmax.f32 %v117, %v180
      %v244 = vmax.f32 %v118, %v181
      %v245 = vmax.f32 %v119, %v182
      %v246 = vmax.f32 %v120, %v183
      %v247 = vmax.f32 %v121, %v184
      %v248 = vmax.f32 %v122, %v185
      %v249 = vmax.f32 %v123, %v186
      %v250 = vmax.f32 %v124, %v187
      %v251 = vmax.f32 %v125, %v188
      %v252 = vmax.f32 %v126, %v189
      %v253 = vmax.f32 %v127, %v190
      %v254 = vmax.f32 %v128, %v191
      %v255 = vmax.f32 %v129, %v192
      %v256 = vmax.f32 %v130, %v193
      %v257 = vmax.f32 %v131, %v194
      %v258 = vmax.f32 %v132, %v195
      %v259 = vmax.f32 %v133, %v196
      %v260 = vmax.f32 %v134, %v197
      %v261 = vmax.f32 %v135, %v198
      %v262 = vmax.f32 %v136, %v199
      %v263 = vmax.f32 %v137, %v200
      %v264 = vmax.f32 %v138, %v201
      %v265 = vmax.f32 %v139, %v202
      %v266 = vmax.f32 %v140, %v203
      %v267 = vmax.f32 %v141, %v204
      %v268 = vmax.f32 %v142, %v205
      %v269 = vmax.f32 %v143, %v206
      %v270 = vmax.f32 %v144, %v207
      %v271 = vmax.f32 %v145, %v208
      %v272 = vmax.f32 %v146, %v209
      %v273 = vmax.f32 %v147, %v210
      %v274 = vmax.f32 %v148, %v211
      %v275 = vmax.f32 %v149, %v212
      %v276 = vmax.f32 %v150, %v213
      %v277 = vmax.f32 %v151, %v214
      %v278 = vmax.f32 %v152, %v215
      %v279 = vmax.f32 %v153, %v216
      %v280 = vmax.f32 %v154, %v217
      %v281 = vmax.f32 %v155, %v218
      %v282 = vmax.f32 %v156, %v219
      %v283 = vmax.f32 %v157, %v220
      %v284 = vmax.f32 %v158, %v221
      %v285 = vmax.f32 %v159, %v222
      %v286 = vmax.f32 %v160, %v223
      %v287 = vmax.f32 %v161, %v224
      %v288 = vmax.f32 %v162, %v225
      %v289 = vmax.f32 %v163, %v226
      %v290 = vmax.f32 %v164, %v227
      %v291 = vmax.f32 %v165, %v228
      %v292 = vmax.f32 %v166, %v229
      %v293 = vmax.f32 %v167, %v230
      %v294 = vmax.f32 %v168, %v231
      %v295 = vmax.f32 %v169, %v232
      %v296 = vmax.f32 %v170, %v233
      %v297 = vmax.f32 %v171, %v234
      %v298 = vmax.f32 %v172, %v235
      %v299 = vmax.f32 %v173, %v236
      %v300 = vmax.f32 %v174, %v237
      %v301 = vmax.f32 %v175, %v238
      %v302 = vmax.f32 %v176, %v239
      %v303 = vmax.f32 %v177, %v240
      %v304 = vmax.f32 %v178, %v241
      %v305 = vmax.f32 %v179, %v242
      %v306 = vld [vmem:[%s111 + $0x2] sm:$0xff]
      %v307 = vld [vmem:[%s111 + $0xa] sm:$0xff]
      %v308 = vld [vmem:[%s111 + $0x12] sm:$0x1f]
      %v309 = vld [vmem:[%s111 + $0x1a] sm:$0xff]
      %v310 = vld [vmem:[%s111 + $0x22] sm:$0xff]
      %v311 = vld [vmem:[%s111 + $0x2a] sm:$0x1f]
      %v312 = vld [vmem:[%s111 + $0x32] sm:$0xff]
      %v313 = vld [vmem:[%s111 + $0x3a] sm:$0xff]
      %v314 = vld [vmem:[%s111 + $0x42] sm:$0x1f]
      %v315 = vld [vmem:[%s111 + $0x4a] sm:$0xff]
      %v316 = vld [vmem:[%s111 + $0x52] sm:$0xff]
      %v317 = vld [vmem:[%s111 + $0x5a] sm:$0x1f]
      %v318 = vld [vmem:[%s111 + $0x62] sm:$0xff]
      %v319 = vld [vmem:[%s111 + $0x6a] sm:$0xff]
      %v320 = vld [vmem:[%s111 + $0x72] sm:$0x1f]
      %v321 = vld [vmem:[%s111 + $0x7a] sm:$0xff]
      %v322 = vld [vmem:[%s111 + $0x82] sm:$0xff]
      %v323 = vld [vmem:[%s111 + $0x8a] sm:$0x1f]
      %v324 = vld [vmem:[%s111 + $0x92] sm:$0xff]
      %v325 = vld [vmem:[%s111 + $0x9a] sm:$0xff]
      %v326 = vld [vmem:[%s111 + $0xa2] sm:$0x1f]
      %v327 = vld [vmem:[%s111 + $0xaa] sm:$0xff]
      %v328 = vld [vmem:[%s111 + $0xb2] sm:$0xff]
      %v329 = vld [vmem:[%s111 + $0xba] sm:$0x1f]
      %v330 = vld [vmem:[%s111 + $0xc2] sm:$0xff]
      %v331 = vld [vmem:[%s111 + $0xca] sm:$0xff]
      %v332 = vld [vmem:[%s111 + $0xd2] sm:$0x1f]
      %v333 = vld [vmem:[%s111 + $0xda] sm:$0xff]
      %v334 = vld [vmem:[%s111 + $0xe2] sm:$0xff]
      %v335 = vld [vmem:[%s111 + $0xea] sm:$0x1f]
      %v336 = vld [vmem:[%s111 + $0xf2] sm:$0xff]
      %v337 = vld [vmem:[%s111 + $0xfa] sm:$0xff]
      %v338 = vld [vmem:[%s111 + $0x102] sm:$0x1f]
      %v339 = vld [vmem:[%s111 + $0x10a] sm:$0xff]
      %v340 = vld [vmem:[%s111 + $0x112] sm:$0xff]
      %v341 = vld [vmem:[%s111 + $0x11a] sm:$0x1f]
      %v342 = vld [vmem:[%s111 + $0x122] sm:$0xff]
      %v343 = vld [vmem:[%s111 + $0x12a] sm:$0xff]
      %v344 = vld [vmem:[%s111 + $0x132] sm:$0x1f]
      %v345 = vld [vmem:[%s111 + $0x13a] sm:$0xff]
      %v346 = vld [vmem:[%s111 + $0x142] sm:$0xff]
      %v347 = vld [vmem:[%s111 + $0x14a] sm:$0x1f]
      %v348 = vld [vmem:[%s111 + $0x152] sm:$0xff]
      %v349 = vld [vmem:[%s111 + $0x15a] sm:$0xff]
      %v350 = vld [vmem:[%s111 + $0x162] sm:$0x1f]
      %v351 = vld [vmem:[%s111 + $0x16a] sm:$0xff]
      %v352 = vld [vmem:[%s111 + $0x172] sm:$0xff]
      %v353 = vld [vmem:[%s111 + $0x17a] sm:$0x1f]
      %v354 = vld [vmem:[%s111 + $0x182] sm:$0xff]
      %v355 = vld [vmem:[%s111 + $0x18a] sm:$0xff]
      %v356 = vld [vmem:[%s111 + $0x192] sm:$0x1f]
      %v357 = vld [vmem:[%s111 + $0x19a] sm:$0xff]
      %v358 = vld [vmem:[%s111 + $0x1a2] sm:$0xff]
      %v359 = vld [vmem:[%s111 + $0x1aa] sm:$0x1f]
      %v360 = vld [vmem:[%s111 + $0x1b2] sm:$0xff]
      %v361 = vld [vmem:[%s111 + $0x1ba] sm:$0xff]
      %v362 = vld [vmem:[%s111 + $0x1c2] sm:$0x1f]
      %v363 = vld [vmem:[%s111 + $0x1ca] sm:$0xff]
      %v364 = vld [vmem:[%s111 + $0x1d2] sm:$0xff]
      %v365 = vld [vmem:[%s111 + $0x1da] sm:$0x1f]
      %v366 = vld [vmem:[%s111 + $0x1e2] sm:$0xff]
      %v367 = vld [vmem:[%s111 + $0x1ea] sm:$0xff]
      %v368 = vld [vmem:[%s111 + $0x1f2] sm:$0x1f]
      %v369 = vmax.f32 %v243, %v306
      %v370 = vmax.f32 %v244, %v307
      %v371 = vmax.f32 %v245, %v308
      %v372 = vmax.f32 %v246, %v309
      %v373 = vmax.f32 %v247, %v310
      %v374 = vmax.f32 %v248, %v311
      %v375 = vmax.f32 %v249, %v312
      %v376 = vmax.f32 %v250, %v313
      %v377 = vmax.f32 %v251, %v314
      %v378 = vmax.f32 %v252, %v315
      %v379 = vmax.f32 %v253, %v316
      %v380 = vmax.f32 %v254, %v317
      %v381 = vmax.f32 %v255, %v318
      %v382 = vmax.f32 %v256, %v319
      %v383 = vmax.f32 %v257, %v320
      %v384 = vmax.f32 %v258, %v321
      %v385 = vmax.f32 %v259, %v322
      %v386 = vmax.f32 %v260, %v323
      %v387 = vmax.f32 %v261, %v324
      %v388 = vmax.f32 %v262, %v325
      %v389 = vmax.f32 %v263, %v326
      %v390 = vmax.f32 %v264, %v327
      %v391 = vmax.f32 %v265, %v328
      %v392 = vmax.f32 %v266, %v329
      %v393 = vmax.f32 %v267, %v330
      %v394 = vmax.f32 %v268, %v331
      %v395 = vmax.f32 %v269, %v332
      %v396 = vmax.f32 %v270, %v333
      %v397 = vmax.f32 %v271, %v334
      %v398 = vmax.f32 %v272, %v335
      %v399 = vmax.f32 %v273, %v336
      %v400 = vmax.f32 %v274, %v337
      %v401 = vmax.f32 %v275, %v338
      %v402 = vmax.f32 %v276, %v339
      %v403 = vmax.f32 %v277, %v340
      %v404 = vmax.f32 %v278, %v341
      %v405 = vmax.f32 %v279, %v342
      %v406 = vmax.f32 %v280, %v343
      %v407 = vmax.f32 %v281, %v344
      %v408 = vmax.f32 %v282, %v345
      %v409 = vmax.f32 %v283, %v346
      %v410 = vmax.f32 %v284, %v347
      %v411 = vmax.f32 %v285, %v348
      %v412 = vmax.f32 %v286, %v349
      %v413 = vmax.f32 %v287, %v350
      %v414 = vmax.f32 %v288, %v351
      %v415 = vmax.f32 %v289, %v352
      %v416 = vmax.f32 %v290, %v353
      %v417 = vmax.f32 %v291, %v354
      %v418 = vmax.f32 %v292, %v355
      %v419 = vmax.f32 %v293, %v356
      %v420 = vmax.f32 %v294, %v357
      %v421 = vmax.f32 %v295, %v358
      %v422 = vmax.f32 %v296, %v359
      %v423 = vmax.f32 %v297, %v360
      %v424 = vmax.f32 %v298, %v361
      %v425 = vmax.f32 %v299, %v362
      %v426 = vmax.f32 %v300, %v363
      %v427 = vmax.f32 %v301, %v364
      %v428 = vmax.f32 %v302, %v365
      %v429 = vmax.f32 %v303, %v366
      %v430 = vmax.f32 %v304, %v367
      %v431 = vmax.f32 %v305, %v368
      %s432 = scalar_lea.vmem %s111, 24
      %v433 = vld [vmem:[%s432] sm:$0xff]
      %v434 = vld [vmem:[%s432 + $0x8] sm:$0xff]
      %v435 = vld [vmem:[%s432 + $0x10] sm:$0x1f]
      %v436 = vld [vmem:[%s432 + $0x18] sm:$0xff]
      %v437 = vld [vmem:[%s432 + $0x20] sm:$0xff]
      %v438 = vld [vmem:[%s432 + $0x28] sm:$0x1f]
      %v439 = vld [vmem:[%s432 + $0x30] sm:$0xff]
      %v440 = vld [vmem:[%s432 + $0x38] sm:$0xff]
      %v441 = vld [vmem:[%s432 + $0x40] sm:$0x1f]
      %v442 = vld [vmem:[%s432 + $0x48] sm:$0xff]
      %v443 = vld [vmem:[%s432 + $0x50] sm:$0xff]
      %v444 = vld [vmem:[%s432 + $0x58] sm:$0x1f]
      %v445 = vld [vmem:[%s432 + $0x60] sm:$0xff]
      %v446 = vld [vmem:[%s432 + $0x68] sm:$0xff]
      %v447 = vld [vmem:[%s432 + $0x70] sm:$0x1f]
      %v448 = vld [vmem:[%s432 + $0x78] sm:$0xff]
      %v449 = vld [vmem:[%s432 + $0x80] sm:$0xff]
      %v450 = vld [vmem:[%s432 + $0x88] sm:$0x1f]
      %v451 = vld [vmem:[%s432 + $0x90] sm:$0xff]
      %v452 = vld [vmem:[%s432 + $0x98] sm:$0xff]
      %v453 = vld [vmem:[%s432 + $0xa0] sm:$0x1f]
      %v454 = vld [vmem:[%s432 + $0xa8] sm:$0xff]
      %v455 = vld [vmem:[%s432 + $0xb0] sm:$0xff]
      %v456 = vld [vmem:[%s432 + $0xb8] sm:$0x1f]
      %v457 = vld [vmem:[%s432 + $0xc0] sm:$0xff]
      %v458 = vld [vmem:[%s432 + $0xc8] sm:$0xff]
      %v459 = vld [vmem:[%s432 + $0xd0] sm:$0x1f]
      %v460 = vld [vmem:[%s432 + $0xd8] sm:$0xff]
      %v461 = vld [vmem:[%s432 + $0xe0] sm:$0xff]
      %v462 = vld [vmem:[%s432 + $0xe8] sm:$0x1f]
      %v463 = vld [vmem:[%s432 + $0xf0] sm:$0xff]
      %v464 = vld [vmem:[%s432 + $0xf8] sm:$0xff]
      %v465 = vld [vmem:[%s432 + $0x100] sm:$0x1f]
      %v466 = vld [vmem:[%s432 + $0x108] sm:$0xff]
      %v467 = vld [vmem:[%s432 + $0x110] sm:$0xff]
      %v468 = vld [vmem:[%s432 + $0x118] sm:$0x1f]
      %v469 = vld [vmem:[%s432 + $0x120] sm:$0xff]
      %v470 = vld [vmem:[%s432 + $0x128] sm:$0xff]
      %v471 = vld [vmem:[%s432 + $0x130] sm:$0x1f]
      %v472 = vld [vmem:[%s432 + $0x138] sm:$0xff]
      %v473 = vld [vmem:[%s432 + $0x140] sm:$0xff]
      %v474 = vld [vmem:[%s432 + $0x148] sm:$0x1f]
      %v475 = vld [vmem:[%s432 + $0x150] sm:$0xff]
      %v476 = vld [vmem:[%s432 + $0x158] sm:$0xff]
      %v477 = vld [vmem:[%s432 + $0x160] sm:$0x1f]
      %v478 = vld [vmem:[%s432 + $0x168] sm:$0xff]
      %v479 = vld [vmem:[%s432 + $0x170] sm:$0xff]
      %v480 = vld [vmem:[%s432 + $0x178] sm:$0x1f]
      %v481 = vld [vmem:[%s432 + $0x180] sm:$0xff]
      %v482 = vld [vmem:[%s432 + $0x188] sm:$0xff]
      %v483 = vld [vmem:[%s432 + $0x190] sm:$0x1f]
      %v484 = vld [vmem:[%s432 + $0x198] sm:$0xff]
      %v485 = vld [vmem:[%s432 + $0x1a0] sm:$0xff]
      %v486 = vld [vmem:[%s432 + $0x1a8] sm:$0x1f]
      %v487 = vld [vmem:[%s432 + $0x1b0] sm:$0xff]
      %v488 = vld [vmem:[%s432 + $0x1b8] sm:$0xff]
      %v489 = vld [vmem:[%s432 + $0x1c0] sm:$0x1f]
      %v490 = vld [vmem:[%s432 + $0x1c8] sm:$0xff]
      %v491 = vld [vmem:[%s432 + $0x1d0] sm:$0xff]
      %v492 = vld [vmem:[%s432 + $0x1d8] sm:$0x1f]
      %v493 = vld [vmem:[%s432 + $0x1e0] sm:$0xff]
      %v494 = vld [vmem:[%s432 + $0x1e8] sm:$0xff]
      %v495 = vld [vmem:[%s432 + $0x1f0] sm:$0x1f]
      %v496 = vmax.f32 %v369, %v433
      %v497 = vmax.f32 %v370, %v434
      %v498 = vmax.f32 %v371, %v435
      %v499 = vmax.f32 %v372, %v436
      %v500 = vmax.f32 %v373, %v437
      %v501 = vmax.f32 %v374, %v438
      %v502 = vmax.f32 %v375, %v439
      %v503 = vmax.f32 %v376, %v440
      %v504 = vmax.f32 %v377, %v441
      %v505 = vmax.f32 %v378, %v442
      %v506 = vmax.f32 %v379, %v443
      %v507 = vmax.f32 %v380, %v444
      %v508 = vmax.f32 %v381, %v445
      %v509 = vmax.f32 %v382, %v446
      %v510 = vmax.f32 %v383, %v447
      %v511 = vmax.f32 %v384, %v448
      %v512 = vmax.f32 %v385, %v449
      %v513 = vmax.f32 %v386, %v450
      %v514 = vmax.f32 %v387, %v451
      %v515 = vmax.f32 %v388, %v452
      %v516 = vmax.f32 %v389, %v453
      %v517 = vmax.f32 %v390, %v454
      %v518 = vmax.f32 %v391, %v455
      %v519 = vmax.f32 %v392, %v456
      %v520 = vmax.f32 %v393, %v457
      %v521 = vmax.f32 %v394, %v458
      %v522 = vmax.f32 %v395, %v459
      %v523 = vmax.f32 %v396, %v460
      %v524 = vmax.f32 %v397, %v461
      %v525 = vmax.f32 %v398, %v462
      %v526 = vmax.f32 %v399, %v463
      %v527 = vmax.f32 %v400, %v464
      %v528 = vmax.f32 %v401, %v465
      %v529 = vmax.f32 %v402, %v466
      %v530 = vmax.f32 %v403, %v467
      %v531 = vmax.f32 %v404, %v468
      %v532 = vmax.f32 %v405, %v469
      %v533 = vmax.f32 %v406, %v470
      %v534 = vmax.f32 %v407, %v471
      %v535 = vmax.f32 %v408, %v472
      %v536 = vmax.f32 %v409, %v473
      %v537 = vmax.f32 %v410, %v474
      %v538 = vmax.f32 %v411, %v475
      %v539 = vmax.f32 %v412, %v476
      %v540 = vmax.f32 %v413, %v477
      %v541 = vmax.f32 %v414, %v478
      %v542 = vmax.f32 %v415, %v479
      %v543 = vmax.f32 %v416, %v480
      %v544 = vmax.f32 %v417, %v481
      %v545 = vmax.f32 %v418, %v482
      %v546 = vmax.f32 %v419, %v483
      %v547 = vmax.f32 %v420, %v484
      %v548 = vmax.f32 %v421, %v485
      %v549 = vmax.f32 %v422, %v486
      %v550 = vmax.f32 %v423, %v487
      %v551 = vmax.f32 %v424, %v488
      %v552 = vmax.f32 %v425, %v489
      %v553 = vmax.f32 %v426, %v490
      %v554 = vmax.f32 %v427, %v491
      %v555 = vmax.f32 %v428, %v492
      %v556 = vmax.f32 %v429, %v493
      %v557 = vmax.f32 %v430, %v494
      %v558 = vmax.f32 %v431, %v495
      %v559 = vld [vmem:[%s432 + $0x1] sm:$0xff]
      %v560 = vld [vmem:[%s432 + $0x9] sm:$0xff]
      %v561 = vld [vmem:[%s432 + $0x11] sm:$0x1f]
      %v562 = vld [vmem:[%s432 + $0x19] sm:$0xff]
      %v563 = vld [vmem:[%s432 + $0x21] sm:$0xff]
      %v564 = vld [vmem:[%s432 + $0x29] sm:$0x1f]
      %v565 = vld [vmem:[%s432 + $0x31] sm:$0xff]
      %v566 = vld [vmem:[%s432 + $0x39] sm:$0xff]
      %v567 = vld [vmem:[%s432 + $0x41] sm:$0x1f]
      %v568 = vld [vmem:[%s432 + $0x49] sm:$0xff]
      %v569 = vld [vmem:[%s432 + $0x51] sm:$0xff]
      %v570 = vld [vmem:[%s432 + $0x59] sm:$0x1f]
      %v571 = vld [vmem:[%s432 + $0x61] sm:$0xff]
      %v572 = vld [vmem:[%s432 + $0x69] sm:$0xff]
      %v573 = vld [vmem:[%s432 + $0x71] sm:$0x1f]
      %v574 = vld [vmem:[%s432 + $0x79] sm:$0xff]
      %v575 = vld [vmem:[%s432 + $0x81] sm:$0xff]
      %v576 = vld [vmem:[%s432 + $0x89] sm:$0x1f]
      %v577 = vld [vmem:[%s432 + $0x91] sm:$0xff]
      %v578 = vld [vmem:[%s432 + $0x99] sm:$0xff]
      %v579 = vld [vmem:[%s432 + $0xa1] sm:$0x1f]
      %v580 = vld [vmem:[%s432 + $0xa9] sm:$0xff]
      %v581 = vld [vmem:[%s432 + $0xb1] sm:$0xff]
      %v582 = vld [vmem:[%s432 + $0xb9] sm:$0x1f]
      %v583 = vld [vmem:[%s432 + $0xc1] sm:$0xff]
      %v584 = vld [vmem:[%s432 + $0xc9] sm:$0xff]
      %v585 = vld [vmem:[%s432 + $0xd1] sm:$0x1f]
      %v586 = vld [vmem:[%s432 + $0xd9] sm:$0xff]
      %v587 = vld [vmem:[%s432 + $0xe1] sm:$0xff]
      %v588 = vld [vmem:[%s432 + $0xe9] sm:$0x1f]
      %v589 = vld [vmem:[%s432 + $0xf1] sm:$0xff]
      %v590 = vld [vmem:[%s432 + $0xf9] sm:$0xff]
      %v591 = vld [vmem:[%s432 + $0x101] sm:$0x1f]
      %v592 = vld [vmem:[%s432 + $0x109] sm:$0xff]
      %v593 = vld [vmem:[%s432 + $0x111] sm:$0xff]
      %v594 = vld [vmem:[%s432 + $0x119] sm:$0x1f]
      %v595 = vld [vmem:[%s432 + $0x121] sm:$0xff]
      %v596 = vld [vmem:[%s432 + $0x129] sm:$0xff]
      %v597 = vld [vmem:[%s432 + $0x131] sm:$0x1f]
      %v598 = vld [vmem:[%s432 + $0x139] sm:$0xff]
      %v599 = vld [vmem:[%s432 + $0x141] sm:$0xff]
      %v600 = vld [vmem:[%s432 + $0x149] sm:$0x1f]
      %v601 = vld [vmem:[%s432 + $0x151] sm:$0xff]
      %v602 = vld [vmem:[%s432 + $0x159] sm:$0xff]
      %v603 = vld [vmem:[%s432 + $0x161] sm:$0x1f]
      %v604 = vld [vmem:[%s432 + $0x169] sm:$0xff]
      %v605 = vld [vmem:[%s432 + $0x171] sm:$0xff]
      %v606 = vld [vmem:[%s432 + $0x179] sm:$0x1f]
      %v607 = vld [vmem:[%s432 + $0x181] sm:$0xff]
      %v608 = vld [vmem:[%s432 + $0x189] sm:$0xff]
      %v609 = vld [vmem:[%s432 + $0x191] sm:$0x1f]
      %v610 = vld [vmem:[%s432 + $0x199] sm:$0xff]
      %v611 = vld [vmem:[%s432 + $0x1a1] sm:$0xff]
      %v612 = vld [vmem:[%s432 + $0x1a9] sm:$0x1f]
      %v613 = vld [vmem:[%s432 + $0x1b1] sm:$0xff]
      %v614 = vld [vmem:[%s432 + $0x1b9] sm:$0xff]
      %v615 = vld [vmem:[%s432 + $0x1c1] sm:$0x1f]
      %v616 = vld [vmem:[%s432 + $0x1c9] sm:$0xff]
      %v617 = vld [vmem:[%s432 + $0x1d1] sm:$0xff]
      %v618 = vld [vmem:[%s432 + $0x1d9] sm:$0x1f]
      %v619 = vld [vmem:[%s432 + $0x1e1] sm:$0xff]
      %v620 = vld [vmem:[%s432 + $0x1e9] sm:$0xff]
      %v621 = vld [vmem:[%s432 + $0x1f1] sm:$0x1f]
      %v622 = vmax.f32 %v496, %v559
      %v623 = vmax.f32 %v497, %v560
      %v624 = vmax.f32 %v498, %v561
      %v625 = vmax.f32 %v499, %v562
      %v626 = vmax.f32 %v500, %v563
      %v627 = vmax.f32 %v501, %v564
      %v628 = vmax.f32 %v502, %v565
      %v629 = vmax.f32 %v503, %v566
      %v630 = vmax.f32 %v504, %v567
      %v631 = vmax.f32 %v505, %v568
      %v632 = vmax.f32 %v506, %v569
      %v633 = vmax.f32 %v507, %v570
      %v634 = vmax.f32 %v508, %v571
      %v635 = vmax.f32 %v509, %v572
      %v636 = vmax.f32 %v510, %v573
      %v637 = vmax.f32 %v511, %v574
      %v638 = vmax.f32 %v512, %v575
      %v639 = vmax.f32 %v513, %v576
      %v640 = vmax.f32 %v514, %v577
      %v641 = vmax.f32 %v515, %v578
      %v642 = vmax.f32 %v516, %v579
      %v643 = vmax.f32 %v517, %v580
      %v644 = vmax.f32 %v518, %v581
      %v645 = vmax.f32 %v519, %v582
      %v646 = vmax.f32 %v520, %v583
      %v647 = vmax.f32 %v521, %v584
      %v648 = vmax.f32 %v522, %v585
      %v649 = vmax.f32 %v523, %v586
      %v650 = vmax.f32 %v524, %v587
      %v651 = vmax.f32 %v525, %v588
      %v652 = vmax.f32 %v526, %v589
      %v653 = vmax.f32 %v527, %v590
      %v654 = vmax.f32 %v528, %v591
      %v655 = vmax.f32 %v529, %v592
      %v656 = vmax.f32 %v530, %v593
      %v657 = vmax.f32 %v531, %v594
      %v658 = vmax.f32 %v532, %v595
      %v659 = vmax.f32 %v533, %v596
      %v660 = vmax.f32 %v534, %v597
      %v661 = vmax.f32 %v535, %v598
      %v662 = vmax.f32 %v536, %v599
      %v663 = vmax.f32 %v537, %v600
      %v664 = vmax.f32 %v538, %v601
      %v665 = vmax.f32 %v539, %v602
      %v666 = vmax.f32 %v540, %v603
      %v667 = vmax.f32 %v541, %v604
      %v668 = vmax.f32 %v542, %v605
      %v669 = vmax.f32 %v543, %v606
      %v670 = vmax.f32 %v544, %v607
      %v671 = vmax.f32 %v545, %v608
      %v672 = vmax.f32 %v546, %v609
      %v673 = vmax.f32 %v547, %v610
      %v674 = vmax.f32 %v548, %v611
      %v675 = vmax.f32 %v549, %v612
      %v676 = vmax.f32 %v550, %v613
      %v677 = vmax.f32 %v551, %v614
      %v678 = vmax.f32 %v552, %v615
      %v679 = vmax.f32 %v553, %v616
      %v680 = vmax.f32 %v554, %v617
      %v681 = vmax.f32 %v555, %v618
      %v682 = vmax.f32 %v556, %v619
      %v683 = vmax.f32 %v557, %v620
      %v684 = vmax.f32 %v558, %v621
      %v685 = vld [vmem:[%s432 + $0x2] sm:$0xff]
      %v686 = vld [vmem:[%s432 + $0xa] sm:$0xff]
      %v687 = vld [vmem:[%s432 + $0x12] sm:$0x1f]
      %v688 = vld [vmem:[%s432 + $0x1a] sm:$0xff]
      %v689 = vld [vmem:[%s432 + $0x22] sm:$0xff]
      %v690 = vld [vmem:[%s432 + $0x2a] sm:$0x1f]
      %v691 = vld [vmem:[%s432 + $0x32] sm:$0xff]
      %v692 = vld [vmem:[%s432 + $0x3a] sm:$0xff]
      %v693 = vld [vmem:[%s432 + $0x42] sm:$0x1f]
      %v694 = vld [vmem:[%s432 + $0x4a] sm:$0xff]
      %v695 = vld [vmem:[%s432 + $0x52] sm:$0xff]
      %v696 = vld [vmem:[%s432 + $0x5a] sm:$0x1f]
      %v697 = vld [vmem:[%s432 + $0x62] sm:$0xff]
      %v698 = vld [vmem:[%s432 + $0x6a] sm:$0xff]
      %v699 = vld [vmem:[%s432 + $0x72] sm:$0x1f]
      %v700 = vld [vmem:[%s432 + $0x7a] sm:$0xff]
      %v701 = vld [vmem:[%s432 + $0x82] sm:$0xff]
      %v702 = vld [vmem:[%s432 + $0x8a] sm:$0x1f]
      %v703 = vld [vmem:[%s432 + $0x92] sm:$0xff]
      %v704 = vld [vmem:[%s432 + $0x9a] sm:$0xff]
      %v705 = vld [vmem:[%s432 + $0xa2] sm:$0x1f]
      %v706 = vld [vmem:[%s432 + $0xaa] sm:$0xff]
      %v707 = vld [vmem:[%s432 + $0xb2] sm:$0xff]
      %v708 = vld [vmem:[%s432 + $0xba] sm:$0x1f]
      %v709 = vld [vmem:[%s432 + $0xc2] sm:$0xff]
      %v710 = vld [vmem:[%s432 + $0xca] sm:$0xff]
      %v711 = vld [vmem:[%s432 + $0xd2] sm:$0x1f]
      %v712 = vld [vmem:[%s432 + $0xda] sm:$0xff]
      %v713 = vld [vmem:[%s432 + $0xe2] sm:$0xff]
      %v714 = vld [vmem:[%s432 + $0xea] sm:$0x1f]
      %v715 = vld [vmem:[%s432 + $0xf2] sm:$0xff]
      %v716 = vld [vmem:[%s432 + $0xfa] sm:$0xff]
      %v717 = vld [vmem:[%s432 + $0x102] sm:$0x1f]
      %v718 = vld [vmem:[%s432 + $0x10a] sm:$0xff]
      %v719 = vld [vmem:[%s432 + $0x112] sm:$0xff]
      %v720 = vld [vmem:[%s432 + $0x11a] sm:$0x1f]
      %v721 = vld [vmem:[%s432 + $0x122] sm:$0xff]
      %v722 = vld [vmem:[%s432 + $0x12a] sm:$0xff]
      %v723 = vld [vmem:[%s432 + $0x132] sm:$0x1f]
      %v724 = vld [vmem:[%s432 + $0x13a] sm:$0xff]
      %v725 = vld [vmem:[%s432 + $0x142] sm:$0xff]
      %v726 = vld [vmem:[%s432 + $0x14a] sm:$0x1f]
      %v727 = vld [vmem:[%s432 + $0x152] sm:$0xff]
      %v728 = vld [vmem:[%s432 + $0x15a] sm:$0xff]
      %v729 = vld [vmem:[%s432 + $0x162] sm:$0x1f]
      %v730 = vld [vmem:[%s432 + $0x16a] sm:$0xff]
      %v731 = vld [vmem:[%s432 + $0x172] sm:$0xff]
      %v732 = vld [vmem:[%s432 + $0x17a] sm:$0x1f]
      %v733 = vld [vmem:[%s432 + $0x182] sm:$0xff]
      %v734 = vld [vmem:[%s432 + $0x18a] sm:$0xff]
      %v735 = vld [vmem:[%s432 + $0x192] sm:$0x1f]
      %v736 = vld [vmem:[%s432 + $0x19a] sm:$0xff]
      %v737 = vld [vmem:[%s432 + $0x1a2] sm:$0xff]
      %v738 = vld [vmem:[%s432 + $0x1aa] sm:$0x1f]
      %v739 = vld [vmem:[%s432 + $0x1b2] sm:$0xff]
      %v740 = vld [vmem:[%s432 + $0x1ba] sm:$0xff]
      %v741 = vld [vmem:[%s432 + $0x1c2] sm:$0x1f]
      %v742 = vld [vmem:[%s432 + $0x1ca] sm:$0xff]
      %v743 = vld [vmem:[%s432 + $0x1d2] sm:$0xff]
      %v744 = vld [vmem:[%s432 + $0x1da] sm:$0x1f]
      %v745 = vld [vmem:[%s432 + $0x1e2] sm:$0xff]
      %v746 = vld [vmem:[%s432 + $0x1ea] sm:$0xff]
      %v747 = vld [vmem:[%s432 + $0x1f2] sm:$0x1f]
      %v748 = vmax.f32 %v622, %v685
      %v749 = vmax.f32 %v623, %v686
      %v750 = vmax.f32 %v624, %v687
      %v751 = vmax.f32 %v625, %v688
      %v752 = vmax.f32 %v626, %v689
      %v753 = vmax.f32 %v627, %v690
      %v754 = vmax.f32 %v628, %v691
      %v755 = vmax.f32 %v629, %v692
      %v756 = vmax.f32 %v630, %v693
      %v757 = vmax.f32 %v631, %v694
      %v758 = vmax.f32 %v632, %v695
      %v759 = vmax.f32 %v633, %v696
      %v760 = vmax.f32 %v634, %v697
      %v761 = vmax.f32 %v635, %v698
      %v762 = vmax.f32 %v636, %v699
      %v763 = vmax.f32 %v637, %v700
      %v764 = vmax.f32 %v638, %v701
      %v765 = vmax.f32 %v639, %v702
      %v766 = vmax.f32 %v640, %v703
      %v767 = vmax.f32 %v641, %v704
      %v768 = vmax.f32 %v642, %v705
      %v769 = vmax.f32 %v643, %v706
      %v770 = vmax.f32 %v644, %v707
      %v771 = vmax.f32 %v645, %v708
      %v772 = vmax.f32 %v646, %v709
      %v773 = vmax.f32 %v647, %v710
      %v774 = vmax.f32 %v648, %v711
      %v775 = vmax.f32 %v649, %v712
      %v776 = vmax.f32 %v650, %v713
      %v777 = vmax.f32 %v651, %v714
      %v778 = vmax.f32 %v652, %v715
      %v779 = vmax.f32 %v653, %v716
      %v780 = vmax.f32 %v654, %v717
      %v781 = vmax.f32 %v655, %v718
      %v782 = vmax.f32 %v656, %v719
      %v783 = vmax.f32 %v657, %v720
      %v784 = vmax.f32 %v658, %v721
      %v785 = vmax.f32 %v659, %v722
      %v786 = vmax.f32 %v660, %v723
      %v787 = vmax.f32 %v661, %v724
      %v788 = vmax.f32 %v662, %v725
      %v789 = vmax.f32 %v663, %v726
      %v790 = vmax.f32 %v664, %v727
      %v791 = vmax.f32 %v665, %v728
      %v792 = vmax.f32 %v666, %v729
      %v793 = vmax.f32 %v667, %v730
      %v794 = vmax.f32 %v668, %v731
      %v795 = vmax.f32 %v669, %v732
      %v796 = vmax.f32 %v670, %v733
      %v797 = vmax.f32 %v671, %v734
      %v798 = vmax.f32 %v672, %v735
      %v799 = vmax.f32 %v673, %v736
      %v800 = vmax.f32 %v674, %v737
      %v801 = vmax.f32 %v675, %v738
      %v802 = vmax.f32 %v676, %v739
      %v803 = vmax.f32 %v677, %v740
      %v804 = vmax.f32 %v678, %v741
      %v805 = vmax.f32 %v679, %v742
      %v806 = vmax.f32 %v680, %v743
      %v807 = vmax.f32 %v681, %v744
      %v808 = vmax.f32 %v682, %v745
      %v809 = vmax.f32 %v683, %v746
      %v810 = vmax.f32 %v684, %v747
      %s811 = scalar_lea.vmem %s111, 48
      %v812 = vld [vmem:[%s811] sm:$0xff]
      %v813 = vld [vmem:[%s811 + $0x8] sm:$0xff]
      %v814 = vld [vmem:[%s811 + $0x10] sm:$0x1f]
      %v815 = vld [vmem:[%s811 + $0x18] sm:$0xff]
      %v816 = vld [vmem:[%s811 + $0x20] sm:$0xff]
      %v817 = vld [vmem:[%s811 + $0x28] sm:$0x1f]
      %v818 = vld [vmem:[%s811 + $0x30] sm:$0xff]
      %v819 = vld [vmem:[%s811 + $0x38] sm:$0xff]
      %v820 = vld [vmem:[%s811 + $0x40] sm:$0x1f]
      %v821 = vld [vmem:[%s811 + $0x48] sm:$0xff]
      %v822 = vld [vmem:[%s811 + $0x50] sm:$0xff]
      %v823 = vld [vmem:[%s811 + $0x58] sm:$0x1f]
      %v824 = vld [vmem:[%s811 + $0x60] sm:$0xff]
      %v825 = vld [vmem:[%s811 + $0x68] sm:$0xff]
      %v826 = vld [vmem:[%s811 + $0x70] sm:$0x1f]
      %v827 = vld [vmem:[%s811 + $0x78] sm:$0xff]
      %v828 = vld [vmem:[%s811 + $0x80] sm:$0xff]
      %v829 = vld [vmem:[%s811 + $0x88] sm:$0x1f]
      %v830 = vld [vmem:[%s811 + $0x90] sm:$0xff]
      %v831 = vld [vmem:[%s811 + $0x98] sm:$0xff]
      %v832 = vld [vmem:[%s811 + $0xa0] sm:$0x1f]
      %v833 = vld [vmem:[%s811 + $0xa8] sm:$0xff]
      %v834 = vld [vmem:[%s811 + $0xb0] sm:$0xff]
      %v835 = vld [vmem:[%s811 + $0xb8] sm:$0x1f]
      %v836 = vld [vmem:[%s811 + $0xc0] sm:$0xff]
      %v837 = vld [vmem:[%s811 + $0xc8] sm:$0xff]
      %v838 = vld [vmem:[%s811 + $0xd0] sm:$0x1f]
      %v839 = vld [vmem:[%s811 + $0xd8] sm:$0xff]
      %v840 = vld [vmem:[%s811 + $0xe0] sm:$0xff]
      %v841 = vld [vmem:[%s811 + $0xe8] sm:$0x1f]
      %v842 = vld [vmem:[%s811 + $0xf0] sm:$0xff]
      %v843 = vld [vmem:[%s811 + $0xf8] sm:$0xff]
      %v844 = vld [vmem:[%s811 + $0x100] sm:$0x1f]
      %v845 = vld [vmem:[%s811 + $0x108] sm:$0xff]
      %v846 = vld [vmem:[%s811 + $0x110] sm:$0xff]
      %v847 = vld [vmem:[%s811 + $0x118] sm:$0x1f]
      %v848 = vld [vmem:[%s811 + $0x120] sm:$0xff]
      %v849 = vld [vmem:[%s811 + $0x128] sm:$0xff]
      %v850 = vld [vmem:[%s811 + $0x130] sm:$0x1f]
      %v851 = vld [vmem:[%s811 + $0x138] sm:$0xff]
      %v852 = vld [vmem:[%s811 + $0x140] sm:$0xff]
      %v853 = vld [vmem:[%s811 + $0x148] sm:$0x1f]
      %v854 = vld [vmem:[%s811 + $0x150] sm:$0xff]
      %v855 = vld [vmem:[%s811 + $0x158] sm:$0xff]
      %v856 = vld [vmem:[%s811 + $0x160] sm:$0x1f]
      %v857 = vld [vmem:[%s811 + $0x168] sm:$0xff]
      %v858 = vld [vmem:[%s811 + $0x170] sm:$0xff]
      %v859 = vld [vmem:[%s811 + $0x178] sm:$0x1f]
      %v860 = vld [vmem:[%s811 + $0x180] sm:$0xff]
      %v861 = vld [vmem:[%s811 + $0x188] sm:$0xff]
      %v862 = vld [vmem:[%s811 + $0x190] sm:$0x1f]
      %v863 = vld [vmem:[%s811 + $0x198] sm:$0xff]
      %v864 = vld [vmem:[%s811 + $0x1a0] sm:$0xff]
      %v865 = vld [vmem:[%s811 + $0x1a8] sm:$0x1f]
      %v866 = vld [vmem:[%s811 + $0x1b0] sm:$0xff]
      %v867 = vld [vmem:[%s811 + $0x1b8] sm:$0xff]
      %v868 = vld [vmem:[%s811 + $0x1c0] sm:$0x1f]
      %v869 = vld [vmem:[%s811 + $0x1c8] sm:$0xff]
      %v870 = vld [vmem:[%s811 + $0x1d0] sm:$0xff]
      %v871 = vld [vmem:[%s811 + $0x1d8] sm:$0x1f]
      %v872 = vld [vmem:[%s811 + $0x1e0] sm:$0xff]
      %v873 = vld [vmem:[%s811 + $0x1e8] sm:$0xff]
      %v874 = vld [vmem:[%s811 + $0x1f0] sm:$0x1f]
      %v875 = vmax.f32 %v748, %v812
      %v876 = vmax.f32 %v749, %v813
      %v877 = vmax.f32 %v750, %v814
      %v878 = vmax.f32 %v751, %v815
      %v879 = vmax.f32 %v752, %v816
      %v880 = vmax.f32 %v753, %v817
      %v881 = vmax.f32 %v754, %v818
      %v882 = vmax.f32 %v755, %v819
      %v883 = vmax.f32 %v756, %v820
      %v884 = vmax.f32 %v757, %v821
      %v885 = vmax.f32 %v758, %v822
      %v886 = vmax.f32 %v759, %v823
      %v887 = vmax.f32 %v760, %v824
      %v888 = vmax.f32 %v761, %v825
      %v889 = vmax.f32 %v762, %v826
      %v890 = vmax.f32 %v763, %v827
      %v891 = vmax.f32 %v764, %v828
      %v892 = vmax.f32 %v765, %v829
      %v893 = vmax.f32 %v766, %v830
      %v894 = vmax.f32 %v767, %v831
      %v895 = vmax.f32 %v768, %v832
      %v896 = vmax.f32 %v769, %v833
      %v897 = vmax.f32 %v770, %v834
      %v898 = vmax.f32 %v771, %v835
      %v899 = vmax.f32 %v772, %v836
      %v900 = vmax.f32 %v773, %v837
      %v901 = vmax.f32 %v774, %v838
      %v902 = vmax.f32 %v775, %v839
      %v903 = vmax.f32 %v776, %v840
      %v904 = vmax.f32 %v777, %v841
      %v905 = vmax.f32 %v778, %v842
      %v906 = vmax.f32 %v779, %v843
      %v907 = vmax.f32 %v780, %v844
      %v908 = vmax.f32 %v781, %v845
      %v909 = vmax.f32 %v782, %v846
      %v910 = vmax.f32 %v783, %v847
      %v911 = vmax.f32 %v784, %v848
      %v912 = vmax.f32 %v785, %v849
      %v913 = vmax.f32 %v786, %v850
      %v914 = vmax.f32 %v787, %v851
      %v915 = vmax.f32 %v788, %v852
      %v916 = vmax.f32 %v789, %v853
      %v917 = vmax.f32 %v790, %v854
      %v918 = vmax.f32 %v791, %v855
      %v919 = vmax.f32 %v792, %v856
      %v920 = vmax.f32 %v793, %v857
      %v921 = vmax.f32 %v794, %v858
      %v922 = vmax.f32 %v795, %v859
      %v923 = vmax.f32 %v796, %v860
      %v924 = vmax.f32 %v797, %v861
      %v925 = vmax.f32 %v798, %v862
      %v926 = vmax.f32 %v799, %v863
      %v927 = vmax.f32 %v800, %v864
      %v928 = vmax.f32 %v801, %v865
      %v929 = vmax.f32 %v802, %v866
      %v930 = vmax.f32 %v803, %v867
      %v931 = vmax.f32 %v804, %v868
      %v932 = vmax.f32 %v805, %v869
      %v933 = vmax.f32 %v806, %v870
      %v934 = vmax.f32 %v807, %v871
      %v935 = vmax.f32 %v808, %v872
      %v936 = vmax.f32 %v809, %v873
      %v937 = vmax.f32 %v810, %v874
      %v938 = vld [vmem:[%s811 + $0x1] sm:$0xff]
      %v939 = vld [vmem:[%s811 + $0x9] sm:$0xff]
      %v940 = vld [vmem:[%s811 + $0x11] sm:$0x1f]
      %v941 = vld [vmem:[%s811 + $0x19] sm:$0xff]
      %v942 = vld [vmem:[%s811 + $0x21] sm:$0xff]
      %v943 = vld [vmem:[%s811 + $0x29] sm:$0x1f]
      %v944 = vld [vmem:[%s811 + $0x31] sm:$0xff]
      %v945 = vld [vmem:[%s811 + $0x39] sm:$0xff]
      %v946 = vld [vmem:[%s811 + $0x41] sm:$0x1f]
      %v947 = vld [vmem:[%s811 + $0x49] sm:$0xff]
      %v948 = vld [vmem:[%s811 + $0x51] sm:$0xff]
      %v949 = vld [vmem:[%s811 + $0x59] sm:$0x1f]
      %v950 = vld [vmem:[%s811 + $0x61] sm:$0xff]
      %v951 = vld [vmem:[%s811 + $0x69] sm:$0xff]
      %v952 = vld [vmem:[%s811 + $0x71] sm:$0x1f]
      %v953 = vld [vmem:[%s811 + $0x79] sm:$0xff]
      %v954 = vld [vmem:[%s811 + $0x81] sm:$0xff]
      %v955 = vld [vmem:[%s811 + $0x89] sm:$0x1f]
      %v956 = vld [vmem:[%s811 + $0x91] sm:$0xff]
      %v957 = vld [vmem:[%s811 + $0x99] sm:$0xff]
      %v958 = vld [vmem:[%s811 + $0xa1] sm:$0x1f]
      %v959 = vld [vmem:[%s811 + $0xa9] sm:$0xff]
      %v960 = vld [vmem:[%s811 + $0xb1] sm:$0xff]
      %v961 = vld [vmem:[%s811 + $0xb9] sm:$0x1f]
      %v962 = vld [vmem:[%s811 + $0xc1] sm:$0xff]
      %v963 = vld [vmem:[%s811 + $0xc9] sm:$0xff]
      %v964 = vld [vmem:[%s811 + $0xd1] sm:$0x1f]
      %v965 = vld [vmem:[%s811 + $0xd9] sm:$0xff]
      %v966 = vld [vmem:[%s811 + $0xe1] sm:$0xff]
      %v967 = vld [vmem:[%s811 + $0xe9] sm:$0x1f]
      %v968 = vld [vmem:[%s811 + $0xf1] sm:$0xff]
      %v969 = vld [vmem:[%s811 + $0xf9] sm:$0xff]
      %v970 = vld [vmem:[%s811 + $0x101] sm:$0x1f]
      %v971 = vld [vmem:[%s811 + $0x109] sm:$0xff]
      %v972 = vld [vmem:[%s811 + $0x111] sm:$0xff]
      %v973 = vld [vmem:[%s811 + $0x119] sm:$0x1f]
      %v974 = vld [vmem:[%s811 + $0x121] sm:$0xff]
      %v975 = vld [vmem:[%s811 + $0x129] sm:$0xff]
      %v976 = vld [vmem:[%s811 + $0x131] sm:$0x1f]
      %v977 = vld [vmem:[%s811 + $0x139] sm:$0xff]
      %v978 = vld [vmem:[%s811 + $0x141] sm:$0xff]
      %v979 = vld [vmem:[%s811 + $0x149] sm:$0x1f]
      %v980 = vld [vmem:[%s811 + $0x151] sm:$0xff]
      %v981 = vld [vmem:[%s811 + $0x159] sm:$0xff]
      %v982 = vld [vmem:[%s811 + $0x161] sm:$0x1f]
      %v983 = vld [vmem:[%s811 + $0x169] sm:$0xff]
      %v984 = vld [vmem:[%s811 + $0x171] sm:$0xff]
      %v985 = vld [vmem:[%s811 + $0x179] sm:$0x1f]
      %v986 = vld [vmem:[%s811 + $0x181] sm:$0xff]
      %v987 = vld [vmem:[%s811 + $0x189] sm:$0xff]
      %v988 = vld [vmem:[%s811 + $0x191] sm:$0x1f]
      %v989 = vld [vmem:[%s811 + $0x199] sm:$0xff]
      %v990 = vld [vmem:[%s811 + $0x1a1] sm:$0xff]
      %v991 = vld [vmem:[%s811 + $0x1a9] sm:$0x1f]
      %v992 = vld [vmem:[%s811 + $0x1b1] sm:$0xff]
      %v993 = vld [vmem:[%s811 + $0x1b9] sm:$0xff]
      %v994 = vld [vmem:[%s811 + $0x1c1] sm:$0x1f]
      %v995 = vld [vmem:[%s811 + $0x1c9] sm:$0xff]
      %v996 = vld [vmem:[%s811 + $0x1d1] sm:$0xff]
      %v997 = vld [vmem:[%s811 + $0x1d9] sm:$0x1f]
      %v998 = vld [vmem:[%s811 + $0x1e1] sm:$0xff]
      %v999 = vld [vmem:[%s811 + $0x1e9] sm:$0xff]
      %v1000 = vld [vmem:[%s811 + $0x1f1] sm:$0x1f]
      %v1001 = vmax.f32 %v875, %v938
      %v1002 = vmax.f32 %v876, %v939
      %v1003 = vmax.f32 %v877, %v940
      %v1004 = vmax.f32 %v878, %v941
      %v1005 = vmax.f32 %v879, %v942
      %v1006 = vmax.f32 %v880, %v943
      %v1007 = vmax.f32 %v881, %v944
      %v1008 = vmax.f32 %v882, %v945
      %v1009 = vmax.f32 %v883, %v946
      %v1010 = vmax.f32 %v884, %v947
      %v1011 = vmax.f32 %v885, %v948
      %v1012 = vmax.f32 %v886, %v949
      %v1013 = vmax.f32 %v887, %v950
      %v1014 = vmax.f32 %v888, %v951
      %v1015 = vmax.f32 %v889, %v952
      %v1016 = vmax.f32 %v890, %v953
      %v1017 = vmax.f32 %v891, %v954
      %v1018 = vmax.f32 %v892, %v955
      %v1019 = vmax.f32 %v893, %v956
      %v1020 = vmax.f32 %v894, %v957
      %v1021 = vmax.f32 %v895, %v958
      %v1022 = vmax.f32 %v896, %v959
      %v1023 = vmax.f32 %v897, %v960
      %v1024 = vmax.f32 %v898, %v961
      %v1025 = vmax.f32 %v899, %v962
      %v1026 = vmax.f32 %v900, %v963
      %v1027 = vmax.f32 %v901, %v964
      %v1028 = vmax.f32 %v902, %v965
      %v1029 = vmax.f32 %v903, %v966
      %v1030 = vmax.f32 %v904, %v967
      %v1031 = vmax.f32 %v905, %v968
      %v1032 = vmax.f32 %v906, %v969
      %v1033 = vmax.f32 %v907, %v970
      %v1034 = vmax.f32 %v908, %v971
      %v1035 = vmax.f32 %v909, %v972
      %v1036 = vmax.f32 %v910, %v973
      %v1037 = vmax.f32 %v911, %v974
      %v1038 = vmax.f32 %v912, %v975
      %v1039 = vmax.f32 %v913, %v976
      %v1040 = vmax.f32 %v914, %v977
      %v1041 = vmax.f32 %v915, %v978
      %v1042 = vmax.f32 %v916, %v979
      %v1043 = vmax.f32 %v917, %v980
      %v1044 = vmax.f32 %v918, %v981
      %v1045 = vmax.f32 %v919, %v982
      %v1046 = vmax.f32 %v920, %v983
      %v1047 = vmax.f32 %v921, %v984
      %v1048 = vmax.f32 %v922, %v985
      %v1049 = vmax.f32 %v923, %v986
      %v1050 = vmax.f32 %v924, %v987
      %v1051 = vmax.f32 %v925, %v988
      %v1052 = vmax.f32 %v926, %v989
      %v1053 = vmax.f32 %v927, %v990
      %v1054 = vmax.f32 %v928, %v991
      %v1055 = vmax.f32 %v929, %v992
      %v1056 = vmax.f32 %v930, %v993
      %v1057 = vmax.f32 %v931, %v994
      %v1058 = vmax.f32 %v932, %v995
      %v1059 = vmax.f32 %v933, %v996
      %v1060 = vmax.f32 %v934, %v997
      %v1061 = vmax.f32 %v935, %v998
      %v1062 = vmax.f32 %v936, %v999
      %v1063 = vmax.f32 %v937, %v1000
      %v1064 = vld [vmem:[%s811 + $0x2] sm:$0xff]
      %v1065 = vld [vmem:[%s811 + $0xa] sm:$0xff]
      %v1066 = vld [vmem:[%s811 + $0x12] sm:$0x1f]
      %v1067 = vld [vmem:[%s811 + $0x1a] sm:$0xff]
      %v1068 = vld [vmem:[%s811 + $0x22] sm:$0xff]
      %v1069 = vld [vmem:[%s811 + $0x2a] sm:$0x1f]
      %v1070 = vld [vmem:[%s811 + $0x32] sm:$0xff]
      %v1071 = vld [vmem:[%s811 + $0x3a] sm:$0xff]
      %v1072 = vld [vmem:[%s811 + $0x42] sm:$0x1f]
      %v1073 = vld [vmem:[%s811 + $0x4a] sm:$0xff]
      %v1074 = vld [vmem:[%s811 + $0x52] sm:$0xff]
      %v1075 = vld [vmem:[%s811 + $0x5a] sm:$0x1f]
      %v1076 = vld [vmem:[%s811 + $0x62] sm:$0xff]
      %v1077 = vld [vmem:[%s811 + $0x6a] sm:$0xff]
      %v1078 = vld [vmem:[%s811 + $0x72] sm:$0x1f]
      %v1079 = vld [vmem:[%s811 + $0x7a] sm:$0xff]
      %v1080 = vld [vmem:[%s811 + $0x82] sm:$0xff]
      %v1081 = vld [vmem:[%s811 + $0x8a] sm:$0x1f]
      %v1082 = vld [vmem:[%s811 + $0x92] sm:$0xff]
      %v1083 = vld [vmem:[%s811 + $0x9a] sm:$0xff]
      %v1084 = vld [vmem:[%s811 + $0xa2] sm:$0x1f]
      %v1085 = vld [vmem:[%s811 + $0xaa] sm:$0xff]
      %v1086 = vld [vmem:[%s811 + $0xb2] sm:$0xff]
      %v1087 = vld [vmem:[%s811 + $0xba] sm:$0x1f]
      %v1088 = vld [vmem:[%s811 + $0xc2] sm:$0xff]
      %v1089 = vld [vmem:[%s811 + $0xca] sm:$0xff]
      %v1090 = vld [vmem:[%s811 + $0xd2] sm:$0x1f]
      %v1091 = vld [vmem:[%s811 + $0xda] sm:$0xff]
      %v1092 = vld [vmem:[%s811 + $0xe2] sm:$0xff]
      %v1093 = vld [vmem:[%s811 + $0xea] sm:$0x1f]
      %v1094 = vld [vmem:[%s811 + $0xf2] sm:$0xff]
      %v1095 = vld [vmem:[%s811 + $0xfa] sm:$0xff]
      %v1096 = vld [vmem:[%s811 + $0x102] sm:$0x1f]
      %v1097 = vld [vmem:[%s811 + $0x10a] sm:$0xff]
      %v1098 = vld [vmem:[%s811 + $0x112] sm:$0xff]
      %v1099 = vld [vmem:[%s811 + $0x11a] sm:$0x1f]
      %v1100 = vld [vmem:[%s811 + $0x122] sm:$0xff]
      %v1101 = vld [vmem:[%s811 + $0x12a] sm:$0xff]
      %v1102 = vld [vmem:[%s811 + $0x132] sm:$0x1f]
      %v1103 = vld [vmem:[%s811 + $0x13a] sm:$0xff]
      %v1104 = vld [vmem:[%s811 + $0x142] sm:$0xff]
      %v1105 = vld [vmem:[%s811 + $0x14a] sm:$0x1f]
      %v1106 = vld [vmem:[%s811 + $0x152] sm:$0xff]
      %v1107 = vld [vmem:[%s811 + $0x15a] sm:$0xff]
      %v1108 = vld [vmem:[%s811 + $0x162] sm:$0x1f]
      %v1109 = vld [vmem:[%s811 + $0x16a] sm:$0xff]
      %v1110 = vld [vmem:[%s811 + $0x172] sm:$0xff]
      %v1111 = vld [vmem:[%s811 + $0x17a] sm:$0x1f]
      %v1112 = vld [vmem:[%s811 + $0x182] sm:$0xff]
      %v1113 = vld [vmem:[%s811 + $0x18a] sm:$0xff]
      %v1114 = vld [vmem:[%s811 + $0x192] sm:$0x1f]
      %v1115 = vld [vmem:[%s811 + $0x19a] sm:$0xff]
      %v1116 = vld [vmem:[%s811 + $0x1a2] sm:$0xff]
      %v1117 = vld [vmem:[%s811 + $0x1aa] sm:$0x1f]
      %v1118 = vld [vmem:[%s811 + $0x1b2] sm:$0xff]
      %v1119 = vld [vmem:[%s811 + $0x1ba] sm:$0xff]
      %v1120 = vld [vmem:[%s811 + $0x1c2] sm:$0x1f]
      %v1121 = vld [vmem:[%s811 + $0x1ca] sm:$0xff]
      %v1122 = vld [vmem:[%s811 + $0x1d2] sm:$0xff]
      %v1123 = vld [vmem:[%s811 + $0x1da] sm:$0x1f]
      %v1124 = vld [vmem:[%s811 + $0x1e2] sm:$0xff]
      %v1125 = vld [vmem:[%s811 + $0x1ea] sm:$0xff]
      %v1126 = vld [vmem:[%s811 + $0x1f2] sm:$0x1f]
      %v1127 = vmax.f32 %v1001, %v1064
      %v1128 = vmax.f32 %v1002, %v1065
      %v1129 = vmax.f32 %v1003, %v1066
      %v1130 = vmax.f32 %v1004, %v1067
      %v1131 = vmax.f32 %v1005, %v1068
      %v1132 = vmax.f32 %v1006, %v1069
      %v1133 = vmax.f32 %v1007, %v1070
      %v1134 = vmax.f32 %v1008, %v1071
      %v1135 = vmax.f32 %v1009, %v1072
      %v1136 = vmax.f32 %v1010, %v1073
      %v1137 = vmax.f32 %v1011, %v1074
      %v1138 = vmax.f32 %v1012, %v1075
      %v1139 = vmax.f32 %v1013, %v1076
      %v1140 = vmax.f32 %v1014, %v1077
      %v1141 = vmax.f32 %v1015, %v1078
      %v1142 = vmax.f32 %v1016, %v1079
      %v1143 = vmax.f32 %v1017, %v1080
      %v1144 = vmax.f32 %v1018, %v1081
      %v1145 = vmax.f32 %v1019, %v1082
      %v1146 = vmax.f32 %v1020, %v1083
      %v1147 = vmax.f32 %v1021, %v1084
      %v1148 = vmax.f32 %v1022, %v1085
      %v1149 = vmax.f32 %v1023, %v1086
      %v1150 = vmax.f32 %v1024, %v1087
      %v1151 = vmax.f32 %v1025, %v1088
      %v1152 = vmax.f32 %v1026, %v1089
      %v1153 = vmax.f32 %v1027, %v1090
      %v1154 = vmax.f32 %v1028, %v1091
      %v1155 = vmax.f32 %v1029, %v1092
      %v1156 = vmax.f32 %v1030, %v1093
      %v1157 = vmax.f32 %v1031, %v1094
      %v1158 = vmax.f32 %v1032, %v1095
      %v1159 = vmax.f32 %v1033, %v1096
      %v1160 = vmax.f32 %v1034, %v1097
      %v1161 = vmax.f32 %v1035, %v1098
      %v1162 = vmax.f32 %v1036, %v1099
      %v1163 = vmax.f32 %v1037, %v1100
      %v1164 = vmax.f32 %v1038, %v1101
      %v1165 = vmax.f32 %v1039, %v1102
      %v1166 = vmax.f32 %v1040, %v1103
      %v1167 = vmax.f32 %v1041, %v1104
      %v1168 = vmax.f32 %v1042, %v1105
      %v1169 = vmax.f32 %v1043, %v1106
      %v1170 = vmax.f32 %v1044, %v1107
      %v1171 = vmax.f32 %v1045, %v1108
      %v1172 = vmax.f32 %v1046, %v1109
      %v1173 = vmax.f32 %v1047, %v1110
      %v1174 = vmax.f32 %v1048, %v1111
      %v1175 = vmax.f32 %v1049, %v1112
      %v1176 = vmax.f32 %v1050, %v1113
      %v1177 = vmax.f32 %v1051, %v1114
      %v1178 = vmax.f32 %v1052, %v1115
      %v1179 = vmax.f32 %v1053, %v1116
      %v1180 = vmax.f32 %v1054, %v1117
      %v1181 = vmax.f32 %v1055, %v1118
      %v1182 = vmax.f32 %v1056, %v1119
      %v1183 = vmax.f32 %v1057, %v1120
      %v1184 = vmax.f32 %v1058, %v1121
      %v1185 = vmax.f32 %v1059, %v1122
      %v1186 = vmax.f32 %v1060, %v1123
      %v1187 = vmax.f32 %v1061, %v1124
      %v1188 = vmax.f32 %v1062, %v1125
      %v1189 = vmax.f32 %v1063, %v1126
      %1190 = vst [vmem:[%s116] sm:$0xff] %v1127
      %1191 = vst [vmem:[%s116 + $0x8] sm:$0xff] %v1128
      %1192 = vst [vmem:[%s116 + $0x10] sm:$0x1f] %v1129
      %1193 = vst [vmem:[%s116 + $0x18] sm:$0xff] %v1130
      %1194 = vst [vmem:[%s116 + $0x20] sm:$0xff] %v1131
      %1195 = vst [vmem:[%s116 + $0x28] sm:$0x1f] %v1132
      %1196 = vst [vmem:[%s116 + $0x30] sm:$0xff] %v1133
      %1197 = vst [vmem:[%s116 + $0x38] sm:$0xff] %v1134
      %1198 = vst [vmem:[%s116 + $0x40] sm:$0x1f] %v1135
      %1199 = vst [vmem:[%s116 + $0x48] sm:$0xff] %v1136
      %1200 = vst [vmem:[%s116 + $0x50] sm:$0xff] %v1137
      %1201 = vst [vmem:[%s116 + $0x58] sm:$0x1f] %v1138
      %1202 = vst [vmem:[%s116 + $0x60] sm:$0xff] %v1139
      %1203 = vst [vmem:[%s116 + $0x68] sm:$0xff] %v1140
      %1204 = vst [vmem:[%s116 + $0x70] sm:$0x1f] %v1141
      %1205 = vst [vmem:[%s116 + $0x78] sm:$0xff] %v1142
      %1206 = vst [vmem:[%s116 + $0x80] sm:$0xff] %v1143
      %1207 = vst [vmem:[%s116 + $0x88] sm:$0x1f] %v1144
      %1208 = vst [vmem:[%s116 + $0x90] sm:$0xff] %v1145
      %1209 = vst [vmem:[%s116 + $0x98] sm:$0xff] %v1146
      %1210 = vst [vmem:[%s116 + $0xa0] sm:$0x1f] %v1147
      %1211 = vst [vmem:[%s116 + $0xa8] sm:$0xff] %v1148
      %1212 = vst [vmem:[%s116 + $0xb0] sm:$0xff] %v1149
      %1213 = vst [vmem:[%s116 + $0xb8] sm:$0x1f] %v1150
      %1214 = vst [vmem:[%s116 + $0xc0] sm:$0xff] %v1151
      %1215 = vst [vmem:[%s116 + $0xc8] sm:$0xff] %v1152
      %1216 = vst [vmem:[%s116 + $0xd0] sm:$0x1f] %v1153
      %1217 = vst [vmem:[%s116 + $0xd8] sm:$0xff] %v1154
      %1218 = vst [vmem:[%s116 + $0xe0] sm:$0xff] %v1155
      %1219 = vst [vmem:[%s116 + $0xe8] sm:$0x1f] %v1156
      %1220 = vst [vmem:[%s116 + $0xf0] sm:$0xff] %v1157
      %1221 = vst [vmem:[%s116 + $0xf8] sm:$0xff] %v1158
      %1222 = vst [vmem:[%s116 + $0x100] sm:$0x1f] %v1159
      %1223 = vst [vmem:[%s116 + $0x108] sm:$0xff] %v1160
      %1224 = vst [vmem:[%s116 + $0x110] sm:$0xff] %v1161
      %1225 = vst [vmem:[%s116 + $0x118] sm:$0x1f] %v1162
      %1226 = vst [vmem:[%s116 + $0x120] sm:$0xff] %v1163
      %1227 = vst [vmem:[%s116 + $0x128] sm:$0xff] %v1164
      %1228 = vst [vmem:[%s116 + $0x130] sm:$0x1f] %v1165
      %1229 = vst [vmem:[%s116 + $0x138] sm:$0xff] %v1166
      %1230 = vst [vmem:[%s116 + $0x140] sm:$0xff] %v1167
      %1231 = vst [vmem:[%s116 + $0x148] sm:$0x1f] %v1168
      %1232 = vst [vmem:[%s116 + $0x150] sm:$0xff] %v1169
      %1233 = vst [vmem:[%s116 + $0x158] sm:$0xff] %v1170
      %1234 = vst [vmem:[%s116 + $0x160] sm:$0x1f] %v1171
      %1235 = vst [vmem:[%s116 + $0x168] sm:$0xff] %v1172
      %1236 = vst [vmem:[%s116 + $0x170] sm:$0xff] %v1173
      %1237 = vst [vmem:[%s116 + $0x178] sm:$0x1f] %v1174
      %1238 = vst [vmem:[%s116 + $0x180] sm:$0xff] %v1175
      %1239 = vst [vmem:[%s116 + $0x188] sm:$0xff] %v1176
      %1240 = vst [vmem:[%s116 + $0x190] sm:$0x1f] %v1177
      %1241 = vst [vmem:[%s116 + $0x198] sm:$0xff] %v1178
      %1242 = vst [vmem:[%s116 + $0x1a0] sm:$0xff] %v1179
      %1243 = vst [vmem:[%s116 + $0x1a8] sm:$0x1f] %v1180
      %1244 = vst [vmem:[%s116 + $0x1b0] sm:$0xff] %v1181
      %1245 = vst [vmem:[%s116 + $0x1b8] sm:$0xff] %v1182
      %1246 = vst [vmem:[%s116 + $0x1c0] sm:$0x1f] %v1183
      %1247 = vst [vmem:[%s116 + $0x1c8] sm:$0xff] %v1184
      %1248 = vst [vmem:[%s116 + $0x1d0] sm:$0xff] %v1185
      %1249 = vst [vmem:[%s116 + $0x1d8] sm:$0x1f] %v1186
      %1250 = vst [vmem:[%s116 + $0x1e0] sm:$0xff] %v1187
      %1251 = vst [vmem:[%s116 + $0x1e8] sm:$0xff] %v1188
      %1252 = vst [vmem:[%s116 + $0x1f0] sm:$0x1f] %v1189
      %p1253 = scmp.lt.s32.totalorder %s12, 1
      %s1254 = scalar_select %p1253, %s12, 1
      %s1255 = smul.addr %s1254, 63
      %s1256 = smul.addr %s1255, 8
      %s1257 = scalar_lea.vmem %s1, %s1256
      // Predicated region
      $region25: #{extract_forward.10} parent=23 // pred_check
        %p1258 = pneg %p56
      $region26: #{extract_forward.10} parent=23 // pred_check_branch
        %1260 = sbr.rel (%p1258) target = $region28
      $region27: #{extract_forward.10} parent=23 // pred_region
        _
      $region28: #{extract_forward.10} parent=23 // pred_fallthru
        _
    $region24: #{extract_forward.10} parent=5 // pred_fallthru
      _
    %p1261 = scmp.le.s32.totalorder 2, %s7
    // Predicated region
    $region29: #{extract_forward.10} parent=5 // pred_check
      %p1262 = pneg %p1261
    $region30: #{extract_forward.10} parent=5 // pred_check_branch
      %1264 = sbr.rel (%p1262) target = $region32
    $region31: #{extract_forward.10} parent=5 // pred_region
      %s1265 = ssub.s32 %s7, 2
      // Predicated region
      $region33: #{extract_forward.10} parent=31 // pred_check
        %p1266 = pneg %p62
      $region34: #{extract_forward.10} parent=31 // pred_check_branch
        %1268 = sbr.rel (%p1266) target = $region36
      $region35: #{extract_forward.10} parent=31 // pred_region
        %p1269 = scmp.lt.s32.totalorder %s13, 1
        %s1270 = scalar_select %p1269, %s13, 1
        %s1271 = smul.addr %s1270, 63
        %s1272 = smul.addr %s1271, 8
        %s1273 = scalar_lea.vmem %s1, %s1272
      $region36: #{extract_forward.10} parent=31 // pred_fallthru
        _
    $region32: #{extract_forward.10} parent=5 // pred_fallthru
      _
  $region6: #{extract_forward.10} parent=0 // loop_footer
    %s11 = sadd.s32 1, %s7
  $region7: #{extract_forward.10} parent=0 // loop_footer_branch
    %6 = sbr.rel target = $region3
  $region8: #{extract_forward.10} parent=0 // loop_exit
    _

// kernel: extract_forward.12
$region0: #{extract_forward.12}
  #allocation0 [shape = 'u32[]', space=smem, size = 0x4, offset = 0x4, fixed_abs, tag = 'smem constant byte address 0x4 - core index']
  #allocation1 [shape = 'u32[144,128]{1,0:T(1,128)}', space=vmem, size = 0x12000, scoped, tag = 'internal scratch']
  %s0 = inlined_call_operand.vmem [shape: f32[2,11,11,128], index: 0, kind: input, shape index: {}]
  %s1 = inlined_call_operand.vmem [shape: f32[2,9,9,128], index: 1, kind: output, shape index: {}]
  %s2 = sld [smem:[#allocation0]]
  $region37: #{extract_forward.12} parent=0
    _
  %s4 = ssub.s32 1, %s2
  %s5 = scalar_select 0, %s4, %s2
  loop: start=0, step=1, limit=4
  $region2: #{extract_forward.12} parent=0 // loop_pre_header
    _
  $region3: #{extract_forward.12} parent=0 // loop_header
    %s7 = sphi 0, %s11
    %p8 = scmp.ge.s32.totalorder %s7, 4
    %s17 = sphi 0, %s19
    %s20 = sphi 0, %s17
    %s21 = sphi 0, %s20
    %s37 = sphi 0, %s21
    %s43 = sphi 0, %s45
    %s46 = sphi 0, %s43
    %s47 = sphi 0, %s46
    %s63 = sphi 0, %s47
  $region4: #{extract_forward.12} parent=0 // loop_header_branch
    %10 = sbr.rel (%p8) target = $region8
  $region5: #{extract_forward.12} parent=0 // loop_body
    %s12 = ssub.s32 %s7, 1
    %s13 = ssub.s32 %s7, 2
    %s14 = sadd.s32 %s7, 1
    %s15 = ssub.s32 %s7, %s14
    %p16 = scmp.eq.s32.totalorder %s15, 0
    %s18 = sadd.s32 %s17, 1
    %s19 = scalar_select %p16, %s17, %s18
    %p22 = pneg %p16
    %p23 = scmp.eq.s32.totalorder %s7, 1
    %p24 = por %p22, %p23
    %p25 = scmp.ne.s32.totalorder %s17, %s20
    %p26 = scmp.eq.s32.totalorder %s7, 0
    %p27 = por %p25, %p26
    %p28 = scmp.ne.s32.totalorder %s17, %s20
    %p29 = scmp.eq.s32.totalorder %s12, 1
    %p30 = por %p28, %p29
    %p31 = scmp.ne.s32.totalorder %s20, %s21
    %p32 = scmp.eq.s32.totalorder %s12, 0
    %p33 = por %p31, %p32
    %p34 = scmp.ne.s32.totalorder %s20, %s21
    %p35 = scmp.eq.s32.totalorder %s13, 1
    %p36 = por %p34, %p35
    %p38 = scmp.ne.s32.totalorder %s21, %s37
    %p39 = scmp.eq.s32.totalorder %s13, 0
    %p40 = por %p38, %p39
    %s41 = ssub.s32 %s7, %s14
    %p42 = scmp.eq.s32.totalorder %s41, 0
    %s44 = sadd.s32 %s43, 1
    %s45 = scalar_select %p42, %s43, %s44
    %p48 = pneg %p42
    %p49 = scmp.eq.s32.totalorder %s7, 1
    %p50 = por %p48, %p49
    %p51 = scmp.ne.s32.totalorder %s43, %s46
    %p52 = scmp.eq.s32.totalorder %s7, 0
    %p53 = por %p51, %p52
    %p54 = scmp.ne.s32.totalorder %s43, %s46
    %p55 = scmp.eq.s32.totalorder %s12, 1
    %p56 = por %p54, %p55
    %p57 = scmp.ne.s32.totalorder %s46, %s47
    %p58 = scmp.eq.s32.totalorder %s12, 0
    %p59 = por %p57, %p58
    %p60 = scmp.ne.s32.totalorder %s46, %s47
    %p61 = scmp.eq.s32.totalorder %s13, 1
    %p62 = por %p60, %p61
    %p64 = scmp.ne.s32.totalorder %s47, %s63
    %p65 = scmp.eq.s32.totalorder %s13, 0
    %p66 = por %p64, %p65
    %p67 = scmp.le.s32.totalorder 1, %s7
    %p68 = scmp.lt.s32.totalorder %s7, 3
    %p69 = pnand %p67, %p68
    %p70 = pneg %p69
    // Predicated region
    $region9: #{extract_forward.12} parent=5 // pred_check
      _
    $region10: #{extract_forward.12} parent=5 // pred_check_branch
      %72 = sbr.rel (%p69) target = $region12
    $region11: #{extract_forward.12} parent=5 // pred_region
      %s73 = ssub.s32 %s7, 1
    $region12: #{extract_forward.12} parent=5 // pred_fallthru
      _
    %p74 = scmp.lt.s32.totalorder %s7, 2
    // Predicated region
    $region13: #{extract_forward.12} parent=5 // pred_check
      %p75 = pneg %p74
    $region14: #{extract_forward.12} parent=5 // pred_check_branch
      %77 = sbr.rel (%p75) target = $region16
    $region15: #{extract_forward.12} parent=5 // pred_region
      // Predicated region
      $region17: #{extract_forward.12} parent=15 // pred_check
        %p78 = pneg %p27
      $region18: #{extract_forward.12} parent=15 // pred_check_branch
        %80 = sbr.rel (%p78) target = $region20
      $region19: #{extract_forward.12} parent=15 // pred_region
        %p81 = scmp.lt.s32.totalorder %s7, 1
        %s82 = scalar_select %p81, %s7, 1
        %s83 = smul.addr %s82, 22
        %s84 = smul.addr %s83, 8
        %s85 = scalar_lea.vmem %s0, %s84
      $region20: #{extract_forward.12} parent=15 // pred_fallthru
        _
    $region16: #{extract_forward.12} parent=5 // pred_fallthru
      _
    %p86 = scmp.le.s32.totalorder 1, %s7
    %p87 = scmp.lt.s32.totalorder %s7, 3
    %p88 = pnand %p86, %p87
    %p89 = pneg %p88
    // Predicated region
    $region21: #{extract_forward.12} parent=5 // pred_check
      _
    $region22: #{extract_forward.12} parent=5 // pred_check_branch
      %91 = sbr.rel (%p88) target = $region24
    $region23: #{extract_forward.12} parent=5 // pred_region
      %s92 = ssub.s32 %s7, 1
      %p93 = scmp.lt.s32.totalorder %s12, 1
      %s94 = scalar_select %p93, %s12, 1
      %s95 = smul.addr %s94, 22
      %s96 = smul.addr %s95, 8
      %s97 = scalar_lea.vmem %s0, %s96
      %p98 = pneg %p33
      %p99 = pneg %p30
      %p100 = pneg %p59
      %p101 = pneg %p56
      %p102 = scmp.lt.s32.totalorder %s12, 1
      %s103 = scalar_select %p102, %s12, 1
      %s104 = smul.addr %s103, 18
      %s105 = smul.addr %s104, 8
      %s106 = scalar_lea.vmem %s1, %s105
      %p107 = scmp.lt.s32.totalorder %s12, 1
      %s108 = scalar_select %p107, %s12, 1
      %s109 = smul.addr %s108, 22
      %s110 = smul.addr %s109, 8
      %s111 = scalar_lea.vmem %s0, %s110
      %p112 = scmp.lt.s32.totalorder %s12, 1
      %s113 = scalar_select %p112, %s12, 1
      %s114 = smul.addr %s113, 18
      %s115 = smul.addr %s114, 8
      %s116 = scalar_lea.vmem %s1, %s115
      %v117 = vld [vmem:[%s111] sm:$0xff]
      %v118 = vld [vmem:[%s111 + $0x8] sm:$0x1]
      %v119 = vld [vmem:[%s111 + $0x10] sm:$0xff]
      %v120 = vld [vmem:[%s111 + $0x18] sm:$0x1]
      %v121 = vld [vmem:[%s111 + $0x20] sm:$0xff]
      %v122 = vld [vmem:[%s111 + $0x28] sm:$0x1]
      %v123 = vld [vmem:[%s111 + $0x30] sm:$0xff]
      %v124 = vld [vmem:[%s111 + $0x38] sm:$0x1]
      %v125 = vld [vmem:[%s111 + $0x40] sm:$0xff]
      %v126 = vld [vmem:[%s111 + $0x48] sm:$0x1]
      %v127 = vld [vmem:[%s111 + $0x50] sm:$0xff]
      %v128 = vld [vmem:[%s111 + $0x58] sm:$0x1]
      %v129 = vld [vmem:[%s111 + $0x60] sm:$0xff]
      %v130 = vld [vmem:[%s111 + $0x68] sm:$0x1]
      %v131 = vld [vmem:[%s111 + $0x70] sm:$0xff]
      %v132 = vld [vmem:[%s111 + $0x78] sm:$0x1]
      %v133 = vld [vmem:[%s111 + $0x80] sm:$0xff]
      %v134 = vld [vmem:[%s111 + $0x88] sm:$0x1]
      %v135 = vld [vmem:[%s111 + $0x1] sm:$0xff]
      %v136 = vld [vmem:[%s111 + $0x9] sm:$0x1]
      %v137 = vld [vmem:[%s111 + $0x11] sm:$0xff]
      %v138 = vld [vmem:[%s111 + $0x19] sm:$0x1]
      %v139 = vld [vmem:[%s111 + $0x21] sm:$0xff]
      %v140 = vld [vmem:[%s111 + $0x29] sm:$0x1]
      %v141 = vld [vmem:[%s111 + $0x31] sm:$0xff]
      %v142 = vld [vmem:[%s111 + $0x39] sm:$0x1]
      %v143 = vld [vmem:[%s111 + $0x41] sm:$0xff]
      %v144 = vld [vmem:[%s111 + $0x49] sm:$0x1]
      %v145 = vld [vmem:[%s111 + $0x51] sm:$0xff]
      %v146 = vld [vmem:[%s111 + $0x59] sm:$0x1]
      %v147 = vld [vmem:[%s111 + $0x61] sm:$0xff]
      %v148 = vld [vmem:[%s111 + $0x69] sm:$0x1]
      %v149 = vld [vmem:[%s111 + $0x71] sm:$0xff]
      %v150 = vld [vmem:[%s111 + $0x79] sm:$0x1]
      %v151 = vld [vmem:[%s111 + $0x81] sm:$0xff]
      %v152 = vld [vmem:[%s111 + $0x89] sm:$0x1]
      %v153 = vmax.f32 %v117, %v135
      %v154 = vmax.f32 %v118, %v136
      %v155 = vmax.f32 %v119, %v137
      %v156 = vmax.f32 %v120, %v138
      %v157 = vmax.f32 %v121, %v139
      %v158 = vmax.f32 %v122, %v140
      %v159 = vmax.f32 %v123, %v141
      %v160 = vmax.f32 %v124, %v142
      %v161 = vmax.f32 %v125, %v143
      %v162 = vmax.f32 %v126, %v144
      %v163 = vmax.f32 %v127, %v145
      %v164 = vmax.f32 %v128, %v146
      %v165 = vmax.f32 %v129, %v147
      %v166 = vmax.f32 %v130, %v148
      %v167 = vmax.f32 %v131, %v149
      %v168 = vmax.f32 %v132, %v150
      %v169 = vmax.f32 %v133, %v151
      %v170 = vmax.f32 %v134, %v152
      %v171 = vld [vmem:[%s111 + $0x2] sm:$0xff]
      %v172 = vld [vmem:[%s111 + $0xa] sm:$0x1]
      %v173 = vld [vmem:[%s111 + $0x12] sm:$0xff]
      %v174 = vld [vmem:[%s111 + $0x1a] sm:$0x1]
      %v175 = vld [vmem:[%s111 + $0x22] sm:$0xff]
      %v176 = vld [vmem:[%s111 + $0x2a] sm:$0x1]
      %v177 = vld [vmem:[%s111 + $0x32] sm:$0xff]
      %v178 = vld [vmem:[%s111 + $0x3a] sm:$0x1]
      %v179 = vld [vmem:[%s111 + $0x42] sm:$0xff]
      %v180 = vld [vmem:[%s111 + $0x4a] sm:$0x1]
      %v181 = vld [vmem:[%s111 + $0x52] sm:$0xff]
      %v182 = vld [vmem:[%s111 + $0x5a] sm:$0x1]
      %v183 = vld [vmem:[%s111 + $0x62] sm:$0xff]
      %v184 = vld [vmem:[%s111 + $0x6a] sm:$0x1]
      %v185 = vld [vmem:[%s111 + $0x72] sm:$0xff]
      %v186 = vld [vmem:[%s111 + $0x7a] sm:$0x1]
      %v187 = vld [vmem:[%s111 + $0x82] sm:$0xff]
      %v188 = vld [vmem:[%s111 + $0x8a] sm:$0x1]
      %v189 = vmax.f32 %v153, %v171
      %v190 = vmax.f32 %v154, %v172
      %v191 = vmax.f32 %v155, %v173
      %v192 = vmax.f32 %v156, %v174
      %v193 = vmax.f32 %v157, %v175
      %v194 = vmax.f32 %v158, %v176
      %v195 = vmax.f32 %v159, %v177
      %v196 = vmax.f32 %v160, %v178
      %v197 = vmax.f32 %v161, %v179
      %v198 = vmax.f32 %v162, %v180
      %v199 = vmax.f32 %v163, %v181
      %v200 = vmax.f32 %v164, %v182
      %v201 = vmax.f32 %v165, %v183
      %v202 = vmax.f32 %v166, %v184
      %v203 = vmax.f32 %v167, %v185
      %v204 = vmax.f32 %v168, %v186
      %v205 = vmax.f32 %v169, %v187
      %v206 = vmax.f32 %v170, %v188
      %s207 = scalar_lea.vmem %s111, 16
      %v208 = vld [vmem:[%s207] sm:$0xff]
      %v209 = vld [vmem:[%s207 + $0x8] sm:$0x1]
      %v210 = vld [vmem:[%s207 + $0x10] sm:$0xff]
      %v211 = vld [vmem:[%s207 + $0x18] sm:$0x1]
      %v212 = vld [vmem:[%s207 + $0x20] sm:$0xff]
      %v213 = vld [vmem:[%s207 + $0x28] sm:$0x1]
      %v214 = vld [vmem:[%s207 + $0x30] sm:$0xff]
      %v215 = vld [vmem:[%s207 + $0x38] sm:$0x1]
      %v216 = vld [vmem:[%s207 + $0x40] sm:$0xff]
      %v217 = vld [vmem:[%s207 + $0x48] sm:$0x1]
      %v218 = vld [vmem:[%s207 + $0x50] sm:$0xff]
      %v219 = vld [vmem:[%s207 + $0x58] sm:$0x1]
      %v220 = vld [vmem:[%s207 + $0x60] sm:$0xff]
      %v221 = vld [vmem:[%s207 + $0x68] sm:$0x1]
      %v222 = vld [vmem:[%s207 + $0x70] sm:$0xff]
      %v223 = vld [vmem:[%s207 + $0x78] sm:$0x1]
      %v224 = vld [vmem:[%s207 + $0x80] sm:$0xff]
      %v225 = vld [vmem:[%s207 + $0x88] sm:$0x1]
      %v226 = vmax.f32 %v189, %v208
      %v227 = vmax.f32 %v190, %v209
      %v228 = vmax.f32 %v191, %v210
      %v229 = vmax.f32 %v192, %v211
      %v230 = vmax.f32 %v193, %v212
      %v231 = vmax.f32 %v194, %v213
      %v232 = vmax.f32 %v195, %v214
      %v233 = vmax.f32 %v196, %v215
      %v234 = vmax.f32 %v197, %v216
      %v235 = vmax.f32 %v198, %v217
      %v236 = vmax.f32 %v199, %v218
      %v237 = vmax.f32 %v200, %v219
      %v238 = vmax.f32 %v201, %v220
      %v239 = vmax.f32 %v202, %v221
      %v240 = vmax.f32 %v203, %v222
      %v241 = vmax.f32 %v204, %v223
      %v242 = vmax.f32 %v205, %v224
      %v243 = vmax.f32 %v206, %v225
      %v244 = vld [vmem:[%s207 + $0x1] sm:$0xff]
      %v245 = vld [vmem:[%s207 + $0x9] sm:$0x1]
      %v246 = vld [vmem:[%s207 + $0x11] sm:$0xff]
      %v247 = vld [vmem:[%s207 + $0x19] sm:$0x1]
      %v248 = vld [vmem:[%s207 + $0x21] sm:$0xff]
      %v249 = vld [vmem:[%s207 + $0x29] sm:$0x1]
      %v250 = vld [vmem:[%s207 + $0x31] sm:$0xff]
      %v251 = vld [vmem:[%s207 + $0x39] sm:$0x1]
      %v252 = vld [vmem:[%s207 + $0x41] sm:$0xff]
      %v253 = vld [vmem:[%s207 + $0x49] sm:$0x1]
      %v254 = vld [vmem:[%s207 + $0x51] sm:$0xff]
      %v255 = vld [vmem:[%s207 + $0x59] sm:$0x1]
      %v256 = vld [vmem:[%s207 + $0x61] sm:$0xff]
      %v257 = vld [vmem:[%s207 + $0x69] sm:$0x1]
      %v258 = vld [vmem:[%s207 + $0x71] sm:$0xff]
      %v259 = vld [vmem:[%s207 + $0x79] sm:$0x1]
      %v260 = vld [vmem:[%s207 + $0x81] sm:$0xff]
      %v261 = vld [vmem:[%s207 + $0x89] sm:$0x1]
      %v262 = vmax.f32 %v226, %v244
      %v263 = vmax.f32 %v227, %v245
      %v264 = vmax.f32 %v228, %v246
      %v265 = vmax.f32 %v229, %v247
      %v266 = vmax.f32 %v230, %v248
      %v267 = vmax.f32 %v231, %v249
      %v268 = vmax.f32 %v232, %v250
      %v269 = vmax.f32 %v233, %v251
      %v270 = vmax.f32 %v234, %v252
      %v271 = vmax.f32 %v235, %v253
      %v272 = vmax.f32 %v236, %v254
      %v273 = vmax.f32 %v237, %v255
      %v274 = vmax.f32 %v238, %v256
      %v275 = vmax.f32 %v239, %v257
      %v276 = vmax.f32 %v240, %v258
      %v277 = vmax.f32 %v241, %v259
      %v278 = vmax.f32 %v242, %v260
      %v279 = vmax.f32 %v243, %v261
      %v280 = vld [vmem:[%s207 + $0x2] sm:$0xff]
      %v281 = vld [vmem:[%s207 + $0xa] sm:$0x1]
      %v282 = vld [vmem:[%s207 + $0x12] sm:$0xff]
      %v283 = vld [vmem:[%s207 + $0x1a] sm:$0x1]
      %v284 = vld [vmem:[%s207 + $0x22] sm:$0xff]
      %v285 = vld [vmem:[%s207 + $0x2a] sm:$0x1]
      %v286 = vld [vmem:[%s207 + $0x32] sm:$0xff]
      %v287 = vld [vmem:[%s207 + $0x3a] sm:$0x1]
      %v288 = vld [vmem:[%s207 + $0x42] sm:$0xff]
      %v289 = vld [vmem:[%s207 + $0x4a] sm:$0x1]
      %v290 = vld [vmem:[%s207 + $0x52] sm:$0xff]
      %v291 = vld [vmem:[%s207 + $0x5a] sm:$0x1]
      %v292 = vld [vmem:[%s207 + $0x62] sm:$0xff]
      %v293 = vld [vmem:[%s207 + $0x6a] sm:$0x1]
      %v294 = vld [vmem:[%s207 + $0x72] sm:$0xff]
      %v295 = vld [vmem:[%s207 + $0x7a] sm:$0x1]
      %v296 = vld [vmem:[%s207 + $0x82] sm:$0xff]
      %v297 = vld [vmem:[%s207 + $0x8a] sm:$0x1]
      %v298 = vmax.f32 %v262, %v280
      %v299 = vmax.f32 %v263, %v281
      %v300 = vmax.f32 %v264, %v282
      %v301 = vmax.f32 %v265, %v283
      %v302 = vmax.f32 %v266, %v284
      %v303 = vmax.f32 %v267, %v285
      %v304 = vmax.f32 %v268, %v286
      %v305 = vmax.f32 %v269, %v287
      %v306 = vmax.f32 %v270, %v288
      %v307 = vmax.f32 %v271, %v289
      %v308 = vmax.f32 %v272, %v290
      %v309 = vmax.f32 %v273, %v291
      %v310 = vmax.f32 %v274, %v292
      %v311 = vmax.f32 %v275, %v293
      %v312 = vmax.f32 %v276, %v294
      %v313 = vmax.f32 %v277, %v295
      %v314 = vmax.f32 %v278, %v296
      %v315 = vmax.f32 %v279, %v297
      %s316 = scalar_lea.vmem %s111, 32
      %v317 = vld [vmem:[%s316] sm:$0xff]
      %v318 = vld [vmem:[%s316 + $0x8] sm:$0x1]
      %v319 = vld [vmem:[%s316 + $0x10] sm:$0xff]
      %v320 = vld [vmem:[%s316 + $0x18] sm:$0x1]
      %v321 = vld [vmem:[%s316 + $0x20] sm:$0xff]
      %v322 = vld [vmem:[%s316 + $0x28] sm:$0x1]
      %v323 = vld [vmem:[%s316 + $0x30] sm:$0xff]
      %v324 = vld [vmem:[%s316 + $0x38] sm:$0x1]
      %v325 = vld [vmem:[%s316 + $0x40] sm:$0xff]
      %v326 = vld [vmem:[%s316 + $0x48] sm:$0x1]
      %v327 = vld [vmem:[%s316 + $0x50] sm:$0xff]
      %v328 = vld [vmem:[%s316 + $0x58] sm:$0x1]
      %v329 = vld [vmem:[%s316 + $0x60] sm:$0xff]
      %v330 = vld [vmem:[%s316 + $0x68] sm:$0x1]
      %v331 = vld [vmem:[%s316 + $0x70] sm:$0xff]
      %v332 = vld [vmem:[%s316 + $0x78] sm:$0x1]
      %v333 = vld [vmem:[%s316 + $0x80] sm:$0xff]
      %v334 = vld [vmem:[%s316 + $0x88] sm:$0x1]
      %v335 = vmax.f32 %v298, %v317
      %v336 = vmax.f32 %v299, %v318
      %v337 = vmax.f32 %v300, %v319
      %v338 = vmax.f32 %v301, %v320
      %v339 = vmax.f32 %v302, %v321
      %v340 = vmax.f32 %v303, %v322
      %v341 = vmax.f32 %v304, %v323
      %v342 = vmax.f32 %v305, %v324
      %v343 = vmax.f32 %v306, %v325
      %v344 = vmax.f32 %v307, %v326
      %v345 = vmax.f32 %v308, %v327
      %v346 = vmax.f32 %v309, %v328
      %v347 = vmax.f32 %v310, %v329
      %v348 = vmax.f32 %v311, %v330
      %v349 = vmax.f32 %v312, %v331
      %v350 = vmax.f32 %v313, %v332
      %v351 = vmax.f32 %v314, %v333
      %v352 = vmax.f32 %v315, %v334
      %v353 = vld [vmem:[%s316 + $0x1] sm:$0xff]
      %v354 = vld [vmem:[%s316 + $0x9] sm:$0x1]
      %v355 = vld [vmem:[%s316 + $0x11] sm:$0xff]
      %v356 = vld [vmem:[%s316 + $0x19] sm:$0x1]
      %v357 = vld [vmem:[%s316 + $0x21] sm:$0xff]
      %v358 = vld [vmem:[%s316 + $0x29] sm:$0x1]
      %v359 = vld [vmem:[%s316 + $0x31] sm:$0xff]
      %v360 = vld [vmem:[%s316 + $0x39] sm:$0x1]
      %v361 = vld [vmem:[%s316 + $0x41] sm:$0xff]
      %v362 = vld [vmem:[%s316 + $0x49] sm:$0x1]
      %v363 = vld [vmem:[%s316 + $0x51] sm:$0xff]
      %v364 = vld [vmem:[%s316 + $0x59] sm:$0x1]
      %v365 = vld [vmem:[%s316 + $0x61] sm:$0xff]
      %v366 = vld [vmem:[%s316 + $0x69] sm:$0x1]
      %v367 = vld [vmem:[%s316 + $0x71] sm:$0xff]
      %v368 = vld [vmem:[%s316 + $0x79] sm:$0x1]
      %v369 = vld [vmem:[%s316 + $0x81] sm:$0xff]
      %v370 = vld [vmem:[%s316 + $0x89] sm:$0x1]
      %v371 = vmax.f32 %v335, %v353
      %v372 = vmax.f32 %v336, %v354
      %v373 = vmax.f32 %v337, %v355
      %v374 = vmax.f32 %v338, %v356
      %v375 = vmax.f32 %v339, %v357
      %v376 = vmax.f32 %v340, %v358
      %v377 = vmax.f32 %v341, %v359
      %v378 = vmax.f32 %v342, %v360
      %v379 = vmax.f32 %v343, %v361
      %v380 = vmax.f32 %v344, %v362
      %v381 = vmax.f32 %v345, %v363
      %v382 = vmax.f32 %v346, %v364
      %v383 = vmax.f32 %v347, %v365
      %v384 = vmax.f32 %v348, %v366
      %v385 = vmax.f32 %v349, %v367
      %v386 = vmax.f32 %v350, %v368
      %v387 = vmax.f32 %v351, %v369
      %v388 = vmax.f32 %v352, %v370
      %v389 = vld [vmem:[%s316 + $0x2] sm:$0xff]
      %v390 = vld [vmem:[%s316 + $0xa] sm:$0x1]
      %v391 = vld [vmem:[%s316 + $0x12] sm:$0xff]
      %v392 = vld [vmem:[%s316 + $0x1a] sm:$0x1]
      %v393 = vld [vmem:[%s316 + $0x22] sm:$0xff]
      %v394 = vld [vmem:[%s316 + $0x2a] sm:$0x1]
      %v395 = vld [vmem:[%s316 + $0x32] sm:$0xff]
      %v396 = vld [vmem:[%s316 + $0x3a] sm:$0x1]
      %v397 = vld [vmem:[%s316 + $0x42] sm:$0xff]
      %v398 = vld [vmem:[%s316 + $0x4a] sm:$0x1]
      %v399 = vld [vmem:[%s316 + $0x52] sm:$0xff]
      %v400 = vld [vmem:[%s316 + $0x5a] sm:$0x1]
      %v401 = vld [vmem:[%s316 + $0x62] sm:$0xff]
      %v402 = vld [vmem:[%s316 + $0x6a] sm:$0x1]
      %v403 = vld [vmem:[%s316 + $0x72] sm:$0xff]
      %v404 = vld [vmem:[%s316 + $0x7a] sm:$0x1]
      %v405 = vld [vmem:[%s316 + $0x82] sm:$0xff]
      %v406 = vld [vmem:[%s316 + $0x8a] sm:$0x1]
      %v407 = vmax.f32 %v371, %v389
      %v408 = vmax.f32 %v372, %v390
      %v409 = vmax.f32 %v373, %v391
      %v410 = vmax.f32 %v374, %v392
      %v411 = vmax.f32 %v375, %v393
      %v412 = vmax.f32 %v376, %v394
      %v413 = vmax.f32 %v377, %v395
      %v414 = vmax.f32 %v378, %v396
      %v415 = vmax.f32 %v379, %v397
      %v416 = vmax.f32 %v380, %v398
      %v417 = vmax.f32 %v381, %v399
      %v418 = vmax.f32 %v382, %v400
      %v419 = vmax.f32 %v383, %v401
      %v420 = vmax.f32 %v384, %v402
      %v421 = vmax.f32 %v385, %v403
      %v422 = vmax.f32 %v386, %v404
      %v423 = vmax.f32 %v387, %v405
      %v424 = vmax.f32 %v388, %v406
      %425 = vst [vmem:[%s116] sm:$0xff] %v407
      %426 = vst [vmem:[%s116 + $0x8] sm:$0x1] %v408
      %427 = vst [vmem:[%s116 + $0x10] sm:$0xff] %v409
      %428 = vst [vmem:[%s116 + $0x18] sm:$0x1] %v410
      %429 = vst [vmem:[%s116 + $0x20] sm:$0xff] %v411
      %430 = vst [vmem:[%s116 + $0x28] sm:$0x1] %v412
      %431 = vst [vmem:[%s116 + $0x30] sm:$0xff] %v413
      %432 = vst [vmem:[%s116 + $0x38] sm:$0x1] %v414
      %433 = vst [vmem:[%s116 + $0x40] sm:$0xff] %v415
      %434 = vst [vmem:[%s116 + $0x48] sm:$0x1] %v416
      %435 = vst [vmem:[%s116 + $0x50] sm:$0xff] %v417
      %436 = vst [vmem:[%s116 + $0x58] sm:$0x1] %v418
      %437 = vst [vmem:[%s116 + $0x60] sm:$0xff] %v419
      %438 = vst [vmem:[%s116 + $0x68] sm:$0x1] %v420
      %439 = vst [vmem:[%s116 + $0x70] sm:$0xff] %v421
      %440 = vst [vmem:[%s116 + $0x78] sm:$0x1] %v422
      %441 = vst [vmem:[%s116 + $0x80] sm:$0xff] %v423
      %442 = vst [vmem:[%s116 + $0x88] sm:$0x1] %v424
      %p443 = scmp.lt.s32.totalorder %s12, 1
      %s444 = scalar_select %p443, %s12, 1
      %s445 = smul.addr %s444, 18
      %s446 = smul.addr %s445, 8
      %s447 = scalar_lea.vmem %s1, %s446
      // Predicated region
      $region25: #{extract_forward.12} parent=23 // pred_check
        %p448 = pneg %p56
      $region26: #{extract_forward.12} parent=23 // pred_check_branch
        %450 = sbr.rel (%p448) target = $region28
      $region27: #{extract_forward.12} parent=23 // pred_region
        _
      $region28: #{extract_forward.12} parent=23 // pred_fallthru
        _
    $region24: #{extract_forward.12} parent=5 // pred_fallthru
      _
    %p451 = scmp.le.s32.totalorder 2, %s7
    // Predicated region
    $region29: #{extract_forward.12} parent=5 // pred_check
      %p452 = pneg %p451
    $region30: #{extract_forward.12} parent=5 // pred_check_branch
      %454 = sbr.rel (%p452) target = $region32
    $region31: #{extract_forward.12} parent=5 // pred_region
      %s455 = ssub.s32 %s7, 2
      // Predicated region
      $region33: #{extract_forward.12} parent=31 // pred_check
        %p456 = pneg %p62
      $region34: #{extract_forward.12} parent=31 // pred_check_branch
        %458 = sbr.rel (%p456) target = $region36
      $region35: #{extract_forward.12} parent=31 // pred_region
        %p459 = scmp.lt.s32.totalorder %s13, 1
        %s460 = scalar_select %p459, %s13, 1
        %s461 = smul.addr %s460, 18
        %s462 = smul.addr %s461, 8
        %s463 = scalar_lea.vmem %s1, %s462
      $region36: #{extract_forward.12} parent=31 // pred_fallthru
        _
    $region32: #{extract_forward.12} parent=5 // pred_fallthru
      _
  $region6: #{extract_forward.12} parent=0 // loop_footer
    %s11 = sadd.s32 1, %s7
  $region7: #{extract_forward.12} parent=0 // loop_footer_branch
    %6 = sbr.rel target = $region3
  $region8: #{extract_forward.12} parent=0 // loop_exit
    _

// kernel: extract_forward.11
$region0: #{extract_forward.11}
  #allocation0 [shape = 'u32[]', space=smem, size = 0x4, offset = 0x4, fixed_abs, tag = 'smem constant byte address 0x4 - core index']
  #allocation1 [shape = 'u32[144,128]{1,0:T(1,128)}', space=vmem, size = 0x12000, scoped, tag = 'internal scratch']
  #allocation2 [shape = 'f32[248,128]{1,0:T(8,128)}', space=vmem, size = 0x1f000, scoped, tag = 'scratch operand']
  %s0 = inlined_call_operand.vmem [shape: bf16[248,512], index: 0, kind: input, shape index: {}]
  %s1 = inlined_call_operand.vmem [shape: bf16[512,128], index: 1, kind: input, shape index: {}]
  %s2 = inlined_call_operand.vmem [shape: f32[1,128], index: 2, kind: input, shape index: {}]
  %s3 = inlined_call_operand.vmem [shape: f32[248,128], index: 3, kind: output, shape index: {}]
  %s4 = sld [smem:[#allocation0]]
  $region30: #{extract_forward.11} parent=0
    _
  %s6 = ssub.s32 1, %s4
  %s7 = scalar_select 0, %s6, %s4
  // Predicated region
  $region2: #{extract_forward.11} parent=0 // pred_check
    _
  $region3: #{extract_forward.11} parent=0 // pred_check_branch
    %9 = sbr.rel (0) target = $region5
  $region4: #{extract_forward.11} parent=0 // pred_region
    _
  $region5: #{extract_forward.11} parent=0 // pred_fallthru
    _
  // Predicated region
  $region6: #{extract_forward.11} parent=0 // pred_check
    _
  $region7: #{extract_forward.11} parent=0 // pred_check_branch
    %11 = sbr.rel (0) target = $region9
  $region8: #{extract_forward.11} parent=0 // pred_region
    _
  $region9: #{extract_forward.11} parent=0 // pred_fallthru
    _
  // Predicated region
  $region10: #{extract_forward.11} parent=0 // pred_check
    _
  $region11: #{extract_forward.11} parent=0 // pred_check_branch
    %13 = sbr.rel (0) target = $region13
  $region12: #{extract_forward.11} parent=0 // pred_region
    _
  $region13: #{extract_forward.11} parent=0 // pred_fallthru
    _
  %p15 = scmp.eq.s32.totalorder 0, 0
  // Predicated region
  $region14: #{extract_forward.11} parent=0 // pred_check
    %p16 = pneg %p15
  $region15: #{extract_forward.11} parent=0 // pred_check_branch
    %18 = sbr.rel (%p16) target = $region17
  $region16: #{extract_forward.11} parent=0 // pred_region
    %19 = vst [vmem:[#allocation2] sm:$0xff] 0.0
    %20 = vst [vmem:[#allocation2 + $0x8] sm:$0xff] 0.0
    %21 = vst [vmem:[#allocation2 + $0x10] sm:$0xff] 0.0
    %22 = vst [vmem:[#allocation2 + $0x18] sm:$0xff] 0.0
    %23 = vst [vmem:[#allocation2 + $0x20] sm:$0xff] 0.0
    %24 = vst [vmem:[#allocation2 + $0x28] sm:$0xff] 0.0
    %25 = vst [vmem:[#allocation2 + $0x30] sm:$0xff] 0.0
    %26 = vst [vmem:[#allocation2 + $0x38] sm:$0xff] 0.0
    %27 = vst [vmem:[#allocation2 + $0x40] sm:$0xff] 0.0
    %28 = vst [vmem:[#allocation2 + $0x48] sm:$0xff] 0.0
    %29 = vst [vmem:[#allocation2 + $0x50] sm:$0xff] 0.0
    %30 = vst [vmem:[#allocation2 + $0x58] sm:$0xff] 0.0
    %31 = vst [vmem:[#allocation2 + $0x60] sm:$0xff] 0.0
    %32 = vst [vmem:[#allocation2 + $0x68] sm:$0xff] 0.0
    %33 = vst [vmem:[#allocation2 + $0x70] sm:$0xff] 0.0
    %34 = vst [vmem:[#allocation2 + $0x78] sm:$0xff] 0.0
    %35 = vst [vmem:[#allocation2 + $0x80] sm:$0xff] 0.0
    %36 = vst [vmem:[#allocation2 + $0x88] sm:$0xff] 0.0
    %37 = vst [vmem:[#allocation2 + $0x90] sm:$0xff] 0.0
    %38 = vst [vmem:[#allocation2 + $0x98] sm:$0xff] 0.0
    %39 = vst [vmem:[#allocation2 + $0xa0] sm:$0xff] 0.0
    %40 = vst [vmem:[#allocation2 + $0xa8] sm:$0xff] 0.0
    %41 = vst [vmem:[#allocation2 + $0xb0] sm:$0xff] 0.0
    %42 = vst [vmem:[#allocation2 + $0xb8] sm:$0xff] 0.0
    %43 = vst [vmem:[#allocation2 + $0xc0] sm:$0xff] 0.0
    %44 = vst [vmem:[#allocation2 + $0xc8] sm:$0xff] 0.0
    %45 = vst [vmem:[#allocation2 + $0xd0] sm:$0xff] 0.0
    %46 = vst [vmem:[#allocation2 + $0xd8] sm:$0xff] 0.0
    %47 = vst [vmem:[#allocation2 + $0xe0] sm:$0xff] 0.0
    %48 = vst [vmem:[#allocation2 + $0xe8] sm:$0xff] 0.0
    %49 = vst [vmem:[#allocation2 + $0xf0] sm:$0xff] 0.0
  $region17: #{extract_forward.11} parent=0 // pred_fallthru
    _
  %v50 = vld [vmem:[#allocation2] sm:$0xff]
  %v51 = vld [vmem:[#allocation2 + $0x8] sm:$0xff]
  %v52 = vld [vmem:[#allocation2 + $0x10] sm:$0xff]
  %v53 = vld [vmem:[#allocation2 + $0x18] sm:$0xff]
  %v54 = vld [vmem:[#allocation2 + $0x20] sm:$0xff]
  %v55 = vld [vmem:[#allocation2 + $0x28] sm:$0xff]
  %v56 = vld [vmem:[#allocation2 + $0x30] sm:$0xff]
  %v57 = vld [vmem:[#allocation2 + $0x38] sm:$0xff]
  %v58 = vld [vmem:[#allocation2 + $0x40] sm:$0xff]
  %v59 = vld [vmem:[#allocation2 + $0x48] sm:$0xff]
  %v60 = vld [vmem:[#allocation2 + $0x50] sm:$0xff]
  %v61 = vld [vmem:[#allocation2 + $0x58] sm:$0xff]
  %v62 = vld [vmem:[#allocation2 + $0x60] sm:$0xff]
  %v63 = vld [vmem:[#allocation2 + $0x68] sm:$0xff]
  %v64 = vld [vmem:[#allocation2 + $0x70] sm:$0xff]
  %v65 = vld [vmem:[#allocation2 + $0x78] sm:$0xff]
  %v66 = vld [vmem:[#allocation2 + $0x80] sm:$0xff]
  %v67 = vld [vmem:[#allocation2 + $0x88] sm:$0xff]
  %v68 = vld [vmem:[#allocation2 + $0x90] sm:$0xff]
  %v69 = vld [vmem:[#allocation2 + $0x98] sm:$0xff]
  %v70 = vld [vmem:[#allocation2 + $0xa0] sm:$0xff]
  %v71 = vld [vmem:[#allocation2 + $0xa8] sm:$0xff]
  %v72 = vld [vmem:[#allocation2 + $0xb0] sm:$0xff]
  %v73 = vld [vmem:[#allocation2 + $0xb8] sm:$0xff]
  %v74 = vld [vmem:[#allocation2 + $0xc0] sm:$0xff]
  %v75 = vld [vmem:[#allocation2 + $0xc8] sm:$0xff]
  %v76 = vld [vmem:[#allocation2 + $0xd0] sm:$0xff]
  %v77 = vld [vmem:[#allocation2 + $0xd8] sm:$0xff]
  %v78 = vld [vmem:[#allocation2 + $0xe0] sm:$0xff]
  %v79 = vld [vmem:[#allocation2 + $0xe8] sm:$0xff]
  %v80 = vld [vmem:[#allocation2 + $0xf0] sm:$0xff]
  %v81 = vld [vmem:[%s0] sm:$0xff]
  %v82 = vld [vmem:[%s0 + $0x8] sm:$0xff]
  %v83 = vld [vmem:[%s0 + $0x10] sm:$0xff]
  %v84 = vld [vmem:[%s0 + $0x18] sm:$0xff]
  %v85 = vld [vmem:[%s0 + $0x20] sm:$0xff]
  %v86 = vld [vmem:[%s0 + $0x28] sm:$0xff]
  %v87 = vld [vmem:[%s0 + $0x30] sm:$0xff]
  %v88 = vld [vmem:[%s0 + $0x38] sm:$0xff]
  %v89 = vld [vmem:[%s0 + $0x40] sm:$0xff]
  %v90 = vld [vmem:[%s0 + $0x48] sm:$0xff]
  %v91 = vld [vmem:[%s0 + $0x50] sm:$0xff]
  %v92 = vld [vmem:[%s0 + $0x58] sm:$0xff]
  %v93 = vld [vmem:[%s0 + $0x60] sm:$0xff]
  %v94 = vld [vmem:[%s0 + $0x68] sm:$0xff]
  %v95 = vld [vmem:[%s0 + $0x70] sm:$0xff]
  %v96 = vld [vmem:[%s0 + $0x78] sm:$0xff]
  %v97 = vld [vmem:[%s0 + $0x80] sm:$0xff]
  %v98 = vld [vmem:[%s0 + $0x88] sm:$0xff]
  %v99 = vld [vmem:[%s0 + $0x90] sm:$0xff]
  %v100 = vld [vmem:[%s0 + $0x98] sm:$0xff]
  %v101 = vld [vmem:[%s0 + $0xa0] sm:$0xff]
  %v102 = vld [vmem:[%s0 + $0xa8] sm:$0xff]
  %v103 = vld [vmem:[%s0 + $0xb0] sm:$0xff]
  %v104 = vld [vmem:[%s0 + $0xb8] sm:$0xff]
  %v105 = vld [vmem:[%s0 + $0xc0] sm:$0xff]
  %v106 = vld [vmem:[%s0 + $0xc8] sm:$0xff]
  %v107 = vld [vmem:[%s0 + $0xd0] sm:$0xff]
  %v108 = vld [vmem:[%s0 + $0xd8] sm:$0xff]
  %v109 = vld [vmem:[%s0 + $0xe0] sm:$0xff]
  %v110 = vld [vmem:[%s0 + $0xe8] sm:$0xff]
  %v111 = vld [vmem:[%s0 + $0xf0] sm:$0xff]
  %v112 = vld [vmem:[%s0 + $0xf8] sm:$0xff]
  %v113 = vld [vmem:[%s0 + $0x100] sm:$0xff]
  %v114 = vld [vmem:[%s0 + $0x108] sm:$0xff]
  %v115 = vld [vmem:[%s0 + $0x110] sm:$0xff]
  %v116 = vld [vmem:[%s0 + $0x118] sm:$0xff]
  %v117 = vld [vmem:[%s0 + $0x120] sm:$0xff]
  %v118 = vld [vmem:[%s0 + $0x128] sm:$0xff]
  %v119 = vld [vmem:[%s0 + $0x130] sm:$0xff]
  %v120 = vld [vmem:[%s0 + $0x138] sm:$0xff]
  %v121 = vld [vmem:[%s0 + $0x140] sm:$0xff]
  %v122 = vld [vmem:[%s0 + $0x148] sm:$0xff]
  %v123 = vld [vmem:[%s0 + $0x150] sm:$0xff]
  %v124 = vld [vmem:[%s0 + $0x158] sm:$0xff]
  %v125 = vld [vmem:[%s0 + $0x160] sm:$0xff]
  %v126 = vld [vmem:[%s0 + $0x168] sm:$0xff]
  %v127 = vld [vmem:[%s0 + $0x170] sm:$0xff]
  %v128 = vld [vmem:[%s0 + $0x178] sm:$0xff]
  %v129 = vld [vmem:[%s0 + $0x180] sm:$0xff]
  %v130 = vld [vmem:[%s0 + $0x188] sm:$0xff]
  %v131 = vld [vmem:[%s0 + $0x190] sm:$0xff]
  %v132 = vld [vmem:[%s0 + $0x198] sm:$0xff]
  %v133 = vld [vmem:[%s0 + $0x1a0] sm:$0xff]
  %v134 = vld [vmem:[%s0 + $0x1a8] sm:$0xff]
  %v135 = vld [vmem:[%s0 + $0x1b0] sm:$0xff]
  %v136 = vld [vmem:[%s0 + $0x1b8] sm:$0xff]
  %v137 = vld [vmem:[%s0 + $0x1c0] sm:$0xff]
  %v138 = vld [vmem:[%s0 + $0x1c8] sm:$0xff]
  %v139 = vld [vmem:[%s0 + $0x1d0] sm:$0xff]
  %v140 = vld [vmem:[%s0 + $0x1d8] sm:$0xff]
  %v141 = vld [vmem:[%s0 + $0x1e0] sm:$0xff]
  %v142 = vld [vmem:[%s0 + $0x1e8] sm:$0xff]
  %v143 = vld [vmem:[%s1] sm:$0xf]
  %v144 = vld [vmem:[%s1 + $0x4] sm:$0xf]
  %v145 = vld [vmem:[%s1 + $0x8] sm:$0xf]
  %v146 = vld [vmem:[%s1 + $0xc] sm:$0xf]
  %v147 = vld [vmem:[%s1 + $0x10] sm:$0xf]
  %v148 = vld [vmem:[%s1 + $0x14] sm:$0xf]
  %v149 = vld [vmem:[%s1 + $0x18] sm:$0xf]
  %v150 = vld [vmem:[%s1 + $0x1c] sm:$0xf]
  %v151 = vld [vmem:[%s1 + $0x20] sm:$0xf]
  %v152 = vld [vmem:[%s1 + $0x24] sm:$0xf]
  %v153 = vld [vmem:[%s1 + $0x28] sm:$0xf]
  %v154 = vld [vmem:[%s1 + $0x2c] sm:$0xf]
  %v155 = vld [vmem:[%s1 + $0x30] sm:$0xf]
  %v156 = vld [vmem:[%s1 + $0x34] sm:$0xf]
  %v157 = vld [vmem:[%s1 + $0x38] sm:$0xf]
  %v158 = vld [vmem:[%s1 + $0x3c] sm:$0xf]
  %v159 = vld [vmem:[%s1 + $0x40] sm:$0xf]
  %v160 = vld [vmem:[%s1 + $0x44] sm:$0xf]
  %v161 = vld [vmem:[%s1 + $0x48] sm:$0xf]
  %v162 = vld [vmem:[%s1 + $0x4c] sm:$0xf]
  %v163 = vld [vmem:[%s1 + $0x50] sm:$0xf]
  %v164 = vld [vmem:[%s1 + $0x54] sm:$0xf]
  %v165 = vld [vmem:[%s1 + $0x58] sm:$0xf]
  %v166 = vld [vmem:[%s1 + $0x5c] sm:$0xf]
  %v167 = vld [vmem:[%s1 + $0x60] sm:$0xf]
  %v168 = vld [vmem:[%s1 + $0x64] sm:$0xf]
  %v169 = vld [vmem:[%s1 + $0x68] sm:$0xf]
  %v170 = vld [vmem:[%s1 + $0x6c] sm:$0xf]
  %v171 = vld [vmem:[%s1 + $0x70] sm:$0xf]
  %v172 = vld [vmem:[%s1 + $0x74] sm:$0xf]
  %v173 = vld [vmem:[%s1 + $0x78] sm:$0xf]
  %v174 = vld [vmem:[%s1 + $0x7c] sm:$0xf]
  %v175 = vld [vmem:[%s1 + $0x80] sm:$0xf]
  %v176 = vld [vmem:[%s1 + $0x84] sm:$0xf]
  %v177 = vld [vmem:[%s1 + $0x88] sm:$0xf]
  %v178 = vld [vmem:[%s1 + $0x8c] sm:$0xf]
  %v179 = vld [vmem:[%s1 + $0x90] sm:$0xf]
  %v180 = vld [vmem:[%s1 + $0x94] sm:$0xf]
  %v181 = vld [vmem:[%s1 + $0x98] sm:$0xf]
  %v182 = vld [vmem:[%s1 + $0x9c] sm:$0xf]
  %v183 = vld [vmem:[%s1 + $0xa0] sm:$0xf]
  %v184 = vld [vmem:[%s1 + $0xa4] sm:$0xf]
  %v185 = vld [vmem:[%s1 + $0xa8] sm:$0xf]
  %v186 = vld [vmem:[%s1 + $0xac] sm:$0xf]
  %v187 = vld [vmem:[%s1 + $0xb0] sm:$0xf]
  %v188 = vld [vmem:[%s1 + $0xb4] sm:$0xf]
  %v189 = vld [vmem:[%s1 + $0xb8] sm:$0xf]
  %v190 = vld [vmem:[%s1 + $0xbc] sm:$0xf]
  %v191 = vld [vmem:[%s1 + $0xc0] sm:$0xf]
  %v192 = vld [vmem:[%s1 + $0xc4] sm:$0xf]
  %v193 = vld [vmem:[%s1 + $0xc8] sm:$0xf]
  %v194 = vld [vmem:[%s1 + $0xcc] sm:$0xf]
  %v195 = vld [vmem:[%s1 + $0xd0] sm:$0xf]
  %v196 = vld [vmem:[%s1 + $0xd4] sm:$0xf]
  %v197 = vld [vmem:[%s1 + $0xd8] sm:$0xf]
  %v198 = vld [vmem:[%s1 + $0xdc] sm:$0xf]
  %v199 = vld [vmem:[%s1 + $0xe0] sm:$0xf]
  %v200 = vld [vmem:[%s1 + $0xe4] sm:$0xf]
  %v201 = vld [vmem:[%s1 + $0xe8] sm:$0xf]
  %v202 = vld [vmem:[%s1 + $0xec] sm:$0xf]
  %v203 = vld [vmem:[%s1 + $0xf0] sm:$0xf]
  %v204 = vld [vmem:[%s1 + $0xf4] sm:$0xf]
  %v205 = vld [vmem:[%s1 + $0xf8] sm:$0xf]
  %v206 = vld [vmem:[%s1 + $0xfc] sm:$0xf]
  %v269 = vunpack.c.l.b16 %v81
  %v270 = vunpack.c.h.b16 %v81
  %v271 = vunpack.c.l.b16 %v82
  %v272 = vunpack.c.h.b16 %v82
  %v273 = vunpack.c.l.b16 %v83
  %v274 = vunpack.c.h.b16 %v83
  %v275 = vunpack.c.l.b16 %v84
  %v276 = vunpack.c.h.b16 %v84
  %v277 = vunpack.c.l.b16 %v85
  %v278 = vunpack.c.h.b16 %v85
  %v279 = vunpack.c.l.b16 %v86
  %v280 = vunpack.c.h.b16 %v86
  %v281 = vunpack.c.l.b16 %v87
  %v282 = vunpack.c.h.b16 %v87
  %v283 = vunpack.c.l.b16 %v88
  %v284 = vunpack.c.h.b16 %v88
  %v285 = vunpack.c.l.b16 %v89
  %v286 = vunpack.c.h.b16 %v89
  %v287 = vunpack.c.l.b16 %v90
  %v288 = vunpack.c.h.b16 %v90
  %v289 = vunpack.c.l.b16 %v91
  %v290 = vunpack.c.h.b16 %v91
  %v291 = vunpack.c.l.b16 %v92
  %v292 = vunpack.c.h.b16 %v92
  %v293 = vunpack.c.l.b16 %v93
  %v294 = vunpack.c.h.b16 %v93
  %v295 = vunpack.c.l.b16 %v94
  %v296 = vunpack.c.h.b16 %v94
  %v297 = vunpack.c.l.b16 %v95
  %v298 = vunpack.c.h.b16 %v95
  %v299 = vunpack.c.l.b16 %v96
  %v300 = vunpack.c.h.b16 %v96
  %v301 = vunpack.c.l.b16 %v97
  %v302 = vunpack.c.h.b16 %v97
  %v303 = vunpack.c.l.b16 %v98
  %v304 = vunpack.c.h.b16 %v98
  %v305 = vunpack.c.l.b16 %v99
  %v306 = vunpack.c.h.b16 %v99
  %v307 = vunpack.c.l.b16 %v100
  %v308 = vunpack.c.h.b16 %v100
  %v309 = vunpack.c.l.b16 %v101
  %v310 = vunpack.c.h.b16 %v101
  %v311 = vunpack.c.l.b16 %v102
  %v312 = vunpack.c.h.b16 %v102
  %v313 = vunpack.c.l.b16 %v103
  %v314 = vunpack.c.h.b16 %v103
  %v315 = vunpack.c.l.b16 %v104
  %v316 = vunpack.c.h.b16 %v104
  %v317 = vunpack.c.l.b16 %v105
  %v318 = vunpack.c.h.b16 %v105
  %v319 = vunpack.c.l.b16 %v106
  %v320 = vunpack.c.h.b16 %v106
  %v321 = vunpack.c.l.b16 %v107
  %v322 = vunpack.c.h.b16 %v107
  %v323 = vunpack.c.l.b16 %v108
  %v324 = vunpack.c.h.b16 %v108
  %v325 = vunpack.c.l.b16 %v109
  %v326 = vunpack.c.h.b16 %v109
  %v327 = vunpack.c.l.b16 %v110
  %v328 = vunpack.c.h.b16 %v110
  %v329 = vunpack.c.l.b16 %v111
  %v330 = vunpack.c.h.b16 %v111
  %v331 = vunpack.c.l.b16 %v112
  %v332 = vunpack.c.h.b16 %v112
  %v333 = vunpack.c.l.b16 %v113
  %v334 = vunpack.c.h.b16 %v113
  %v335 = vunpack.c.l.b16 %v114
  %v336 = vunpack.c.h.b16 %v114
  %v337 = vunpack.c.l.b16 %v115
  %v338 = vunpack.c.h.b16 %v115
  %v339 = vunpack.c.l.b16 %v116
  %v340 = vunpack.c.h.b16 %v116
  %v341 = vunpack.c.l.b16 %v117
  %v342 = vunpack.c.h.b16 %v117
  %v343 = vunpack.c.l.b16 %v118
  %v344 = vunpack.c.h.b16 %v118
  %v345 = vunpack.c.l.b16 %v119
  %v346 = vunpack.c.h.b16 %v119
  %v347 = vunpack.c.l.b16 %v120
  %v348 = vunpack.c.h.b16 %v120
  %v349 = vunpack.c.l.b16 %v121
  %v350 = vunpack.c.h.b16 %v121
  %v351 = vunpack.c.l.b16 %v122
  %v352 = vunpack.c.h.b16 %v122
  %v353 = vunpack.c.l.b16 %v123
  %v354 = vunpack.c.h.b16 %v123
  %v355 = vunpack.c.l.b16 %v124
  %v356 = vunpack.c.h.b16 %v124
  %v357 = vunpack.c.l.b16 %v125
  %v358 = vunpack.c.h.b16 %v125
  %v359 = vunpack.c.l.b16 %v126
  %v360 = vunpack.c.h.b16 %v126
  %v361 = vunpack.c.l.b16 %v127
  %v362 = vunpack.c.h.b16 %v127
  %v363 = vunpack.c.l.b16 %v128
  %v364 = vunpack.c.h.b16 %v128
  %v365 = vunpack.c.l.b16 %v129
  %v366 = vunpack.c.h.b16 %v129
  %v367 = vunpack.c.l.b16 %v130
  %v368 = vunpack.c.h.b16 %v130
  %v369 = vunpack.c.l.b16 %v131
  %v370 = vunpack.c.h.b16 %v131
  %v371 = vunpack.c.l.b16 %v132
  %v372 = vunpack.c.h.b16 %v132
  %v373 = vunpack.c.l.b16 %v133
  %v374 = vunpack.c.h.b16 %v133
  %v375 = vunpack.c.l.b16 %v134
  %v376 = vunpack.c.h.b16 %v134
  %v377 = vunpack.c.l.b16 %v135
  %v378 = vunpack.c.h.b16 %v135
  %v379 = vunpack.c.l.b16 %v136
  %v380 = vunpack.c.h.b16 %v136
  %v381 = vunpack.c.l.b16 %v137
  %v382 = vunpack.c.h.b16 %v137
  %v383 = vunpack.c.l.b16 %v138
  %v384 = vunpack.c.h.b16 %v138
  %v385 = vunpack.c.l.b16 %v139
  %v386 = vunpack.c.h.b16 %v139
  %v387 = vunpack.c.l.b16 %v140
  %v388 = vunpack.c.h.b16 %v140
  %v389 = vunpack.c.l.b16 %v141
  %v390 = vunpack.c.h.b16 %v141
  %v391 = vunpack.c.l.b16 %v142
  %v392 = vunpack.c.h.b16 %v142
  %v393 = vpack.c.b16 %v273, %v269
  %v394 = vpack.c.b16 %v274, %v270
  %v395 = vpack.c.b16 %v275, %v271
  %v396 = vpack.c.b16 %v276, %v272
  %v397 = vpack.c.b16 %v281, %v277
  %v398 = vpack.c.b16 %v282, %v278
  %v399 = vpack.c.b16 %v283, %v279
  %v400 = vpack.c.b16 %v284, %v280
  %v401 = vpack.c.b16 %v289, %v285
  %v402 = vpack.c.b16 %v290, %v286
  %v403 = vpack.c.b16 %v291, %v287
  %v404 = vpack.c.b16 %v292, %v288
  %v405 = vpack.c.b16 %v297, %v293
  %v406 = vpack.c.b16 %v298, %v294
  %v407 = vpack.c.b16 %v299, %v295
  %v408 = vpack.c.b16 %v300, %v296
  %v409 = vpack.c.b16 %v305, %v301
  %v410 = vpack.c.b16 %v306, %v302
  %v411 = vpack.c.b16 %v307, %v303
  %v412 = vpack.c.b16 %v308, %v304
  %v413 = vpack.c.b16 %v313, %v309
  %v414 = vpack.c.b16 %v314, %v310
  %v415 = vpack.c.b16 %v315, %v311
  %v416 = vpack.c.b16 %v316, %v312
  %v417 = vpack.c.b16 %v321, %v317
  %v418 = vpack.c.b16 %v322, %v318
  %v419 = vpack.c.b16 %v323, %v319
  %v420 = vpack.c.b16 %v324, %v320
  %v421 = vpack.c.b16 %v329, %v325
  %v422 = vpack.c.b16 %v330, %v326
  %v423 = vpack.c.b16 %v331, %v327
  %v424 = vpack.c.b16 %v332, %v328
  %v425 = vpack.c.b16 %v337, %v333
  %v426 = vpack.c.b16 %v338, %v334
  %v427 = vpack.c.b16 %v339, %v335
  %v428 = vpack.c.b16 %v340, %v336
  %v429 = vpack.c.b16 %v345, %v341
  %v430 = vpack.c.b16 %v346, %v342
  %v431 = vpack.c.b16 %v347, %v343
  %v432 = vpack.c.b16 %v348, %v344
  %v433 = vpack.c.b16 %v353, %v349
  %v434 = vpack.c.b16 %v354, %v350
  %v435 = vpack.c.b16 %v355, %v351
  %v436 = vpack.c.b16 %v356, %v352
  %v437 = vpack.c.b16 %v361, %v357
  %v438 = vpack.c.b16 %v362, %v358
  %v439 = vpack.c.b16 %v363, %v359
  %v440 = vpack.c.b16 %v364, %v360
  %v441 = vpack.c.b16 %v369, %v365
  %v442 = vpack.c.b16 %v370, %v366
  %v443 = vpack.c.b16 %v371, %v367
  %v444 = vpack.c.b16 %v372, %v368
  %v445 = vpack.c.b16 %v377, %v373
  %v446 = vpack.c.b16 %v378, %v374
  %v447 = vpack.c.b16 %v379, %v375
  %v448 = vpack.c.b16 %v380, %v376
  %v449 = vpack.c.b16 %v385, %v381
  %v450 = vpack.c.b16 %v386, %v382
  %v451 = vpack.c.b16 %v387, %v383
  %v452 = vpack.c.b16 %v388, %v384
  %v453 = vpack.c.b16 %v389, %v389
  %v454 = vpack.c.b16 %v390, %v390
  %v455 = vpack.c.b16 %v391, %v391
  %v456 = vpack.c.b16 %v392, %v392
  %v585 = vunpack.c.l.b16 %v143
  %v586 = vunpack.c.l.b16 %v144
  %v587 = vunpack.c.l.b16 %v145
  %v588 = vunpack.c.l.b16 %v146
  %v589 = vunpack.c.l.b16 %v147
  %v590 = vunpack.c.l.b16 %v148
  %v591 = vunpack.c.l.b16 %v149
  %v592 = vunpack.c.l.b16 %v150
  %v593 = vunpack.c.l.b16 %v151
  %v594 = vunpack.c.l.b16 %v152
  %v595 = vunpack.c.l.b16 %v153
  %v596 = vunpack.c.l.b16 %v154
  %v597 = vunpack.c.l.b16 %v155
  %v598 = vunpack.c.l.b16 %v156
  %v599 = vunpack.c.l.b16 %v157
  %v600 = vunpack.c.l.b16 %v158
  %v601 = vunpack.c.l.b16 %v159
  %v602 = vunpack.c.l.b16 %v160
  %v603 = vunpack.c.l.b16 %v161
  %v604 = vunpack.c.l.b16 %v162
  %v605 = vunpack.c.l.b16 %v163
  %v606 = vunpack.c.l.b16 %v164
  %v607 = vunpack.c.l.b16 %v165
  %v608 = vunpack.c.l.b16 %v166
  %v609 = vunpack.c.l.b16 %v167
  %v610 = vunpack.c.l.b16 %v168
  %v611 = vunpack.c.l.b16 %v169
  %v612 = vunpack.c.l.b16 %v170
  %v613 = vunpack.c.l.b16 %v171
  %v614 = vunpack.c.l.b16 %v172
  %v615 = vunpack.c.l.b16 %v173
  %v616 = vunpack.c.l.b16 %v174
  %v617 = vunpack.c.l.b16 %v175
  %v618 = vunpack.c.l.b16 %v176
  %v619 = vunpack.c.l.b16 %v177
  %v620 = vunpack.c.l.b16 %v178
  %v621 = vunpack.c.l.b16 %v179
  %v622 = vunpack.c.l.b16 %v180
  %v623 = vunpack.c.l.b16 %v181
  %v624 = vunpack.c.l.b16 %v182
  %v625 = vunpack.c.l.b16 %v183
  %v626 = vunpack.c.l.b16 %v184
  %v627 = vunpack.c.l.b16 %v185
  %v628 = vunpack.c.l.b16 %v186
  %v629 = vunpack.c.l.b16 %v187
  %v630 = vunpack.c.l.b16 %v188
  %v631 = vunpack.c.l.b16 %v189
  %v632 = vunpack.c.l.b16 %v190
  %v633 = vunpack.c.l.b16 %v191
  %v634 = vunpack.c.l.b16 %v192
  %v635 = vunpack.c.l.b16 %v193
  %v636 = vunpack.c.l.b16 %v194
  %v637 = vunpack.c.l.b16 %v195
  %v638 = vunpack.c.l.b16 %v196
  %v639 = vunpack.c.l.b16 %v197
  %v640 = vunpack.c.l.b16 %v198
  %v641 = vunpack.c.l.b16 %v199
  %v642 = vunpack.c.l.b16 %v200
  %v643 = vunpack.c.l.b16 %v201
  %v644 = vunpack.c.l.b16 %v202
  %v645 = vunpack.c.l.b16 %v203
  %v646 = vunpack.c.l.b16 %v204
  %v647 = vunpack.c.l.b16 %v205
  %v648 = vunpack.c.l.b16 %v206
  %v649 = vpack.c.b16 %v586, %v585
  %v650 = vpack.c.b16 %v588, %v587
  %v651 = vpack.c.b16 %v590, %v589
  %v652 = vpack.c.b16 %v592, %v591
  %v653 = vpack.c.b16 %v594, %v593
  %v654 = vpack.c.b16 %v596, %v595
  %v655 = vpack.c.b16 %v598, %v597
  %v656 = vpack.c.b16 %v600, %v599
  %v657 = vpack.c.b16 %v602, %v601
  %v658 = vpack.c.b16 %v604, %v603
  %v659 = vpack.c.b16 %v606, %v605
  %v660 = vpack.c.b16 %v608, %v607
  %v661 = vpack.c.b16 %v610, %v609
  %v662 = vpack.c.b16 %v612, %v611
  %v663 = vpack.c.b16 %v614, %v613
  %v664 = vpack.c.b16 %v616, %v615
  %v665 = vpack.c.b16 %v618, %v617
  %v666 = vpack.c.b16 %v620, %v619
  %v667 = vpack.c.b16 %v622, %v621
  %v668 = vpack.c.b16 %v624, %v623
  %v669 = vpack.c.b16 %v626, %v625
  %v670 = vpack.c.b16 %v628, %v627
  %v671 = vpack.c.b16 %v630, %v629
  %v672 = vpack.c.b16 %v632, %v631
  %v673 = vpack.c.b16 %v634, %v633
  %v674 = vpack.c.b16 %v636, %v635
  %v675 = vpack.c.b16 %v638, %v637
  %v676 = vpack.c.b16 %v640, %v639
  %v677 = vpack.c.b16 %v642, %v641
  %v678 = vpack.c.b16 %v644, %v643
  %v679 = vpack.c.b16 %v646, %v645
  %v680 = vpack.c.b16 %v648, %v647
  %713 = vmatprep.subr.bf16.mxu0 0
  %714 = vmatpush1.bf16.msra.mxu0 %v649
  %715 = vmatprep.subr.bf16.mxu0 0
  %716 = vmatpush1.bf16.msra.mxu0 %v650
  %717 = vmatprep.subr.bf16.mxu0 0
  %718 = vmatpush1.bf16.msra.mxu0 %v651
  %719 = vmatprep.subr.bf16.mxu0 0
  %720 = vmatpush1.bf16.msra.mxu0 %v652
  %721 = vmatprep.subr.bf16.mxu0 0
  %722 = vmatpush1.bf16.msra.mxu0 %v653
  %723 = vmatprep.subr.bf16.mxu0 0
  %724 = vmatpush1.bf16.msra.mxu0 %v654
  %725 = vmatprep.subr.bf16.mxu0 0
  %726 = vmatpush1.bf16.msra.mxu0 %v655
  %727 = vmatprep.subr.bf16.mxu0 0
  %728 = vmatpush1.bf16.msra.mxu0 %v656
  %729 = vmatprep.subr.bf16.mxu0 0
  %730 = vmatpush1.bf16.msra.mxu0 %v657
  %731 = vmatprep.subr.bf16.mxu0 0
  %732 = vmatpush1.bf16.msra.mxu0 %v658
  %733 = vmatprep.subr.bf16.mxu0 0
  %734 = vmatpush1.bf16.msra.mxu0 %v659
  %735 = vmatprep.subr.bf16.mxu0 0
  %736 = vmatpush1.bf16.msra.mxu0 %v660
  %737 = vmatprep.subr.bf16.mxu0 0
  %738 = vmatpush1.bf16.msra.mxu0 %v661
  %739 = vmatprep.subr.bf16.mxu0 0
  %740 = vmatpush1.bf16.msra.mxu0 %v662
  %741 = vmatprep.subr.bf16.mxu0 0
  %742 = vmatpush1.bf16.msra.mxu0 %v663
  %743 = vmatprep.subr.bf16.mxu0 0
  %744 = vmatpush1.bf16.msra.mxu0 %v664
  %745 = vmatprep.mubr.bf16.mxu0 %v394
  %746 = vmatmul.mubr.bf16.gmra.mrb[0].mxu0 %v393
  %v747 = vpop.f32.mrb[0].mxu0
  %v748 = vadd.f32 0.0, %v747
  %v749 = vpop.f32.mrb[0].mxu0
  %v750 = vpop.f32.mrb[0].mxu0
  %v751 = vadd.f32 0.0, %v750
  %v752 = vpop.f32.mrb[0].mxu0
  %753 = vmatprep.mubr.bf16.mxu0 %v398
  %754 = vmatmul.mubr.bf16.gmra.mrb[0].mxu0 %v397
  %v755 = vpop.f32.mrb[0].mxu0
  %v756 = vadd.f32 0.0, %v755
  %v757 = vpop.f32.mrb[0].mxu0
  %v758 = vpop.f32.mrb[0].mxu0
  %v759 = vadd.f32 0.0, %v758
  %v760 = vpop.f32.mrb[0].mxu0
  %761 = vmatprep.mubr.bf16.mxu0 %v402
  %762 = vmatmul.mubr.bf16.gmra.mrb[0].mxu0 %v401
  %v763 = vpop.f32.mrb[0].mxu0
  %v764 = vadd.f32 0.0, %v763
  %v765 = vpop.f32.mrb[0].mxu0
  %v766 = vpop.f32.mrb[0].mxu0
  %v767 = vadd.f32 0.0, %v766
  %v768 = vpop.f32.mrb[0].mxu0
  %769 = vmatprep.mubr.bf16.mxu0 %v406
  %770 = vmatmul.mubr.bf16.gmra.mrb[0].mxu0 %v405
  %v771 = vpop.f32.mrb[0].mxu0
  %v772 = vadd.f32 0.0, %v771
  %v773 = vpop.f32.mrb[0].mxu0
  %v774 = vpop.f32.mrb[0].mxu0
  %v775 = vadd.f32 0.0, %v774
  %v776 = vpop.f32.mrb[0].mxu0
  %777 = vmatprep.mubr.bf16.mxu0 %v410
  %778 = vmatmul.mubr.bf16.gmra.mrb[0].mxu0 %v409
  %v779 = vpop.f32.mrb[0].mxu0
  %v780 = vadd.f32 0.0, %v779
  %v781 = vpop.f32.mrb[0].mxu0
  %v782 = vpop.f32.mrb[0].mxu0
  %v783 = vadd.f32 0.0, %v782
  %v784 = vpop.f32.mrb[0].mxu0
  %785 = vmatprep.mubr.bf16.mxu0 %v414
  %786 = vmatmul.mubr.bf16.gmra.mrb[0].mxu0 %v413
  %v787 = vpop.f32.mrb[0].mxu0
  %v788 = vadd.f32 0.0, %v787
  %v789 = vpop.f32.mrb[0].mxu0
  %v790 = vpop.f32.mrb[0].mxu0
  %v791 = vadd.f32 0.0, %v790
  %v792 = vpop.f32.mrb[0].mxu0
  %793 = vmatprep.mubr.bf16.mxu0 %v418
  %794 = vmatmul.mubr.bf16.gmra.mrb[0].mxu0 %v417
  %v795 = vpop.f32.mrb[0].mxu0
  %v796 = vadd.f32 0.0, %v795
  %v797 = vpop.f32.mrb[0].mxu0
  %v798 = vpop.f32.mrb[0].mxu0
  %v799 = vadd.f32 0.0, %v798
  %v800 = vpop.f32.mrb[0].mxu0
  %801 = vmatprep.mubr.bf16.mxu0 %v422
  %802 = vmatmul.mubr.bf16.gmra.mrb[0].mxu0 %v421
  %v803 = vpop.f32.mrb[0].mxu0
  %v804 = vadd.f32 0.0, %v803
  %v805 = vpop.f32.mrb[0].mxu0
  %v806 = vpop.f32.mrb[0].mxu0
  %v807 = vadd.f32 0.0, %v806
  %v808 = vpop.f32.mrb[0].mxu0
  %809 = vmatprep.mubr.bf16.mxu0 %v426
  %810 = vmatmul.mubr.bf16.gmra.mrb[0].mxu0 %v425
  %v811 = vpop.f32.mrb[0].mxu0
  %v812 = vadd.f32 0.0, %v811
  %v813 = vpop.f32.mrb[0].mxu0
  %v814 = vpop.f32.mrb[0].mxu0
  %v815 = vadd.f32 0.0, %v814
  %v816 = vpop.f32.mrb[0].mxu0
  %817 = vmatprep.mubr.bf16.mxu0 %v430
  %818 = vmatmul.mubr.bf16.gmra.mrb[0].mxu0 %v429
  %v819 = vpop.f32.mrb[0].mxu0
  %v820 = vadd.f32 0.0, %v819
  %v821 = vpop.f32.mrb[0].mxu0
  %v822 = vpop.f32.mrb[0].mxu0
  %v823 = vadd.f32 0.0, %v822
  %v824 = vpop.f32.mrb[0].mxu0
  %825 = vmatprep.mubr.bf16.mxu0 %v434
  %826 = vmatmul.mubr.bf16.gmra.mrb[0].mxu0 %v433
  %v827 = vpop.f32.mrb[0].mxu0
  %v828 = vadd.f32 0.0, %v827
  %v829 = vpop.f32.mrb[0].mxu0
  %v830 = vpop.f32.mrb[0].mxu0
  %v831 = vadd.f32 0.0, %v830
  %v832 = vpop.f32.mrb[0].mxu0
  %833 = vmatprep.mubr.bf16.mxu0 %v438
  %834 = vmatmul.mubr.bf16.gmra.mrb[0].mxu0 %v437
  %v835 = vpop.f32.mrb[0].mxu0
  %v836 = vadd.f32 0.0, %v835
  %v837 = vpop.f32.mrb[0].mxu0
  %v838 = vpop.f32.mrb[0].mxu0
  %v839 = vadd.f32 0.0, %v838
  %v840 = vpop.f32.mrb[0].mxu0
  %841 = vmatprep.mubr.bf16.mxu0 %v442
  %842 = vmatmul.mubr.bf16.gmra.mrb[0].mxu0 %v441
  %v843 = vpop.f32.mrb[0].mxu0
  %v844 = vadd.f32 0.0, %v843
  %v845 = vpop.f32.mrb[0].mxu0
  %v846 = vpop.f32.mrb[0].mxu0
  %v847 = vadd.f32 0.0, %v846
  %v848 = vpop.f32.mrb[0].mxu0
  %849 = vmatprep.mubr.bf16.mxu0 %v446
  %850 = vmatmul.mubr.bf16.gmra.mrb[0].mxu0 %v445
  %v851 = vpop.f32.mrb[0].mxu0
  %v852 = vadd.f32 0.0, %v851
  %v853 = vpop.f32.mrb[0].mxu0
  %v854 = vpop.f32.mrb[0].mxu0
  %v855 = vadd.f32 0.0, %v854
  %v856 = vpop.f32.mrb[0].mxu0
  %857 = vmatprep.mubr.bf16.mxu0 %v450
  %858 = vmatmul.mubr.bf16.gmra.mrb[0].mxu0 %v449
  %v859 = vpop.f32.mrb[0].mxu0
  %v860 = vadd.f32 0.0, %v859
  %v861 = vpop.f32.mrb[0].mxu0
  %v862 = vpop.f32.mrb[0].mxu0
  %v863 = vadd.f32 0.0, %v862
  %v864 = vpop.f32.mrb[0].mxu0
  %865 = vmatprep.mubr.bf16.mxu0 %v454
  %866 = vmatmul.mubr.bf16.gmra.mrb[0].mxu0 %v453
  %v867 = vpop.f32.mrb[0].mxu0
  %v868 = vadd.f32 0.0, %v867
  %v869 = vpop.f32.mrb[0].mxu0
  %v870 = vpop.f32.mrb[0].mxu0
  %v871 = vpop.f32.mrb[0].mxu0
  %872 = vdwg.mxu0
  %873 = vmatprep.subr.bf16.mxu0 0
  %874 = vmatpush1.bf16.msra.mxu0 %v665
  %875 = vmatprep.subr.bf16.mxu0 0
  %876 = vmatpush1.bf16.msra.mxu0 %v666
  %877 = vmatprep.subr.bf16.mxu0 0
  %878 = vmatpush1.bf16.msra.mxu0 %v667
  %879 = vmatprep.subr.bf16.mxu0 0
  %880 = vmatpush1.bf16.msra.mxu0 %v668
  %881 = vmatprep.subr.bf16.mxu0 0
  %882 = vmatpush1.bf16.msra.mxu0 %v669
  %883 = vmatprep.subr.bf16.mxu0 0
  %884 = vmatpush1.bf16.msra.mxu0 %v670
  %885 = vmatprep.subr.bf16.mxu0 0
  %886 = vmatpush1.bf16.msra.mxu0 %v671
  %887 = vmatprep.subr.bf16.mxu0 0
  %888 = vmatpush1.bf16.msra.mxu0 %v672
  %889 = vmatprep.subr.bf16.mxu0 0
  %890 = vmatpush1.bf16.msra.mxu0 %v673
  %891 = vmatprep.subr.bf16.mxu0 0
  %892 = vmatpush1.bf16.msra.mxu0 %v674
  %893 = vmatprep.subr.bf16.mxu0 0
  %894 = vmatpush1.bf16.msra.mxu0 %v675
  %895 = vmatprep.subr.bf16.mxu0 0
  %896 = vmatpush1.bf16.msra.mxu0 %v676
  %897 = vmatprep.subr.bf16.mxu0 0
  %898 = vmatpush1.bf16.msra.mxu0 %v677
  %899 = vmatprep.subr.bf16.mxu0 0
  %900 = vmatpush1.bf16.msra.mxu0 %v678
  %901 = vmatprep.subr.bf16.mxu0 0
  %902 = vmatpush1.bf16.msra.mxu0 %v679
  %903 = vmatprep.subr.bf16.mxu0 0
  %904 = vmatpush1.bf16.msra.mxu0 %v680
  %905 = vmatprep.mubr.bf16.mxu0 %v396
  %906 = vmatmul.mubr.bf16.gmra.mrb[0].mxu0 %v395
  %v907 = vpop.f32.mrb[0].mxu0
  %v908 = vadd.f32 %v748, %v907
  %v909 = vpop.f32.mrb[0].mxu0
  %v910 = vpop.f32.mrb[0].mxu0
  %v911 = vadd.f32 %v751, %v910
  %v912 = vpop.f32.mrb[0].mxu0
  %913 = vmatprep.mubr.bf16.mxu0 %v400
  %914 = vmatmul.mubr.bf16.gmra.mrb[0].mxu0 %v399
  %v915 = vpop.f32.mrb[0].mxu0
  %v916 = vadd.f32 %v756, %v915
  %v917 = vpop.f32.mrb[0].mxu0
  %v918 = vpop.f32.mrb[0].mxu0
  %v919 = vadd.f32 %v759, %v918
  %v920 = vpop.f32.mrb[0].mxu0
  %921 = vmatprep.mubr.bf16.mxu0 %v404
  %922 = vmatmul.mubr.bf16.gmra.mrb[0].mxu0 %v403
  %v923 = vpop.f32.mrb[0].mxu0
  %v924 = vadd.f32 %v764, %v923
  %v925 = vpop.f32.mrb[0].mxu0
  %v926 = vpop.f32.mrb[0].mxu0
  %v927 = vadd.f32 %v767, %v926
  %v928 = vpop.f32.mrb[0].mxu0
  %929 = vmatprep.mubr.bf16.mxu0 %v408
  %930 = vmatmul.mubr.bf16.gmra.mrb[0].mxu0 %v407
  %v931 = vpop.f32.mrb[0].mxu0
  %v932 = vadd.f32 %v772, %v931
  %v933 = vpop.f32.mrb[0].mxu0
  %v934 = vpop.f32.mrb[0].mxu0
  %v935 = vadd.f32 %v775, %v934
  %v936 = vpop.f32.mrb[0].mxu0
  %937 = vmatprep.mubr.bf16.mxu0 %v412
  %938 = vmatmul.mubr.bf16.gmra.mrb[0].mxu0 %v411
  %v939 = vpop.f32.mrb[0].mxu0
  %v940 = vadd.f32 %v780, %v939
  %v941 = vpop.f32.mrb[0].mxu0
  %v942 = vpop.f32.mrb[0].mxu0
  %v943 = vadd.f32 %v783, %v942
  %v944 = vpop.f32.mrb[0].mxu0
  %945 = vmatprep.mubr.bf16.mxu0 %v416
  %946 = vmatmul.mubr.bf16.gmra.mrb[0].mxu0 %v415
  %v947 = vpop.f32.mrb[0].mxu0
  %v948 = vadd.f32 %v788, %v947
  %v949 = vpop.f32.mrb[0].mxu0
  %v950 = vpop.f32.mrb[0].mxu0
  %v951 = vadd.f32 %v791, %v950
  %v952 = vpop.f32.mrb[0].mxu0
  %953 = vmatprep.mubr.bf16.mxu0 %v420
  %954 = vmatmul.mubr.bf16.gmra.mrb[0].mxu0 %v419
  %v955 = vpop.f32.mrb[0].mxu0
  %v956 = vadd.f32 %v796, %v955
  %v957 = vpop.f32.mrb[0].mxu0
  %v958 = vpop.f32.mrb[0].mxu0
  %v959 = vadd.f32 %v799, %v958
  %v960 = vpop.f32.mrb[0].mxu0
  %961 = vmatprep.mubr.bf16.mxu0 %v424
  %962 = vmatmul.mubr.bf16.gmra.mrb[0].mxu0 %v423
  %v963 = vpop.f32.mrb[0].mxu0
  %v964 = vadd.f32 %v804, %v963
  %v965 = vpop.f32.mrb[0].mxu0
  %v966 = vpop.f32.mrb[0].mxu0
  %v967 = vadd.f32 %v807, %v966
  %v968 = vpop.f32.mrb[0].mxu0
  %969 = vmatprep.mubr.bf16.mxu0 %v428
  %970 = vmatmul.mubr.bf16.gmra.mrb[0].mxu0 %v427
  %v971 = vpop.f32.mrb[0].mxu0
  %v972 = vadd.f32 %v812, %v971
  %v973 = vpop.f32.mrb[0].mxu0
  %v974 = vpop.f32.mrb[0].mxu0
  %v975 = vadd.f32 %v815, %v974
  %v976 = vpop.f32.mrb[0].mxu0
  %977 = vmatprep.mubr.bf16.mxu0 %v432
  %978 = vmatmul.mubr.bf16.gmra.mrb[0].mxu0 %v431
  %v979 = vpop.f32.mrb[0].mxu0
  %v980 = vadd.f32 %v820, %v979
  %v981 = vpop.f32.mrb[0].mxu0
  %v982 = vpop.f32.mrb[0].mxu0
  %v983 = vadd.f32 %v823, %v982
  %v984 = vpop.f32.mrb[0].mxu0
  %985 = vmatprep.mubr.bf16.mxu0 %v436
  %986 = vmatmul.mubr.bf16.gmra.mrb[0].mxu0 %v435
  %v987 = vpop.f32.mrb[0].mxu0
  %v988 = vadd.f32 %v828, %v987
  %v989 = vpop.f32.mrb[0].mxu0
  %v990 = vpop.f32.mrb[0].mxu0
  %v991 = vadd.f32 %v831, %v990
  %v992 = vpop.f32.mrb[0].mxu0
  %993 = vmatprep.mubr.bf16.mxu0 %v440
  %994 = vmatmul.mubr.bf16.gmra.mrb[0].mxu0 %v439
  %v995 = vpop.f32.mrb[0].mxu0
  %v996 = vadd.f32 %v836, %v995
  %v997 = vpop.f32.mrb[0].mxu0
  %v998 = vpop.f32.mrb[0].mxu0
  %v999 = vadd.f32 %v839, %v998
  %v1000 = vpop.f32.mrb[0].mxu0
  %1001 = vmatprep.mubr.bf16.mxu0 %v444
  %1002 = vmatmul.mubr.bf16.gmra.mrb[0].mxu0 %v443
  %v1003 = vpop.f32.mrb[0].mxu0
  %v1004 = vadd.f32 %v844, %v1003
  %v1005 = vpop.f32.mrb[0].mxu0
  %v1006 = vpop.f32.mrb[0].mxu0
  %v1007 = vadd.f32 %v847, %v1006
  %v1008 = vpop.f32.mrb[0].mxu0
  %1009 = vmatprep.mubr.bf16.mxu0 %v448
  %1010 = vmatmul.mubr.bf16.gmra.mrb[0].mxu0 %v447
  %v1011 = vpop.f32.mrb[0].mxu0
  %v1012 = vadd.f32 %v852, %v1011
  %v1013 = vpop.f32.mrb[0].mxu0
  %v1014 = vpop.f32.mrb[0].mxu0
  %v1015 = vadd.f32 %v855, %v1014
  %v1016 = vpop.f32.mrb[0].mxu0
  %1017 = vmatprep.mubr.bf16.mxu0 %v452
  %1018 = vmatmul.mubr.bf16.gmra.mrb[0].mxu0 %v451
  %v1019 = vpop.f32.mrb[0].mxu0
  %v1020 = vadd.f32 %v860, %v1019
  %v1021 = vpop.f32.mrb[0].mxu0
  %v1022 = vpop.f32.mrb[0].mxu0
  %v1023 = vadd.f32 %v863, %v1022
  %v1024 = vpop.f32.mrb[0].mxu0
  %1025 = vmatprep.mubr.bf16.mxu0 %v456
  %1026 = vmatmul.mubr.bf16.gmra.mrb[0].mxu0 %v455
  %v1027 = vpop.f32.mrb[0].mxu0
  %v1028 = vadd.f32 %v868, %v1027
  %v1029 = vpop.f32.mrb[0].mxu0
  %v1030 = vpop.f32.mrb[0].mxu0
  %v1031 = vpop.f32.mrb[0].mxu0
  %1032 = vdwg.mxu0
  %v1033 = vadd.f32 %v50, %v908
  %v1034 = vadd.f32 %v51, %v911
  %v1035 = vadd.f32 %v52, %v916
  %v1036 = vadd.f32 %v53, %v919
  %v1037 = vadd.f32 %v54, %v924
  %v1038 = vadd.f32 %v55, %v927
  %v1039 = vadd.f32 %v56, %v932
  %v1040 = vadd.f32 %v57, %v935
  %v1041 = vadd.f32 %v58, %v940
  %v1042 = vadd.f32 %v59, %v943
  %v1043 = vadd.f32 %v60, %v948
  %v1044 = vadd.f32 %v61, %v951
  %v1045 = vadd.f32 %v62, %v956
  %v1046 = vadd.f32 %v63, %v959
  %v1047 = vadd.f32 %v64, %v964
  %v1048 = vadd.f32 %v65, %v967
  %v1049 = vadd.f32 %v66, %v972
  %v1050 = vadd.f32 %v67, %v975
  %v1051 = vadd.f32 %v68, %v980
  %v1052 = vadd.f32 %v69, %v983
  %v1053 = vadd.f32 %v70, %v988
  %v1054 = vadd.f32 %v71, %v991
  %v1055 = vadd.f32 %v72, %v996
  %v1056 = vadd.f32 %v73, %v999
  %v1057 = vadd.f32 %v74, %v1004
  %v1058 = vadd.f32 %v75, %v1007
  %v1059 = vadd.f32 %v76, %v1012
  %v1060 = vadd.f32 %v77, %v1015
  %v1061 = vadd.f32 %v78, %v1020
  %v1062 = vadd.f32 %v79, %v1023
  %v1063 = vadd.f32 %v80, %v1028
  %1064 = vst [vmem:[#allocation2] sm:$0xff] %v1033
  %1065 = vst [vmem:[#allocation2 + $0x8] sm:$0xff] %v1034
  %1066 = vst [vmem:[#allocation2 + $0x10] sm:$0xff] %v1035
  %1067 = vst [vmem:[#allocation2 + $0x18] sm:$0xff] %v1036
  %1068 = vst [vmem:[#allocation2 + $0x20] sm:$0xff] %v1037
  %1069 = vst [vmem:[#allocation2 + $0x28] sm:$0xff] %v1038
  %1070 = vst [vmem:[#allocation2 + $0x30] sm:$0xff] %v1039
  %1071 = vst [vmem:[#allocation2 + $0x38] sm:$0xff] %v1040
  %1072 = vst [vmem:[#allocation2 + $0x40] sm:$0xff] %v1041
  %1073 = vst [vmem:[#allocation2 + $0x48] sm:$0xff] %v1042
  %1074 = vst [vmem:[#allocation2 + $0x50] sm:$0xff] %v1043
  %1075 = vst [vmem:[#allocation2 + $0x58] sm:$0xff] %v1044
  %1076 = vst [vmem:[#allocation2 + $0x60] sm:$0xff] %v1045
  %1077 = vst [vmem:[#allocation2 + $0x68] sm:$0xff] %v1046
  %1078 = vst [vmem:[#allocation2 + $0x70] sm:$0xff] %v1047
  %1079 = vst [vmem:[#allocation2 + $0x78] sm:$0xff] %v1048
  %1080 = vst [vmem:[#allocation2 + $0x80] sm:$0xff] %v1049
  %1081 = vst [vmem:[#allocation2 + $0x88] sm:$0xff] %v1050
  %1082 = vst [vmem:[#allocation2 + $0x90] sm:$0xff] %v1051
  %1083 = vst [vmem:[#allocation2 + $0x98] sm:$0xff] %v1052
  %1084 = vst [vmem:[#allocation2 + $0xa0] sm:$0xff] %v1053
  %1085 = vst [vmem:[#allocation2 + $0xa8] sm:$0xff] %v1054
  %1086 = vst [vmem:[#allocation2 + $0xb0] sm:$0xff] %v1055
  %1087 = vst [vmem:[#allocation2 + $0xb8] sm:$0xff] %v1056
  %1088 = vst [vmem:[#allocation2 + $0xc0] sm:$0xff] %v1057
  %1089 = vst [vmem:[#allocation2 + $0xc8] sm:$0xff] %v1058
  %1090 = vst [vmem:[#allocation2 + $0xd0] sm:$0xff] %v1059
  %1091 = vst [vmem:[#allocation2 + $0xd8] sm:$0xff] %v1060
  %1092 = vst [vmem:[#allocation2 + $0xe0] sm:$0xff] %v1061
  %1093 = vst [vmem:[#allocation2 + $0xe8] sm:$0xff] %v1062
  %1094 = vst [vmem:[#allocation2 + $0xf0] sm:$0xff] %v1063
  // Predicated region
  $region18: #{extract_forward.11} parent=0 // pred_check
    %p1095 = pneg %p15
  $region19: #{extract_forward.11} parent=0 // pred_check_branch
    %1097 = sbr.rel (%p1095) target = $region21
  $region20: #{extract_forward.11} parent=0 // pred_region
    %v1098 = vld [vmem:[#allocation2] sm:$0xff]
    %v1099 = vld [vmem:[#allocation2 + $0x8] sm:$0xff]
    %v1100 = vld [vmem:[#allocation2 + $0x10] sm:$0xff]
    %v1101 = vld [vmem:[#allocation2 + $0x18] sm:$0xff]
    %v1102 = vld [vmem:[#allocation2 + $0x20] sm:$0xff]
    %v1103 = vld [vmem:[#allocation2 + $0x28] sm:$0xff]
    %v1104 = vld [vmem:[#allocation2 + $0x30] sm:$0xff]
    %v1105 = vld [vmem:[#allocation2 + $0x38] sm:$0xff]
    %v1106 = vld [vmem:[#allocation2 + $0x40] sm:$0xff]
    %v1107 = vld [vmem:[#allocation2 + $0x48] sm:$0xff]
    %v1108 = vld [vmem:[#allocation2 + $0x50] sm:$0xff]
    %v1109 = vld [vmem:[#allocation2 + $0x58] sm:$0xff]
    %v1110 = vld [vmem:[#allocation2 + $0x60] sm:$0xff]
    %v1111 = vld [vmem:[#allocation2 + $0x68] sm:$0xff]
    %v1112 = vld [vmem:[#allocation2 + $0x70] sm:$0xff]
    %v1113 = vld [vmem:[#allocation2 + $0x78] sm:$0xff]
    %v1114 = vld [vmem:[#allocation2 + $0x80] sm:$0xff]
    %v1115 = vld [vmem:[#allocation2 + $0x88] sm:$0xff]
    %v1116 = vld [vmem:[#allocation2 + $0x90] sm:$0xff]
    %v1117 = vld [vmem:[#allocation2 + $0x98] sm:$0xff]
    %v1118 = vld [vmem:[#allocation2 + $0xa0] sm:$0xff]
    %v1119 = vld [vmem:[#allocation2 + $0xa8] sm:$0xff]
    %v1120 = vld [vmem:[#allocation2 + $0xb0] sm:$0xff]
    %v1121 = vld [vmem:[#allocation2 + $0xb8] sm:$0xff]
    %v1122 = vld [vmem:[#allocation2 + $0xc0] sm:$0xff]
    %v1123 = vld [vmem:[#allocation2 + $0xc8] sm:$0xff]
    %v1124 = vld [vmem:[#allocation2 + $0xd0] sm:$0xff]
    %v1125 = vld [vmem:[#allocation2 + $0xd8] sm:$0xff]
    %v1126 = vld [vmem:[#allocation2 + $0xe0] sm:$0xff]
    %v1127 = vld [vmem:[#allocation2 + $0xe8] sm:$0xff]
    %v1128 = vld [vmem:[#allocation2 + $0xf0] sm:$0xff]
    %v1129 = vld [vmem:[%s2] sm:$0x1]
    %v1131 = vlaneseq
    %v1132 = vshrl.u32 %v1131, 7
    %v1133 = vsub.s32 0, %v1132
    %v1134 = vrot.slane %v1129, %v1133
    %v1136 = vadd.f32 %v1098, %v1134
    %v1137 = vadd.f32 %v1099, %v1134
    %v1138 = vadd.f32 %v1100, %v1134
    %v1139 = vadd.f32 %v1101, %v1134
    %v1140 = vadd.f32 %v1102, %v1134
    %v1141 = vadd.f32 %v1103, %v1134
    %v1142 = vadd.f32 %v1104, %v1134
    %v1143 = vadd.f32 %v1105, %v1134
    %v1144 = vadd.f32 %v1106, %v1134
    %v1145 = vadd.f32 %v1107, %v1134
    %v1146 = vadd.f32 %v1108, %v1134
    %v1147 = vadd.f32 %v1109, %v1134
    %v1148 = vadd.f32 %v1110, %v1134
    %v1149 = vadd.f32 %v1111, %v1134
    %v1150 = vadd.f32 %v1112, %v1134
    %v1151 = vadd.f32 %v1113, %v1134
    %v1152 = vadd.f32 %v1114, %v1134
    %v1153 = vadd.f32 %v1115, %v1134
    %v1154 = vadd.f32 %v1116, %v1134
    %v1155 = vadd.f32 %v1117, %v1134
    %v1156 = vadd.f32 %v1118, %v1134
    %v1157 = vadd.f32 %v1119, %v1134
    %v1158 = vadd.f32 %v1120, %v1134
    %v1159 = vadd.f32 %v1121, %v1134
    %v1160 = vadd.f32 %v1122, %v1134
    %v1161 = vadd.f32 %v1123, %v1134
    %v1162 = vadd.f32 %v1124, %v1134
    %v1163 = vadd.f32 %v1125, %v1134
    %v1164 = vadd.f32 %v1126, %v1134
    %v1165 = vadd.f32 %v1127, %v1134
    %v1166 = vadd.f32 %v1128, %v1134
    %v1167 = vmax.f32 %v1136, 0.0
    %v1168 = vmax.f32 %v1137, 0.0
    %v1169 = vmax.f32 %v1138, 0.0
    %v1170 = vmax.f32 %v1139, 0.0
    %v1171 = vmax.f32 %v1140, 0.0
    %v1172 = vmax.f32 %v1141, 0.0
    %v1173 = vmax.f32 %v1142, 0.0
    %v1174 = vmax.f32 %v1143, 0.0
    %v1175 = vmax.f32 %v1144, 0.0
    %v1176 = vmax.f32 %v1145, 0.0
    %v1177 = vmax.f32 %v1146, 0.0
    %v1178 = vmax.f32 %v1147, 0.0
    %v1179 = vmax.f32 %v1148, 0.0
    %v1180 = vmax.f32 %v1149, 0.0
    %v1181 = vmax.f32 %v1150, 0.0
    %v1182 = vmax.f32 %v1151, 0.0
    %v1183 = vmax.f32 %v1152, 0.0
    %v1184 = vmax.f32 %v1153, 0.0
    %v1185 = vmax.f32 %v1154, 0.0
    %v1186 = vmax.f32 %v1155, 0.0
    %v1187 = vmax.f32 %v1156, 0.0
    %v1188 = vmax.f32 %v1157, 0.0
    %v1189 = vmax.f32 %v1158, 0.0
    %v1190 = vmax.f32 %v1159, 0.0
    %v1191 = vmax.f32 %v1160, 0.0
    %v1192 = vmax.f32 %v1161, 0.0
    %v1193 = vmax.f32 %v1162, 0.0
    %v1194 = vmax.f32 %v1163, 0.0
    %v1195 = vmax.f32 %v1164, 0.0
    %v1196 = vmax.f32 %v1165, 0.0
    %v1197 = vmax.f32 %v1166, 0.0
    %1198 = vst [vmem:[%s3] sm:$0xff] %v1167
    %1199 = vst [vmem:[%s3 + $0x8] sm:$0xff] %v1168
    %1200 = vst [vmem:[%s3 + $0x10] sm:$0xff] %v1169
    %1201 = vst [vmem:[%s3 + $0x18] sm:$0xff] %v1170
    %1202 = vst [vmem:[%s3 + $0x20] sm:$0xff] %v1171
    %1203 = vst [vmem:[%s3 + $0x28] sm:$0xff] %v1172
    %1204 = vst [vmem:[%s3 + $0x30] sm:$0xff] %v1173
    %1205 = vst [vmem:[%s3 + $0x38] sm:$0xff] %v1174
    %1206 = vst [vmem:[%s3 + $0x40] sm:$0xff] %v1175
    %1207 = vst [vmem:[%s3 + $0x48] sm:$0xff] %v1176
    %1208 = vst [vmem:[%s3 + $0x50] sm:$0xff] %v1177
    %1209 = vst [vmem:[%s3 + $0x58] sm:$0xff] %v1178
    %1210 = vst [vmem:[%s3 + $0x60] sm:$0xff] %v1179
    %1211 = vst [vmem:[%s3 + $0x68] sm:$0xff] %v1180
    %1212 = vst [vmem:[%s3 + $0x70] sm:$0xff] %v1181
    %1213 = vst [vmem:[%s3 + $0x78] sm:$0xff] %v1182
    %1214 = vst [vmem:[%s3 + $0x80] sm:$0xff] %v1183
    %1215 = vst [vmem:[%s3 + $0x88] sm:$0xff] %v1184
    %1216 = vst [vmem:[%s3 + $0x90] sm:$0xff] %v1185
    %1217 = vst [vmem:[%s3 + $0x98] sm:$0xff] %v1186
    %1218 = vst [vmem:[%s3 + $0xa0] sm:$0xff] %v1187
    %1219 = vst [vmem:[%s3 + $0xa8] sm:$0xff] %v1188
    %1220 = vst [vmem:[%s3 + $0xb0] sm:$0xff] %v1189
    %1221 = vst [vmem:[%s3 + $0xb8] sm:$0xff] %v1190
    %1222 = vst [vmem:[%s3 + $0xc0] sm:$0xff] %v1191
    %1223 = vst [vmem:[%s3 + $0xc8] sm:$0xff] %v1192
    %1224 = vst [vmem:[%s3 + $0xd0] sm:$0xff] %v1193
    %1225 = vst [vmem:[%s3 + $0xd8] sm:$0xff] %v1194
    %1226 = vst [vmem:[%s3 + $0xe0] sm:$0xff] %v1195
    %1227 = vst [vmem:[%s3 + $0xe8] sm:$0xff] %v1196
    %1228 = vst [vmem:[%s3 + $0xf0] sm:$0xff] %v1197
  $region21: #{extract_forward.11} parent=0 // pred_fallthru
    _
  // Predicated region
  $region22: #{extract_forward.11} parent=0 // pred_check
    _
  $region23: #{extract_forward.11} parent=0 // pred_check_branch
    %1230 = sbr.rel (0) target = $region25
  $region24: #{extract_forward.11} parent=0 // pred_region
    _
  $region25: #{extract_forward.11} parent=0 // pred_fallthru
    _
  // Predicated region
  $region26: #{extract_forward.11} parent=0 // pred_check
    _
  $region27: #{extract_forward.11} parent=0 // pred_check_branch
    %1232 = sbr.rel (0) target = $region29
  $region28: #{extract_forward.11} parent=0 // pred_region
    _
  $region29: #{extract_forward.11} parent=0 // pred_fallthru
    _

// kernel: extract_forward.13
$region0: #{extract_forward.13}
  #allocation0 [shape = 'u32[]', space=smem, size = 0x4, offset = 0x4, fixed_abs, tag = 'smem constant byte address 0x4 - core index']
  #allocation1 [shape = 'u32[144,128]{1,0:T(1,128)}', space=vmem, size = 0x12000, scoped, tag = 'internal scratch']
  #allocation2 [shape = 'f32[56,128]{1,0:T(8,128)}', space=vmem, size = 0x7000, scoped, tag = 'scratch operand']
  %s0 = inlined_call_operand.vmem [shape: bf16[56,384], index: 0, kind: input, shape index: {}]
  %s1 = inlined_call_operand.vmem [shape: bf16[384,128], index: 1, kind: input, shape index: {}]
  %s2 = inlined_call_operand.vmem [shape: f32[1,128], index: 2, kind: input, shape index: {}]
  %s3 = inlined_call_operand.vmem [shape: f32[56,128], index: 3, kind: output, shape index: {}]
  %s4 = sld [smem:[#allocation0]]
  $region30: #{extract_forward.13} parent=0
    _
  %s6 = ssub.s32 1, %s4
  %s7 = scalar_select 0, %s6, %s4
  // Predicated region
  $region2: #{extract_forward.13} parent=0 // pred_check
    _
  $region3: #{extract_forward.13} parent=0 // pred_check_branch
    %9 = sbr.rel (0) target = $region5
  $region4: #{extract_forward.13} parent=0 // pred_region
    _
  $region5: #{extract_forward.13} parent=0 // pred_fallthru
    _
  // Predicated region
  $region6: #{extract_forward.13} parent=0 // pred_check
    _
  $region7: #{extract_forward.13} parent=0 // pred_check_branch
    %11 = sbr.rel (0) target = $region9
  $region8: #{extract_forward.13} parent=0 // pred_region
    _
  $region9: #{extract_forward.13} parent=0 // pred_fallthru
    _
  // Predicated region
  $region10: #{extract_forward.13} parent=0 // pred_check
    _
  $region11: #{extract_forward.13} parent=0 // pred_check_branch
    %13 = sbr.rel (0) target = $region13
  $region12: #{extract_forward.13} parent=0 // pred_region
    _
  $region13: #{extract_forward.13} parent=0 // pred_fallthru
    _
  %p15 = scmp.eq.s32.totalorder 0, 0
  // Predicated region
  $region14: #{extract_forward.13} parent=0 // pred_check
    %p16 = pneg %p15
  $region15: #{extract_forward.13} parent=0 // pred_check_branch
    %18 = sbr.rel (%p16) target = $region17
  $region16: #{extract_forward.13} parent=0 // pred_region
    %19 = vst [vmem:[#allocation2] sm:$0xff] 0.0
    %20 = vst [vmem:[#allocation2 + $0x8] sm:$0xff] 0.0
    %21 = vst [vmem:[#allocation2 + $0x10] sm:$0xff] 0.0
    %22 = vst [vmem:[#allocation2 + $0x18] sm:$0xff] 0.0
    %23 = vst [vmem:[#allocation2 + $0x20] sm:$0xff] 0.0
    %24 = vst [vmem:[#allocation2 + $0x28] sm:$0xff] 0.0
    %25 = vst [vmem:[#allocation2 + $0x30] sm:$0xff] 0.0
  $region17: #{extract_forward.13} parent=0 // pred_fallthru
    _
  %v26 = vld [vmem:[#allocation2] sm:$0xff]
  %v27 = vld [vmem:[#allocation2 + $0x8] sm:$0xff]
  %v28 = vld [vmem:[#allocation2 + $0x10] sm:$0xff]
  %v29 = vld [vmem:[#allocation2 + $0x18] sm:$0xff]
  %v30 = vld [vmem:[#allocation2 + $0x20] sm:$0xff]
  %v31 = vld [vmem:[#allocation2 + $0x28] sm:$0xff]
  %v32 = vld [vmem:[#allocation2 + $0x30] sm:$0xff]
  %v33 = vld [vmem:[%s0] sm:$0xff]
  %v34 = vld [vmem:[%s0 + $0x8] sm:$0xf]
  %v35 = vld [vmem:[%s0 + $0xc] sm:$0xff]
  %v36 = vld [vmem:[%s0 + $0x14] sm:$0xf]
  %v37 = vld [vmem:[%s0 + $0x18] sm:$0xff]
  %v38 = vld [vmem:[%s0 + $0x20] sm:$0xf]
  %v39 = vld [vmem:[%s0 + $0x24] sm:$0xff]
  %v40 = vld [vmem:[%s0 + $0x2c] sm:$0xf]
  %v41 = vld [vmem:[%s0 + $0x30] sm:$0xff]
  %v42 = vld [vmem:[%s0 + $0x38] sm:$0xf]
  %v43 = vld [vmem:[%s0 + $0x3c] sm:$0xff]
  %v44 = vld [vmem:[%s0 + $0x44] sm:$0xf]
  %v45 = vld [vmem:[%s0 + $0x48] sm:$0xff]
  %v46 = vld [vmem:[%s0 + $0x50] sm:$0xf]
  %v47 = vld [vmem:[%s1] sm:$0xf]
  %v48 = vld [vmem:[%s1 + $0x4] sm:$0xf]
  %v49 = vld [vmem:[%s1 + $0x8] sm:$0xf]
  %v50 = vld [vmem:[%s1 + $0xc] sm:$0xf]
  %v51 = vld [vmem:[%s1 + $0x10] sm:$0xf]
  %v52 = vld [vmem:[%s1 + $0x14] sm:$0xf]
  %v53 = vld [vmem:[%s1 + $0x18] sm:$0xf]
  %v54 = vld [vmem:[%s1 + $0x1c] sm:$0xf]
  %v55 = vld [vmem:[%s1 + $0x20] sm:$0xf]
  %v56 = vld [vmem:[%s1 + $0x24] sm:$0xf]
  %v57 = vld [vmem:[%s1 + $0x28] sm:$0xf]
  %v58 = vld [vmem:[%s1 + $0x2c] sm:$0xf]
  %v59 = vld [vmem:[%s1 + $0x30] sm:$0xf]
  %v60 = vld [vmem:[%s1 + $0x34] sm:$0xf]
  %v61 = vld [vmem:[%s1 + $0x38] sm:$0xf]
  %v62 = vld [vmem:[%s1 + $0x3c] sm:$0xf]
  %v63 = vld [vmem:[%s1 + $0x40] sm:$0xf]
  %v64 = vld [vmem:[%s1 + $0x44] sm:$0xf]
  %v65 = vld [vmem:[%s1 + $0x48] sm:$0xf]
  %v66 = vld [vmem:[%s1 + $0x4c] sm:$0xf]
  %v67 = vld [vmem:[%s1 + $0x50] sm:$0xf]
  %v68 = vld [vmem:[%s1 + $0x54] sm:$0xf]
  %v69 = vld [vmem:[%s1 + $0x58] sm:$0xf]
  %v70 = vld [vmem:[%s1 + $0x5c] sm:$0xf]
  %v71 = vld [vmem:[%s1 + $0x60] sm:$0xf]
  %v72 = vld [vmem:[%s1 + $0x64] sm:$0xf]
  %v73 = vld [vmem:[%s1 + $0x68] sm:$0xf]
  %v74 = vld [vmem:[%s1 + $0x6c] sm:$0xf]
  %v75 = vld [vmem:[%s1 + $0x70] sm:$0xf]
  %v76 = vld [vmem:[%s1 + $0x74] sm:$0xf]
  %v77 = vld [vmem:[%s1 + $0x78] sm:$0xf]
  %v78 = vld [vmem:[%s1 + $0x7c] sm:$0xf]
  %v79 = vld [vmem:[%s1 + $0x80] sm:$0xf]
  %v80 = vld [vmem:[%s1 + $0x84] sm:$0xf]
  %v81 = vld [vmem:[%s1 + $0x88] sm:$0xf]
  %v82 = vld [vmem:[%s1 + $0x8c] sm:$0xf]
  %v83 = vld [vmem:[%s1 + $0x90] sm:$0xf]
  %v84 = vld [vmem:[%s1 + $0x94] sm:$0xf]
  %v85 = vld [vmem:[%s1 + $0x98] sm:$0xf]
  %v86 = vld [vmem:[%s1 + $0x9c] sm:$0xf]
  %v87 = vld [vmem:[%s1 + $0xa0] sm:$0xf]
  %v88 = vld [vmem:[%s1 + $0xa4] sm:$0xf]
  %v89 = vld [vmem:[%s1 + $0xa8] sm:$0xf]
  %v90 = vld [vmem:[%s1 + $0xac] sm:$0xf]
  %v91 = vld [vmem:[%s1 + $0xb0] sm:$0xf]
  %v92 = vld [vmem:[%s1 + $0xb4] sm:$0xf]
  %v93 = vld [vmem:[%s1 + $0xb8] sm:$0xf]
  %v94 = vld [vmem:[%s1 + $0xbc] sm:$0xf]
  %v109 = vunpack.c.l.b16 %v33
  %v110 = vunpack.c.h.b16 %v33
  %v111 = vunpack.c.l.b16 %v34
  %v112 = vunpack.c.l.b16 %v35
  %v113 = vunpack.c.h.b16 %v35
  %v114 = vunpack.c.l.b16 %v36
  %v115 = vunpack.c.l.b16 %v37
  %v116 = vunpack.c.h.b16 %v37
  %v117 = vunpack.c.l.b16 %v38
  %v118 = vunpack.c.l.b16 %v39
  %v119 = vunpack.c.h.b16 %v39
  %v120 = vunpack.c.l.b16 %v40
  %v121 = vunpack.c.l.b16 %v41
  %v122 = vunpack.c.h.b16 %v41
  %v123 = vunpack.c.l.b16 %v42
  %v124 = vunpack.c.l.b16 %v43
  %v125 = vunpack.c.h.b16 %v43
  %v126 = vunpack.c.l.b16 %v44
  %v127 = vunpack.c.l.b16 %v45
  %v128 = vunpack.c.h.b16 %v45
  %v129 = vunpack.c.l.b16 %v46
  %v130 = vpack.c.b16 %v112, %v109
  %v131 = vpack.c.b16 %v113, %v110
  %v132 = vpack.c.b16 %v114, %v111
  %v133 = vpack.c.b16 %v118, %v115
  %v134 = vpack.c.b16 %v119, %v116
  %v135 = vpack.c.b16 %v120, %v117
  %v136 = vpack.c.b16 %v124, %v121
  %v137 = vpack.c.b16 %v125, %v122
  %v138 = vpack.c.b16 %v126, %v123
  %v139 = vpack.c.b16 %v127, %v127
  %v140 = vpack.c.b16 %v128, %v128
  %v141 = vpack.c.b16 %v129, %v129
  %v202 = vunpack.c.l.b16 %v47
  %v203 = vunpack.c.l.b16 %v48
  %v204 = vunpack.c.l.b16 %v49
  %v205 = vunpack.c.l.b16 %v50
  %v206 = vunpack.c.l.b16 %v51
  %v207 = vunpack.c.l.b16 %v52
  %v208 = vunpack.c.l.b16 %v53
  %v209 = vunpack.c.l.b16 %v54
  %v210 = vunpack.c.l.b16 %v55
  %v211 = vunpack.c.l.b16 %v56
  %v212 = vunpack.c.l.b16 %v57
  %v213 = vunpack.c.l.b16 %v58
  %v214 = vunpack.c.l.b16 %v59
  %v215 = vunpack.c.l.b16 %v60
  %v216 = vunpack.c.l.b16 %v61
  %v217 = vunpack.c.l.b16 %v62
  %v218 = vunpack.c.l.b16 %v63
  %v219 = vunpack.c.l.b16 %v64
  %v220 = vunpack.c.l.b16 %v65
  %v221 = vunpack.c.l.b16 %v66
  %v222 = vunpack.c.l.b16 %v67
  %v223 = vunpack.c.l.b16 %v68
  %v224 = vunpack.c.l.b16 %v69
  %v225 = vunpack.c.l.b16 %v70
  %v226 = vunpack.c.l.b16 %v71
  %v227 = vunpack.c.l.b16 %v72
  %v228 = vunpack.c.l.b16 %v73
  %v229 = vunpack.c.l.b16 %v74
  %v230 = vunpack.c.l.b16 %v75
  %v231 = vunpack.c.l.b16 %v76
  %v232 = vunpack.c.l.b16 %v77
  %v233 = vunpack.c.l.b16 %v78
  %v234 = vunpack.c.l.b16 %v79
  %v235 = vunpack.c.l.b16 %v80
  %v236 = vunpack.c.l.b16 %v81
  %v237 = vunpack.c.l.b16 %v82
  %v238 = vunpack.c.l.b16 %v83
  %v239 = vunpack.c.l.b16 %v84
  %v240 = vunpack.c.l.b16 %v85
  %v241 = vunpack.c.l.b16 %v86
  %v242 = vunpack.c.l.b16 %v87
  %v243 = vunpack.c.l.b16 %v88
  %v244 = vunpack.c.l.b16 %v89
  %v245 = vunpack.c.l.b16 %v90
  %v246 = vunpack.c.l.b16 %v91
  %v247 = vunpack.c.l.b16 %v92
  %v248 = vunpack.c.l.b16 %v93
  %v249 = vunpack.c.l.b16 %v94
  %v250 = vpack.c.b16 %v203, %v202
  %v251 = vpack.c.b16 %v205, %v204
  %v252 = vpack.c.b16 %v207, %v206
  %v253 = vpack.c.b16 %v209, %v208
  %v254 = vpack.c.b16 %v211, %v210
  %v255 = vpack.c.b16 %v213, %v212
  %v256 = vpack.c.b16 %v215, %v214
  %v257 = vpack.c.b16 %v217, %v216
  %v258 = vpack.c.b16 %v219, %v218
  %v259 = vpack.c.b16 %v221, %v220
  %v260 = vpack.c.b16 %v223, %v222
  %v261 = vpack.c.b16 %v225, %v224
  %v262 = vpack.c.b16 %v227, %v226
  %v263 = vpack.c.b16 %v229, %v228
  %v264 = vpack.c.b16 %v231, %v230
  %v265 = vpack.c.b16 %v233, %v232
  %v266 = vpack.c.b16 %v235, %v234
  %v267 = vpack.c.b16 %v237, %v236
  %v268 = vpack.c.b16 %v239, %v238
  %v269 = vpack.c.b16 %v241, %v240
  %v270 = vpack.c.b16 %v243, %v242
  %v271 = vpack.c.b16 %v245, %v244
  %v272 = vpack.c.b16 %v247, %v246
  %v273 = vpack.c.b16 %v249, %v248
  %298 = vmatprep.subr.bf16.mxu0 0
  %299 = vmatpush1.bf16.msra.mxu0 %v250
  %300 = vmatprep.subr.bf16.mxu0 0
  %301 = vmatpush1.bf16.msra.mxu0 %v251
  %302 = vmatprep.subr.bf16.mxu0 0
  %303 = vmatpush1.bf16.msra.mxu0 %v252
  %304 = vmatprep.subr.bf16.mxu0 0
  %305 = vmatpush1.bf16.msra.mxu0 %v253
  %306 = vmatprep.subr.bf16.mxu0 0
  %307 = vmatpush1.bf16.msra.mxu0 %v254
  %308 = vmatprep.subr.bf16.mxu0 0
  %309 = vmatpush1.bf16.msra.mxu0 %v255
  %310 = vmatprep.subr.bf16.mxu0 0
  %311 = vmatpush1.bf16.msra.mxu0 %v256
  %312 = vmatprep.subr.bf16.mxu0 0
  %313 = vmatpush1.bf16.msra.mxu0 %v257
  %314 = vmatprep.subr.bf16.mxu0 0
  %315 = vmatpush1.bf16.msra.mxu0 %v258
  %316 = vmatprep.subr.bf16.mxu0 0
  %317 = vmatpush1.bf16.msra.mxu0 %v259
  %318 = vmatprep.subr.bf16.mxu0 0
  %319 = vmatpush1.bf16.msra.mxu0 %v260
  %320 = vmatprep.subr.bf16.mxu0 0
  %321 = vmatpush1.bf16.msra.mxu0 %v261
  %322 = vmatprep.subr.bf16.mxu0 0
  %323 = vmatpush1.bf16.msra.mxu0 %v262
  %324 = vmatprep.subr.bf16.mxu0 0
  %325 = vmatpush1.bf16.msra.mxu0 %v263
  %326 = vmatprep.subr.bf16.mxu0 0
  %327 = vmatpush1.bf16.msra.mxu0 %v264
  %328 = vmatprep.subr.bf16.mxu0 0
  %329 = vmatpush1.bf16.msra.mxu0 %v265
  %330 = vmatprep.mubr.bf16.mxu0 %v131
  %331 = vmatmul.mubr.bf16.gmra.mrb[0].mxu0 %v130
  %v332 = vpop.f32.mrb[0].mxu0
  %v333 = vadd.f32 0.0, %v332
  %v334 = vpop.f32.mrb[0].mxu0
  %v335 = vpop.f32.mrb[0].mxu0
  %v336 = vadd.f32 0.0, %v335
  %v337 = vpop.f32.mrb[0].mxu0
  %338 = vmatprep.mubr.bf16.mxu0 %v134
  %339 = vmatmul.mubr.bf16.gmra.mrb[0].mxu0 %v133
  %v340 = vpop.f32.mrb[0].mxu0
  %v341 = vadd.f32 0.0, %v340
  %v342 = vpop.f32.mrb[0].mxu0
  %v343 = vpop.f32.mrb[0].mxu0
  %v344 = vadd.f32 0.0, %v343
  %v345 = vpop.f32.mrb[0].mxu0
  %346 = vmatprep.mubr.bf16.mxu0 %v137
  %347 = vmatmul.mubr.bf16.gmra.mrb[0].mxu0 %v136
  %v348 = vpop.f32.mrb[0].mxu0
  %v349 = vadd.f32 0.0, %v348
  %v350 = vpop.f32.mrb[0].mxu0
  %v351 = vpop.f32.mrb[0].mxu0
  %v352 = vadd.f32 0.0, %v351
  %v353 = vpop.f32.mrb[0].mxu0
  %354 = vmatprep.mubr.bf16.mxu0 %v140
  %355 = vmatmul.mubr.bf16.gmra.mrb[0].mxu0 %v139
  %v356 = vpop.f32.mrb[0].mxu0
  %v357 = vadd.f32 0.0, %v356
  %v358 = vpop.f32.mrb[0].mxu0
  %v359 = vpop.f32.mrb[0].mxu0
  %v360 = vpop.f32.mrb[0].mxu0
  %361 = vdwg.mxu0
  %362 = vmatprep.subr.bf16.mxu0 0
  %363 = vmatpush1.bf16.msra.mxu0 %v266
  %364 = vmatprep.subr.bf16.mxu0 0
  %365 = vmatpush1.bf16.msra.mxu0 %v267
  %366 = vmatprep.subr.bf16.mxu0 0
  %367 = vmatpush1.bf16.msra.mxu0 %v268
  %368 = vmatprep.subr.bf16.mxu0 0
  %369 = vmatpush1.bf16.msra.mxu0 %v269
  %370 = vmatprep.subr.bf16.mxu0 0
  %371 = vmatpush1.bf16.msra.mxu0 %v270
  %372 = vmatprep.subr.bf16.mxu0 0
  %373 = vmatpush1.bf16.msra.mxu0 %v271
  %374 = vmatprep.subr.bf16.mxu0 0
  %375 = vmatpush1.bf16.msra.mxu0 %v272
  %376 = vmatprep.subr.bf16.mxu0 0
  %377 = vmatpush1.bf16.msra.mxu0 %v273
  %378 = vmatprep.subr.bf16.mxu0 0
  %379 = vmatpush1.bf16.msra.mxu0 0
  %380 = vmatprep.subr.bf16.mxu0 0
  %381 = vmatpush1.bf16.msra.mxu0 0
  %382 = vmatprep.subr.bf16.mxu0 0
  %383 = vmatpush1.bf16.msra.mxu0 0
  %384 = vmatprep.subr.bf16.mxu0 0
  %385 = vmatpush1.bf16.msra.mxu0 0
  %386 = vmatprep.subr.bf16.mxu0 0
  %387 = vmatpush1.bf16.msra.mxu0 0
  %388 = vmatprep.subr.bf16.mxu0 0
  %389 = vmatpush1.bf16.msra.mxu0 0
  %390 = vmatprep.subr.bf16.mxu0 0
  %391 = vmatpush1.bf16.msra.mxu0 0
  %392 = vmatprep.subr.bf16.mxu0 0
  %393 = vmatpush1.bf16.msra.mxu0 0
  %394 = vmatprep.mubr.bf16.mxu0 0
  %395 = vmatmul.mubr.bf16.gmra.mrb[0].mxu0 %v132
  %v396 = vpop.f32.mrb[0].mxu0
  %v397 = vadd.f32 %v333, %v396
  %v398 = vpop.f32.mrb[0].mxu0
  %v399 = vpop.f32.mrb[0].mxu0
  %v400 = vadd.f32 %v336, %v399
  %v401 = vpop.f32.mrb[0].mxu0
  %402 = vmatprep.mubr.bf16.mxu0 0
  %403 = vmatmul.mubr.bf16.gmra.mrb[0].mxu0 %v135
  %v404 = vpop.f32.mrb[0].mxu0
  %v405 = vadd.f32 %v341, %v404
  %v406 = vpop.f32.mrb[0].mxu0
  %v407 = vpop.f32.mrb[0].mxu0
  %v408 = vadd.f32 %v344, %v407
  %v409 = vpop.f32.mrb[0].mxu0
  %410 = vmatprep.mubr.bf16.mxu0 0
  %411 = vmatmul.mubr.bf16.gmra.mrb[0].mxu0 %v138
  %v412 = vpop.f32.mrb[0].mxu0
  %v413 = vadd.f32 %v349, %v412
  %v414 = vpop.f32.mrb[0].mxu0
  %v415 = vpop.f32.mrb[0].mxu0
  %v416 = vadd.f32 %v352, %v415
  %v417 = vpop.f32.mrb[0].mxu0
  %418 = vmatprep.mubr.bf16.mxu0 0
  %419 = vmatmul.mubr.bf16.gmra.mrb[0].mxu0 %v141
  %v420 = vpop.f32.mrb[0].mxu0
  %v421 = vadd.f32 %v357, %v420
  %v422 = vpop.f32.mrb[0].mxu0
  %v423 = vpop.f32.mrb[0].mxu0
  %v424 = vpop.f32.mrb[0].mxu0
  %425 = vdwg.mxu0
  %v426 = vadd.f32 %v26, %v397
  %v427 = vadd.f32 %v27, %v400
  %v428 = vadd.f32 %v28, %v405
  %v429 = vadd.f32 %v29, %v408
  %v430 = vadd.f32 %v30, %v413
  %v431 = vadd.f32 %v31, %v416
  %v432 = vadd.f32 %v32, %v421
  %433 = vst [vmem:[#allocation2] sm:$0xff] %v426
  %434 = vst [vmem:[#allocation2 + $0x8] sm:$0xff] %v427
  %435 = vst [vmem:[#allocation2 + $0x10] sm:$0xff] %v428
  %436 = vst [vmem:[#allocation2 + $0x18] sm:$0xff] %v429
  %437 = vst [vmem:[#allocation2 + $0x20] sm:$0xff] %v430
  %438 = vst [vmem:[#allocation2 + $0x28] sm:$0xff] %v431
  %439 = vst [vmem:[#allocation2 + $0x30] sm:$0xff] %v432
  // Predicated region
  $region18: #{extract_forward.13} parent=0 // pred_check
    %p440 = pneg %p15
  $region19: #{extract_forward.13} parent=0 // pred_check_branch
    %442 = sbr.rel (%p440) target = $region21
  $region20: #{extract_forward.13} parent=0 // pred_region
    %v443 = vld [vmem:[#allocation2] sm:$0xff]
    %v444 = vld [vmem:[#allocation2 + $0x8] sm:$0xff]
    %v445 = vld [vmem:[#allocation2 + $0x10] sm:$0xff]
    %v446 = vld [vmem:[#allocation2 + $0x18] sm:$0xff]
    %v447 = vld [vmem:[#allocation2 + $0x20] sm:$0xff]
    %v448 = vld [vmem:[#allocation2 + $0x28] sm:$0xff]
    %v449 = vld [vmem:[#allocation2 + $0x30] sm:$0xff]
    %v450 = vld [vmem:[%s2] sm:$0x1]
    %v452 = vlaneseq
    %v453 = vshrl.u32 %v452, 7
    %v454 = vsub.s32 0, %v453
    %v455 = vrot.slane %v450, %v454
    %v457 = vadd.f32 %v443, %v455
    %v458 = vadd.f32 %v444, %v455
    %v459 = vadd.f32 %v445, %v455
    %v460 = vadd.f32 %v446, %v455
    %v461 = vadd.f32 %v447, %v455
    %v462 = vadd.f32 %v448, %v455
    %v463 = vadd.f32 %v449, %v455
    %v464 = vmax.f32 %v457, 0.0
    %v465 = vmax.f32 %v458, 0.0
    %v466 = vmax.f32 %v459, 0.0
    %v467 = vmax.f32 %v460, 0.0
    %v468 = vmax.f32 %v461, 0.0
    %v469 = vmax.f32 %v462, 0.0
    %v470 = vmax.f32 %v463, 0.0
    %471 = vst [vmem:[%s3] sm:$0xff] %v464
    %472 = vst [vmem:[%s3 + $0x8] sm:$0xff] %v465
    %473 = vst [vmem:[%s3 + $0x10] sm:$0xff] %v466
    %474 = vst [vmem:[%s3 + $0x18] sm:$0xff] %v467
    %475 = vst [vmem:[%s3 + $0x20] sm:$0xff] %v468
    %476 = vst [vmem:[%s3 + $0x28] sm:$0xff] %v469
    %477 = vst [vmem:[%s3 + $0x30] sm:$0xff] %v470
  $region21: #{extract_forward.13} parent=0 // pred_fallthru
    _
  // Predicated region
  $region22: #{extract_forward.13} parent=0 // pred_check
    _
  $region23: #{extract_forward.13} parent=0 // pred_check_branch
    %479 = sbr.rel (0) target = $region25
  $region24: #{extract_forward.13} parent=0 // pred_region
    _
  $region25: #{extract_forward.13} parent=0 // pred_fallthru
    _
  // Predicated region
  $region26: #{extract_forward.13} parent=0 // pred_check
    _
  $region27: #{extract_forward.13} parent=0 // pred_check_branch
    %481 = sbr.rel (0) target = $region29
  $region28: #{extract_forward.13} parent=0 // pred_region
    _
  $region29: #{extract_forward.13} parent=0 // pred_fallthru
    _

// kernel: extract_forward.14
$region0: #{extract_forward.14}
  #allocation0 [shape = 'u32[]', space=smem, size = 0x4, offset = 0x4, fixed_abs, tag = 'smem constant byte address 0x4 - core index']
  #allocation1 [shape = 'u32[144,128]{1,0:T(1,128)}', space=vmem, size = 0x12000, scoped, tag = 'internal scratch']
  #allocation2 [shape = 'f32[56,128]{1,0:T(8,128)}', space=vmem, size = 0x7000, scoped, tag = 'scratch operand']
  %s0 = inlined_call_operand.vmem [shape: bf16[56,512], index: 0, kind: input, shape index: {}]
  %s1 = inlined_call_operand.vmem [shape: bf16[512,128], index: 1, kind: input, shape index: {}]
  %s2 = inlined_call_operand.vmem [shape: f32[1,128], index: 2, kind: input, shape index: {}]
  %s3 = inlined_call_operand.vmem [shape: f32[56,128], index: 3, kind: output, shape index: {}]
  %s4 = sld [smem:[#allocation0]]
  $region30: #{extract_forward.14} parent=0
    _
  %s6 = ssub.s32 1, %s4
  %s7 = scalar_select 0, %s6, %s4
  // Predicated region
  $region2: #{extract_forward.14} parent=0 // pred_check
    _
  $region3: #{extract_forward.14} parent=0 // pred_check_branch
    %9 = sbr.rel (0) target = $region5
  $region4: #{extract_forward.14} parent=0 // pred_region
    _
  $region5: #{extract_forward.14} parent=0 // pred_fallthru
    _
  // Predicated region
  $region6: #{extract_forward.14} parent=0 // pred_check
    _
  $region7: #{extract_forward.14} parent=0 // pred_check_branch
    %11 = sbr.rel (0) target = $region9
  $region8: #{extract_forward.14} parent=0 // pred_region
    _
  $region9: #{extract_forward.14} parent=0 // pred_fallthru
    _
  // Predicated region
  $region10: #{extract_forward.14} parent=0 // pred_check
    _
  $region11: #{extract_forward.14} parent=0 // pred_check_branch
    %13 = sbr.rel (0) target = $region13
  $region12: #{extract_forward.14} parent=0 // pred_region
    _
  $region13: #{extract_forward.14} parent=0 // pred_fallthru
    _
  %p15 = scmp.eq.s32.totalorder 0, 0
  // Predicated region
  $region14: #{extract_forward.14} parent=0 // pred_check
    %p16 = pneg %p15
  $region15: #{extract_forward.14} parent=0 // pred_check_branch
    %18 = sbr.rel (%p16) target = $region17
  $region16: #{extract_forward.14} parent=0 // pred_region
    %19 = vst [vmem:[#allocation2] sm:$0xff] 0.0
    %20 = vst [vmem:[#allocation2 + $0x8] sm:$0xff] 0.0
    %21 = vst [vmem:[#allocation2 + $0x10] sm:$0xff] 0.0
    %22 = vst [vmem:[#allocation2 + $0x18] sm:$0xff] 0.0
    %23 = vst [vmem:[#allocation2 + $0x20] sm:$0xff] 0.0
    %24 = vst [vmem:[#allocation2 + $0x28] sm:$0xff] 0.0
    %25 = vst [vmem:[#allocation2 + $0x30] sm:$0xff] 0.0
  $region17: #{extract_forward.14} parent=0 // pred_fallthru
    _
  %v26 = vld [vmem:[#allocation2] sm:$0xff]
  %v27 = vld [vmem:[#allocation2 + $0x8] sm:$0xff]
  %v28 = vld [vmem:[#allocation2 + $0x10] sm:$0xff]
  %v29 = vld [vmem:[#allocation2 + $0x18] sm:$0xff]
  %v30 = vld [vmem:[#allocation2 + $0x20] sm:$0xff]
  %v31 = vld [vmem:[#allocation2 + $0x28] sm:$0xff]
  %v32 = vld [vmem:[#allocation2 + $0x30] sm:$0xff]
  %v33 = vld [vmem:[%s0] sm:$0xff]
  %v34 = vld [vmem:[%s0 + $0x8] sm:$0xff]
  %v35 = vld [vmem:[%s0 + $0x10] sm:$0xff]
  %v36 = vld [vmem:[%s0 + $0x18] sm:$0xff]
  %v37 = vld [vmem:[%s0 + $0x20] sm:$0xff]
  %v38 = vld [vmem:[%s0 + $0x28] sm:$0xff]
  %v39 = vld [vmem:[%s0 + $0x30] sm:$0xff]
  %v40 = vld [vmem:[%s0 + $0x38] sm:$0xff]
  %v41 = vld [vmem:[%s0 + $0x40] sm:$0xff]
  %v42 = vld [vmem:[%s0 + $0x48] sm:$0xff]
  %v43 = vld [vmem:[%s0 + $0x50] sm:$0xff]
  %v44 = vld [vmem:[%s0 + $0x58] sm:$0xff]
  %v45 = vld [vmem:[%s0 + $0x60] sm:$0xff]
  %v46 = vld [vmem:[%s0 + $0x68] sm:$0xff]
  %v47 = vld [vmem:[%s1] sm:$0xf]
  %v48 = vld [vmem:[%s1 + $0x4] sm:$0xf]
  %v49 = vld [vmem:[%s1 + $0x8] sm:$0xf]
  %v50 = vld [vmem:[%s1 + $0xc] sm:$0xf]
  %v51 = vld [vmem:[%s1 + $0x10] sm:$0xf]
  %v52 = vld [vmem:[%s1 + $0x14] sm:$0xf]
  %v53 = vld [vmem:[%s1 + $0x18] sm:$0xf]
  %v54 = vld [vmem:[%s1 + $0x1c] sm:$0xf]
  %v55 = vld [vmem:[%s1 + $0x20] sm:$0xf]
  %v56 = vld [vmem:[%s1 + $0x24] sm:$0xf]
  %v57 = vld [vmem:[%s1 + $0x28] sm:$0xf]
  %v58 = vld [vmem:[%s1 + $0x2c] sm:$0xf]
  %v59 = vld [vmem:[%s1 + $0x30] sm:$0xf]
  %v60 = vld [vmem:[%s1 + $0x34] sm:$0xf]
  %v61 = vld [vmem:[%s1 + $0x38] sm:$0xf]
  %v62 = vld [vmem:[%s1 + $0x3c] sm:$0xf]
  %v63 = vld [vmem:[%s1 + $0x40] sm:$0xf]
  %v64 = vld [vmem:[%s1 + $0x44] sm:$0xf]
  %v65 = vld [vmem:[%s1 + $0x48] sm:$0xf]
  %v66 = vld [vmem:[%s1 + $0x4c] sm:$0xf]
  %v67 = vld [vmem:[%s1 + $0x50] sm:$0xf]
  %v68 = vld [vmem:[%s1 + $0x54] sm:$0xf]
  %v69 = vld [vmem:[%s1 + $0x58] sm:$0xf]
  %v70 = vld [vmem:[%s1 + $0x5c] sm:$0xf]
  %v71 = vld [vmem:[%s1 + $0x60] sm:$0xf]
  %v72 = vld [vmem:[%s1 + $0x64] sm:$0xf]
  %v73 = vld [vmem:[%s1 + $0x68] sm:$0xf]
  %v74 = vld [vmem:[%s1 + $0x6c] sm:$0xf]
  %v75 = vld [vmem:[%s1 + $0x70] sm:$0xf]
  %v76 = vld [vmem:[%s1 + $0x74] sm:$0xf]
  %v77 = vld [vmem:[%s1 + $0x78] sm:$0xf]
  %v78 = vld [vmem:[%s1 + $0x7c] sm:$0xf]
  %v79 = vld [vmem:[%s1 + $0x80] sm:$0xf]
  %v80 = vld [vmem:[%s1 + $0x84] sm:$0xf]
  %v81 = vld [vmem:[%s1 + $0x88] sm:$0xf]
  %v82 = vld [vmem:[%s1 + $0x8c] sm:$0xf]
  %v83 = vld [vmem:[%s1 + $0x90] sm:$0xf]
  %v84 = vld [vmem:[%s1 + $0x94] sm:$0xf]
  %v85 = vld [vmem:[%s1 + $0x98] sm:$0xf]
  %v86 = vld [vmem:[%s1 + $0x9c] sm:$0xf]
  %v87 = vld [vmem:[%s1 + $0xa0] sm:$0xf]
  %v88 = vld [vmem:[%s1 + $0xa4] sm:$0xf]
  %v89 = vld [vmem:[%s1 + $0xa8] sm:$0xf]
  %v90 = vld [vmem:[%s1 + $0xac] sm:$0xf]
  %v91 = vld [vmem:[%s1 + $0xb0] sm:$0xf]
  %v92 = vld [vmem:[%s1 + $0xb4] sm:$0xf]
  %v93 = vld [vmem:[%s1 + $0xb8] sm:$0xf]
  %v94 = vld [vmem:[%s1 + $0xbc] sm:$0xf]
  %v95 = vld [vmem:[%s1 + $0xc0] sm:$0xf]
  %v96 = vld [vmem:[%s1 + $0xc4] sm:$0xf]
  %v97 = vld [vmem:[%s1 + $0xc8] sm:$0xf]
  %v98 = vld [vmem:[%s1 + $0xcc] sm:$0xf]
  %v99 = vld [vmem:[%s1 + $0xd0] sm:$0xf]
  %v100 = vld [vmem:[%s1 + $0xd4] sm:$0xf]
  %v101 = vld [vmem:[%s1 + $0xd8] sm:$0xf]
  %v102 = vld [vmem:[%s1 + $0xdc] sm:$0xf]
  %v103 = vld [vmem:[%s1 + $0xe0] sm:$0xf]
  %v104 = vld [vmem:[%s1 + $0xe4] sm:$0xf]
  %v105 = vld [vmem:[%s1 + $0xe8] sm:$0xf]
  %v106 = vld [vmem:[%s1 + $0xec] sm:$0xf]
  %v107 = vld [vmem:[%s1 + $0xf0] sm:$0xf]
  %v108 = vld [vmem:[%s1 + $0xf4] sm:$0xf]
  %v109 = vld [vmem:[%s1 + $0xf8] sm:$0xf]
  %v110 = vld [vmem:[%s1 + $0xfc] sm:$0xf]
  %v125 = vunpack.c.l.b16 %v33
  %v126 = vunpack.c.h.b16 %v33
  %v127 = vunpack.c.l.b16 %v34
  %v128 = vunpack.c.h.b16 %v34
  %v129 = vunpack.c.l.b16 %v35
  %v130 = vunpack.c.h.b16 %v35
  %v131 = vunpack.c.l.b16 %v36
  %v132 = vunpack.c.h.b16 %v36
  %v133 = vunpack.c.l.b16 %v37
  %v134 = vunpack.c.h.b16 %v37
  %v135 = vunpack.c.l.b16 %v38
  %v136 = vunpack.c.h.b16 %v38
  %v137 = vunpack.c.l.b16 %v39
  %v138 = vunpack.c.h.b16 %v39
  %v139 = vunpack.c.l.b16 %v40
  %v140 = vunpack.c.h.b16 %v40
  %v141 = vunpack.c.l.b16 %v41
  %v142 = vunpack.c.h.b16 %v41
  %v143 = vunpack.c.l.b16 %v42
  %v144 = vunpack.c.h.b16 %v42
  %v145 = vunpack.c.l.b16 %v43
  %v146 = vunpack.c.h.b16 %v43
  %v147 = vunpack.c.l.b16 %v44
  %v148 = vunpack.c.h.b16 %v44
  %v149 = vunpack.c.l.b16 %v45
  %v150 = vunpack.c.h.b16 %v45
  %v151 = vunpack.c.l.b16 %v46
  %v152 = vunpack.c.h.b16 %v46
  %v153 = vpack.c.b16 %v129, %v125
  %v154 = vpack.c.b16 %v130, %v126
  %v155 = vpack.c.b16 %v131, %v127
  %v156 = vpack.c.b16 %v132, %v128
  %v157 = vpack.c.b16 %v137, %v133
  %v158 = vpack.c.b16 %v138, %v134
  %v159 = vpack.c.b16 %v139, %v135
  %v160 = vpack.c.b16 %v140, %v136
  %v161 = vpack.c.b16 %v145, %v141
  %v162 = vpack.c.b16 %v146, %v142
  %v163 = vpack.c.b16 %v147, %v143
  %v164 = vpack.c.b16 %v148, %v144
  %v165 = vpack.c.b16 %v149, %v149
  %v166 = vpack.c.b16 %v150, %v150
  %v167 = vpack.c.b16 %v151, %v151
  %v168 = vpack.c.b16 %v152, %v152
  %v249 = vunpack.c.l.b16 %v47
  %v250 = vunpack.c.l.b16 %v48
  %v251 = vunpack.c.l.b16 %v49
  %v252 = vunpack.c.l.b16 %v50
  %v253 = vunpack.c.l.b16 %v51
  %v254 = vunpack.c.l.b16 %v52
  %v255 = vunpack.c.l.b16 %v53
  %v256 = vunpack.c.l.b16 %v54
  %v257 = vunpack.c.l.b16 %v55
  %v258 = vunpack.c.l.b16 %v56
  %v259 = vunpack.c.l.b16 %v57
  %v260 = vunpack.c.l.b16 %v58
  %v261 = vunpack.c.l.b16 %v59
  %v262 = vunpack.c.l.b16 %v60
  %v263 = vunpack.c.l.b16 %v61
  %v264 = vunpack.c.l.b16 %v62
  %v265 = vunpack.c.l.b16 %v63
  %v266 = vunpack.c.l.b16 %v64
  %v267 = vunpack.c.l.b16 %v65
  %v268 = vunpack.c.l.b16 %v66
  %v269 = vunpack.c.l.b16 %v67
  %v270 = vunpack.c.l.b16 %v68
  %v271 = vunpack.c.l.b16 %v69
  %v272 = vunpack.c.l.b16 %v70
  %v273 = vunpack.c.l.b16 %v71
  %v274 = vunpack.c.l.b16 %v72
  %v275 = vunpack.c.l.b16 %v73
  %v276 = vunpack.c.l.b16 %v74
  %v277 = vunpack.c.l.b16 %v75
  %v278 = vunpack.c.l.b16 %v76
  %v279 = vunpack.c.l.b16 %v77
  %v280 = vunpack.c.l.b16 %v78
  %v281 = vunpack.c.l.b16 %v79
  %v282 = vunpack.c.l.b16 %v80
  %v283 = vunpack.c.l.b16 %v81
  %v284 = vunpack.c.l.b16 %v82
  %v285 = vunpack.c.l.b16 %v83
  %v286 = vunpack.c.l.b16 %v84
  %v287 = vunpack.c.l.b16 %v85
  %v288 = vunpack.c.l.b16 %v86
  %v289 = vunpack.c.l.b16 %v87
  %v290 = vunpack.c.l.b16 %v88
  %v291 = vunpack.c.l.b16 %v89
  %v292 = vunpack.c.l.b16 %v90
  %v293 = vunpack.c.l.b16 %v91
  %v294 = vunpack.c.l.b16 %v92
  %v295 = vunpack.c.l.b16 %v93
  %v296 = vunpack.c.l.b16 %v94
  %v297 = vunpack.c.l.b16 %v95
  %v298 = vunpack.c.l.b16 %v96
  %v299 = vunpack.c.l.b16 %v97
  %v300 = vunpack.c.l.b16 %v98
  %v301 = vunpack.c.l.b16 %v99
  %v302 = vunpack.c.l.b16 %v100
  %v303 = vunpack.c.l.b16 %v101
  %v304 = vunpack.c.l.b16 %v102
  %v305 = vunpack.c.l.b16 %v103
  %v306 = vunpack.c.l.b16 %v104
  %v307 = vunpack.c.l.b16 %v105
  %v308 = vunpack.c.l.b16 %v106
  %v309 = vunpack.c.l.b16 %v107
  %v310 = vunpack.c.l.b16 %v108
  %v311 = vunpack.c.l.b16 %v109
  %v312 = vunpack.c.l.b16 %v110
  %v313 = vpack.c.b16 %v250, %v249
  %v314 = vpack.c.b16 %v252, %v251
  %v315 = vpack.c.b16 %v254, %v253
  %v316 = vpack.c.b16 %v256, %v255
  %v317 = vpack.c.b16 %v258, %v257
  %v318 = vpack.c.b16 %v260, %v259
  %v319 = vpack.c.b16 %v262, %v261
  %v320 = vpack.c.b16 %v264, %v263
  %v321 = vpack.c.b16 %v266, %v265
  %v322 = vpack.c.b16 %v268, %v267
  %v323 = vpack.c.b16 %v270, %v269
  %v324 = vpack.c.b16 %v272, %v271
  %v325 = vpack.c.b16 %v274, %v273
  %v326 = vpack.c.b16 %v276, %v275
  %v327 = vpack.c.b16 %v278, %v277
  %v328 = vpack.c.b16 %v280, %v279
  %v329 = vpack.c.b16 %v282, %v281
  %v330 = vpack.c.b16 %v284, %v283
  %v331 = vpack.c.b16 %v286, %v285
  %v332 = vpack.c.b16 %v288, %v287
  %v333 = vpack.c.b16 %v290, %v289
  %v334 = vpack.c.b16 %v292, %v291
  %v335 = vpack.c.b16 %v294, %v293
  %v336 = vpack.c.b16 %v296, %v295
  %v337 = vpack.c.b16 %v298, %v297
  %v338 = vpack.c.b16 %v300, %v299
  %v339 = vpack.c.b16 %v302, %v301
  %v340 = vpack.c.b16 %v304, %v303
  %v341 = vpack.c.b16 %v306, %v305
  %v342 = vpack.c.b16 %v308, %v307
  %v343 = vpack.c.b16 %v310, %v309
  %v344 = vpack.c.b16 %v312, %v311
  %377 = vmatprep.subr.bf16.mxu0 0
  %378 = vmatpush1.bf16.msra.mxu0 %v313
  %379 = vmatprep.subr.bf16.mxu0 0
  %380 = vmatpush1.bf16.msra.mxu0 %v314
  %381 = vmatprep.subr.bf16.mxu0 0
  %382 = vmatpush1.bf16.msra.mxu0 %v315
  %383 = vmatprep.subr.bf16.mxu0 0
  %384 = vmatpush1.bf16.msra.mxu0 %v316
  %385 = vmatprep.subr.bf16.mxu0 0
  %386 = vmatpush1.bf16.msra.mxu0 %v317
  %387 = vmatprep.subr.bf16.mxu0 0
  %388 = vmatpush1.bf16.msra.mxu0 %v318
  %389 = vmatprep.subr.bf16.mxu0 0
  %390 = vmatpush1.bf16.msra.mxu0 %v319
  %391 = vmatprep.subr.bf16.mxu0 0
  %392 = vmatpush1.bf16.msra.mxu0 %v320
  %393 = vmatprep.subr.bf16.mxu0 0
  %394 = vmatpush1.bf16.msra.mxu0 %v321
  %395 = vmatprep.subr.bf16.mxu0 0
  %396 = vmatpush1.bf16.msra.mxu0 %v322
  %397 = vmatprep.subr.bf16.mxu0 0
  %398 = vmatpush1.bf16.msra.mxu0 %v323
  %399 = vmatprep.subr.bf16.mxu0 0
  %400 = vmatpush1.bf16.msra.mxu0 %v324
  %401 = vmatprep.subr.bf16.mxu0 0
  %402 = vmatpush1.bf16.msra.mxu0 %v325
  %403 = vmatprep.subr.bf16.mxu0 0
  %404 = vmatpush1.bf16.msra.mxu0 %v326
  %405 = vmatprep.subr.bf16.mxu0 0
  %406 = vmatpush1.bf16.msra.mxu0 %v327
  %407 = vmatprep.subr.bf16.mxu0 0
  %408 = vmatpush1.bf16.msra.mxu0 %v328
  %409 = vmatprep.mubr.bf16.mxu0 %v154
  %410 = vmatmul.mubr.bf16.gmra.mrb[0].mxu0 %v153
  %v411 = vpop.f32.mrb[0].mxu0
  %v412 = vadd.f32 0.0, %v411
  %v413 = vpop.f32.mrb[0].mxu0
  %v414 = vpop.f32.mrb[0].mxu0
  %v415 = vadd.f32 0.0, %v414
  %v416 = vpop.f32.mrb[0].mxu0
  %417 = vmatprep.mubr.bf16.mxu0 %v158
  %418 = vmatmul.mubr.bf16.gmra.mrb[0].mxu0 %v157
  %v419 = vpop.f32.mrb[0].mxu0
  %v420 = vadd.f32 0.0, %v419
  %v421 = vpop.f32.mrb[0].mxu0
  %v422 = vpop.f32.mrb[0].mxu0
  %v423 = vadd.f32 0.0, %v422
  %v424 = vpop.f32.mrb[0].mxu0
  %425 = vmatprep.mubr.bf16.mxu0 %v162
  %426 = vmatmul.mubr.bf16.gmra.mrb[0].mxu0 %v161
  %v427 = vpop.f32.mrb[0].mxu0
  %v428 = vadd.f32 0.0, %v427
  %v429 = vpop.f32.mrb[0].mxu0
  %v430 = vpop.f32.mrb[0].mxu0
  %v431 = vadd.f32 0.0, %v430
  %v432 = vpop.f32.mrb[0].mxu0
  %433 = vmatprep.mubr.bf16.mxu0 %v166
  %434 = vmatmul.mubr.bf16.gmra.mrb[0].mxu0 %v165
  %v435 = vpop.f32.mrb[0].mxu0
  %v436 = vadd.f32 0.0, %v435
  %v437 = vpop.f32.mrb[0].mxu0
  %v438 = vpop.f32.mrb[0].mxu0
  %v439 = vpop.f32.mrb[0].mxu0
  %440 = vdwg.mxu0
  %441 = vmatprep.subr.bf16.mxu0 0
  %442 = vmatpush1.bf16.msra.mxu0 %v329
  %443 = vmatprep.subr.bf16.mxu0 0
  %444 = vmatpush1.bf16.msra.mxu0 %v330
  %445 = vmatprep.subr.bf16.mxu0 0
  %446 = vmatpush1.bf16.msra.mxu0 %v331
  %447 = vmatprep.subr.bf16.mxu0 0
  %448 = vmatpush1.bf16.msra.mxu0 %v332
  %449 = vmatprep.subr.bf16.mxu0 0
  %450 = vmatpush1.bf16.msra.mxu0 %v333
  %451 = vmatprep.subr.bf16.mxu0 0
  %452 = vmatpush1.bf16.msra.mxu0 %v334
  %453 = vmatprep.subr.bf16.mxu0 0
  %454 = vmatpush1.bf16.msra.mxu0 %v335
  %455 = vmatprep.subr.bf16.mxu0 0
  %456 = vmatpush1.bf16.msra.mxu0 %v336
  %457 = vmatprep.subr.bf16.mxu0 0
  %458 = vmatpush1.bf16.msra.mxu0 %v337
  %459 = vmatprep.subr.bf16.mxu0 0
  %460 = vmatpush1.bf16.msra.mxu0 %v338
  %461 = vmatprep.subr.bf16.mxu0 0
  %462 = vmatpush1.bf16.msra.mxu0 %v339
  %463 = vmatprep.subr.bf16.mxu0 0
  %464 = vmatpush1.bf16.msra.mxu0 %v340
  %465 = vmatprep.subr.bf16.mxu0 0
  %466 = vmatpush1.bf16.msra.mxu0 %v341
  %467 = vmatprep.subr.bf16.mxu0 0
  %468 = vmatpush1.bf16.msra.mxu0 %v342
  %469 = vmatprep.subr.bf16.mxu0 0
  %470 = vmatpush1.bf16.msra.mxu0 %v343
  %471 = vmatprep.subr.bf16.mxu0 0
  %472 = vmatpush1.bf16.msra.mxu0 %v344
  %473 = vmatprep.mubr.bf16.mxu0 %v156
  %474 = vmatmul.mubr.bf16.gmra.mrb[0].mxu0 %v155
  %v475 = vpop.f32.mrb[0].mxu0
  %v476 = vadd.f32 %v412, %v475
  %v477 = vpop.f32.mrb[0].mxu0
  %v478 = vpop.f32.mrb[0].mxu0
  %v479 = vadd.f32 %v415, %v478
  %v480 = vpop.f32.mrb[0].mxu0
  %481 = vmatprep.mubr.bf16.mxu0 %v160
  %482 = vmatmul.mubr.bf16.gmra.mrb[0].mxu0 %v159
  %v483 = vpop.f32.mrb[0].mxu0
  %v484 = vadd.f32 %v420, %v483
  %v485 = vpop.f32.mrb[0].mxu0
  %v486 = vpop.f32.mrb[0].mxu0
  %v487 = vadd.f32 %v423, %v486
  %v488 = vpop.f32.mrb[0].mxu0
  %489 = vmatprep.mubr.bf16.mxu0 %v164
  %490 = vmatmul.mubr.bf16.gmra.mrb[0].mxu0 %v163
  %v491 = vpop.f32.mrb[0].mxu0
  %v492 = vadd.f32 %v428, %v491
  %v493 = vpop.f32.mrb[0].mxu0
  %v494 = vpop.f32.mrb[0].mxu0
  %v495 = vadd.f32 %v431, %v494
  %v496 = vpop.f32.mrb[0].mxu0
  %497 = vmatprep.mubr.bf16.mxu0 %v168
  %498 = vmatmul.mubr.bf16.gmra.mrb[0].mxu0 %v167
  %v499 = vpop.f32.mrb[0].mxu0
  %v500 = vadd.f32 %v436, %v499
  %v501 = vpop.f32.mrb[0].mxu0
  %v502 = vpop.f32.mrb[0].mxu0
  %v503 = vpop.f32.mrb[0].mxu0
  %504 = vdwg.mxu0
  %v505 = vadd.f32 %v26, %v476
  %v506 = vadd.f32 %v27, %v479
  %v507 = vadd.f32 %v28, %v484
  %v508 = vadd.f32 %v29, %v487
  %v509 = vadd.f32 %v30, %v492
  %v510 = vadd.f32 %v31, %v495
  %v511 = vadd.f32 %v32, %v500
  %512 = vst [vmem:[#allocation2] sm:$0xff] %v505
  %513 = vst [vmem:[#allocation2 + $0x8] sm:$0xff] %v506
  %514 = vst [vmem:[#allocation2 + $0x10] sm:$0xff] %v507
  %515 = vst [vmem:[#allocation2 + $0x18] sm:$0xff] %v508
  %516 = vst [vmem:[#allocation2 + $0x20] sm:$0xff] %v509
  %517 = vst [vmem:[#allocation2 + $0x28] sm:$0xff] %v510
  %518 = vst [vmem:[#allocation2 + $0x30] sm:$0xff] %v511
  // Predicated region
  $region18: #{extract_forward.14} parent=0 // pred_check
    %p519 = pneg %p15
  $region19: #{extract_forward.14} parent=0 // pred_check_branch
    %521 = sbr.rel (%p519) target = $region21
  $region20: #{extract_forward.14} parent=0 // pred_region
    %v522 = vld [vmem:[#allocation2] sm:$0xff]
    %v523 = vld [vmem:[#allocation2 + $0x8] sm:$0xff]
    %v524 = vld [vmem:[#allocation2 + $0x10] sm:$0xff]
    %v525 = vld [vmem:[#allocation2 + $0x18] sm:$0xff]
    %v526 = vld [vmem:[#allocation2 + $0x20] sm:$0xff]
    %v527 = vld [vmem:[#allocation2 + $0x28] sm:$0xff]
    %v528 = vld [vmem:[#allocation2 + $0x30] sm:$0xff]
    %v529 = vld [vmem:[%s2] sm:$0x1]
    %v531 = vlaneseq
    %v532 = vshrl.u32 %v531, 7
    %v533 = vsub.s32 0, %v532
    %v534 = vrot.slane %v529, %v533
    %v536 = vadd.f32 %v522, %v534
    %v537 = vadd.f32 %v523, %v534
    %v538 = vadd.f32 %v524, %v534
    %v539 = vadd.f32 %v525, %v534
    %v540 = vadd.f32 %v526, %v534
    %v541 = vadd.f32 %v527, %v534
    %v542 = vadd.f32 %v528, %v534
    %v543 = vmax.f32 %v536, 0.0
    %v544 = vmax.f32 %v537, 0.0
    %v545 = vmax.f32 %v538, 0.0
    %v546 = vmax.f32 %v539, 0.0
    %v547 = vmax.f32 %v540, 0.0
    %v548 = vmax.f32 %v541, 0.0
    %v549 = vmax.f32 %v542, 0.0
    %550 = vst [vmem:[%s3] sm:$0xff] %v543
    %551 = vst [vmem:[%s3 + $0x8] sm:$0xff] %v544
    %552 = vst [vmem:[%s3 + $0x10] sm:$0xff] %v545
    %553 = vst [vmem:[%s3 + $0x18] sm:$0xff] %v546
    %554 = vst [vmem:[%s3 + $0x20] sm:$0xff] %v547
    %555 = vst [vmem:[%s3 + $0x28] sm:$0xff] %v548
    %556 = vst [vmem:[%s3 + $0x30] sm:$0xff] %v549
  $region21: #{extract_forward.14} parent=0 // pred_fallthru
    _
  // Predicated region
  $region22: #{extract_forward.14} parent=0 // pred_check
    _
  $region23: #{extract_forward.14} parent=0 // pred_check_branch
    %558 = sbr.rel (0) target = $region25
  $region24: #{extract_forward.14} parent=0 // pred_region
    _
  $region25: #{extract_forward.14} parent=0 // pred_fallthru
    _
  // Predicated region
  $region26: #{extract_forward.14} parent=0 // pred_check
    _
  $region27: #{extract_forward.14} parent=0 // pred_check_branch
    %560 = sbr.rel (0) target = $region29
  $region28: #{extract_forward.14} parent=0 // pred_region
    _
  $region29: #{extract_forward.14} parent=0 // pred_fallthru
    _

// kernel: extract_forward.16
$region0: #{extract_forward.16}
  #allocation0 [shape = 'u32[]', space=smem, size = 0x4, offset = 0x4, fixed_abs, tag = 'smem constant byte address 0x4 - core index']
  #allocation1 [shape = 'u32[144,128]{1,0:T(1,128)}', space=vmem, size = 0x12000, scoped, tag = 'internal scratch']
  %s0 = inlined_call_operand.vmem [shape: f32[2,5,5,128], index: 0, kind: input, shape index: {}]
  %s1 = inlined_call_operand.vmem [shape: f32[2,3,3,128], index: 1, kind: output, shape index: {}]
  %s2 = sld [smem:[#allocation0]]
  $region37: #{extract_forward.16} parent=0
    _
  %s4 = ssub.s32 1, %s2
  %s5 = scalar_select 0, %s4, %s2
  loop: start=0, step=1, limit=4
  $region2: #{extract_forward.16} parent=0 // loop_pre_header
    _
  $region3: #{extract_forward.16} parent=0 // loop_header
    %s7 = sphi 0, %s11
    %p8 = scmp.ge.s32.totalorder %s7, 4
    %s17 = sphi 0, %s19
    %s20 = sphi 0, %s17
    %s21 = sphi 0, %s20
    %s37 = sphi 0, %s21
    %s43 = sphi 0, %s45
    %s46 = sphi 0, %s43
    %s47 = sphi 0, %s46
    %s63 = sphi 0, %s47
  $region4: #{extract_forward.16} parent=0 // loop_header_branch
    %10 = sbr.rel (%p8) target = $region8
  $region5: #{extract_forward.16} parent=0 // loop_body
    %s12 = ssub.s32 %s7, 1
    %s13 = ssub.s32 %s7, 2
    %s14 = sadd.s32 %s7, 1
    %s15 = ssub.s32 %s7, %s14
    %p16 = scmp.eq.s32.totalorder %s15, 0
    %s18 = sadd.s32 %s17, 1
    %s19 = scalar_select %p16, %s17, %s18
    %p22 = pneg %p16
    %p23 = scmp.eq.s32.totalorder %s7, 1
    %p24 = por %p22, %p23
    %p25 = scmp.ne.s32.totalorder %s17, %s20
    %p26 = scmp.eq.s32.totalorder %s7, 0
    %p27 = por %p25, %p26
    %p28 = scmp.ne.s32.totalorder %s17, %s20
    %p29 = scmp.eq.s32.totalorder %s12, 1
    %p30 = por %p28, %p29
    %p31 = scmp.ne.s32.totalorder %s20, %s21
    %p32 = scmp.eq.s32.totalorder %s12, 0
    %p33 = por %p31, %p32
    %p34 = scmp.ne.s32.totalorder %s20, %s21
    %p35 = scmp.eq.s32.totalorder %s13, 1
    %p36 = por %p34, %p35
    %p38 = scmp.ne.s32.totalorder %s21, %s37
    %p39 = scmp.eq.s32.totalorder %s13, 0
    %p40 = por %p38, %p39
    %s41 = ssub.s32 %s7, %s14
    %p42 = scmp.eq.s32.totalorder %s41, 0
    %s44 = sadd.s32 %s43, 1
    %s45 = scalar_select %p42, %s43, %s44
    %p48 = pneg %p42
    %p49 = scmp.eq.s32.totalorder %s7, 1
    %p50 = por %p48, %p49
    %p51 = scmp.ne.s32.totalorder %s43, %s46
    %p52 = scmp.eq.s32.totalorder %s7, 0
    %p53 = por %p51, %p52
    %p54 = scmp.ne.s32.totalorder %s43, %s46
    %p55 = scmp.eq.s32.totalorder %s12, 1
    %p56 = por %p54, %p55
    %p57 = scmp.ne.s32.totalorder %s46, %s47
    %p58 = scmp.eq.s32.totalorder %s12, 0
    %p59 = por %p57, %p58
    %p60 = scmp.ne.s32.totalorder %s46, %s47
    %p61 = scmp.eq.s32.totalorder %s13, 1
    %p62 = por %p60, %p61
    %p64 = scmp.ne.s32.totalorder %s47, %s63
    %p65 = scmp.eq.s32.totalorder %s13, 0
    %p66 = por %p64, %p65
    %p67 = scmp.le.s32.totalorder 1, %s7
    %p68 = scmp.lt.s32.totalorder %s7, 3
    %p69 = pnand %p67, %p68
    %p70 = pneg %p69
    // Predicated region
    $region9: #{extract_forward.16} parent=5 // pred_check
      _
    $region10: #{extract_forward.16} parent=5 // pred_check_branch
      %72 = sbr.rel (%p69) target = $region12
    $region11: #{extract_forward.16} parent=5 // pred_region
      %s73 = ssub.s32 %s7, 1
    $region12: #{extract_forward.16} parent=5 // pred_fallthru
      _
    %p74 = scmp.lt.s32.totalorder %s7, 2
    // Predicated region
    $region13: #{extract_forward.16} parent=5 // pred_check
      %p75 = pneg %p74
    $region14: #{extract_forward.16} parent=5 // pred_check_branch
      %77 = sbr.rel (%p75) target = $region16
    $region15: #{extract_forward.16} parent=5 // pred_region
      // Predicated region
      $region17: #{extract_forward.16} parent=15 // pred_check
        %p78 = pneg %p27
      $region18: #{extract_forward.16} parent=15 // pred_check_branch
        %80 = sbr.rel (%p78) target = $region20
      $region19: #{extract_forward.16} parent=15 // pred_region
        %p81 = scmp.lt.s32.totalorder %s7, 1
        %s82 = scalar_select %p81, %s7, 1
        %s83 = smul.addr %s82, 5
        %s84 = smul.addr %s83, 8
        %s85 = scalar_lea.vmem %s0, %s84
      $region20: #{extract_forward.16} parent=15 // pred_fallthru
        _
    $region16: #{extract_forward.16} parent=5 // pred_fallthru
      _
    %p86 = scmp.le.s32.totalorder 1, %s7
    %p87 = scmp.lt.s32.totalorder %s7, 3
    %p88 = pnand %p86, %p87
    %p89 = pneg %p88
    // Predicated region
    $region21: #{extract_forward.16} parent=5 // pred_check
      _
    $region22: #{extract_forward.16} parent=5 // pred_check_branch
      %91 = sbr.rel (%p88) target = $region24
    $region23: #{extract_forward.16} parent=5 // pred_region
      %s92 = ssub.s32 %s7, 1
      %p93 = scmp.lt.s32.totalorder %s12, 1
      %s94 = scalar_select %p93, %s12, 1
      %s95 = smul.addr %s94, 5
      %s96 = smul.addr %s95, 8
      %s97 = scalar_lea.vmem %s0, %s96
      %p98 = pneg %p33
      %p99 = pneg %p30
      %p100 = pneg %p59
      %p101 = pneg %p56
      %p102 = scmp.lt.s32.totalorder %s12, 1
      %s103 = scalar_select %p102, %s12, 1
      %s104 = smul.addr %s103, 3
      %s105 = smul.addr %s104, 4
      %s106 = scalar_lea.vmem %s1, %s105
      %p107 = scmp.lt.s32.totalorder %s12, 1
      %s108 = scalar_select %p107, %s12, 1
      %s109 = smul.addr %s108, 5
      %s110 = smul.addr %s109, 8
      %s111 = scalar_lea.vmem %s0, %s110
      %p112 = scmp.lt.s32.totalorder %s12, 1
      %s113 = scalar_select %p112, %s12, 1
      %s114 = smul.addr %s113, 3
      %s115 = smul.addr %s114, 4
      %s116 = scalar_lea.vmem %s1, %s115
      %v117 = vld [vmem:[%s111] sm:$0x7]
      %v118 = vld [vmem:[%s111 + $0x8] sm:$0x7]
      %v119 = vld [vmem:[%s111 + $0x10] sm:$0x7]
      %v120 = vld [vmem:[%s111 + $0x1] sm:$0x7]
      %v121 = vld [vmem:[%s111 + $0x9] sm:$0x7]
      %v122 = vld [vmem:[%s111 + $0x11] sm:$0x7]
      %v123 = vmax.f32 %v117, %v120
      %v124 = vmax.f32 %v118, %v121
      %v125 = vmax.f32 %v119, %v122
      %v126 = vld [vmem:[%s111 + $0x2] sm:$0x7]
      %v127 = vld [vmem:[%s111 + $0xa] sm:$0x7]
      %v128 = vld [vmem:[%s111 + $0x12] sm:$0x7]
      %v129 = vmax.f32 %v123, %v126
      %v130 = vmax.f32 %v124, %v127
      %v131 = vmax.f32 %v125, %v128
      %s132 = scalar_lea.vmem %s111, 8
      %v133 = vld [vmem:[%s132] sm:$0x7]
      %v134 = vld [vmem:[%s132 + $0x8] sm:$0x7]
      %v135 = vld [vmem:[%s132 + $0x10] sm:$0x7]
      %v136 = vmax.f32 %v129, %v133
      %v137 = vmax.f32 %v130, %v134
      %v138 = vmax.f32 %v131, %v135
      %v139 = vld [vmem:[%s132 + $0x1] sm:$0x7]
      %v140 = vld [vmem:[%s132 + $0x9] sm:$0x7]
      %v141 = vld [vmem:[%s132 + $0x11] sm:$0x7]
      %v142 = vmax.f32 %v136, %v139
      %v143 = vmax.f32 %v137, %v140
      %v144 = vmax.f32 %v138, %v141
      %v145 = vld [vmem:[%s132 + $0x2] sm:$0x7]
      %v146 = vld [vmem:[%s132 + $0xa] sm:$0x7]
      %v147 = vld [vmem:[%s132 + $0x12] sm:$0x7]
      %v148 = vmax.f32 %v142, %v145
      %v149 = vmax.f32 %v143, %v146
      %v150 = vmax.f32 %v144, %v147
      %s151 = scalar_lea.vmem %s111, 16
      %v152 = vld [vmem:[%s151] sm:$0x7]
      %v153 = vld [vmem:[%s151 + $0x8] sm:$0x7]
      %v154 = vld [vmem:[%s151 + $0x10] sm:$0x7]
      %v155 = vmax.f32 %v148, %v152
      %v156 = vmax.f32 %v149, %v153
      %v157 = vmax.f32 %v150, %v154
      %v158 = vld [vmem:[%s151 + $0x1] sm:$0x7]
      %v159 = vld [vmem:[%s151 + $0x9] sm:$0x7]
      %v160 = vld [vmem:[%s151 + $0x11] sm:$0x7]
      %v161 = vmax.f32 %v155, %v158
      %v162 = vmax.f32 %v156, %v159
      %v163 = vmax.f32 %v157, %v160
      %v164 = vld [vmem:[%s151 + $0x2] sm:$0x7]
      %v165 = vld [vmem:[%s151 + $0xa] sm:$0x7]
      %v166 = vld [vmem:[%s151 + $0x12] sm:$0x7]
      %v167 = vmax.f32 %v161, %v164
      %v168 = vmax.f32 %v162, %v165
      %v169 = vmax.f32 %v163, %v166
      %170 = vst [vmem:[%s116] sm:$0x7] %v167
      %171 = vst [vmem:[%s116 + $0x4] sm:$0x7] %v168
      %172 = vst [vmem:[%s116 + $0x8] sm:$0x7] %v169
      %p173 = scmp.lt.s32.totalorder %s12, 1
      %s174 = scalar_select %p173, %s12, 1
      %s175 = smul.addr %s174, 3
      %s176 = smul.addr %s175, 4
      %s177 = scalar_lea.vmem %s1, %s176
      // Predicated region
      $region25: #{extract_forward.16} parent=23 // pred_check
        %p178 = pneg %p56
      $region26: #{extract_forward.16} parent=23 // pred_check_branch
        %180 = sbr.rel (%p178) target = $region28
      $region27: #{extract_forward.16} parent=23 // pred_region
        _
      $region28: #{extract_forward.16} parent=23 // pred_fallthru
        _
    $region24: #{extract_forward.16} parent=5 // pred_fallthru
      _
    %p181 = scmp.le.s32.totalorder 2, %s7
    // Predicated region
    $region29: #{extract_forward.16} parent=5 // pred_check
      %p182 = pneg %p181
    $region30: #{extract_forward.16} parent=5 // pred_check_branch
      %184 = sbr.rel (%p182) target = $region32
    $region31: #{extract_forward.16} parent=5 // pred_region
      %s185 = ssub.s32 %s7, 2
      // Predicated region
      $region33: #{extract_forward.16} parent=31 // pred_check
        %p186 = pneg %p62
      $region34: #{extract_forward.16} parent=31 // pred_check_branch
        %188 = sbr.rel (%p186) target = $region36
      $region35: #{extract_forward.16} parent=31 // pred_region
        %p189 = scmp.lt.s32.totalorder %s13, 1
        %s190 = scalar_select %p189, %s13, 1
        %s191 = smul.addr %s190, 3
        %s192 = smul.addr %s191, 4
        %s193 = scalar_lea.vmem %s1, %s192
      $region36: #{extract_forward.16} parent=31 // pred_fallthru
        _
    $region32: #{extract_forward.16} parent=5 // pred_fallthru
      _
  $region6: #{extract_forward.16} parent=0 // loop_footer
    %s11 = sadd.s32 1, %s7
  $region7: #{extract_forward.16} parent=0 // loop_footer_branch
    %6 = sbr.rel target = $region3
  $region8: #{extract_forward.16} parent=0 // loop_exit
    _

// kernel: extract_forward.17
$region0: #{extract_forward.17}
  #allocation0 [shape = 'u32[]', space=smem, size = 0x4, offset = 0x4, fixed_abs, tag = 'smem constant byte address 0x4 - core index']
  #allocation1 [shape = 'u32[144,128]{1,0:T(1,128)}', space=vmem, size = 0x12000, scoped, tag = 'internal scratch']
  #allocation2 [shape = 'bf16[8,256]{1,0:T(8,128)(2,1)}', space=vmem, size = 0x1000, scoped, tag = 'scratch operand']
  %s0 = inlined_call_operand.vmem [shape: bf16[8,128], index: 0, kind: input, shape index: {}]
  %s1 = inlined_call_operand.vmem [shape: bf16[128,256], index: 1, kind: input, shape index: {}]
  %s2 = inlined_call_operand.vmem [shape: f32[1,256], index: 2, kind: input, shape index: {}]
  %s3 = inlined_call_operand.vmem [shape: bf16[256,256], index: 3, kind: input, shape index: {}]
  %s4 = inlined_call_operand.vmem [shape: f32[1,256], index: 4, kind: input, shape index: {}]
  %s5 = inlined_call_operand.vmem [shape: f32[8,256], index: 5, kind: output, shape index: {}]
  %s6 = sld [smem:[#allocation0]]
  $region30: #{extract_forward.17} parent=0
    _
  %s8 = ssub.s32 1, %s6
  %s9 = scalar_select 0, %s8, %s6
  // Predicated region
  $region2: #{extract_forward.17} parent=0 // pred_check
    _
  $region3: #{extract_forward.17} parent=0 // pred_check_branch
    %11 = sbr.rel (0) target = $region5
  $region4: #{extract_forward.17} parent=0 // pred_region
    _
  $region5: #{extract_forward.17} parent=0 // pred_fallthru
    _
  // Predicated region
  $region6: #{extract_forward.17} parent=0 // pred_check
    _
  $region7: #{extract_forward.17} parent=0 // pred_check_branch
    %13 = sbr.rel (0) target = $region9
  $region8: #{extract_forward.17} parent=0 // pred_region
    _
  $region9: #{extract_forward.17} parent=0 // pred_fallthru
    _
  // Predicated region
  $region10: #{extract_forward.17} parent=0 // pred_check
    _
  $region11: #{extract_forward.17} parent=0 // pred_check_branch
    %15 = sbr.rel (0) target = $region13
  $region12: #{extract_forward.17} parent=0 // pred_region
    _
  $region13: #{extract_forward.17} parent=0 // pred_fallthru
    _
  // Predicated region
  $region14: #{extract_forward.17} parent=0 // pred_check
    _
  $region15: #{extract_forward.17} parent=0 // pred_check_branch
    %17 = sbr.rel (0) target = $region17
  $region16: #{extract_forward.17} parent=0 // pred_region
    _
  $region17: #{extract_forward.17} parent=0 // pred_fallthru
    _
  // Predicated region
  $region18: #{extract_forward.17} parent=0 // pred_check
    _
  $region19: #{extract_forward.17} parent=0 // pred_check_branch
    %19 = sbr.rel (0) target = $region21
  $region20: #{extract_forward.17} parent=0 // pred_region
    _
  $region21: #{extract_forward.17} parent=0 // pred_fallthru
    _
  %v21 = vld [vmem:[%s0] sm:$0xf]
  %v22 = vld [vmem:[%s1] sm:$0xff]
  %v23 = vld [vmem:[%s1 + $0x8] sm:$0xff]
  %v24 = vld [vmem:[%s1 + $0x10] sm:$0xff]
  %v25 = vld [vmem:[%s1 + $0x18] sm:$0xff]
  %v26 = vld [vmem:[%s1 + $0x20] sm:$0xff]
  %v27 = vld [vmem:[%s1 + $0x28] sm:$0xff]
  %v28 = vld [vmem:[%s1 + $0x30] sm:$0xff]
  %v29 = vld [vmem:[%s1 + $0x38] sm:$0xff]
  %v30 = vld [vmem:[%s1 + $0x40] sm:$0xff]
  %v31 = vld [vmem:[%s1 + $0x48] sm:$0xff]
  %v32 = vld [vmem:[%s1 + $0x50] sm:$0xff]
  %v33 = vld [vmem:[%s1 + $0x58] sm:$0xff]
  %v34 = vld [vmem:[%s1 + $0x60] sm:$0xff]
  %v35 = vld [vmem:[%s1 + $0x68] sm:$0xff]
  %v36 = vld [vmem:[%s1 + $0x70] sm:$0xff]
  %v37 = vld [vmem:[%s1 + $0x78] sm:$0xff]
  %v38 = vld [vmem:[%s2] sm:$0x3]
  %v40 = vlaneseq
  %v41 = vshrl.u32 %v40, 7
  %v42 = vsub.s32 0, %v41
  %v43 = vrot.slane %v38, %v42
  %v44 = vlaneseq
  %v45 = vshrl.u32 %v44, 7
  %v46 = vsub.s32 1, %v45
  %v47 = vrot.slane %v38, %v46
  %v66 = vunpack.c.l.b16 %v22
  %v67 = vunpack.c.h.b16 %v22
  %v68 = vunpack.c.l.b16 %v23
  %v69 = vunpack.c.h.b16 %v23
  %v70 = vunpack.c.l.b16 %v24
  %v71 = vunpack.c.h.b16 %v24
  %v72 = vunpack.c.l.b16 %v25
  %v73 = vunpack.c.h.b16 %v25
  %v74 = vunpack.c.l.b16 %v26
  %v75 = vunpack.c.h.b16 %v26
  %v76 = vunpack.c.l.b16 %v27
  %v77 = vunpack.c.h.b16 %v27
  %v78 = vunpack.c.l.b16 %v28
  %v79 = vunpack.c.h.b16 %v28
  %v80 = vunpack.c.l.b16 %v29
  %v81 = vunpack.c.h.b16 %v29
  %v82 = vunpack.c.l.b16 %v30
  %v83 = vunpack.c.h.b16 %v30
  %v84 = vunpack.c.l.b16 %v31
  %v85 = vunpack.c.h.b16 %v31
  %v86 = vunpack.c.l.b16 %v32
  %v87 = vunpack.c.h.b16 %v32
  %v88 = vunpack.c.l.b16 %v33
  %v89 = vunpack.c.h.b16 %v33
  %v90 = vunpack.c.l.b16 %v34
  %v91 = vunpack.c.h.b16 %v34
  %v92 = vunpack.c.l.b16 %v35
  %v93 = vunpack.c.h.b16 %v35
  %v94 = vunpack.c.l.b16 %v36
  %v95 = vunpack.c.h.b16 %v36
  %v96 = vunpack.c.l.b16 %v37
  %v97 = vunpack.c.h.b16 %v37
  %v98 = vpack.c.b16 %v68, %v66
  %v99 = vpack.c.b16 %v69, %v67
  %v100 = vpack.c.b16 %v72, %v70
  %v101 = vpack.c.b16 %v73, %v71
  %v102 = vpack.c.b16 %v76, %v74
  %v103 = vpack.c.b16 %v77, %v75
  %v104 = vpack.c.b16 %v80, %v78
  %v105 = vpack.c.b16 %v81, %v79
  %v106 = vpack.c.b16 %v84, %v82
  %v107 = vpack.c.b16 %v85, %v83
  %v108 = vpack.c.b16 %v88, %v86
  %v109 = vpack.c.b16 %v89, %v87
  %v110 = vpack.c.b16 %v92, %v90
  %v111 = vpack.c.b16 %v93, %v91
  %v112 = vpack.c.b16 %v96, %v94
  %v113 = vpack.c.b16 %v97, %v95
  %130 = vmatprep.subr.bf16.mxu0 %v99
  %131 = vmatpush1.bf16.msra.mxu0 %v98
  %132 = vmatprep.subr.bf16.mxu0 %v101
  %133 = vmatpush1.bf16.msra.mxu0 %v100
  %134 = vmatprep.subr.bf16.mxu0 %v103
  %135 = vmatpush1.bf16.msra.mxu0 %v102
  %136 = vmatprep.subr.bf16.mxu0 %v105
  %137 = vmatpush1.bf16.msra.mxu0 %v104
  %138 = vmatprep.subr.bf16.mxu0 %v107
  %139 = vmatpush1.bf16.msra.mxu0 %v106
  %140 = vmatprep.subr.bf16.mxu0 %v109
  %141 = vmatpush1.bf16.msra.mxu0 %v108
  %142 = vmatprep.subr.bf16.mxu0 %v111
  %143 = vmatpush1.bf16.msra.mxu0 %v110
  %144 = vmatprep.subr.bf16.mxu0 %v113
  %145 = vmatpush1.bf16.msra.mxu0 %v112
  %146 = vmatprep.subr.bf16.mxu0 0
  %147 = vmatpush1.bf16.msra.mxu0 0
  %148 = vmatprep.subr.bf16.mxu0 0
  %149 = vmatpush1.bf16.msra.mxu0 0
  %150 = vmatprep.subr.bf16.mxu0 0
  %151 = vmatpush1.bf16.msra.mxu0 0
  %152 = vmatprep.subr.bf16.mxu0 0
  %153 = vmatpush1.bf16.msra.mxu0 0
  %154 = vmatprep.subr.bf16.mxu0 0
  %155 = vmatpush1.bf16.msra.mxu0 0
  %156 = vmatprep.subr.bf16.mxu0 0
  %157 = vmatpush1.bf16.msra.mxu0 0
  %158 = vmatprep.subr.bf16.mxu0 0
  %159 = vmatpush1.bf16.msra.mxu0 0
  %160 = vmatprep.subr.bf16.mxu0 0
  %161 = vmatpush1.bf16.msra.mxu0 0
  %162 = vmatprep.mubr.bf16.mxu0 0
  %163 = vmatmul.mubr.bf16.gmra.mrb[0].mxu0 %v21
  %v164 = vpop.f32.mrb[0].mxu0
  %v165 = vadd.f32 %v43, %v164
  %v166 = vpop.f32.mrb[0].mxu0
  %v167 = vadd.f32 %v47, %v166
  %v168 = vpop.f32.mrb[0].mxu0
  %v169 = vpop.f32.mrb[0].mxu0
  %170 = vdwg.mxu0
  %v171 = vmax.f32 %v165, 0.0
  %v172 = vmax.f32 %v167, 0.0
  %v173 = vpack.c.bf16 %v171, %v171
  %v174 = vpack.c.bf16 %v172, %v172
  %v177 = vunpack.c.l.b16 %v173
  %v178 = vunpack.c.l.b16 %v174
  %v179 = vpack.c.b16 %v178, %v177
  %181 = vst [vmem:[#allocation2] sm:$0xff] %v179
  %v182 = vld [vmem:[#allocation2] sm:$0xff]
  %v183 = vld [vmem:[%s3] sm:$0xff]
  %v184 = vld [vmem:[%s3 + $0x8] sm:$0xff]
  %v185 = vld [vmem:[%s3 + $0x10] sm:$0xff]
  %v186 = vld [vmem:[%s3 + $0x18] sm:$0xff]
  %v187 = vld [vmem:[%s3 + $0x20] sm:$0xff]
  %v188 = vld [vmem:[%s3 + $0x28] sm:$0xff]
  %v189 = vld [vmem:[%s3 + $0x30] sm:$0xff]
  %v190 = vld [vmem:[%s3 + $0x38] sm:$0xff]
  %v191 = vld [vmem:[%s3 + $0x40] sm:$0xff]
  %v192 = vld [vmem:[%s3 + $0x48] sm:$0xff]
  %v193 = vld [vmem:[%s3 + $0x50] sm:$0xff]
  %v194 = vld [vmem:[%s3 + $0x58] sm:$0xff]
  %v195 = vld [vmem:[%s3 + $0x60] sm:$0xff]
  %v196 = vld [vmem:[%s3 + $0x68] sm:$0xff]
  %v197 = vld [vmem:[%s3 + $0x70] sm:$0xff]
  %v198 = vld [vmem:[%s3 + $0x78] sm:$0xff]
  %v199 = vld [vmem:[%s3 + $0x80] sm:$0xff]
  %v200 = vld [vmem:[%s3 + $0x88] sm:$0xff]
  %v201 = vld [vmem:[%s3 + $0x90] sm:$0xff]
  %v202 = vld [vmem:[%s3 + $0x98] sm:$0xff]
  %v203 = vld [vmem:[%s3 + $0xa0] sm:$0xff]
  %v204 = vld [vmem:[%s3 + $0xa8] sm:$0xff]
  %v205 = vld [vmem:[%s3 + $0xb0] sm:$0xff]
  %v206 = vld [vmem:[%s3 + $0xb8] sm:$0xff]
  %v207 = vld [vmem:[%s3 + $0xc0] sm:$0xff]
  %v208 = vld [vmem:[%s3 + $0xc8] sm:$0xff]
  %v209 = vld [vmem:[%s3 + $0xd0] sm:$0xff]
  %v210 = vld [vmem:[%s3 + $0xd8] sm:$0xff]
  %v211 = vld [vmem:[%s3 + $0xe0] sm:$0xff]
  %v212 = vld [vmem:[%s3 + $0xe8] sm:$0xff]
  %v213 = vld [vmem:[%s3 + $0xf0] sm:$0xff]
  %v214 = vld [vmem:[%s3 + $0xf8] sm:$0xff]
  %v215 = vld [vmem:[%s4] sm:$0x3]
  %v217 = vlaneseq
  %v218 = vshrl.u32 %v217, 7
  %v219 = vsub.s32 0, %v218
  %v220 = vrot.slane %v215, %v219
  %v221 = vlaneseq
  %v222 = vshrl.u32 %v221, 7
  %v223 = vsub.s32 1, %v222
  %v224 = vrot.slane %v215, %v223
  %v228 = vunpack.c.l.b16 %v182
  %v229 = vunpack.c.h.b16 %v182
  %v230 = vpack.c.b16 %v228, %v228
  %v231 = vpack.c.b16 %v229, %v229
  %v266 = vunpack.c.l.b16 %v183
  %v267 = vunpack.c.h.b16 %v183
  %v268 = vunpack.c.l.b16 %v184
  %v269 = vunpack.c.h.b16 %v184
  %v270 = vunpack.c.l.b16 %v185
  %v271 = vunpack.c.h.b16 %v185
  %v272 = vunpack.c.l.b16 %v186
  %v273 = vunpack.c.h.b16 %v186
  %v274 = vunpack.c.l.b16 %v187
  %v275 = vunpack.c.h.b16 %v187
  %v276 = vunpack.c.l.b16 %v188
  %v277 = vunpack.c.h.b16 %v188
  %v278 = vunpack.c.l.b16 %v189
  %v279 = vunpack.c.h.b16 %v189
  %v280 = vunpack.c.l.b16 %v190
  %v281 = vunpack.c.h.b16 %v190
  %v282 = vunpack.c.l.b16 %v191
  %v283 = vunpack.c.h.b16 %v191
  %v284 = vunpack.c.l.b16 %v192
  %v285 = vunpack.c.h.b16 %v192
  %v286 = vunpack.c.l.b16 %v193
  %v287 = vunpack.c.h.b16 %v193
  %v288 = vunpack.c.l.b16 %v194
  %v289 = vunpack.c.h.b16 %v194
  %v290 = vunpack.c.l.b16 %v195
  %v291 = vunpack.c.h.b16 %v195
  %v292 = vunpack.c.l.b16 %v196
  %v293 = vunpack.c.h.b16 %v196
  %v294 = vunpack.c.l.b16 %v197
  %v295 = vunpack.c.h.b16 %v197
  %v296 = vunpack.c.l.b16 %v198
  %v297 = vunpack.c.h.b16 %v198
  %v298 = vunpack.c.l.b16 %v199
  %v299 = vunpack.c.h.b16 %v199
  %v300 = vunpack.c.l.b16 %v200
  %v301 = vunpack.c.h.b16 %v200
  %v302 = vunpack.c.l.b16 %v201
  %v303 = vunpack.c.h.b16 %v201
  %v304 = vunpack.c.l.b16 %v202
  %v305 = vunpack.c.h.b16 %v202
  %v306 = vunpack.c.l.b16 %v203
  %v307 = vunpack.c.h.b16 %v203
  %v308 = vunpack.c.l.b16 %v204
  %v309 = vunpack.c.h.b16 %v204
  %v310 = vunpack.c.l.b16 %v205
  %v311 = vunpack.c.h.b16 %v205
  %v312 = vunpack.c.l.b16 %v206
  %v313 = vunpack.c.h.b16 %v206
  %v314 = vunpack.c.l.b16 %v207
  %v315 = vunpack.c.h.b16 %v207
  %v316 = vunpack.c.l.b16 %v208
  %v317 = vunpack.c.h.b16 %v208
  %v318 = vunpack.c.l.b16 %v209
  %v319 = vunpack.c.h.b16 %v209
  %v320 = vunpack.c.l.b16 %v210
  %v321 = vunpack.c.h.b16 %v210
  %v322 = vunpack.c.l.b16 %v211
  %v323 = vunpack.c.h.b16 %v211
  %v324 = vunpack.c.l.b16 %v212
  %v325 = vunpack.c.h.b16 %v212
  %v326 = vunpack.c.l.b16 %v213
  %v327 = vunpack.c.h.b16 %v213
  %v328 = vunpack.c.l.b16 %v214
  %v329 = vunpack.c.h.b16 %v214
  %v330 = vpack.c.b16 %v268, %v266
  %v331 = vpack.c.b16 %v269, %v267
  %v332 = vpack.c.b16 %v272, %v270
  %v333 = vpack.c.b16 %v273, %v271
  %v334 = vpack.c.b16 %v276, %v274
  %v335 = vpack.c.b16 %v277, %v275
  %v336 = vpack.c.b16 %v280, %v278
  %v337 = vpack.c.b16 %v281, %v279
  %v338 = vpack.c.b16 %v284, %v282
  %v339 = vpack.c.b16 %v285, %v283
  %v340 = vpack.c.b16 %v288, %v286
  %v341 = vpack.c.b16 %v289, %v287
  %v342 = vpack.c.b16 %v292, %v290
  %v343 = vpack.c.b16 %v293, %v291
  %v344 = vpack.c.b16 %v296, %v294
  %v345 = vpack.c.b16 %v297, %v295
  %v346 = vpack.c.b16 %v300, %v298
  %v347 = vpack.c.b16 %v301, %v299
  %v348 = vpack.c.b16 %v304, %v302
  %v349 = vpack.c.b16 %v305, %v303
  %v350 = vpack.c.b16 %v308, %v306
  %v351 = vpack.c.b16 %v309, %v307
  %v352 = vpack.c.b16 %v312, %v310
  %v353 = vpack.c.b16 %v313, %v311
  %v354 = vpack.c.b16 %v316, %v314
  %v355 = vpack.c.b16 %v317, %v315
  %v356 = vpack.c.b16 %v320, %v318
  %v357 = vpack.c.b16 %v321, %v319
  %v358 = vpack.c.b16 %v324, %v322
  %v359 = vpack.c.b16 %v325, %v323
  %v360 = vpack.c.b16 %v328, %v326
  %v361 = vpack.c.b16 %v329, %v327
  %394 = vmatprep.subr.bf16.mxu0 %v331
  %395 = vmatpush1.bf16.msra.mxu0 %v330
  %396 = vmatprep.subr.bf16.mxu0 %v333
  %397 = vmatpush1.bf16.msra.mxu0 %v332
  %398 = vmatprep.subr.bf16.mxu0 %v335
  %399 = vmatpush1.bf16.msra.mxu0 %v334
  %400 = vmatprep.subr.bf16.mxu0 %v337
  %401 = vmatpush1.bf16.msra.mxu0 %v336
  %402 = vmatprep.subr.bf16.mxu0 %v339
  %403 = vmatpush1.bf16.msra.mxu0 %v338
  %404 = vmatprep.subr.bf16.mxu0 %v341
  %405 = vmatpush1.bf16.msra.mxu0 %v340
  %406 = vmatprep.subr.bf16.mxu0 %v343
  %407 = vmatpush1.bf16.msra.mxu0 %v342
  %408 = vmatprep.subr.bf16.mxu0 %v345
  %409 = vmatpush1.bf16.msra.mxu0 %v344
  %410 = vmatprep.subr.bf16.mxu0 %v347
  %411 = vmatpush1.bf16.msra.mxu0 %v346
  %412 = vmatprep.subr.bf16.mxu0 %v349
  %413 = vmatpush1.bf16.msra.mxu0 %v348
  %414 = vmatprep.subr.bf16.mxu0 %v351
  %415 = vmatpush1.bf16.msra.mxu0 %v350
  %416 = vmatprep.subr.bf16.mxu0 %v353
  %417 = vmatpush1.bf16.msra.mxu0 %v352
  %418 = vmatprep.subr.bf16.mxu0 %v355
  %419 = vmatpush1.bf16.msra.mxu0 %v354
  %420 = vmatprep.subr.bf16.mxu0 %v357
  %421 = vmatpush1.bf16.msra.mxu0 %v356
  %422 = vmatprep.subr.bf16.mxu0 %v359
  %423 = vmatpush1.bf16.msra.mxu0 %v358
  %424 = vmatprep.subr.bf16.mxu0 %v361
  %425 = vmatpush1.bf16.msra.mxu0 %v360
  %426 = vmatprep.mubr.bf16.mxu0 %v231
  %427 = vmatmul.mubr.bf16.gmra.mrb[0].mxu0 %v230
  %v428 = vpop.f32.mrb[0].mxu0
  %v429 = vadd.f32 %v220, %v428
  %v430 = vpop.f32.mrb[0].mxu0
  %v431 = vadd.f32 %v224, %v430
  %v432 = vpop.f32.mrb[0].mxu0
  %v433 = vpop.f32.mrb[0].mxu0
  %434 = vdwg.mxu0
  %435 = vst [vmem:[%s5] sm:$0xff] %v429
  %436 = vst [vmem:[%s5 + $0x8] sm:$0xff] %v431
  // Predicated region
  $region22: #{extract_forward.17} parent=0 // pred_check
    _
  $region23: #{extract_forward.17} parent=0 // pred_check_branch
    %438 = sbr.rel (0) target = $region25
  $region24: #{extract_forward.17} parent=0 // pred_region
    _
  $region25: #{extract_forward.17} parent=0 // pred_fallthru
    _
  // Predicated region
  $region26: #{extract_forward.17} parent=0 // pred_check
    _
  $region27: #{extract_forward.17} parent=0 // pred_check_branch
    %440 = sbr.rel (0) target = $region29
  $region28: #{extract_forward.17} parent=0 // pred_region
    _
  $region29: #{extract_forward.17} parent=0 // pred_fallthru
    _

</llo_original>
